<compile_context>
chip_gen: v6e
topology: v6e:2x2x1
jax: 0.10.0
libtpu: 0.0.40
codegen_flags: <defaults>
</compile_context>

<pallas_src>
import functools
import math

import numpy as np
import jax
import jax.numpy as jnp
from jax.experimental import pallas as pl
from jax.experimental.pallas import tpu as pltpu

_BN_EVAL_SCALE = 1.0 / math.sqrt(1.0 + 1e-5)   # BN eval: mean=0, var=1, g=1, b=0
_EPS = 1e-12                                    # F.normalize default eps
_TAPS = tuple((dh, dw) for dh in (-1, 0, 1) for dw in (-1, 0, 1))  # (kh-1, kw-1)


def _full_spec(shape):
    """Full-array block (block dims == array dims, allowed by the TPU rule)."""
    return pl.BlockSpec(shape, lambda i, _n=len(shape): (0,) * _n)


# --------------------------------------------------------------------------
# Kernel 1: fused conv1 -> BN -> ReLU -> conv2 -> BN -> ReLU
#   activations live as (R, 64) rows ordered (b, h, w); each conv = one GEMM
#   on an in-kernel im2col built from shifted slices of a zero-haloed scratch.
# --------------------------------------------------------------------------

def _phase_conv_kernel(x_ref, m_ref, w1_ref, b1_ref, w2_ref, b2_ref, o_ref,
                       pad_ref, *, R, PAD, deltas):
    """x_ref: (R, 64) bf16 (input channels zero-padded to 64);
    m_ref: (9, R, 1) bf16 0/1 boundary masks per tap;
    w*_ref: (576, 64) bf16 im2col weights (BN folded, rows = tap*64 + cin);
    b*_ref: (1, 64) f32 (BN folded);  pad_ref: (R+2*PAD, 64) bf16 scratch."""

    # Zero halo + body, then drop the input into the middle of the scratch.
    pad_ref[...] = jnp.zeros_like(pad_ref)
    pad_ref[PAD:PAD + R, :] = x_ref[...]

    def conv(w_ref, b_ref):
        cols = []
        for tap, delta in enumerate(deltas):       # static unroll, 9 taps
            sl = pad_ref[PAD + delta:PAD + delta + R, :]
            if delta != 0:
                sl = sl * m_ref[tap]               # zero h/w-boundary leakage
            cols.append(sl)
        patches = jnp.concatenate(cols, axis=1)    # (R, 9*64) bf16
        out = jnp.dot(patches, w_ref[...],
                      preferred_element_type=jnp.float32) + b_ref[...]
        return jnp.maximum(out, 0.0)

    a1 = conv(w1_ref, b1_ref)
    pad_ref[PAD:PAD + R, :] = a1.astype(jnp.bfloat16)   # halo rows stay zero
    a2 = conv(w2_ref, b2_ref)
    o_ref[...] = a2.astype(o_ref.dtype)


def phase_conv(x2d, masks, w1, b1, w2, b2, *, Wd):
    R = x2d.shape[0]
    PAD = Wd + 1                                   # max |row shift| of a tap
    deltas = tuple(dh * Wd + dw for dh, dw in _TAPS)
    return pl.pallas_call(
        functools.partial(_phase_conv_kernel, R=R, PAD=PAD, deltas=deltas),
        out_shape=jax.ShapeDtypeStruct((R, 64), jnp.bfloat16),
        grid=(1,),
        in_specs=[_full_spec(x2d.shape),
                  _full_spec(masks.shape),
                  _full_spec(w1.shape),
                  _full_spec(b1.shape),
                  _full_spec(w2.shape),
                  _full_spec(b2.shape)],
        out_specs=_full_spec((R, 64)),
        scratch_shapes=[pltpu.VMEM((R + 2 * PAD, 64), jnp.bfloat16)],
        compiler_params=pltpu.CompilerParams(
            dimension_semantics=("arbitrary",)),
    )(x2d, masks, w1, b1, w2, b2)


# --------------------------------------------------------------------------
# Kernel 2: flatten -> f1 -> f2 -> Theta-norm -> eff.channel -> BeamNet -> W-norm
#   single lane-dense (B, 128) output slab: [theta (2N) | W (2MK) | zeros]
# --------------------------------------------------------------------------

def _fc_beam_kernel(a_ref, f1w_ref, f1b_ref, f2w_ref, f2b_ref, at_ref, g_ref,
                    b1w_ref, b1b_ref, b2w_ref, b2b_ref, b3w_ref, b3b_ref,
                    o_ref, *, N, MK2, w_scale):
    # PhaseNet FC head: Linear -> BN(folded) -> ReLU -> Linear
    h = jnp.dot(a_ref[...], f1w_ref[...],
                preferred_element_type=jnp.float32) + f1b_ref[...]
    h = jnp.maximum(h, 0.0)
    phase = jnp.dot(h.astype(jnp.bfloat16), f2w_ref[...],
                    preferred_element_type=jnp.float32) + f2b_ref[...]

    # Theta = F.normalize over (re, im) pairs.
    re = phase[:, :N]
    im = phase[:, N:]
    denom = jnp.maximum(jnp.sqrt(re * re + im * im), _EPS)
    theta = jnp.concatenate([re / denom, im / denom], axis=1)      # (B, 2N)

    # Effective channel: eff[b, k*2M+m] = sum_c AT[b, k*2M+m, c] * theta[b, c]
    eff = jnp.sum(at_ref[...] * theta[:, None, :], axis=-1)        # (B, 2MK)

    # BeamNet: Linear -> BN -> ReLU -> Linear -> BN -> ReLU -> Linear
    h = jnp.dot(eff.astype(jnp.bfloat16), b1w_ref[...],
                preferred_element_type=jnp.float32) + b1b_ref[...]
    h = jnp.maximum(h, 0.0)
    h = jnp.dot(h.astype(jnp.bfloat16), b2w_ref[...],
                preferred_element_type=jnp.float32) + b2b_ref[...]
    h = jnp.maximum(h, 0.0)
    w3 = jnp.dot(h.astype(jnp.bfloat16), b3w_ref[...],
                 preferred_element_type=jnp.float32) + b3b_ref[...]  # (B, 2MK)

    # F.normalize over each group of K consecutive features (rows of
    # W.reshape(2M, K)); constant group-indicator matmul, no lane<->sublane
    # reshape needed.
    nrm2 = jnp.dot(w3 * w3, g_ref[...], preferred_element_type=jnp.float32)
    wn = (w3 / jnp.maximum(jnp.sqrt(nrm2), _EPS)) * w_scale

    pad = o_ref.shape[1] - (2 * N + MK2)
    o_ref[...] = jnp.concatenate(
        [theta, wn, jnp.zeros((theta.shape[0], pad), jnp.float32)],
        axis=1).astype(o_ref.dtype)


def fc_beam(a, f1w, f1b, f2w, f2b, AT, G, b1w, b1b, b2w, b2b, b3w, b3b,
            *, N, MK2, w_scale):
    Bsz = a.shape[0]
    args = (a, f1w, f1b, f2w, f2b, AT, G, b1w, b1b, b2w, b2b, b3w, b3b)
    return pl.pallas_call(
        functools.partial(_fc_beam_kernel, N=N, MK2=MK2, w_scale=w_scale),
        out_shape=jax.ShapeDtypeStruct((Bsz, 128), jnp.float32),
        grid=(1,),
        in_specs=[_full_spec(arr.shape) for arr in args],
        out_specs=_full_spec((Bsz, 128)),
        compiler_params=pltpu.CompilerParams(
            dimension_semantics=("arbitrary",)),
    )(*args)


# --------------------------------------------------------------------------
# JAX glue (layout plumbing only; all matmul/normalize work is in the kernels)
# --------------------------------------------------------------------------

def _tap_masks(B, Hh, Ww):
    """(9, R, 1) 0/1 masks: 1 where the tap's source pixel is in-bounds for
    the destination row (rows ordered (b, h, w))."""
    R = B * Hh * Ww
    rem = np.arange(R) % (Hh * Ww)
    h, w = rem // Ww, rem % Ww
    m = np.zeros((9, R, 1), np.float32)
    for t, (dh, dw) in enumerate(_TAPS):
        m[t, :, 0] = ((h + dh >= 0) & (h + dh < Hh)
                      & (w + dw >= 0) & (w + dw < Ww)).astype(np.float32)
    return m


def dnn_forward(prep, x, H, d, *, M, N, K, Pt):
    """Mirrors DNN.forward. x: (B,2K,M,N) f32, H: (B,M,N,K) c64, d: (B,K,M) c64."""
    # TODO(synk): BatchNorm layers are evaluated in eval mode with default
    # running stats (mean=0, var=1, gamma=1, beta=0), folded into the weights;
    # training-mode batch statistics are not reproduced.
    B = x.shape[0]
    Wd = N + 1
    R = B * M * Wd
    MK2 = 2 * M * K

    # ---- input assembly (matches the torch reshapes/concat) ----
    d = d.reshape(B, 1, K, -1)
    d = jnp.concatenate([jnp.real(d), jnp.imag(d)], axis=1)        # (B,2,K,M)
    d = d.reshape(B, 2 * K, -1, 1).astype(jnp.float32)
    x = jnp.concatenate([x, d], axis=3)                            # (B,2K,M,N+1)
    x2d = x.transpose(0, 2, 3, 1).reshape(R, 2 * K).astype(jnp.bfloat16)
    x2d = jnp.pad(x2d, ((0, 0), (0, 64 - 2 * K)))                  # (R, 64)

    # Constant boundary masks / group-indicator matrix (static shapes only).
    masks = jnp.asarray(_tap_masks(B, M, Wd), dtype=jnp.bfloat16)
    G = jnp.asarray(np.kron(np.eye(2 * M, dtype=np.float32),
                            np.ones((K, K), np.float32)))          # (2MK, 2MK)

    # ---- kernel 1: fused conv stack ----
    act = phase_conv(x2d, masks, prep['c1w'], prep['c1b'],
                     prep['c2w'], prep['c2b'], Wd=Wd)              # (R, 64) bf16
    a_fc = act.reshape(B, M * Wd * 64)        # flatten in (h, w, c) order;
                                              # f1 weight columns were permuted
                                              # to match at prep time.

    # ---- effective-channel matrix A_k^T (real 2M x 2N per user, k-major) ----
    Hr = jnp.real(H).transpose(0, 3, 1, 2)                         # (B,K,M,N)
    Hi = jnp.imag(H).transpose(0, 3, 1, 2)
    top = jnp.concatenate([Hr, -Hi], axis=3)                       # (B,K,M,2N)
    bot = jnp.concatenate([Hi, Hr], axis=3)                        # (B,K,M,2N)
    AT = jnp.concatenate([top, bot], axis=2).reshape(B, MK2, 2 * N)
    AT = AT.astype(jnp.float32)

    # ---- kernel 2: FC head + Theta norm + eff channel + BeamNet + W norm ----
    out = fc_beam(a_fc, prep['f1w'], prep['f1b'],
                  prep['f2w'], prep['f2b'], AT, G,
                  prep['b1w'], prep['b1b'],
                  prep['b2w'], prep['b2b'],
                  prep['b3w'], prep['b3b'],
                  N=N, MK2=MK2, w_scale=math.sqrt(Pt) / K)         # (B, 128)

    theta_flat = out[:, :2 * N]
    Wn = out[:, 2 * N:2 * N + MK2]
    Theta = jnp.stack([theta_flat[:, :N], theta_flat[:, N:]], axis=2)  # (B,N,2)
    W = Wn.reshape(B, 2 * M, K)
    return Theta, W


@functools.partial(jax.jit, static_argnames=("M", "N", "L", "K", "Pt"))
def dnn_module_forward(prep1, prep2, x1, H, d1, x2, C, d2, *, M, N, L, K, Pt):
    Theta1, W = dnn_forward(prep1, x1, H, d1, M=M, N=N, K=K, Pt=Pt)
    Theta2, Fm = dnn_forward(prep2, x2, C, d2, M=L, N=N, K=K, Pt=Pt)
    return Theta1, W, Theta2, Fm


# --------------------------------------------------------------------------
# Parameters: torch-layout init + one-time kernel-layout prep (BN fold, bf16,
# im2col weight layout, flatten-order permutation). Prep runs once, outside jit.
# --------------------------------------------------------------------------

def init_dnn_params(key, M, N, K):
    def w(k, shape, s=0.05):
        return jax.random.normal(k, shape, jnp.float32) * s
    ks = jax.random.split(key, 14)
    return {
        'c1w': w(ks[0], (64, 2 * K, 3, 3)),
        'c1b': w(ks[1], (64,), 0.01),
        'c2w': w(ks[2], (64, 64, 3, 3)),
        'c2b': w(ks[3], (64,), 0.01),
        'f1w': w(ks[4], (4 * N, 64 * M * (N + 1))),
        'f1b': w(ks[5], (4 * N,), 0.01),
        'f2w': w(ks[6], (2 * N, 4 * N)),
        'f2b': w(ks[7], (2 * N,), 0.01),
        'b1w': w(ks[8], (100, 2 * K * M)),
        'b1b': w(ks[9], (100,), 0.01),
        'b2w': w(ks[10], (100, 100)),
        'b2b': w(ks[11], (100,), 0.01),
        'b3w': w(ks[12], (2 * M * K, 100)),
        'b3b': w(ks[13], (2 * M * K,), 0.01),
    }


def prep_dnn_params(p, M, N, K):
    s = _BN_EVAL_SCALE
    Wd = N + 1
    D1 = 64 * M * Wd

    def conv_im2col(w):
        # (Cout, Cin, 3, 3) -> (9*64, Cout), rows = tap*64 + cin, zero-padded
        # on the input-channel axis so both convs share one 64-lane code path.
        cout, cin = w.shape[0], w.shape[1]
        w9 = jnp.transpose(w, (2, 3, 1, 0)).reshape(9, cin, cout)
        if cin < 64:
            w9 = jnp.pad(w9, ((0, 0), (0, 64 - cin), (0, 0)))
        return w9.reshape(9 * 64, cout)

    # f1 weight columns permuted from torch's (c, h, w) flatten order to the
    # kernel's (h, w, c) order, then transposed for the GEMM.
    f1w = (p['f1w'] * s).reshape(4 * N, 64, M, Wd).transpose(0, 2, 3, 1)
    f1w = f1w.reshape(4 * N, D1).T

    return {
        'c1w': (conv_im2col(p['c1w']) * s).astype(jnp.bfloat16),
        'c1b': (p['c1b'] * s).reshape(1, 64).astype(jnp.float32),
        'c2w': (conv_im2col(p['c2w']) * s).astype(jnp.bfloat16),
        'c2b': (p['c2b'] * s).reshape(1, 64).astype(jnp.float32),
        'f1w': f1w.astype(jnp.bfloat16),
        'f1b': (p['f1b'] * s).reshape(1, 4 * N).astype(jnp.float32),
        'f2w': p['f2w'].T.astype(jnp.bfloat16),
        'f2b': p['f2b'].reshape(1, 2 * N).astype(jnp.float32),
        'b1w': (p['b1w'] * s).T.astype(jnp.bfloat16),
        'b1b': (p['b1b'] * s).reshape(1, 100).astype(jnp.float32),
        'b2w': (p['b2w'] * s).T.astype(jnp.bfloat16),
        'b2b': (p['b2b'] * s).reshape(1, 100).astype(jnp.float32),
        'b3w': p['b3w'].T.astype(jnp.bfloat16),
        'b3b': p['b3b'].reshape(1, 2 * M * K).astype(jnp.float32),
    }


def _complex(key, shape):
    kr, ki = jax.random.split(key)
    return (jax.random.normal(kr, shape, jnp.float32)
            + 1j * jax.random.normal(ki, shape, jnp.float32))


if __name__ == "__main__":
    M, N, L, K = 4, 8, 3, 3
    Pt = 10.0
    B = 2

    key = jax.random.PRNGKey(0)
    kp1, kp2, kx1, kx2, kd1, kd2, kh, kc = jax.random.split(key, 8)

    params1 = init_dnn_params(kp1, M, N, K)   # phase_I  : DNN(M, N, K, Pt)
    params2 = init_dnn_params(kp2, L, N, K)   # phase_II : DNN(L, N, K, Pt)
    prep1 = prep_dnn_params(params1, M, N, K)
    prep2 = prep_dnn_params(params2, L, N, K)

    x1 = jax.random.normal(kx1, (B, 2 * K, M, N), jnp.float32)
    x2 = jax.random.normal(kx2, (B, 2 * K, L, N), jnp.float32)
    d1 = _complex(kd1, (B, K, M))
    d2 = _complex(kd2, (B, K, L))
    H = _complex(kh, (B, M, N, K))
    C = _complex(kc, (B, L, N, K))

    Theta1, W, Theta2, Fm = dnn_module_forward(
        prep1, prep2, x1, H, d1, x2, C, d2, M=M, N=N, L=L, K=K, Pt=Pt)

    for out in (Theta1, W, Theta2, Fm):
        jax.block_until_ready(out)

    assert Theta1.shape == (B, N, 2)
    assert W.shape == (B, 2 * M, K)
    assert Theta2.shape == (B, N, 2)
    assert Fm.shape == (B, 2 * L, K)
    print("KERNEL_OK")
</pallas_src>

<mosaic_0001>
module attributes {stable_mosaic.version = 11 : i64} {
  func.func @_phase_conv_kernel(%arg0: i32, %arg1: memref<54x64xbf16, #tpu.memory_space<vmem>>, %arg2: memref<9x54x1xbf16, #tpu.memory_space<vmem>>, %arg3: memref<576x64xbf16, #tpu.memory_space<vmem>>, %arg4: memref<1x64xf32, #tpu.memory_space<vmem>>, %arg5: memref<576x64xbf16, #tpu.memory_space<vmem>>, %arg6: memref<1x64xf32, #tpu.memory_space<vmem>>, %arg7: memref<54x64xbf16, #tpu.memory_space<vmem>>, %arg8: memref<74x64xbf16, #tpu.memory_space<vmem>>) attributes {dimension_semantics = [#tpu.dimension_semantics<arbitrary>], iteration_bounds = array<i64: 1>, scalar_prefetch = 0 : i64, scratch_operands = 1 : i64, tpu.core_type = #tpu.core_type<tc>, window_params = [{pipeline_mode = #tpu.pipeline_mode<synchronous>, transform_indices = @transform_0, window_bounds = array<i64: 54, 64>}, {pipeline_mode = #tpu.pipeline_mode<synchronous>, transform_indices = @transform_1, window_bounds = array<i64: 9, 54, 1>}, {pipeline_mode = #tpu.pipeline_mode<synchronous>, transform_indices = @transform_2, window_bounds = array<i64: 576, 64>}, {pipeline_mode = #tpu.pipeline_mode<synchronous>, transform_indices = @transform_3, window_bounds = array<i64: 1, 64>}, {pipeline_mode = #tpu.pipeline_mode<synchronous>, transform_indices = @transform_4, window_bounds = array<i64: 576, 64>}, {pipeline_mode = #tpu.pipeline_mode<synchronous>, transform_indices = @transform_5, window_bounds = array<i64: 1, 64>}, {pipeline_mode = #tpu.pipeline_mode<synchronous>, transform_indices = @transform_6, window_bounds = array<i64: 54, 64>}]} {
    %cst = arith.constant 0.000000e+00 : bf16
    %0 = vector.broadcast %cst : bf16 to vector<74x64xbf16>
    %c0 = arith.constant 0 : index
    %c0_0 = arith.constant 0 : index
    %1 = vector.load %arg8[%c0, %c0_0] : memref<74x64xbf16, #tpu.memory_space<vmem>>, vector<74x64xbf16>
    tpu.vector_store %arg8[%c0, %c0_0], %0 {strides = array<i32>} : memref<74x64xbf16, #tpu.memory_space<vmem>>, vector<74x64xbf16>,
    %c0_1 = arith.constant 0 : index
    %c0_2 = arith.constant 0 : index
    %2 = vector.load %arg1[%c0_1, %c0_2] : memref<54x64xbf16, #tpu.memory_space<vmem>>, vector<54x64xbf16>
    %c10 = arith.constant 10 : index
    %c0_3 = arith.constant 0 : index
    %3 = vector.load %arg8[%c10, %c0_3] : memref<74x64xbf16, #tpu.memory_space<vmem>>, vector<54x64xbf16>
    tpu.vector_store %arg8[%c10, %c0_3], %2 {strides = array<i32>} : memref<74x64xbf16, #tpu.memory_space<vmem>>, vector<54x64xbf16>,
    %c0_4 = arith.constant 0 : index
    %c0_5 = arith.constant 0 : index
    %4 = vector.load %arg8[%c0_4, %c0_5] : memref<74x64xbf16, #tpu.memory_space<vmem>>, vector<54x64xbf16>
    %c0_6 = arith.constant 0 : index
    %c0_7 = arith.constant 0 : index
    %c0_8 = arith.constant 0 : index
    %5 = vector.load %arg2[%c0_6, %c0_7, %c0_8] : memref<9x54x1xbf16, #tpu.memory_space<vmem>>, vector<1x54x1xbf16>
    %6 = vector.shape_cast %5 : vector<1x54x1xbf16> to vector<54x1xbf16>
    %7 = vector.broadcast %6 : vector<54x1xbf16> to vector<54x64xbf16>
    %8 = arith.mulf %4, %7 : vector<54x64xbf16>
    %c1 = arith.constant 1 : index
    %c0_9 = arith.constant 0 : index
    %9 = vector.load %arg8[%c1, %c0_9] : memref<74x64xbf16, #tpu.memory_space<vmem>>, vector<54x64xbf16>
    %c1_10 = arith.constant 1 : index
    %c0_11 = arith.constant 0 : index
    %c0_12 = arith.constant 0 : index
    %10 = vector.load %arg2[%c1_10, %c0_11, %c0_12] : memref<9x54x1xbf16, #tpu.memory_space<vmem>>, vector<1x54x1xbf16>
    %11 = vector.shape_cast %10 : vector<1x54x1xbf16> to vector<54x1xbf16>
    %12 = vector.broadcast %11 : vector<54x1xbf16> to vector<54x64xbf16>
    %13 = arith.mulf %9, %12 : vector<54x64xbf16>
    %c2 = arith.constant 2 : index
    %c0_13 = arith.constant 0 : index
    %14 = vector.load %arg8[%c2, %c0_13] : memref<74x64xbf16, #tpu.memory_space<vmem>>, vector<54x64xbf16>
    %c2_14 = arith.constant 2 : index
    %c0_15 = arith.constant 0 : index
    %c0_16 = arith.constant 0 : index
    %15 = vector.load %arg2[%c2_14, %c0_15, %c0_16] : memref<9x54x1xbf16, #tpu.memory_space<vmem>>, vector<1x54x1xbf16>
    %16 = vector.shape_cast %15 : vector<1x54x1xbf16> to vector<54x1xbf16>
    %17 = vector.broadcast %16 : vector<54x1xbf16> to vector<54x64xbf16>
    %18 = arith.mulf %14, %17 : vector<54x64xbf16>
    %c9 = arith.constant 9 : index
    %c0_17 = arith.constant 0 : index
    %19 = vector.load %arg8[%c9, %c0_17] : memref<74x64xbf16, #tpu.memory_space<vmem>>, vector<54x64xbf16>
    %c3 = arith.constant 3 : index
    %c0_18 = arith.constant 0 : index
    %c0_19 = arith.constant 0 : index
    %20 = vector.load %arg2[%c3, %c0_18, %c0_19] : memref<9x54x1xbf16, #tpu.memory_space<vmem>>, vector<1x54x1xbf16>
    %21 = vector.shape_cast %20 : vector<1x54x1xbf16> to vector<54x1xbf16>
    %22 = vector.broadcast %21 : vector<54x1xbf16> to vector<54x64xbf16>
    %23 = arith.mulf %19, %22 : vector<54x64xbf16>
    %c10_20 = arith.constant 10 : index
    %c0_21 = arith.constant 0 : index
    %24 = vector.load %arg8[%c10_20, %c0_21] : memref<74x64xbf16, #tpu.memory_space<vmem>>, vector<54x64xbf16>
    %c11 = arith.constant 11 : index
    %c0_22 = arith.constant 0 : index
    %25 = vector.load %arg8[%c11, %c0_22] : memref<74x64xbf16, #tpu.memory_space<vmem>>, vector<54x64xbf16>
    %c5 = arith.constant 5 : index
    %c0_23 = arith.constant 0 : index
    %c0_24 = arith.constant 0 : index
    %26 = vector.load %arg2[%c5, %c0_23, %c0_24] : memref<9x54x1xbf16, #tpu.memory_space<vmem>>, vector<1x54x1xbf16>
    %27 = vector.shape_cast %26 : vector<1x54x1xbf16> to vector<54x1xbf16>
    %28 = vector.broadcast %27 : vector<54x1xbf16> to vector<54x64xbf16>
    %29 = arith.mulf %25, %28 : vector<54x64xbf16>
    %c18 = arith.constant 18 : index
    %c0_25 = arith.constant 0 : index
    %30 = vector.load %arg8[%c18, %c0_25] : memref<74x64xbf16, #tpu.memory_space<vmem>>, vector<54x64xbf16>
    %c6 = arith.constant 6 : index
    %c0_26 = arith.constant 0 : index
    %c0_27 = arith.constant 0 : index
    %31 = vector.load %arg2[%c6, %c0_26, %c0_27] : memref<9x54x1xbf16, #tpu.memory_space<vmem>>, vector<1x54x1xbf16>
    %32 = vector.shape_cast %31 : vector<1x54x1xbf16> to vector<54x1xbf16>
    %33 = vector.broadcast %32 : vector<54x1xbf16> to vector<54x64xbf16>
    %34 = arith.mulf %30, %33 : vector<54x64xbf16>
    %c19 = arith.constant 19 : index
    %c0_28 = arith.constant 0 : index
    %35 = vector.load %arg8[%c19, %c0_28] : memref<74x64xbf16, #tpu.memory_space<vmem>>, vector<54x64xbf16>
    %c7 = arith.constant 7 : index
    %c0_29 = arith.constant 0 : index
    %c0_30 = arith.constant 0 : index
    %36 = vector.load %arg2[%c7, %c0_29, %c0_30] : memref<9x54x1xbf16, #tpu.memory_space<vmem>>, vector<1x54x1xbf16>
    %37 = vector.shape_cast %36 : vector<1x54x1xbf16> to vector<54x1xbf16>
    %38 = vector.broadcast %37 : vector<54x1xbf16> to vector<54x64xbf16>
    %39 = arith.mulf %35, %38 : vector<54x64xbf16>
    %c20 = arith.constant 20 : index
    %c0_31 = arith.constant 0 : index
    %40 = vector.load %arg8[%c20, %c0_31] : memref<74x64xbf16, #tpu.memory_space<vmem>>, vector<54x64xbf16>
    %c8 = arith.constant 8 : index
    %c0_32 = arith.constant 0 : index
    %c0_33 = arith.constant 0 : index
    %41 = vector.load %arg2[%c8, %c0_32, %c0_33] : memref<9x54x1xbf16, #tpu.memory_space<vmem>>, vector<1x54x1xbf16>
    %42 = vector.shape_cast %41 : vector<1x54x1xbf16> to vector<54x1xbf16>
    %43 = vector.broadcast %42 : vector<54x1xbf16> to vector<54x64xbf16>
    %44 = arith.mulf %40, %43 : vector<54x64xbf16>
    %45 = tpu.concatenate %8, %13, %18, %23, %24, %29, %34, %39, %44 in 1 : vector<54x64xbf16>, vector<54x64xbf16>, vector<54x64xbf16>, vector<54x64xbf16>, vector<54x64xbf16>, vector<54x64xbf16>, vector<54x64xbf16>, vector<54x64xbf16>, vector<54x64xbf16> -> vector<54x576xbf16>
    %c0_34 = arith.constant 0 : index
    %c0_35 = arith.constant 0 : index
    %46 = vector.load %arg3[%c0_34, %c0_35] : memref<576x64xbf16, #tpu.memory_space<vmem>>, vector<576x64xbf16>
    %cst_36 = arith.constant dense<0.000000e+00> : vector<54x64xf32>
    %47 = tpu.matmul %45, %46, %cst_36 {dimension_numbers = #tpu.dot_dimension_numbers<[1], [0], [0], [1], [0, 0, 1, 1], [], []>} : vector<54x576xbf16>, vector<576x64xbf16>, vector<54x64xf32> -> vector<54x64xf32>
    %c0_37 = arith.constant 0 : index
    %c0_38 = arith.constant 0 : index
    %48 = vector.load %arg4[%c0_37, %c0_38] : memref<1x64xf32, #tpu.memory_space<vmem>>, vector<1x64xf32>
    %49 = vector.broadcast %48 : vector<1x64xf32> to vector<54x64xf32>
    %50 = arith.addf %47, %49 : vector<54x64xf32>
    %cst_39 = arith.constant 0.000000e+00 : f32
    %51 = vector.broadcast %cst_39 : f32 to vector<54x64xf32>
    %52 = arith.maximumf %50, %51 : vector<54x64xf32>
    %53 = arith.truncf %52 : vector<54x64xf32> to vector<54x64xbf16>
    %c10_40 = arith.constant 10 : index
    %c0_41 = arith.constant 0 : index
    %54 = vector.load %arg8[%c10_40, %c0_41] : memref<74x64xbf16, #tpu.memory_space<vmem>>, vector<54x64xbf16>
    tpu.vector_store %arg8[%c10_40, %c0_41], %53 {strides = array<i32>} : memref<74x64xbf16, #tpu.memory_space<vmem>>, vector<54x64xbf16>,
    %c0_42 = arith.constant 0 : index
    %c0_43 = arith.constant 0 : index
    %55 = vector.load %arg8[%c0_42, %c0_43] : memref<74x64xbf16, #tpu.memory_space<vmem>>, vector<54x64xbf16>
    %c0_44 = arith.constant 0 : index
    %c0_45 = arith.constant 0 : index
    %c0_46 = arith.constant 0 : index
    %56 = vector.load %arg2[%c0_44, %c0_45, %c0_46] : memref<9x54x1xbf16, #tpu.memory_space<vmem>>, vector<1x54x1xbf16>
    %57 = vector.shape_cast %56 : vector<1x54x1xbf16> to vector<54x1xbf16>
    %58 = vector.broadcast %57 : vector<54x1xbf16> to vector<54x64xbf16>
    %59 = arith.mulf %55, %58 : vector<54x64xbf16>
    %c1_47 = arith.constant 1 : index
    %c0_48 = arith.constant 0 : index
    %60 = vector.load %arg8[%c1_47, %c0_48] : memref<74x64xbf16, #tpu.memory_space<vmem>>, vector<54x64xbf16>
    %c1_49 = arith.constant 1 : index
    %c0_50 = arith.constant 0 : index
    %c0_51 = arith.constant 0 : index
    %61 = vector.load %arg2[%c1_49, %c0_50, %c0_51] : memref<9x54x1xbf16, #tpu.memory_space<vmem>>, vector<1x54x1xbf16>
    %62 = vector.shape_cast %61 : vector<1x54x1xbf16> to vector<54x1xbf16>
    %63 = vector.broadcast %62 : vector<54x1xbf16> to vector<54x64xbf16>
    %64 = arith.mulf %60, %63 : vector<54x64xbf16>
    %c2_52 = arith.constant 2 : index
    %c0_53 = arith.constant 0 : index
    %65 = vector.load %arg8[%c2_52, %c0_53] : memref<74x64xbf16, #tpu.memory_space<vmem>>, vector<54x64xbf16>
    %c2_54 = arith.constant 2 : index
    %c0_55 = arith.constant 0 : index
    %c0_56 = arith.constant 0 : index
    %66 = vector.load %arg2[%c2_54, %c0_55, %c0_56] : memref<9x54x1xbf16, #tpu.memory_space<vmem>>, vector<1x54x1xbf16>
    %67 = vector.shape_cast %66 : vector<1x54x1xbf16> to vector<54x1xbf16>
    %68 = vector.broadcast %67 : vector<54x1xbf16> to vector<54x64xbf16>
    %69 = arith.mulf %65, %68 : vector<54x64xbf16>
    %c9_57 = arith.constant 9 : index
    %c0_58 = arith.constant 0 : index
    %70 = vector.load %arg8[%c9_57, %c0_58] : memref<74x64xbf16, #tpu.memory_space<vmem>>, vector<54x64xbf16>
    %c3_59 = arith.constant 3 : index
    %c0_60 = arith.constant 0 : index
    %c0_61 = arith.constant 0 : index
    %71 = vector.load %arg2[%c3_59, %c0_60, %c0_61] : memref<9x54x1xbf16, #tpu.memory_space<vmem>>, vector<1x54x1xbf16>
    %72 = vector.shape_cast %71 : vector<1x54x1xbf16> to vector<54x1xbf16>
    %73 = vector.broadcast %72 : vector<54x1xbf16> to vector<54x64xbf16>
    %74 = arith.mulf %70, %73 : vector<54x64xbf16>
    %c10_62 = arith.constant 10 : index
    %c0_63 = arith.constant 0 : index
    %75 = vector.load %arg8[%c10_62, %c0_63] : memref<74x64xbf16, #tpu.memory_space<vmem>>, vector<54x64xbf16>
    %c11_64 = arith.constant 11 : index
    %c0_65 = arith.constant 0 : index
    %76 = vector.load %arg8[%c11_64, %c0_65] : memref<74x64xbf16, #tpu.memory_space<vmem>>, vector<54x64xbf16>
    %c5_66 = arith.constant 5 : index
    %c0_67 = arith.constant 0 : index
    %c0_68 = arith.constant 0 : index
    %77 = vector.load %arg2[%c5_66, %c0_67, %c0_68] : memref<9x54x1xbf16, #tpu.memory_space<vmem>>, vector<1x54x1xbf16>
    %78 = vector.shape_cast %77 : vector<1x54x1xbf16> to vector<54x1xbf16>
    %79 = vector.broadcast %78 : vector<54x1xbf16> to vector<54x64xbf16>
    %80 = arith.mulf %76, %79 : vector<54x64xbf16>
    %c18_69 = arith.constant 18 : index
    %c0_70 = arith.constant 0 : index
    %81 = vector.load %arg8[%c18_69, %c0_70] : memref<74x64xbf16, #tpu.memory_space<vmem>>, vector<54x64xbf16>
    %c6_71 = arith.constant 6 : index
    %c0_72 = arith.constant 0 : index
    %c0_73 = arith.constant 0 : index
    %82 = vector.load %arg2[%c6_71, %c0_72, %c0_73] : memref<9x54x1xbf16, #tpu.memory_space<vmem>>, vector<1x54x1xbf16>
    %83 = vector.shape_cast %82 : vector<1x54x1xbf16> to vector<54x1xbf16>
    %84 = vector.broadcast %83 : vector<54x1xbf16> to vector<54x64xbf16>
    %85 = arith.mulf %81, %84 : vector<54x64xbf16>
    %c19_74 = arith.constant 19 : index
    %c0_75 = arith.constant 0 : index
    %86 = vector.load %arg8[%c19_74, %c0_75] : memref<74x64xbf16, #tpu.memory_space<vmem>>, vector<54x64xbf16>
    %c7_76 = arith.constant 7 : index
    %c0_77 = arith.constant 0 : index
    %c0_78 = arith.constant 0 : index
    %87 = vector.load %arg2[%c7_76, %c0_77, %c0_78] : memref<9x54x1xbf16, #tpu.memory_space<vmem>>, vector<1x54x1xbf16>
    %88 = vector.shape_cast %87 : vector<1x54x1xbf16> to vector<54x1xbf16>
    %89 = vector.broadcast %88 : vector<54x1xbf16> to vector<54x64xbf16>
    %90 = arith.mulf %86, %89 : vector<54x64xbf16>
    %c20_79 = arith.constant 20 : index
    %c0_80 = arith.constant 0 : index
    %91 = vector.load %arg8[%c20_79, %c0_80] : memref<74x64xbf16, #tpu.memory_space<vmem>>, vector<54x64xbf16>
    %c8_81 = arith.constant 8 : index
    %c0_82 = arith.constant 0 : index
    %c0_83 = arith.constant 0 : index
    %92 = vector.load %arg2[%c8_81, %c0_82, %c0_83] : memref<9x54x1xbf16, #tpu.memory_space<vmem>>, vector<1x54x1xbf16>
    %93 = vector.shape_cast %92 : vector<1x54x1xbf16> to vector<54x1xbf16>
    %94 = vector.broadcast %93 : vector<54x1xbf16> to vector<54x64xbf16>
    %95 = arith.mulf %91, %94 : vector<54x64xbf16>
    %96 = tpu.concatenate %59, %64, %69, %74, %75, %80, %85, %90, %95 in 1 : vector<54x64xbf16>, vector<54x64xbf16>, vector<54x64xbf16>, vector<54x64xbf16>, vector<54x64xbf16>, vector<54x64xbf16>, vector<54x64xbf16>, vector<54x64xbf16>, vector<54x64xbf16> -> vector<54x576xbf16>
    %c0_84 = arith.constant 0 : index
    %c0_85 = arith.constant 0 : index
    %97 = vector.load %arg5[%c0_84, %c0_85] : memref<576x64xbf16, #tpu.memory_space<vmem>>, vector<576x64xbf16>
    %cst_86 = arith.constant dense<0.000000e+00> : vector<54x64xf32>
    %98 = tpu.matmul %96, %97, %cst_86 {dimension_numbers = #tpu.dot_dimension_numbers<[1], [0], [0], [1], [0, 0, 1, 1], [], []>} : vector<54x576xbf16>, vector<576x64xbf16>, vector<54x64xf32> -> vector<54x64xf32>
    %c0_87 = arith.constant 0 : index
    %c0_88 = arith.constant 0 : index
    %99 = vector.load %arg6[%c0_87, %c0_88] : memref<1x64xf32, #tpu.memory_space<vmem>>, vector<1x64xf32>
    %100 = vector.broadcast %99 : vector<1x64xf32> to vector<54x64xf32>
    %101 = arith.addf %98, %100 : vector<54x64xf32>
    %cst_89 = arith.constant 0.000000e+00 : f32
    %102 = vector.broadcast %cst_89 : f32 to vector<54x64xf32>
    %103 = arith.maximumf %101, %102 : vector<54x64xf32>
    %104 = arith.truncf %103 : vector<54x64xf32> to vector<54x64xbf16>
    %c0_90 = arith.constant 0 : index
    %c0_91 = arith.constant 0 : index
    %105 = vector.load %arg7[%c0_90, %c0_91] : memref<54x64xbf16, #tpu.memory_space<vmem>>, vector<54x64xbf16>
    tpu.vector_store %arg7[%c0_90, %c0_91], %104 {strides = array<i32>} : memref<54x64xbf16, #tpu.memory_space<vmem>>, vector<54x64xbf16>,
    return
  }
  func.func @transform_0(%arg0: i32) -> (i32, i32) {
    %c0_i32 = arith.constant 0 : i32
    %c0_i32_0 = arith.constant 0 : i32
    %c0_i32_1 = arith.constant 0 : i32
    return %c0_i32, %c0_i32_0 : i32, i32
  }
  func.func @transform_1(%arg0: i32) -> (i32, i32, i32) {
    %c0_i32 = arith.constant 0 : i32
    %c0_i32_0 = arith.constant 0 : i32
    %c0_i32_1 = arith.constant 0 : i32
    %c0_i32_2 = arith.constant 0 : i32
    return %c0_i32, %c0_i32_0, %c0_i32_1 : i32, i32, i32
  }
  func.func @transform_2(%arg0: i32) -> (i32, i32) {
    %c0_i32 = arith.constant 0 : i32
    %c0_i32_0 = arith.constant 0 : i32
    %c0_i32_1 = arith.constant 0 : i32
    return %c0_i32, %c0_i32_0 : i32, i32
  }
  func.func @transform_3(%arg0: i32) -> (i32, i32) {
    %c0_i32 = arith.constant 0 : i32
    %c0_i32_0 = arith.constant 0 : i32
    %c0_i32_1 = arith.constant 0 : i32
    return %c0_i32, %c0_i32_0 : i32, i32
  }
  func.func @transform_4(%arg0: i32) -> (i32, i32) {
    %c0_i32 = arith.constant 0 : i32
    %c0_i32_0 = arith.constant 0 : i32
    %c0_i32_1 = arith.constant 0 : i32
    return %c0_i32, %c0_i32_0 : i32, i32
  }
  func.func @transform_5(%arg0: i32) -> (i32, i32) {
    %c0_i32 = arith.constant 0 : i32
    %c0_i32_0 = arith.constant 0 : i32
    %c0_i32_1 = arith.constant 0 : i32
    return %c0_i32, %c0_i32_0 : i32, i32
  }
  func.func @transform_6(%arg0: i32) -> (i32, i32) {
    %c0_i32 = arith.constant 0 : i32
    %c0_i32_0 = arith.constant 0 : i32
    %c0_i32_1 = arith.constant 0 : i32
    return %c0_i32, %c0_i32_0 : i32, i32
  }
}

module attributes {stable_mosaic.version = 11 : i64} {
  func.func @_fc_beam_kernel(%arg0: i32, %arg1: memref<2x1728xbf16, #tpu.memory_space<vmem>>, %arg2: memref<1728x32xbf16, #tpu.memory_space<vmem>>, %arg3: memref<1x32xf32, #tpu.memory_space<vmem>>, %arg4: memref<32x16xbf16, #tpu.memory_space<vmem>>, %arg5: memref<1x16xf32, #tpu.memory_space<vmem>>, %arg6: memref<2x18x16xf32, #tpu.memory_space<vmem>>, %arg7: memref<18x18xf32, #tpu.memory_space<vmem>>, %arg8: memref<18x100xbf16, #tpu.memory_space<vmem>>, %arg9: memref<1x100xf32, #tpu.memory_space<vmem>>, %arg10: memref<100x100xbf16, #tpu.memory_space<vmem>>, %arg11: memref<1x100xf32, #tpu.memory_space<vmem>>, %arg12: memref<100x18xbf16, #tpu.memory_space<vmem>>, %arg13: memref<1x18xf32, #tpu.memory_space<vmem>>, %arg14: memref<2x128xf32, #tpu.memory_space<vmem>>) attributes {dimension_semantics = [#tpu.dimension_semantics<arbitrary>], iteration_bounds = array<i64: 1>, scalar_prefetch = 0 : i64, scratch_operands = 0 : i64, tpu.core_type = #tpu.core_type<tc>, window_params = [{pipeline_mode = #tpu.pipeline_mode<synchronous>, transform_indices = @transform_0, window_bounds = array<i64: 2, 1728>}, {pipeline_mode = #tpu.pipeline_mode<synchronous>, transform_indices = @transform_1, window_bounds = array<i64: 1728, 32>}, {pipeline_mode = #tpu.pipeline_mode<synchronous>, transform_indices = @transform_2, window_bounds = array<i64: 1, 32>}, {pipeline_mode = #tpu.pipeline_mode<synchronous>, transform_indices = @transform_3, window_bounds = array<i64: 32, 16>}, {pipeline_mode = #tpu.pipeline_mode<synchronous>, transform_indices = @transform_4, window_bounds = array<i64: 1, 16>}, {pipeline_mode = #tpu.pipeline_mode<synchronous>, transform_indices = @transform_5, window_bounds = array<i64: 2, 18, 16>}, {pipeline_mode = #tpu.pipeline_mode<synchronous>, transform_indices = @transform_6, window_bounds = array<i64: 18, 18>}, {pipeline_mode = #tpu.pipeline_mode<synchronous>, transform_indices = @transform_7, window_bounds = array<i64: 18, 100>}, {pipeline_mode = #tpu.pipeline_mode<synchronous>, transform_indices = @transform_8, window_bounds = array<i64: 1, 100>}, {pipeline_mode = #tpu.pipeline_mode<synchronous>, transform_indices = @transform_9, window_bounds = array<i64: 100, 100>}, {pipeline_mode = #tpu.pipeline_mode<synchronous>, transform_indices = @transform_10, window_bounds = array<i64: 1, 100>}, {pipeline_mode = #tpu.pipeline_mode<synchronous>, transform_indices = @transform_11, window_bounds = array<i64: 100, 18>}, {pipeline_mode = #tpu.pipeline_mode<synchronous>, transform_indices = @transform_12, window_bounds = array<i64: 1, 18>}, {pipeline_mode = #tpu.pipeline_mode<synchronous>, transform_indices = @transform_13, window_bounds = array<i64: 2, 128>}]} {
    %c0 = arith.constant 0 : index
    %c0_0 = arith.constant 0 : index
    %0 = vector.load %arg1[%c0, %c0_0] : memref<2x1728xbf16, #tpu.memory_space<vmem>>, vector<2x1728xbf16>
    %c0_1 = arith.constant 0 : index
    %c0_2 = arith.constant 0 : index
    %1 = vector.load %arg2[%c0_1, %c0_2] : memref<1728x32xbf16, #tpu.memory_space<vmem>>, vector<1728x32xbf16>
    %cst = arith.constant dense<0.000000e+00> : vector<2x32xf32>
    %2 = tpu.matmul %0, %1, %cst {dimension_numbers = #tpu.dot_dimension_numbers<[1], [0], [0], [1], [0, 0, 1, 1], [], []>} : vector<2x1728xbf16>, vector<1728x32xbf16>, vector<2x32xf32> -> vector<2x32xf32>
    %c0_3 = arith.constant 0 : index
    %c0_4 = arith.constant 0 : index
    %3 = vector.load %arg3[%c0_3, %c0_4] : memref<1x32xf32, #tpu.memory_space<vmem>>, vector<1x32xf32>
    %4 = vector.broadcast %3 : vector<1x32xf32> to vector<2x32xf32>
    %5 = arith.addf %2, %4 : vector<2x32xf32>
    %cst_5 = arith.constant 0.000000e+00 : f32
    %6 = vector.broadcast %cst_5 : f32 to vector<2x32xf32>
    %7 = arith.maximumf %5, %6 : vector<2x32xf32>
    %8 = arith.truncf %7 : vector<2x32xf32> to vector<2x32xbf16>
    %c0_6 = arith.constant 0 : index
    %c0_7 = arith.constant 0 : index
    %9 = vector.load %arg4[%c0_6, %c0_7] : memref<32x16xbf16, #tpu.memory_space<vmem>>, vector<32x16xbf16>
    %cst_8 = arith.constant dense<0.000000e+00> : vector<2x16xf32>
    %10 = tpu.matmul %8, %9, %cst_8 {dimension_numbers = #tpu.dot_dimension_numbers<[1], [0], [0], [1], [0, 0, 1, 1], [], []>} : vector<2x32xbf16>, vector<32x16xbf16>, vector<2x16xf32> -> vector<2x16xf32>
    %c0_9 = arith.constant 0 : index
    %c0_10 = arith.constant 0 : index
    %11 = vector.load %arg5[%c0_9, %c0_10] : memref<1x16xf32, #tpu.memory_space<vmem>>, vector<1x16xf32>
    %12 = vector.broadcast %11 : vector<1x16xf32> to vector<2x16xf32>
    %13 = arith.addf %10, %12 : vector<2x16xf32>
    %14 = vector.extract_strided_slice %13 {offsets = [0, 0], sizes = [2, 8], strides = [1, 1]} : vector<2x16xf32> to vector<2x8xf32>
    %15 = vector.extract_strided_slice %13 {offsets = [0, 8], sizes = [2, 8], strides = [1, 1]} : vector<2x16xf32> to vector<2x8xf32>
    %16 = arith.mulf %14, %14 : vector<2x8xf32>
    %17 = arith.mulf %15, %15 : vector<2x8xf32>
    %18 = arith.addf %16, %17 : vector<2x8xf32>
    %19 = math.sqrt %18 : vector<2x8xf32>
    %cst_11 = arith.constant 9.99999996E-13 : f32
    %20 = vector.broadcast %cst_11 : f32 to vector<2x8xf32>
    %21 = arith.maximumf %19, %20 : vector<2x8xf32>
    %22 = arith.divf %14, %21 : vector<2x8xf32>
    %23 = arith.divf %15, %21 : vector<2x8xf32>
    %24 = tpu.concatenate %22, %23 in 1 : vector<2x8xf32>, vector<2x8xf32> -> vector<2x16xf32>
    %c0_12 = arith.constant 0 : index
    %c0_13 = arith.constant 0 : index
    %c0_14 = arith.constant 0 : index
    %25 = vector.load %arg6[%c0_12, %c0_13, %c0_14] : memref<2x18x16xf32, #tpu.memory_space<vmem>>, vector<2x18x16xf32>
    %26 = vector.shape_cast %24 : vector<2x16xf32> to vector<2x1x16xf32>
    %27 = vector.broadcast %26 : vector<2x1x16xf32> to vector<2x18x16xf32>
    %28 = arith.mulf %25, %27 : vector<2x18x16xf32>
    %cst_15 = arith.constant dense<0.000000e+00> : vector<2x18xf32>
    %29 = vector.multi_reduction <add>, %28, %cst_15 [2] : vector<2x18x16xf32> to vector<2x18xf32>
    %30 = arith.truncf %29 : vector<2x18xf32> to vector<2x18xbf16>
    %c0_16 = arith.constant 0 : index
    %c0_17 = arith.constant 0 : index
    %31 = vector.load %arg8[%c0_16, %c0_17] : memref<18x100xbf16, #tpu.memory_space<vmem>>, vector<18x100xbf16>
    %cst_18 = arith.constant dense<0.000000e+00> : vector<2x100xf32>
    %32 = tpu.matmul %30, %31, %cst_18 {dimension_numbers = #tpu.dot_dimension_numbers<[1], [0], [0], [1], [0, 0, 1, 1], [], []>} : vector<2x18xbf16>, vector<18x100xbf16>, vector<2x100xf32> -> vector<2x100xf32>
    %c0_19 = arith.constant 0 : index
    %c0_20 = arith.constant 0 : index
    %33 = vector.load %arg9[%c0_19, %c0_20] : memref<1x100xf32, #tpu.memory_space<vmem>>, vector<1x100xf32>
    %34 = vector.broadcast %33 : vector<1x100xf32> to vector<2x100xf32>
    %35 = arith.addf %32, %34 : vector<2x100xf32>
    %cst_21 = arith.constant 0.000000e+00 : f32
    %36 = vector.broadcast %cst_21 : f32 to vector<2x100xf32>
    %37 = arith.maximumf %35, %36 : vector<2x100xf32>
    %38 = arith.truncf %37 : vector<2x100xf32> to vector<2x100xbf16>
    %c0_22 = arith.constant 0 : index
    %c0_23 = arith.constant 0 : index
    %39 = vector.load %arg10[%c0_22, %c0_23] : memref<100x100xbf16, #tpu.memory_space<vmem>>, vector<100x100xbf16>
    %cst_24 = arith.constant dense<0.000000e+00> : vector<2x100xf32>
    %40 = tpu.matmul %38, %39, %cst_24 {dimension_numbers = #tpu.dot_dimension_numbers<[1], [0], [0], [1], [0, 0, 1, 1], [], []>} : vector<2x100xbf16>, vector<100x100xbf16>, vector<2x100xf32> -> vector<2x100xf32>
    %c0_25 = arith.constant 0 : index
    %c0_26 = arith.constant 0 : index
    %41 = vector.load %arg11[%c0_25, %c0_26] : memref<1x100xf32, #tpu.memory_space<vmem>>, vector<1x100xf32>
    %42 = vector.broadcast %41 : vector<1x100xf32> to vector<2x100xf32>
    %43 = arith.addf %40, %42 : vector<2x100xf32>
    %cst_27 = arith.constant 0.000000e+00 : f32
    %44 = vector.broadcast %cst_27 : f32 to vector<2x100xf32>
    %45 = arith.maximumf %43, %44 : vector<2x100xf32>
    %46 = arith.truncf %45 : vector<2x100xf32> to vector<2x100xbf16>
    %c0_28 = arith.constant 0 : index
    %c0_29 = arith.constant 0 : index
    %47 = vector.load %arg12[%c0_28, %c0_29] : memref<100x18xbf16, #tpu.memory_space<vmem>>, vector<100x18xbf16>
    %cst_30 = arith.constant dense<0.000000e+00> : vector<2x18xf32>
    %48 = tpu.matmul %46, %47, %cst_30 {dimension_numbers = #tpu.dot_dimension_numbers<[1], [0], [0], [1], [0, 0, 1, 1], [], []>} : vector<2x100xbf16>, vector<100x18xbf16>, vector<2x18xf32> -> vector<2x18xf32>
    %c0_31 = arith.constant 0 : index
    %c0_32 = arith.constant 0 : index
    %49 = vector.load %arg13[%c0_31, %c0_32] : memref<1x18xf32, #tpu.memory_space<vmem>>, vector<1x18xf32>
    %50 = vector.broadcast %49 : vector<1x18xf32> to vector<2x18xf32>
    %51 = arith.addf %48, %50 : vector<2x18xf32>
    %52 = arith.mulf %51, %51 : vector<2x18xf32>
    %c0_33 = arith.constant 0 : index
    %c0_34 = arith.constant 0 : index
    %53 = vector.load %arg7[%c0_33, %c0_34] : memref<18x18xf32, #tpu.memory_space<vmem>>, vector<18x18xf32>
    %cst_35 = arith.constant dense<0.000000e+00> : vector<2x18xf32>
    %54 = tpu.matmul %52, %53, %cst_35 {dimension_numbers = #tpu.dot_dimension_numbers<[1], [0], [0], [1], [0, 0, 1, 1], [], []>} : vector<2x18xf32>, vector<18x18xf32>, vector<2x18xf32> -> vector<2x18xf32>
    %55 = math.sqrt %54 : vector<2x18xf32>
    %cst_36 = arith.constant 9.99999996E-13 : f32
    %56 = vector.broadcast %cst_36 : f32 to vector<2x18xf32>
    %57 = arith.maximumf %55, %56 : vector<2x18xf32>
    %58 = arith.divf %51, %57 : vector<2x18xf32>
    %cst_37 = arith.constant 1.05409253 : f32
    %59 = vector.broadcast %cst_37 : f32 to vector<2x18xf32>
    %60 = arith.mulf %58, %59 : vector<2x18xf32>
    %cst_38 = arith.constant 0.000000e+00 : f32
    %61 = vector.broadcast %cst_38 : f32 to vector<2x94xf32>
    %62 = tpu.concatenate %24, %60, %61 in 1 : vector<2x16xf32>, vector<2x18xf32>, vector<2x94xf32> -> vector<2x128xf32>
    %c0_39 = arith.constant 0 : index
    %c0_40 = arith.constant 0 : index
    %63 = vector.load %arg14[%c0_39, %c0_40] : memref<2x128xf32, #tpu.memory_space<vmem>>, vector<2x128xf32>
    tpu.vector_store %arg14[%c0_39, %c0_40], %62 {strides = array<i32>} : memref<2x128xf32, #tpu.memory_space<vmem>>, vector<2x128xf32>,
    return
  }
  func.func @transform_0(%arg0: i32) -> (i32, i32) {
    %c0_i32 = arith.constant 0 : i32
    %c0_i32_0 = arith.constant 0 : i32
    %c0_i32_1 = arith.constant 0 : i32
    return %c0_i32, %c0_i32_0 : i32, i32
  }
  func.func @transform_1(%arg0: i32) -> (i32, i32) {
    %c0_i32 = arith.constant 0 : i32
    %c0_i32_0 = arith.constant 0 : i32
    %c0_i32_1 = arith.constant 0 : i32
    return %c0_i32, %c0_i32_0 : i32, i32
  }
  func.func @transform_2(%arg0: i32) -> (i32, i32) {
    %c0_i32 = arith.constant 0 : i32
    %c0_i32_0 = arith.constant 0 : i32
    %c0_i32_1 = arith.constant 0 : i32
    return %c0_i32, %c0_i32_0 : i32, i32
  }
  func.func @transform_3(%arg0: i32) -> (i32, i32) {
    %c0_i32 = arith.constant 0 : i32
    %c0_i32_0 = arith.constant 0 : i32
    %c0_i32_1 = arith.constant 0 : i32
    return %c0_i32, %c0_i32_0 : i32, i32
  }
  func.func @transform_4(%arg0: i32) -> (i32, i32) {
    %c0_i32 = arith.constant 0 : i32
    %c0_i32_0 = arith.constant 0 : i32
    %c0_i32_1 = arith.constant 0 : i32
    return %c0_i32, %c0_i32_0 : i32, i32
  }
  func.func @transform_5(%arg0: i32) -> (i32, i32, i32) {
    %c0_i32 = arith.constant 0 : i32
    %c0_i32_0 = arith.constant 0 : i32
    %c0_i32_1 = arith.constant 0 : i32
    %c0_i32_2 = arith.constant 0 : i32
    return %c0_i32, %c0_i32_0, %c0_i32_1 : i32, i32, i32
  }
  func.func @transform_6(%arg0: i32) -> (i32, i32) {
    %c0_i32 = arith.constant 0 : i32
    %c0_i32_0 = arith.constant 0 : i32
    %c0_i32_1 = arith.constant 0 : i32
    return %c0_i32, %c0_i32_0 : i32, i32
  }
  func.func @transform_7(%arg0: i32) -> (i32, i32) {
    %c0_i32 = arith.constant 0 : i32
    %c0_i32_0 = arith.constant 0 : i32
    %c0_i32_1 = arith.constant 0 : i32
    return %c0_i32, %c0_i32_0 : i32, i32
  }
  func.func @transform_8(%arg0: i32) -> (i32, i32) {
    %c0_i32 = arith.constant 0 : i32
    %c0_i32_0 = arith.constant 0 : i32
    %c0_i32_1 = arith.constant 0 : i32
    return %c0_i32, %c0_i32_0 : i32, i32
  }
  func.func @transform_9(%arg0: i32) -> (i32, i32) {
    %c0_i32 = arith.constant 0 : i32
    %c0_i32_0 = arith.constant 0 : i32
    %c0_i32_1 = arith.constant 0 : i32
    return %c0_i32, %c0_i32_0 : i32, i32
  }
  func.func @transform_10(%arg0: i32) -> (i32, i32) {
    %c0_i32 = arith.constant 0 : i32
    %c0_i32_0 = arith.constant 0 : i32
    %c0_i32_1 = arith.constant 0 : i32
    return %c0_i32, %c0_i32_0 : i32, i32
  }
  func.func @transform_11(%arg0: i32) -> (i32, i32) {
    %c0_i32 = arith.constant 0 : i32
    %c0_i32_0 = arith.constant 0 : i32
    %c0_i32_1 = arith.constant 0 : i32
    return %c0_i32, %c0_i32_0 : i32, i32
  }
  func.func @transform_12(%arg0: i32) -> (i32, i32) {
    %c0_i32 = arith.constant 0 : i32
    %c0_i32_0 = arith.constant 0 : i32
    %c0_i32_1 = arith.constant 0 : i32
    return %c0_i32, %c0_i32_0 : i32, i32
  }
  func.func @transform_13(%arg0: i32) -> (i32, i32) {
    %c0_i32 = arith.constant 0 : i32
    %c0_i32_0 = arith.constant 0 : i32
    %c0_i32_1 = arith.constant 0 : i32
    return %c0_i32, %c0_i32_0 : i32, i32
  }
}

module attributes {stable_mosaic.version = 11 : i64} {
  func.func @_phase_conv_kernel(%arg0: i32, %arg1: memref<72x64xbf16, #tpu.memory_space<vmem>>, %arg2: memref<9x72x1xbf16, #tpu.memory_space<vmem>>, %arg3: memref<576x64xbf16, #tpu.memory_space<vmem>>, %arg4: memref<1x64xf32, #tpu.memory_space<vmem>>, %arg5: memref<576x64xbf16, #tpu.memory_space<vmem>>, %arg6: memref<1x64xf32, #tpu.memory_space<vmem>>, %arg7: memref<72x64xbf16, #tpu.memory_space<vmem>>, %arg8: memref<92x64xbf16, #tpu.memory_space<vmem>>) attributes {dimension_semantics = [#tpu.dimension_semantics<arbitrary>], iteration_bounds = array<i64: 1>, scalar_prefetch = 0 : i64, scratch_operands = 1 : i64, tpu.core_type = #tpu.core_type<tc>, window_params = [{pipeline_mode = #tpu.pipeline_mode<synchronous>, transform_indices = @transform_0, window_bounds = array<i64: 72, 64>}, {pipeline_mode = #tpu.pipeline_mode<synchronous>, transform_indices = @transform_1, window_bounds = array<i64: 9, 72, 1>}, {pipeline_mode = #tpu.pipeline_mode<synchronous>, transform_indices = @transform_2, window_bounds = array<i64: 576, 64>}, {pipeline_mode = #tpu.pipeline_mode<synchronous>, transform_indices = @transform_3, window_bounds = array<i64: 1, 64>}, {pipeline_mode = #tpu.pipeline_mode<synchronous>, transform_indices = @transform_4, window_bounds = array<i64: 576, 64>}, {pipeline_mode = #tpu.pipeline_mode<synchronous>, transform_indices = @transform_5, window_bounds = array<i64: 1, 64>}, {pipeline_mode = #tpu.pipeline_mode<synchronous>, transform_indices = @transform_6, window_bounds = array<i64: 72, 64>}]} {
    %cst = arith.constant 0.000000e+00 : bf16
    %0 = vector.broadcast %cst : bf16 to vector<92x64xbf16>
    %c0 = arith.constant 0 : index
    %c0_0 = arith.constant 0 : index
    %1 = vector.load %arg8[%c0, %c0_0] : memref<92x64xbf16, #tpu.memory_space<vmem>>, vector<92x64xbf16>
    tpu.vector_store %arg8[%c0, %c0_0], %0 {strides = array<i32>} : memref<92x64xbf16, #tpu.memory_space<vmem>>, vector<92x64xbf16>,
    %c0_1 = arith.constant 0 : index
    %c0_2 = arith.constant 0 : index
    %2 = vector.load %arg1[%c0_1, %c0_2] : memref<72x64xbf16, #tpu.memory_space<vmem>>, vector<72x64xbf16>
    %c10 = arith.constant 10 : index
    %c0_3 = arith.constant 0 : index
    %3 = vector.load %arg8[%c10, %c0_3] : memref<92x64xbf16, #tpu.memory_space<vmem>>, vector<72x64xbf16>
    tpu.vector_store %arg8[%c10, %c0_3], %2 {strides = array<i32>} : memref<92x64xbf16, #tpu.memory_space<vmem>>, vector<72x64xbf16>,
    %c0_4 = arith.constant 0 : index
    %c0_5 = arith.constant 0 : index
    %4 = vector.load %arg8[%c0_4, %c0_5] : memref<92x64xbf16, #tpu.memory_space<vmem>>, vector<72x64xbf16>
    %c0_6 = arith.constant 0 : index
    %c0_7 = arith.constant 0 : index
    %c0_8 = arith.constant 0 : index
    %5 = vector.load %arg2[%c0_6, %c0_7, %c0_8] : memref<9x72x1xbf16, #tpu.memory_space<vmem>>, vector<1x72x1xbf16>
    %6 = vector.shape_cast %5 : vector<1x72x1xbf16> to vector<72x1xbf16>
    %7 = vector.broadcast %6 : vector<72x1xbf16> to vector<72x64xbf16>
    %8 = arith.mulf %4, %7 : vector<72x64xbf16>
    %c1 = arith.constant 1 : index
    %c0_9 = arith.constant 0 : index
    %9 = vector.load %arg8[%c1, %c0_9] : memref<92x64xbf16, #tpu.memory_space<vmem>>, vector<72x64xbf16>
    %c1_10 = arith.constant 1 : index
    %c0_11 = arith.constant 0 : index
    %c0_12 = arith.constant 0 : index
    %10 = vector.load %arg2[%c1_10, %c0_11, %c0_12] : memref<9x72x1xbf16, #tpu.memory_space<vmem>>, vector<1x72x1xbf16>
    %11 = vector.shape_cast %10 : vector<1x72x1xbf16> to vector<72x1xbf16>
    %12 = vector.broadcast %11 : vector<72x1xbf16> to vector<72x64xbf16>
    %13 = arith.mulf %9, %12 : vector<72x64xbf16>
    %c2 = arith.constant 2 : index
    %c0_13 = arith.constant 0 : index
    %14 = vector.load %arg8[%c2, %c0_13] : memref<92x64xbf16, #tpu.memory_space<vmem>>, vector<72x64xbf16>
    %c2_14 = arith.constant 2 : index
    %c0_15 = arith.constant 0 : index
    %c0_16 = arith.constant 0 : index
    %15 = vector.load %arg2[%c2_14, %c0_15, %c0_16] : memref<9x72x1xbf16, #tpu.memory_space<vmem>>, vector<1x72x1xbf16>
    %16 = vector.shape_cast %15 : vector<1x72x1xbf16> to vector<72x1xbf16>
    %17 = vector.broadcast %16 : vector<72x1xbf16> to vector<72x64xbf16>
    %18 = arith.mulf %14, %17 : vector<72x64xbf16>
    %c9 = arith.constant 9 : index
    %c0_17 = arith.constant 0 : index
    %19 = vector.load %arg8[%c9, %c0_17] : memref<92x64xbf16, #tpu.memory_space<vmem>>, vector<72x64xbf16>
    %c3 = arith.constant 3 : index
    %c0_18 = arith.constant 0 : index
    %c0_19 = arith.constant 0 : index
    %20 = vector.load %arg2[%c3, %c0_18, %c0_19] : memref<9x72x1xbf16, #tpu.memory_space<vmem>>, vector<1x72x1xbf16>
    %21 = vector.shape_cast %20 : vector<1x72x1xbf16> to vector<72x1xbf16>
    %22 = vector.broadcast %21 : vector<72x1xbf16> to vector<72x64xbf16>
    %23 = arith.mulf %19, %22 : vector<72x64xbf16>
    %c10_20 = arith.constant 10 : index
    %c0_21 = arith.constant 0 : index
    %24 = vector.load %arg8[%c10_20, %c0_21] : memref<92x64xbf16, #tpu.memory_space<vmem>>, vector<72x64xbf16>
    %c11 = arith.constant 11 : index
    %c0_22 = arith.constant 0 : index
    %25 = vector.load %arg8[%c11, %c0_22] : memref<92x64xbf16, #tpu.memory_space<vmem>>, vector<72x64xbf16>
    %c5 = arith.constant 5 : index
    %c0_23 = arith.constant 0 : index
    %c0_24 = arith.constant 0 : index
    %26 = vector.load %arg2[%c5, %c0_23, %c0_24] : memref<9x72x1xbf16, #tpu.memory_space<vmem>>, vector<1x72x1xbf16>
    %27 = vector.shape_cast %26 : vector<1x72x1xbf16> to vector<72x1xbf16>
    %28 = vector.broadcast %27 : vector<72x1xbf16> to vector<72x64xbf16>
    %29 = arith.mulf %25, %28 : vector<72x64xbf16>
    %c18 = arith.constant 18 : index
    %c0_25 = arith.constant 0 : index
    %30 = vector.load %arg8[%c18, %c0_25] : memref<92x64xbf16, #tpu.memory_space<vmem>>, vector<72x64xbf16>
    %c6 = arith.constant 6 : index
    %c0_26 = arith.constant 0 : index
    %c0_27 = arith.constant 0 : index
    %31 = vector.load %arg2[%c6, %c0_26, %c0_27] : memref<9x72x1xbf16, #tpu.memory_space<vmem>>, vector<1x72x1xbf16>
    %32 = vector.shape_cast %31 : vector<1x72x1xbf16> to vector<72x1xbf16>
    %33 = vector.broadcast %32 : vector<72x1xbf16> to vector<72x64xbf16>
    %34 = arith.mulf %30, %33 : vector<72x64xbf16>
    %c19 = arith.constant 19 : index
    %c0_28 = arith.constant 0 : index
    %35 = vector.load %arg8[%c19, %c0_28] : memref<92x64xbf16, #tpu.memory_space<vmem>>, vector<72x64xbf16>
    %c7 = arith.constant 7 : index
    %c0_29 = arith.constant 0 : index
    %c0_30 = arith.constant 0 : index
    %36 = vector.load %arg2[%c7, %c0_29, %c0_30] : memref<9x72x1xbf16, #tpu.memory_space<vmem>>, vector<1x72x1xbf16>
    %37 = vector.shape_cast %36 : vector<1x72x1xbf16> to vector<72x1xbf16>
    %38 = vector.broadcast %37 : vector<72x1xbf16> to vector<72x64xbf16>
    %39 = arith.mulf %35, %38 : vector<72x64xbf16>
    %c20 = arith.constant 20 : index
    %c0_31 = arith.constant 0 : index
    %40 = vector.load %arg8[%c20, %c0_31] : memref<92x64xbf16, #tpu.memory_space<vmem>>, vector<72x64xbf16>
    %c8 = arith.constant 8 : index
    %c0_32 = arith.constant 0 : index
    %c0_33 = arith.constant 0 : index
    %41 = vector.load %arg2[%c8, %c0_32, %c0_33] : memref<9x72x1xbf16, #tpu.memory_space<vmem>>, vector<1x72x1xbf16>
    %42 = vector.shape_cast %41 : vector<1x72x1xbf16> to vector<72x1xbf16>
    %43 = vector.broadcast %42 : vector<72x1xbf16> to vector<72x64xbf16>
    %44 = arith.mulf %40, %43 : vector<72x64xbf16>
    %45 = tpu.concatenate %8, %13, %18, %23, %24, %29, %34, %39, %44 in 1 : vector<72x64xbf16>, vector<72x64xbf16>, vector<72x64xbf16>, vector<72x64xbf16>, vector<72x64xbf16>, vector<72x64xbf16>, vector<72x64xbf16>, vector<72x64xbf16>, vector<72x64xbf16> -> vector<72x576xbf16>
    %c0_34 = arith.constant 0 : index
    %c0_35 = arith.constant 0 : index
    %46 = vector.load %arg3[%c0_34, %c0_35] : memref<576x64xbf16, #tpu.memory_space<vmem>>, vector<576x64xbf16>
    %cst_36 = arith.constant dense<0.000000e+00> : vector<72x64xf32>
    %47 = tpu.matmul %45, %46, %cst_36 {dimension_numbers = #tpu.dot_dimension_numbers<[1], [0], [0], [1], [0, 0, 1, 1], [], []>} : vector<72x576xbf16>, vector<576x64xbf16>, vector<72x64xf32> -> vector<72x64xf32>
    %c0_37 = arith.constant 0 : index
    %c0_38 = arith.constant 0 : index
    %48 = vector.load %arg4[%c0_37, %c0_38] : memref<1x64xf32, #tpu.memory_space<vmem>>, vector<1x64xf32>
    %49 = vector.broadcast %48 : vector<1x64xf32> to vector<72x64xf32>
    %50 = arith.addf %47, %49 : vector<72x64xf32>
    %cst_39 = arith.constant 0.000000e+00 : f32
    %51 = vector.broadcast %cst_39 : f32 to vector<72x64xf32>
    %52 = arith.maximumf %50, %51 : vector<72x64xf32>
    %53 = arith.truncf %52 : vector<72x64xf32> to vector<72x64xbf16>
    %c10_40 = arith.constant 10 : index
    %c0_41 = arith.constant 0 : index
    %54 = vector.load %arg8[%c10_40, %c0_41] : memref<92x64xbf16, #tpu.memory_space<vmem>>, vector<72x64xbf16>
    tpu.vector_store %arg8[%c10_40, %c0_41], %53 {strides = array<i32>} : memref<92x64xbf16, #tpu.memory_space<vmem>>, vector<72x64xbf16>,
    %c0_42 = arith.constant 0 : index
    %c0_43 = arith.constant 0 : index
    %55 = vector.load %arg8[%c0_42, %c0_43] : memref<92x64xbf16, #tpu.memory_space<vmem>>, vector<72x64xbf16>
    %c0_44 = arith.constant 0 : index
    %c0_45 = arith.constant 0 : index
    %c0_46 = arith.constant 0 : index
    %56 = vector.load %arg2[%c0_44, %c0_45, %c0_46] : memref<9x72x1xbf16, #tpu.memory_space<vmem>>, vector<1x72x1xbf16>
    %57 = vector.shape_cast %56 : vector<1x72x1xbf16> to vector<72x1xbf16>
    %58 = vector.broadcast %57 : vector<72x1xbf16> to vector<72x64xbf16>
    %59 = arith.mulf %55, %58 : vector<72x64xbf16>
    %c1_47 = arith.constant 1 : index
    %c0_48 = arith.constant 0 : index
    %60 = vector.load %arg8[%c1_47, %c0_48] : memref<92x64xbf16, #tpu.memory_space<vmem>>, vector<72x64xbf16>
    %c1_49 = arith.constant 1 : index
    %c0_50 = arith.constant 0 : index
    %c0_51 = arith.constant 0 : index
    %61 = vector.load %arg2[%c1_49, %c0_50, %c0_51] : memref<9x72x1xbf16, #tpu.memory_space<vmem>>, vector<1x72x1xbf16>
    %62 = vector.shape_cast %61 : vector<1x72x1xbf16> to vector<72x1xbf16>
    %63 = vector.broadcast %62 : vector<72x1xbf16> to vector<72x64xbf16>
    %64 = arith.mulf %60, %63 : vector<72x64xbf16>
    %c2_52 = arith.constant 2 : index
    %c0_53 = arith.constant 0 : index
    %65 = vector.load %arg8[%c2_52, %c0_53] : memref<92x64xbf16, #tpu.memory_space<vmem>>, vector<72x64xbf16>
    %c2_54 = arith.constant 2 : index
    %c0_55 = arith.constant 0 : index
    %c0_56 = arith.constant 0 : index
    %66 = vector.load %arg2[%c2_54, %c0_55, %c0_56] : memref<9x72x1xbf16, #tpu.memory_space<vmem>>, vector<1x72x1xbf16>
    %67 = vector.shape_cast %66 : vector<1x72x1xbf16> to vector<72x1xbf16>
    %68 = vector.broadcast %67 : vector<72x1xbf16> to vector<72x64xbf16>
    %69 = arith.mulf %65, %68 : vector<72x64xbf16>
    %c9_57 = arith.constant 9 : index
    %c0_58 = arith.constant 0 : index
    %70 = vector.load %arg8[%c9_57, %c0_58] : memref<92x64xbf16, #tpu.memory_space<vmem>>, vector<72x64xbf16>
    %c3_59 = arith.constant 3 : index
    %c0_60 = arith.constant 0 : index
    %c0_61 = arith.constant 0 : index
    %71 = vector.load %arg2[%c3_59, %c0_60, %c0_61] : memref<9x72x1xbf16, #tpu.memory_space<vmem>>, vector<1x72x1xbf16>
    %72 = vector.shape_cast %71 : vector<1x72x1xbf16> to vector<72x1xbf16>
    %73 = vector.broadcast %72 : vector<72x1xbf16> to vector<72x64xbf16>
    %74 = arith.mulf %70, %73 : vector<72x64xbf16>
    %c10_62 = arith.constant 10 : index
    %c0_63 = arith.constant 0 : index
    %75 = vector.load %arg8[%c10_62, %c0_63] : memref<92x64xbf16, #tpu.memory_space<vmem>>, vector<72x64xbf16>
    %c11_64 = arith.constant 11 : index
    %c0_65 = arith.constant 0 : index
    %76 = vector.load %arg8[%c11_64, %c0_65] : memref<92x64xbf16, #tpu.memory_space<vmem>>, vector<72x64xbf16>
    %c5_66 = arith.constant 5 : index
    %c0_67 = arith.constant 0 : index
    %c0_68 = arith.constant 0 : index
    %77 = vector.load %arg2[%c5_66, %c0_67, %c0_68] : memref<9x72x1xbf16, #tpu.memory_space<vmem>>, vector<1x72x1xbf16>
    %78 = vector.shape_cast %77 : vector<1x72x1xbf16> to vector<72x1xbf16>
    %79 = vector.broadcast %78 : vector<72x1xbf16> to vector<72x64xbf16>
    %80 = arith.mulf %76, %79 : vector<72x64xbf16>
    %c18_69 = arith.constant 18 : index
    %c0_70 = arith.constant 0 : index
    %81 = vector.load %arg8[%c18_69, %c0_70] : memref<92x64xbf16, #tpu.memory_space<vmem>>, vector<72x64xbf16>
    %c6_71 = arith.constant 6 : index
    %c0_72 = arith.constant 0 : index
    %c0_73 = arith.constant 0 : index
    %82 = vector.load %arg2[%c6_71, %c0_72, %c0_73] : memref<9x72x1xbf16, #tpu.memory_space<vmem>>, vector<1x72x1xbf16>
    %83 = vector.shape_cast %82 : vector<1x72x1xbf16> to vector<72x1xbf16>
    %84 = vector.broadcast %83 : vector<72x1xbf16> to vector<72x64xbf16>
    %85 = arith.mulf %81, %84 : vector<72x64xbf16>
    %c19_74 = arith.constant 19 : index
    %c0_75 = arith.constant 0 : index
    %86 = vector.load %arg8[%c19_74, %c0_75] : memref<92x64xbf16, #tpu.memory_space<vmem>>, vector<72x64xbf16>
    %c7_76 = arith.constant 7 : index
    %c0_77 = arith.constant 0 : index
    %c0_78 = arith.constant 0 : index
    %87 = vector.load %arg2[%c7_76, %c0_77, %c0_78] : memref<9x72x1xbf16, #tpu.memory_space<vmem>>, vector<1x72x1xbf16>
    %88 = vector.shape_cast %87 : vector<1x72x1xbf16> to vector<72x1xbf16>
    %89 = vector.broadcast %88 : vector<72x1xbf16> to vector<72x64xbf16>
    %90 = arith.mulf %86, %89 : vector<72x64xbf16>
    %c20_79 = arith.constant 20 : index
    %c0_80 = arith.constant 0 : index
    %91 = vector.load %arg8[%c20_79, %c0_80] : memref<92x64xbf16, #tpu.memory_space<vmem>>, vector<72x64xbf16>
    %c8_81 = arith.constant 8 : index
    %c0_82 = arith.constant 0 : index
    %c0_83 = arith.constant 0 : index
    %92 = vector.load %arg2[%c8_81, %c0_82, %c0_83] : memref<9x72x1xbf16, #tpu.memory_space<vmem>>, vector<1x72x1xbf16>
    %93 = vector.shape_cast %92 : vector<1x72x1xbf16> to vector<72x1xbf16>
    %94 = vector.broadcast %93 : vector<72x1xbf16> to vector<72x64xbf16>
    %95 = arith.mulf %91, %94 : vector<72x64xbf16>
    %96 = tpu.concatenate %59, %64, %69, %74, %75, %80, %85, %90, %95 in 1 : vector<72x64xbf16>, vector<72x64xbf16>, vector<72x64xbf16>, vector<72x64xbf16>, vector<72x64xbf16>, vector<72x64xbf16>, vector<72x64xbf16>, vector<72x64xbf16>, vector<72x64xbf16> -> vector<72x576xbf16>
    %c0_84 = arith.constant 0 : index
    %c0_85 = arith.constant 0 : index
    %97 = vector.load %arg5[%c0_84, %c0_85] : memref<576x64xbf16, #tpu.memory_space<vmem>>, vector<576x64xbf16>
    %cst_86 = arith.constant dense<0.000000e+00> : vector<72x64xf32>
    %98 = tpu.matmul %96, %97, %cst_86 {dimension_numbers = #tpu.dot_dimension_numbers<[1], [0], [0], [1], [0, 0, 1, 1], [], []>} : vector<72x576xbf16>, vector<576x64xbf16>, vector<72x64xf32> -> vector<72x64xf32>
    %c0_87 = arith.constant 0 : index
    %c0_88 = arith.constant 0 : index
    %99 = vector.load %arg6[%c0_87, %c0_88] : memref<1x64xf32, #tpu.memory_space<vmem>>, vector<1x64xf32>
    %100 = vector.broadcast %99 : vector<1x64xf32> to vector<72x64xf32>
    %101 = arith.addf %98, %100 : vector<72x64xf32>
    %cst_89 = arith.constant 0.000000e+00 : f32
    %102 = vector.broadcast %cst_89 : f32 to vector<72x64xf32>
    %103 = arith.maximumf %101, %102 : vector<72x64xf32>
    %104 = arith.truncf %103 : vector<72x64xf32> to vector<72x64xbf16>
    %c0_90 = arith.constant 0 : index
    %c0_91 = arith.constant 0 : index
    %105 = vector.load %arg7[%c0_90, %c0_91] : memref<72x64xbf16, #tpu.memory_space<vmem>>, vector<72x64xbf16>
    tpu.vector_store %arg7[%c0_90, %c0_91], %104 {strides = array<i32>} : memref<72x64xbf16, #tpu.memory_space<vmem>>, vector<72x64xbf16>,
    return
  }
  func.func @transform_0(%arg0: i32) -> (i32, i32) {
    %c0_i32 = arith.constant 0 : i32
    %c0_i32_0 = arith.constant 0 : i32
    %c0_i32_1 = arith.constant 0 : i32
    return %c0_i32, %c0_i32_0 : i32, i32
  }
  func.func @transform_1(%arg0: i32) -> (i32, i32, i32) {
    %c0_i32 = arith.constant 0 : i32
    %c0_i32_0 = arith.constant 0 : i32
    %c0_i32_1 = arith.constant 0 : i32
    %c0_i32_2 = arith.constant 0 : i32
    return %c0_i32, %c0_i32_0, %c0_i32_1 : i32, i32, i32
  }
  func.func @transform_2(%arg0: i32) -> (i32, i32) {
    %c0_i32 = arith.constant 0 : i32
    %c0_i32_0 = arith.constant 0 : i32
    %c0_i32_1 = arith.constant 0 : i32
    return %c0_i32, %c0_i32_0 : i32, i32
  }
  func.func @transform_3(%arg0: i32) -> (i32, i32) {
    %c0_i32 = arith.constant 0 : i32
    %c0_i32_0 = arith.constant 0 : i32
    %c0_i32_1 = arith.constant 0 : i32
    return %c0_i32, %c0_i32_0 : i32, i32
  }
  func.func @transform_4(%arg0: i32) -> (i32, i32) {
    %c0_i32 = arith.constant 0 : i32
    %c0_i32_0 = arith.constant 0 : i32
    %c0_i32_1 = arith.constant 0 : i32
    return %c0_i32, %c0_i32_0 : i32, i32
  }
  func.func @transform_5(%arg0: i32) -> (i32, i32) {
    %c0_i32 = arith.constant 0 : i32
    %c0_i32_0 = arith.constant 0 : i32
    %c0_i32_1 = arith.constant 0 : i32
    return %c0_i32, %c0_i32_0 : i32, i32
  }
  func.func @transform_6(%arg0: i32) -> (i32, i32) {
    %c0_i32 = arith.constant 0 : i32
    %c0_i32_0 = arith.constant 0 : i32
    %c0_i32_1 = arith.constant 0 : i32
    return %c0_i32, %c0_i32_0 : i32, i32
  }
}

module attributes {stable_mosaic.version = 11 : i64} {
  func.func @_fc_beam_kernel(%arg0: i32, %arg1: memref<2x2304xbf16, #tpu.memory_space<vmem>>, %arg2: memref<2304x32xbf16, #tpu.memory_space<vmem>>, %arg3: memref<1x32xf32, #tpu.memory_space<vmem>>, %arg4: memref<32x16xbf16, #tpu.memory_space<vmem>>, %arg5: memref<1x16xf32, #tpu.memory_space<vmem>>, %arg6: memref<2x24x16xf32, #tpu.memory_space<vmem>>, %arg7: memref<24x24xf32, #tpu.memory_space<vmem>>, %arg8: memref<24x100xbf16, #tpu.memory_space<vmem>>, %arg9: memref<1x100xf32, #tpu.memory_space<vmem>>, %arg10: memref<100x100xbf16, #tpu.memory_space<vmem>>, %arg11: memref<1x100xf32, #tpu.memory_space<vmem>>, %arg12: memref<100x24xbf16, #tpu.memory_space<vmem>>, %arg13: memref<1x24xf32, #tpu.memory_space<vmem>>, %arg14: memref<2x128xf32, #tpu.memory_space<vmem>>) attributes {dimension_semantics = [#tpu.dimension_semantics<arbitrary>], iteration_bounds = array<i64: 1>, scalar_prefetch = 0 : i64, scratch_operands = 0 : i64, tpu.core_type = #tpu.core_type<tc>, window_params = [{pipeline_mode = #tpu.pipeline_mode<synchronous>, transform_indices = @transform_0, window_bounds = array<i64: 2, 2304>}, {pipeline_mode = #tpu.pipeline_mode<synchronous>, transform_indices = @transform_1, window_bounds = array<i64: 2304, 32>}, {pipeline_mode = #tpu.pipeline_mode<synchronous>, transform_indices = @transform_2, window_bounds = array<i64: 1, 32>}, {pipeline_mode = #tpu.pipeline_mode<synchronous>, transform_indices = @transform_3, window_bounds = array<i64: 32, 16>}, {pipeline_mode = #tpu.pipeline_mode<synchronous>, transform_indices = @transform_4, window_bounds = array<i64: 1, 16>}, {pipeline_mode = #tpu.pipeline_mode<synchronous>, transform_indices = @transform_5, window_bounds = array<i64: 2, 24, 16>}, {pipeline_mode = #tpu.pipeline_mode<synchronous>, transform_indices = @transform_6, window_bounds = array<i64: 24, 24>}, {pipeline_mode = #tpu.pipeline_mode<synchronous>, transform_indices = @transform_7, window_bounds = array<i64: 24, 100>}, {pipeline_mode = #tpu.pipeline_mode<synchronous>, transform_indices = @transform_8, window_bounds = array<i64: 1, 100>}, {pipeline_mode = #tpu.pipeline_mode<synchronous>, transform_indices = @transform_9, window_bounds = array<i64: 100, 100>}, {pipeline_mode = #tpu.pipeline_mode<synchronous>, transform_indices = @transform_10, window_bounds = array<i64: 1, 100>}, {pipeline_mode = #tpu.pipeline_mode<synchronous>, transform_indices = @transform_11, window_bounds = array<i64: 100, 24>}, {pipeline_mode = #tpu.pipeline_mode<synchronous>, transform_indices = @transform_12, window_bounds = array<i64: 1, 24>}, {pipeline_mode = #tpu.pipeline_mode<synchronous>, transform_indices = @transform_13, window_bounds = array<i64: 2, 128>}]} {
    %c0 = arith.constant 0 : index
    %c0_0 = arith.constant 0 : index
    %0 = vector.load %arg1[%c0, %c0_0] : memref<2x2304xbf16, #tpu.memory_space<vmem>>, vector<2x2304xbf16>
    %c0_1 = arith.constant 0 : index
    %c0_2 = arith.constant 0 : index
    %1 = vector.load %arg2[%c0_1, %c0_2] : memref<2304x32xbf16, #tpu.memory_space<vmem>>, vector<2304x32xbf16>
    %cst = arith.constant dense<0.000000e+00> : vector<2x32xf32>
    %2 = tpu.matmul %0, %1, %cst {dimension_numbers = #tpu.dot_dimension_numbers<[1], [0], [0], [1], [0, 0, 1, 1], [], []>} : vector<2x2304xbf16>, vector<2304x32xbf16>, vector<2x32xf32> -> vector<2x32xf32>
    %c0_3 = arith.constant 0 : index
    %c0_4 = arith.constant 0 : index
    %3 = vector.load %arg3[%c0_3, %c0_4] : memref<1x32xf32, #tpu.memory_space<vmem>>, vector<1x32xf32>
    %4 = vector.broadcast %3 : vector<1x32xf32> to vector<2x32xf32>
    %5 = arith.addf %2, %4 : vector<2x32xf32>
    %cst_5 = arith.constant 0.000000e+00 : f32
    %6 = vector.broadcast %cst_5 : f32 to vector<2x32xf32>
    %7 = arith.maximumf %5, %6 : vector<2x32xf32>
    %8 = arith.truncf %7 : vector<2x32xf32> to vector<2x32xbf16>
    %c0_6 = arith.constant 0 : index
    %c0_7 = arith.constant 0 : index
    %9 = vector.load %arg4[%c0_6, %c0_7] : memref<32x16xbf16, #tpu.memory_space<vmem>>, vector<32x16xbf16>
    %cst_8 = arith.constant dense<0.000000e+00> : vector<2x16xf32>
    %10 = tpu.matmul %8, %9, %cst_8 {dimension_numbers = #tpu.dot_dimension_numbers<[1], [0], [0], [1], [0, 0, 1, 1], [], []>} : vector<2x32xbf16>, vector<32x16xbf16>, vector<2x16xf32> -> vector<2x16xf32>
    %c0_9 = arith.constant 0 : index
    %c0_10 = arith.constant 0 : index
    %11 = vector.load %arg5[%c0_9, %c0_10] : memref<1x16xf32, #tpu.memory_space<vmem>>, vector<1x16xf32>
    %12 = vector.broadcast %11 : vector<1x16xf32> to vector<2x16xf32>
    %13 = arith.addf %10, %12 : vector<2x16xf32>
    %14 = vector.extract_strided_slice %13 {offsets = [0, 0], sizes = [2, 8], strides = [1, 1]} : vector<2x16xf32> to vector<2x8xf32>
    %15 = vector.extract_strided_slice %13 {offsets = [0, 8], sizes = [2, 8], strides = [1, 1]} : vector<2x16xf32> to vector<2x8xf32>
    %16 = arith.mulf %14, %14 : vector<2x8xf32>
    %17 = arith.mulf %15, %15 : vector<2x8xf32>
    %18 = arith.addf %16, %17 : vector<2x8xf32>
    %19 = math.sqrt %18 : vector<2x8xf32>
    %cst_11 = arith.constant 9.99999996E-13 : f32
    %20 = vector.broadcast %cst_11 : f32 to vector<2x8xf32>
    %21 = arith.maximumf %19, %20 : vector<2x8xf32>
    %22 = arith.divf %14, %21 : vector<2x8xf32>
    %23 = arith.divf %15, %21 : vector<2x8xf32>
    %24 = tpu.concatenate %22, %23 in 1 : vector<2x8xf32>, vector<2x8xf32> -> vector<2x16xf32>
    %c0_12 = arith.constant 0 : index
    %c0_13 = arith.constant 0 : index
    %c0_14 = arith.constant 0 : index
    %25 = vector.load %arg6[%c0_12, %c0_13, %c0_14] : memref<2x24x16xf32, #tpu.memory_space<vmem>>, vector<2x24x16xf32>
    %26 = vector.shape_cast %24 : vector<2x16xf32> to vector<2x1x16xf32>
    %27 = vector.broadcast %26 : vector<2x1x16xf32> to vector<2x24x16xf32>
    %28 = arith.mulf %25, %27 : vector<2x24x16xf32>
    %cst_15 = arith.constant dense<0.000000e+00> : vector<2x24xf32>
    %29 = vector.multi_reduction <add>, %28, %cst_15 [2] : vector<2x24x16xf32> to vector<2x24xf32>
    %30 = arith.truncf %29 : vector<2x24xf32> to vector<2x24xbf16>
    %c0_16 = arith.constant 0 : index
    %c0_17 = arith.constant 0 : index
    %31 = vector.load %arg8[%c0_16, %c0_17] : memref<24x100xbf16, #tpu.memory_space<vmem>>, vector<24x100xbf16>
    %cst_18 = arith.constant dense<0.000000e+00> : vector<2x100xf32>
    %32 = tpu.matmul %30, %31, %cst_18 {dimension_numbers = #tpu.dot_dimension_numbers<[1], [0], [0], [1], [0, 0, 1, 1], [], []>} : vector<2x24xbf16>, vector<24x100xbf16>, vector<2x100xf32> -> vector<2x100xf32>
    %c0_19 = arith.constant 0 : index
    %c0_20 = arith.constant 0 : index
    %33 = vector.load %arg9[%c0_19, %c0_20] : memref<1x100xf32, #tpu.memory_space<vmem>>, vector<1x100xf32>
    %34 = vector.broadcast %33 : vector<1x100xf32> to vector<2x100xf32>
    %35 = arith.addf %32, %34 : vector<2x100xf32>
    %cst_21 = arith.constant 0.000000e+00 : f32
    %36 = vector.broadcast %cst_21 : f32 to vector<2x100xf32>
    %37 = arith.maximumf %35, %36 : vector<2x100xf32>
    %38 = arith.truncf %37 : vector<2x100xf32> to vector<2x100xbf16>
    %c0_22 = arith.constant 0 : index
    %c0_23 = arith.constant 0 : index
    %39 = vector.load %arg10[%c0_22, %c0_23] : memref<100x100xbf16, #tpu.memory_space<vmem>>, vector<100x100xbf16>
    %cst_24 = arith.constant dense<0.000000e+00> : vector<2x100xf32>
    %40 = tpu.matmul %38, %39, %cst_24 {dimension_numbers = #tpu.dot_dimension_numbers<[1], [0], [0], [1], [0, 0, 1, 1], [], []>} : vector<2x100xbf16>, vector<100x100xbf16>, vector<2x100xf32> -> vector<2x100xf32>
    %c0_25 = arith.constant 0 : index
    %c0_26 = arith.constant 0 : index
    %41 = vector.load %arg11[%c0_25, %c0_26] : memref<1x100xf32, #tpu.memory_space<vmem>>, vector<1x100xf32>
    %42 = vector.broadcast %41 : vector<1x100xf32> to vector<2x100xf32>
    %43 = arith.addf %40, %42 : vector<2x100xf32>
    %cst_27 = arith.constant 0.000000e+00 : f32
    %44 = vector.broadcast %cst_27 : f32 to vector<2x100xf32>
    %45 = arith.maximumf %43, %44 : vector<2x100xf32>
    %46 = arith.truncf %45 : vector<2x100xf32> to vector<2x100xbf16>
    %c0_28 = arith.constant 0 : index
    %c0_29 = arith.constant 0 : index
    %47 = vector.load %arg12[%c0_28, %c0_29] : memref<100x24xbf16, #tpu.memory_space<vmem>>, vector<100x24xbf16>
    %cst_30 = arith.constant dense<0.000000e+00> : vector<2x24xf32>
    %48 = tpu.matmul %46, %47, %cst_30 {dimension_numbers = #tpu.dot_dimension_numbers<[1], [0], [0], [1], [0, 0, 1, 1], [], []>} : vector<2x100xbf16>, vector<100x24xbf16>, vector<2x24xf32> -> vector<2x24xf32>
    %c0_31 = arith.constant 0 : index
    %c0_32 = arith.constant 0 : index
    %49 = vector.load %arg13[%c0_31, %c0_32] : memref<1x24xf32, #tpu.memory_space<vmem>>, vector<1x24xf32>
    %50 = vector.broadcast %49 : vector<1x24xf32> to vector<2x24xf32>
    %51 = arith.addf %48, %50 : vector<2x24xf32>
    %52 = arith.mulf %51, %51 : vector<2x24xf32>
    %c0_33 = arith.constant 0 : index
    %c0_34 = arith.constant 0 : index
    %53 = vector.load %arg7[%c0_33, %c0_34] : memref<24x24xf32, #tpu.memory_space<vmem>>, vector<24x24xf32>
    %cst_35 = arith.constant dense<0.000000e+00> : vector<2x24xf32>
    %54 = tpu.matmul %52, %53, %cst_35 {dimension_numbers = #tpu.dot_dimension_numbers<[1], [0], [0], [1], [0, 0, 1, 1], [], []>} : vector<2x24xf32>, vector<24x24xf32>, vector<2x24xf32> -> vector<2x24xf32>
    %55 = math.sqrt %54 : vector<2x24xf32>
    %cst_36 = arith.constant 9.99999996E-13 : f32
    %56 = vector.broadcast %cst_36 : f32 to vector<2x24xf32>
    %57 = arith.maximumf %55, %56 : vector<2x24xf32>
    %58 = arith.divf %51, %57 : vector<2x24xf32>
    %cst_37 = arith.constant 1.05409253 : f32
    %59 = vector.broadcast %cst_37 : f32 to vector<2x24xf32>
    %60 = arith.mulf %58, %59 : vector<2x24xf32>
    %cst_38 = arith.constant 0.000000e+00 : f32
    %61 = vector.broadcast %cst_38 : f32 to vector<2x88xf32>
    %62 = tpu.concatenate %24, %60, %61 in 1 : vector<2x16xf32>, vector<2x24xf32>, vector<2x88xf32> -> vector<2x128xf32>
    %c0_39 = arith.constant 0 : index
    %c0_40 = arith.constant 0 : index
    %63 = vector.load %arg14[%c0_39, %c0_40] : memref<2x128xf32, #tpu.memory_space<vmem>>, vector<2x128xf32>
    tpu.vector_store %arg14[%c0_39, %c0_40], %62 {strides = array<i32>} : memref<2x128xf32, #tpu.memory_space<vmem>>, vector<2x128xf32>,
    return
  }
  func.func @transform_0(%arg0: i32) -> (i32, i32) {
    %c0_i32 = arith.constant 0 : i32
    %c0_i32_0 = arith.constant 0 : i32
    %c0_i32_1 = arith.constant 0 : i32
    return %c0_i32, %c0_i32_0 : i32, i32
  }
  func.func @transform_1(%arg0: i32) -> (i32, i32) {
    %c0_i32 = arith.constant 0 : i32
    %c0_i32_0 = arith.constant 0 : i32
    %c0_i32_1 = arith.constant 0 : i32
    return %c0_i32, %c0_i32_0 : i32, i32
  }
  func.func @transform_2(%arg0: i32) -> (i32, i32) {
    %c0_i32 = arith.constant 0 : i32
    %c0_i32_0 = arith.constant 0 : i32
    %c0_i32_1 = arith.constant 0 : i32
    return %c0_i32, %c0_i32_0 : i32, i32
  }
  func.func @transform_3(%arg0: i32) -> (i32, i32) {
    %c0_i32 = arith.constant 0 : i32
    %c0_i32_0 = arith.constant 0 : i32
    %c0_i32_1 = arith.constant 0 : i32
    return %c0_i32, %c0_i32_0 : i32, i32
  }
  func.func @transform_4(%arg0: i32) -> (i32, i32) {
    %c0_i32 = arith.constant 0 : i32
    %c0_i32_0 = arith.constant 0 : i32
    %c0_i32_1 = arith.constant 0 : i32
    return %c0_i32, %c0_i32_0 : i32, i32
  }
  func.func @transform_5(%arg0: i32) -> (i32, i32, i32) {
    %c0_i32 = arith.constant 0 : i32
    %c0_i32_0 = arith.constant 0 : i32
    %c0_i32_1 = arith.constant 0 : i32
    %c0_i32_2 = arith.constant 0 : i32
    return %c0_i32, %c0_i32_0, %c0_i32_1 : i32, i32, i32
  }
  func.func @transform_6(%arg0: i32) -> (i32, i32) {
    %c0_i32 = arith.constant 0 : i32
    %c0_i32_0 = arith.constant 0 : i32
    %c0_i32_1 = arith.constant 0 : i32
    return %c0_i32, %c0_i32_0 : i32, i32
  }
  func.func @transform_7(%arg0: i32) -> (i32, i32) {
    %c0_i32 = arith.constant 0 : i32
    %c0_i32_0 = arith.constant 0 : i32
    %c0_i32_1 = arith.constant 0 : i32
    return %c0_i32, %c0_i32_0 : i32, i32
  }
  func.func @transform_8(%arg0: i32) -> (i32, i32) {
    %c0_i32 = arith.constant 0 : i32
    %c0_i32_0 = arith.constant 0 : i32
    %c0_i32_1 = arith.constant 0 : i32
    return %c0_i32, %c0_i32_0 : i32, i32
  }
  func.func @transform_9(%arg0: i32) -> (i32, i32) {
    %c0_i32 = arith.constant 0 : i32
    %c0_i32_0 = arith.constant 0 : i32
    %c0_i32_1 = arith.constant 0 : i32
    return %c0_i32, %c0_i32_0 : i32, i32
  }
  func.func @transform_10(%arg0: i32) -> (i32, i32) {
    %c0_i32 = arith.constant 0 : i32
    %c0_i32_0 = arith.constant 0 : i32
    %c0_i32_1 = arith.constant 0 : i32
    return %c0_i32, %c0_i32_0 : i32, i32
  }
  func.func @transform_11(%arg0: i32) -> (i32, i32) {
    %c0_i32 = arith.constant 0 : i32
    %c0_i32_0 = arith.constant 0 : i32
    %c0_i32_1 = arith.constant 0 : i32
    return %c0_i32, %c0_i32_0 : i32, i32
  }
  func.func @transform_12(%arg0: i32) -> (i32, i32) {
    %c0_i32 = arith.constant 0 : i32
    %c0_i32_0 = arith.constant 0 : i32
    %c0_i32_1 = arith.constant 0 : i32
    return %c0_i32, %c0_i32_0 : i32, i32
  }
  func.func @transform_13(%arg0: i32) -> (i32, i32) {
    %c0_i32 = arith.constant 0 : i32
    %c0_i32_0 = arith.constant 0 : i32
    %c0_i32_1 = arith.constant 0 : i32
    return %c0_i32, %c0_i32_0 : i32, i32
  }
}

</mosaic_0001>

<llo_original>
// kernel: custom-call.5
$region0: #{custom-call.5}
  %s0 = inlined_call_operand.hbm [shape: c64[2,3,3], index: 0, kind: input, shape index: {}]
  %s1 = inlined_call_operand.vmem [shape: f32[2,3,3], index: 1, kind: output, shape index: {}]
  %s2 = scalar_lea.hbm %s0, 96
  $region1: #{custom-call.5} parent=0
    #allocation0 [shape = 's32[1]{0}', space=sflag, size = 0x4, scoped, tag = 'scoped memory for custom-call.5']
    %3 = vsyncpa [#allocation0], 0
    %s4 = sshll.u32 %s1, 4
    %s5 = int_to_ptr.vmem [resolvable:$true] %s4
    %7 = dma.hbm_to_vmem [thread:$0]  %s2, 96, %s5, [#allocation0]
    %8 = dma.done [#allocation0], 96
    %9 = vsyncpa [#allocation0], 1

// kernel: custom-call.4
$region0: #{custom-call.4}
  %s0 = inlined_call_operand.hbm [shape: c64[2,3,3], index: 0, kind: input, shape index: {}]
  %s1 = inlined_call_operand.vmem [shape: f32[2,3,3], index: 1, kind: output, shape index: {}]
  $region1: #{custom-call.4} parent=0
    #allocation0 [shape = 's32[1]{0}', space=sflag, size = 0x4, scoped, tag = 'scoped memory for custom-call.4']
    %2 = vsyncpa [#allocation0], 0
    %s3 = sshll.u32 %s1, 4
    %s4 = int_to_ptr.vmem [resolvable:$true] %s3
    %6 = dma.hbm_to_vmem [thread:$0]  %s0, 96, %s4, [#allocation0]
    %7 = dma.done [#allocation0], 96
    %8 = vsyncpa [#allocation0], 1

// kernel: custom-call.7
$region0: #{custom-call.7}
  %s0 = inlined_call_operand.hbm [shape: c64[2,3,8,3], index: 0, kind: input, shape index: {}]
  %s1 = inlined_call_operand.vmem [shape: f32[2,3,8,3], index: 1, kind: output, shape index: {}]
  %s2 = scalar_lea.hbm %s0, 288
  $region1: #{custom-call.7} parent=0
    #allocation0 [shape = 's32[1]{0}', space=sflag, size = 0x4, scoped, tag = 'scoped memory for custom-call.7']
    %3 = vsyncpa [#allocation0], 0
    %s4 = sshll.u32 %s1, 4
    %s5 = int_to_ptr.vmem [resolvable:$true] %s4
    %7 = dma.hbm_to_vmem [thread:$0]  %s2, 288, %s5, [#allocation0]
    %8 = dma.done [#allocation0], 288
    %9 = vsyncpa [#allocation0], 1

// kernel: custom-call.6
$region0: #{custom-call.6}
  %s0 = inlined_call_operand.hbm [shape: c64[2,3,8,3], index: 0, kind: input, shape index: {}]
  %s1 = inlined_call_operand.vmem [shape: f32[2,3,8,3], index: 1, kind: output, shape index: {}]
  $region1: #{custom-call.6} parent=0
    #allocation0 [shape = 's32[1]{0}', space=sflag, size = 0x4, scoped, tag = 'scoped memory for custom-call.6']
    %2 = vsyncpa [#allocation0], 0
    %s3 = sshll.u32 %s1, 4
    %s4 = int_to_ptr.vmem [resolvable:$true] %s3
    %6 = dma.hbm_to_vmem [thread:$0]  %s0, 288, %s4, [#allocation0]
    %7 = dma.done [#allocation0], 288
    %8 = vsyncpa [#allocation0], 1

// kernel: custom-call
$region0: #{custom-call}
  %s0 = inlined_call_operand.hbm [shape: c64[2,3,4], index: 0, kind: input, shape index: {}]
  %s1 = inlined_call_operand.vmem [shape: f32[2,3,4], index: 1, kind: output, shape index: {}]
  $region1: #{custom-call} parent=0
    #allocation0 [shape = 's32[1]{0}', space=sflag, size = 0x4, scoped, tag = 'scoped memory for custom-call']
    %2 = vsyncpa [#allocation0], 0
    %s3 = sshll.u32 %s1, 4
    %s4 = int_to_ptr.vmem [resolvable:$true] %s3
    %6 = dma.hbm_to_vmem [thread:$0]  %s0, 96, %s4, [#allocation0]
    %7 = dma.done [#allocation0], 96
    %8 = vsyncpa [#allocation0], 1

// kernel: custom-call.1
$region0: #{custom-call.1}
  %s0 = inlined_call_operand.hbm [shape: c64[2,3,4], index: 0, kind: input, shape index: {}]
  %s1 = inlined_call_operand.vmem [shape: f32[2,3,4], index: 1, kind: output, shape index: {}]
  %s2 = scalar_lea.hbm %s0, 96
  $region1: #{custom-call.1} parent=0
    #allocation0 [shape = 's32[1]{0}', space=sflag, size = 0x4, scoped, tag = 'scoped memory for custom-call.1']
    %3 = vsyncpa [#allocation0], 0
    %s4 = sshll.u32 %s1, 4
    %s5 = int_to_ptr.vmem [resolvable:$true] %s4
    %7 = dma.hbm_to_vmem [thread:$0]  %s2, 96, %s5, [#allocation0]
    %8 = dma.done [#allocation0], 96
    %9 = vsyncpa [#allocation0], 1

// kernel: custom-call.3
$region0: #{custom-call.3}
  %s0 = inlined_call_operand.hbm [shape: c64[2,4,8,3], index: 0, kind: input, shape index: {}]
  %s1 = inlined_call_operand.vmem [shape: f32[2,4,8,3], index: 1, kind: output, shape index: {}]
  %s2 = scalar_lea.hbm %s0, 384
  $region1: #{custom-call.3} parent=0
    #allocation0 [shape = 's32[1]{0}', space=sflag, size = 0x4, scoped, tag = 'scoped memory for custom-call.3']
    %3 = vsyncpa [#allocation0], 0
    %s4 = sshll.u32 %s1, 4
    %s5 = int_to_ptr.vmem [resolvable:$true] %s4
    %7 = dma.hbm_to_vmem [thread:$0]  %s2, 384, %s5, [#allocation0]
    %8 = dma.done [#allocation0], 384
    %9 = vsyncpa [#allocation0], 1

// kernel: custom-call.2
$region0: #{custom-call.2}
  %s0 = inlined_call_operand.hbm [shape: c64[2,4,8,3], index: 0, kind: input, shape index: {}]
  %s1 = inlined_call_operand.vmem [shape: f32[2,4,8,3], index: 1, kind: output, shape index: {}]
  $region1: #{custom-call.2} parent=0
    #allocation0 [shape = 's32[1]{0}', space=sflag, size = 0x4, scoped, tag = 'scoped memory for custom-call.2']
    %2 = vsyncpa [#allocation0], 0
    %s3 = sshll.u32 %s1, 4
    %s4 = int_to_ptr.vmem [resolvable:$true] %s3
    %6 = dma.hbm_to_vmem [thread:$0]  %s0, 384, %s4, [#allocation0]
    %7 = dma.done [#allocation0], 384
    %8 = vsyncpa [#allocation0], 1

// kernel: dnn_module_forward.7
$region0: #{dnn_module_forward.7}
  #allocation0 [shape = 'u32[]', space=smem, size = 0x4, offset = 0x4, fixed_abs, tag = 'smem constant byte address 0x4 - core index']
  #allocation1 [shape = 'u32[144,128]{1,0:T(1,128)}', space=vmem, size = 0x12000, scoped, tag = 'internal scratch']
  %s0 = inlined_call_operand.vmem [shape: bf16[2,1728], index: 0, kind: input, shape index: {}]
  %s1 = inlined_call_operand.vmem [shape: bf16[1728,32], index: 1, kind: input, shape index: {}]
  %s2 = inlined_call_operand.vmem [shape: f32[1,32], index: 2, kind: input, shape index: {}]
  %s3 = inlined_call_operand.vmem [shape: bf16[32,16], index: 3, kind: input, shape index: {}]
  %s4 = inlined_call_operand.vmem [shape: f32[1,16], index: 4, kind: input, shape index: {}]
  %s5 = inlined_call_operand.vmem [shape: f32[2,18,16], index: 5, kind: input, shape index: {}]
  %s6 = inlined_call_operand.vmem [shape: f32[18,18], index: 6, kind: input, shape index: {}]
  %s7 = inlined_call_operand.vmem [shape: bf16[18,100], index: 7, kind: input, shape index: {}]
  %s8 = inlined_call_operand.vmem [shape: f32[1,100], index: 8, kind: input, shape index: {}]
  %s9 = inlined_call_operand.vmem [shape: bf16[100,100], index: 9, kind: input, shape index: {}]
  %s10 = inlined_call_operand.vmem [shape: f32[1,100], index: 10, kind: input, shape index: {}]
  %s11 = inlined_call_operand.vmem [shape: bf16[100,18], index: 11, kind: input, shape index: {}]
  %s12 = inlined_call_operand.vmem [shape: f32[1,18], index: 12, kind: input, shape index: {}]
  %s13 = inlined_call_operand.vmem [shape: f32[2,128], index: 13, kind: output, shape index: {}]
  %s14 = sld [smem:[#allocation0]]
  $region62: #{dnn_module_forward.7} parent=0
    _
  %s16 = ssub.s32 1, %s14
  %s17 = scalar_select 0, %s16, %s14
  // Predicated region
  $region2: #{dnn_module_forward.7} parent=0 // pred_check
    _
  $region3: #{dnn_module_forward.7} parent=0 // pred_check_branch
    %19 = sbr.rel (0) target = $region5
  $region4: #{dnn_module_forward.7} parent=0 // pred_region
    _
  $region5: #{dnn_module_forward.7} parent=0 // pred_fallthru
    _
  // Predicated region
  $region6: #{dnn_module_forward.7} parent=0 // pred_check
    _
  $region7: #{dnn_module_forward.7} parent=0 // pred_check_branch
    %21 = sbr.rel (0) target = $region9
  $region8: #{dnn_module_forward.7} parent=0 // pred_region
    _
  $region9: #{dnn_module_forward.7} parent=0 // pred_fallthru
    _
  // Predicated region
  $region10: #{dnn_module_forward.7} parent=0 // pred_check
    _
  $region11: #{dnn_module_forward.7} parent=0 // pred_check_branch
    %23 = sbr.rel (0) target = $region13
  $region12: #{dnn_module_forward.7} parent=0 // pred_region
    _
  $region13: #{dnn_module_forward.7} parent=0 // pred_fallthru
    _
  // Predicated region
  $region14: #{dnn_module_forward.7} parent=0 // pred_check
    _
  $region15: #{dnn_module_forward.7} parent=0 // pred_check_branch
    %25 = sbr.rel (0) target = $region17
  $region16: #{dnn_module_forward.7} parent=0 // pred_region
    _
  $region17: #{dnn_module_forward.7} parent=0 // pred_fallthru
    _
  // Predicated region
  $region18: #{dnn_module_forward.7} parent=0 // pred_check
    _
  $region19: #{dnn_module_forward.7} parent=0 // pred_check_branch
    %27 = sbr.rel (0) target = $region21
  $region20: #{dnn_module_forward.7} parent=0 // pred_region
    _
  $region21: #{dnn_module_forward.7} parent=0 // pred_fallthru
    _
  // Predicated region
  $region22: #{dnn_module_forward.7} parent=0 // pred_check
    _
  $region23: #{dnn_module_forward.7} parent=0 // pred_check_branch
    %29 = sbr.rel (0) target = $region25
  $region24: #{dnn_module_forward.7} parent=0 // pred_region
    _
  $region25: #{dnn_module_forward.7} parent=0 // pred_fallthru
    _
  // Predicated region
  $region26: #{dnn_module_forward.7} parent=0 // pred_check
    _
  $region27: #{dnn_module_forward.7} parent=0 // pred_check_branch
    %31 = sbr.rel (0) target = $region29
  $region28: #{dnn_module_forward.7} parent=0 // pred_region
    _
  $region29: #{dnn_module_forward.7} parent=0 // pred_fallthru
    _
  // Predicated region
  $region30: #{dnn_module_forward.7} parent=0 // pred_check
    _
  $region31: #{dnn_module_forward.7} parent=0 // pred_check_branch
    %33 = sbr.rel (0) target = $region33
  $region32: #{dnn_module_forward.7} parent=0 // pred_region
    _
  $region33: #{dnn_module_forward.7} parent=0 // pred_fallthru
    _
  // Predicated region
  $region34: #{dnn_module_forward.7} parent=0 // pred_check
    _
  $region35: #{dnn_module_forward.7} parent=0 // pred_check_branch
    %35 = sbr.rel (0) target = $region37
  $region36: #{dnn_module_forward.7} parent=0 // pred_region
    _
  $region37: #{dnn_module_forward.7} parent=0 // pred_fallthru
    _
  // Predicated region
  $region38: #{dnn_module_forward.7} parent=0 // pred_check
    _
  $region39: #{dnn_module_forward.7} parent=0 // pred_check_branch
    %37 = sbr.rel (0) target = $region41
  $region40: #{dnn_module_forward.7} parent=0 // pred_region
    _
  $region41: #{dnn_module_forward.7} parent=0 // pred_fallthru
    _
  // Predicated region
  $region42: #{dnn_module_forward.7} parent=0 // pred_check
    _
  $region43: #{dnn_module_forward.7} parent=0 // pred_check_branch
    %39 = sbr.rel (0) target = $region45
  $region44: #{dnn_module_forward.7} parent=0 // pred_region
    _
  $region45: #{dnn_module_forward.7} parent=0 // pred_fallthru
    _
  // Predicated region
  $region46: #{dnn_module_forward.7} parent=0 // pred_check
    _
  $region47: #{dnn_module_forward.7} parent=0 // pred_check_branch
    %41 = sbr.rel (0) target = $region49
  $region48: #{dnn_module_forward.7} parent=0 // pred_region
    _
  $region49: #{dnn_module_forward.7} parent=0 // pred_fallthru
    _
  // Predicated region
  $region50: #{dnn_module_forward.7} parent=0 // pred_check
    _
  $region51: #{dnn_module_forward.7} parent=0 // pred_check_branch
    %43 = sbr.rel (0) target = $region53
  $region52: #{dnn_module_forward.7} parent=0 // pred_region
    _
  $region53: #{dnn_module_forward.7} parent=0 // pred_fallthru
    _
  %v45 = vld [vmem:[%s0] sm:$0xff]
  %v46 = vld [vmem:[%s0 + $0x8] sm:$0x3f]
  %v47 = vld [vmem:[%s1] sm:$0xf]
  %v48 = vld [vmem:[%s1 + $0x4] sm:$0xf]
  %v49 = vld [vmem:[%s1 + $0x8] sm:$0xf]
  %v50 = vld [vmem:[%s1 + $0xc] sm:$0xf]
  %v51 = vld [vmem:[%s1 + $0x10] sm:$0xf]
  %v52 = vld [vmem:[%s1 + $0x14] sm:$0xf]
  %v53 = vld [vmem:[%s1 + $0x18] sm:$0xf]
  %v54 = vld [vmem:[%s1 + $0x1c] sm:$0xf]
  %v55 = vld [vmem:[%s1 + $0x20] sm:$0xf]
  %v56 = vld [vmem:[%s1 + $0x24] sm:$0xf]
  %v57 = vld [vmem:[%s1 + $0x28] sm:$0xf]
  %v58 = vld [vmem:[%s1 + $0x2c] sm:$0xf]
  %v59 = vld [vmem:[%s1 + $0x30] sm:$0xf]
  %v60 = vld [vmem:[%s1 + $0x34] sm:$0xf]
  %v61 = vld [vmem:[%s1 + $0x38] sm:$0xf]
  %v62 = vld [vmem:[%s1 + $0x3c] sm:$0xf]
  %v63 = vld [vmem:[%s1 + $0x40] sm:$0xf]
  %v64 = vld [vmem:[%s1 + $0x44] sm:$0xf]
  %v65 = vld [vmem:[%s1 + $0x48] sm:$0xf]
  %v66 = vld [vmem:[%s1 + $0x4c] sm:$0xf]
  %v67 = vld [vmem:[%s1 + $0x50] sm:$0xf]
  %v68 = vld [vmem:[%s1 + $0x54] sm:$0xf]
  %v69 = vld [vmem:[%s1 + $0x58] sm:$0xf]
  %v70 = vld [vmem:[%s1 + $0x5c] sm:$0xf]
  %v71 = vld [vmem:[%s1 + $0x60] sm:$0xf]
  %v72 = vld [vmem:[%s1 + $0x64] sm:$0xf]
  %v73 = vld [vmem:[%s1 + $0x68] sm:$0xf]
  %v74 = vld [vmem:[%s1 + $0x6c] sm:$0xf]
  %v75 = vld [vmem:[%s1 + $0x70] sm:$0xf]
  %v76 = vld [vmem:[%s1 + $0x74] sm:$0xf]
  %v77 = vld [vmem:[%s1 + $0x78] sm:$0xf]
  %v78 = vld [vmem:[%s1 + $0x7c] sm:$0xf]
  %v79 = vld [vmem:[%s1 + $0x80] sm:$0xf]
  %v80 = vld [vmem:[%s1 + $0x84] sm:$0xf]
  %v81 = vld [vmem:[%s1 + $0x88] sm:$0xf]
  %v82 = vld [vmem:[%s1 + $0x8c] sm:$0xf]
  %v83 = vld [vmem:[%s1 + $0x90] sm:$0xf]
  %v84 = vld [vmem:[%s1 + $0x94] sm:$0xf]
  %v85 = vld [vmem:[%s1 + $0x98] sm:$0xf]
  %v86 = vld [vmem:[%s1 + $0x9c] sm:$0xf]
  %v87 = vld [vmem:[%s1 + $0xa0] sm:$0xf]
  %v88 = vld [vmem:[%s1 + $0xa4] sm:$0xf]
  %v89 = vld [vmem:[%s1 + $0xa8] sm:$0xf]
  %v90 = vld [vmem:[%s1 + $0xac] sm:$0xf]
  %v91 = vld [vmem:[%s1 + $0xb0] sm:$0xf]
  %v92 = vld [vmem:[%s1 + $0xb4] sm:$0xf]
  %v93 = vld [vmem:[%s1 + $0xb8] sm:$0xf]
  %v94 = vld [vmem:[%s1 + $0xbc] sm:$0xf]
  %v95 = vld [vmem:[%s1 + $0xc0] sm:$0xf]
  %v96 = vld [vmem:[%s1 + $0xc4] sm:$0xf]
  %v97 = vld [vmem:[%s1 + $0xc8] sm:$0xf]
  %v98 = vld [vmem:[%s1 + $0xcc] sm:$0xf]
  %v99 = vld [vmem:[%s1 + $0xd0] sm:$0xf]
  %v100 = vld [vmem:[%s1 + $0xd4] sm:$0xf]
  %v101 = vld [vmem:[%s1 + $0xd8] sm:$0xf]
  %v102 = vld [vmem:[%s1 + $0xdc] sm:$0xf]
  %v103 = vld [vmem:[%s1 + $0xe0] sm:$0xf]
  %v104 = vld [vmem:[%s1 + $0xe4] sm:$0xf]
  %v105 = vld [vmem:[%s1 + $0xe8] sm:$0xf]
  %v106 = vld [vmem:[%s1 + $0xec] sm:$0xf]
  %v107 = vld [vmem:[%s1 + $0xf0] sm:$0xf]
  %v108 = vld [vmem:[%s1 + $0xf4] sm:$0xf]
  %v109 = vld [vmem:[%s1 + $0xf8] sm:$0xf]
  %v110 = vld [vmem:[%s1 + $0xfc] sm:$0xf]
  %v111 = vld [vmem:[%s1 + $0x100] sm:$0xf]
  %v112 = vld [vmem:[%s1 + $0x104] sm:$0xf]
  %v113 = vld [vmem:[%s1 + $0x108] sm:$0xf]
  %v114 = vld [vmem:[%s1 + $0x10c] sm:$0xf]
  %v115 = vld [vmem:[%s1 + $0x110] sm:$0xf]
  %v116 = vld [vmem:[%s1 + $0x114] sm:$0xf]
  %v117 = vld [vmem:[%s1 + $0x118] sm:$0xf]
  %v118 = vld [vmem:[%s1 + $0x11c] sm:$0xf]
  %v119 = vld [vmem:[%s1 + $0x120] sm:$0xf]
  %v120 = vld [vmem:[%s1 + $0x124] sm:$0xf]
  %v121 = vld [vmem:[%s1 + $0x128] sm:$0xf]
  %v122 = vld [vmem:[%s1 + $0x12c] sm:$0xf]
  %v123 = vld [vmem:[%s1 + $0x130] sm:$0xf]
  %v124 = vld [vmem:[%s1 + $0x134] sm:$0xf]
  %v125 = vld [vmem:[%s1 + $0x138] sm:$0xf]
  %v126 = vld [vmem:[%s1 + $0x13c] sm:$0xf]
  %v127 = vld [vmem:[%s1 + $0x140] sm:$0xf]
  %v128 = vld [vmem:[%s1 + $0x144] sm:$0xf]
  %v129 = vld [vmem:[%s1 + $0x148] sm:$0xf]
  %v130 = vld [vmem:[%s1 + $0x14c] sm:$0xf]
  %v131 = vld [vmem:[%s1 + $0x150] sm:$0xf]
  %v132 = vld [vmem:[%s1 + $0x154] sm:$0xf]
  %v133 = vld [vmem:[%s1 + $0x158] sm:$0xf]
  %v134 = vld [vmem:[%s1 + $0x15c] sm:$0xf]
  %v135 = vld [vmem:[%s1 + $0x160] sm:$0xf]
  %v136 = vld [vmem:[%s1 + $0x164] sm:$0xf]
  %v137 = vld [vmem:[%s1 + $0x168] sm:$0xf]
  %v138 = vld [vmem:[%s1 + $0x16c] sm:$0xf]
  %v139 = vld [vmem:[%s1 + $0x170] sm:$0xf]
  %v140 = vld [vmem:[%s1 + $0x174] sm:$0xf]
  %v141 = vld [vmem:[%s1 + $0x178] sm:$0xf]
  %v142 = vld [vmem:[%s1 + $0x17c] sm:$0xf]
  %v143 = vld [vmem:[%s1 + $0x180] sm:$0xf]
  %v144 = vld [vmem:[%s1 + $0x184] sm:$0xf]
  %v145 = vld [vmem:[%s1 + $0x188] sm:$0xf]
  %v146 = vld [vmem:[%s1 + $0x18c] sm:$0xf]
  %v147 = vld [vmem:[%s1 + $0x190] sm:$0xf]
  %v148 = vld [vmem:[%s1 + $0x194] sm:$0xf]
  %v149 = vld [vmem:[%s1 + $0x198] sm:$0xf]
  %v150 = vld [vmem:[%s1 + $0x19c] sm:$0xf]
  %v151 = vld [vmem:[%s1 + $0x1a0] sm:$0xf]
  %v152 = vld [vmem:[%s1 + $0x1a4] sm:$0xf]
  %v153 = vld [vmem:[%s1 + $0x1a8] sm:$0xf]
  %v154 = vld [vmem:[%s1 + $0x1ac] sm:$0xf]
  %v155 = vld [vmem:[%s1 + $0x1b0] sm:$0xf]
  %v156 = vld [vmem:[%s1 + $0x1b4] sm:$0xf]
  %v157 = vld [vmem:[%s1 + $0x1b8] sm:$0xf]
  %v158 = vld [vmem:[%s1 + $0x1bc] sm:$0xf]
  %v159 = vld [vmem:[%s1 + $0x1c0] sm:$0xf]
  %v160 = vld [vmem:[%s1 + $0x1c4] sm:$0xf]
  %v161 = vld [vmem:[%s1 + $0x1c8] sm:$0xf]
  %v162 = vld [vmem:[%s1 + $0x1cc] sm:$0xf]
  %v163 = vld [vmem:[%s1 + $0x1d0] sm:$0xf]
  %v164 = vld [vmem:[%s1 + $0x1d4] sm:$0xf]
  %v165 = vld [vmem:[%s1 + $0x1d8] sm:$0xf]
  %v166 = vld [vmem:[%s1 + $0x1dc] sm:$0xf]
  %v167 = vld [vmem:[%s1 + $0x1e0] sm:$0xf]
  %v168 = vld [vmem:[%s1 + $0x1e4] sm:$0xf]
  %v169 = vld [vmem:[%s1 + $0x1e8] sm:$0xf]
  %v170 = vld [vmem:[%s1 + $0x1ec] sm:$0xf]
  %v171 = vld [vmem:[%s1 + $0x1f0] sm:$0xf]
  %v172 = vld [vmem:[%s1 + $0x1f4] sm:$0xf]
  %v173 = vld [vmem:[%s1 + $0x1f8] sm:$0xf]
  %v174 = vld [vmem:[%s1 + $0x1fc] sm:$0xf]
  %v175 = vld [vmem:[%s1 + $0x200] sm:$0xf]
  %v176 = vld [vmem:[%s1 + $0x204] sm:$0xf]
  %v177 = vld [vmem:[%s1 + $0x208] sm:$0xf]
  %v178 = vld [vmem:[%s1 + $0x20c] sm:$0xf]
  %v179 = vld [vmem:[%s1 + $0x210] sm:$0xf]
  %v180 = vld [vmem:[%s1 + $0x214] sm:$0xf]
  %v181 = vld [vmem:[%s1 + $0x218] sm:$0xf]
  %v182 = vld [vmem:[%s1 + $0x21c] sm:$0xf]
  %v183 = vld [vmem:[%s1 + $0x220] sm:$0xf]
  %v184 = vld [vmem:[%s1 + $0x224] sm:$0xf]
  %v185 = vld [vmem:[%s1 + $0x228] sm:$0xf]
  %v186 = vld [vmem:[%s1 + $0x22c] sm:$0xf]
  %v187 = vld [vmem:[%s1 + $0x230] sm:$0xf]
  %v188 = vld [vmem:[%s1 + $0x234] sm:$0xf]
  %v189 = vld [vmem:[%s1 + $0x238] sm:$0xf]
  %v190 = vld [vmem:[%s1 + $0x23c] sm:$0xf]
  %v191 = vld [vmem:[%s1 + $0x240] sm:$0xf]
  %v192 = vld [vmem:[%s1 + $0x244] sm:$0xf]
  %v193 = vld [vmem:[%s1 + $0x248] sm:$0xf]
  %v194 = vld [vmem:[%s1 + $0x24c] sm:$0xf]
  %v195 = vld [vmem:[%s1 + $0x250] sm:$0xf]
  %v196 = vld [vmem:[%s1 + $0x254] sm:$0xf]
  %v197 = vld [vmem:[%s1 + $0x258] sm:$0xf]
  %v198 = vld [vmem:[%s1 + $0x25c] sm:$0xf]
  %v199 = vld [vmem:[%s1 + $0x260] sm:$0xf]
  %v200 = vld [vmem:[%s1 + $0x264] sm:$0xf]
  %v201 = vld [vmem:[%s1 + $0x268] sm:$0xf]
  %v202 = vld [vmem:[%s1 + $0x26c] sm:$0xf]
  %v203 = vld [vmem:[%s1 + $0x270] sm:$0xf]
  %v204 = vld [vmem:[%s1 + $0x274] sm:$0xf]
  %v205 = vld [vmem:[%s1 + $0x278] sm:$0xf]
  %v206 = vld [vmem:[%s1 + $0x27c] sm:$0xf]
  %v207 = vld [vmem:[%s1 + $0x280] sm:$0xf]
  %v208 = vld [vmem:[%s1 + $0x284] sm:$0xf]
  %v209 = vld [vmem:[%s1 + $0x288] sm:$0xf]
  %v210 = vld [vmem:[%s1 + $0x28c] sm:$0xf]
  %v211 = vld [vmem:[%s1 + $0x290] sm:$0xf]
  %v212 = vld [vmem:[%s1 + $0x294] sm:$0xf]
  %v213 = vld [vmem:[%s1 + $0x298] sm:$0xf]
  %v214 = vld [vmem:[%s1 + $0x29c] sm:$0xf]
  %v215 = vld [vmem:[%s1 + $0x2a0] sm:$0xf]
  %v216 = vld [vmem:[%s1 + $0x2a4] sm:$0xf]
  %v217 = vld [vmem:[%s1 + $0x2a8] sm:$0xf]
  %v218 = vld [vmem:[%s1 + $0x2ac] sm:$0xf]
  %v219 = vld [vmem:[%s1 + $0x2b0] sm:$0xf]
  %v220 = vld [vmem:[%s1 + $0x2b4] sm:$0xf]
  %v221 = vld [vmem:[%s1 + $0x2b8] sm:$0xf]
  %v222 = vld [vmem:[%s1 + $0x2bc] sm:$0xf]
  %v223 = vld [vmem:[%s1 + $0x2c0] sm:$0xf]
  %v224 = vld [vmem:[%s1 + $0x2c4] sm:$0xf]
  %v225 = vld [vmem:[%s1 + $0x2c8] sm:$0xf]
  %v226 = vld [vmem:[%s1 + $0x2cc] sm:$0xf]
  %v227 = vld [vmem:[%s1 + $0x2d0] sm:$0xf]
  %v228 = vld [vmem:[%s1 + $0x2d4] sm:$0xf]
  %v229 = vld [vmem:[%s1 + $0x2d8] sm:$0xf]
  %v230 = vld [vmem:[%s1 + $0x2dc] sm:$0xf]
  %v231 = vld [vmem:[%s1 + $0x2e0] sm:$0xf]
  %v232 = vld [vmem:[%s1 + $0x2e4] sm:$0xf]
  %v233 = vld [vmem:[%s1 + $0x2e8] sm:$0xf]
  %v234 = vld [vmem:[%s1 + $0x2ec] sm:$0xf]
  %v235 = vld [vmem:[%s1 + $0x2f0] sm:$0xf]
  %v236 = vld [vmem:[%s1 + $0x2f4] sm:$0xf]
  %v237 = vld [vmem:[%s1 + $0x2f8] sm:$0xf]
  %v238 = vld [vmem:[%s1 + $0x2fc] sm:$0xf]
  %v239 = vld [vmem:[%s1 + $0x300] sm:$0xf]
  %v240 = vld [vmem:[%s1 + $0x304] sm:$0xf]
  %v241 = vld [vmem:[%s1 + $0x308] sm:$0xf]
  %v242 = vld [vmem:[%s1 + $0x30c] sm:$0xf]
  %v243 = vld [vmem:[%s1 + $0x310] sm:$0xf]
  %v244 = vld [vmem:[%s1 + $0x314] sm:$0xf]
  %v245 = vld [vmem:[%s1 + $0x318] sm:$0xf]
  %v246 = vld [vmem:[%s1 + $0x31c] sm:$0xf]
  %v247 = vld [vmem:[%s1 + $0x320] sm:$0xf]
  %v248 = vld [vmem:[%s1 + $0x324] sm:$0xf]
  %v249 = vld [vmem:[%s1 + $0x328] sm:$0xf]
  %v250 = vld [vmem:[%s1 + $0x32c] sm:$0xf]
  %v251 = vld [vmem:[%s1 + $0x330] sm:$0xf]
  %v252 = vld [vmem:[%s1 + $0x334] sm:$0xf]
  %v253 = vld [vmem:[%s1 + $0x338] sm:$0xf]
  %v254 = vld [vmem:[%s1 + $0x33c] sm:$0xf]
  %v255 = vld [vmem:[%s1 + $0x340] sm:$0xf]
  %v256 = vld [vmem:[%s1 + $0x344] sm:$0xf]
  %v257 = vld [vmem:[%s1 + $0x348] sm:$0xf]
  %v258 = vld [vmem:[%s1 + $0x34c] sm:$0xf]
  %v259 = vld [vmem:[%s1 + $0x350] sm:$0xf]
  %v260 = vld [vmem:[%s1 + $0x354] sm:$0xf]
  %v261 = vld [vmem:[%s1 + $0x358] sm:$0xf]
  %v262 = vld [vmem:[%s1 + $0x35c] sm:$0xf]
  %v263 = vld [vmem:[%s2] sm:$0x1]
  %v265 = vlaneseq
  %v266 = vshrl.u32 %v265, 7
  %v267 = vsub.s32 0, %v266
  %v268 = vrot.slane %v263, %v267
  %v272 = vcombine.high %v45, %v45
  %v274 = vunpack.c.l.s4 1966171168
  %v275 = vunpack.c.0.s8 %v274
  %v276 = vlaneseq
  %v277 = vshrl.u32 %v276, 7
  %v278 = vsub.s32 %v275, %v277
  %v279 = vrot.slane %v45, %v278
  %v281 = vunpack.c.l.s4 1966171168
  %v282 = vunpack.c.0.s8 %v281
  %v283 = vlaneseq
  %v284 = vshrl.u32 %v283, 7
  %v285 = vsub.s32 %v282, %v284
  %v286 = vrot.slane %v272, %v285
  %v287 = vcombine.high %v279, %v279
  %v288 = vcombine.high %v286, %v286
  %v290 = vunpack.c.l.s4 1966171168
  %v291 = vunpack.c.0.s8 %v290
  %v292 = vlaneseq
  %v293 = vshrl.u32 %v292, 7
  %v294 = vsub.s32 %v291, %v293
  %v295 = vrot.slane %v279, %v294
  %v297 = vunpack.c.l.s4 1966171168
  %v298 = vunpack.c.0.s8 %v297
  %v299 = vlaneseq
  %v300 = vshrl.u32 %v299, 7
  %v301 = vsub.s32 %v298, %v300
  %v302 = vrot.slane %v286, %v301
  %v304 = vunpack.c.l.s4 1966171168
  %v305 = vunpack.c.0.s8 %v304
  %v306 = vlaneseq
  %v307 = vshrl.u32 %v306, 7
  %v308 = vsub.s32 %v305, %v307
  %v309 = vrot.slane %v287, %v308
  %v311 = vunpack.c.l.s4 1966171168
  %v312 = vunpack.c.0.s8 %v311
  %v313 = vlaneseq
  %v314 = vshrl.u32 %v313, 7
  %v315 = vsub.s32 %v312, %v314
  %v316 = vrot.slane %v288, %v315
  %v317 = vcombine.high %v295, %v295
  %v318 = vcombine.high %v302, %v302
  %v319 = vcombine.high %v309, %v309
  %v320 = vcombine.high %v316, %v316
  %v321 = vcombine.high %v46, %v46
  %v323 = vunpack.c.l.s4 1966171168
  %v324 = vunpack.c.0.s8 %v323
  %v325 = vlaneseq
  %v326 = vshrl.u32 %v325, 7
  %v327 = vsub.s32 %v324, %v326
  %v328 = vrot.slane %v46, %v327
  %v330 = vunpack.c.l.s4 1966171168
  %v331 = vunpack.c.0.s8 %v330
  %v332 = vlaneseq
  %v333 = vshrl.u32 %v332, 7
  %v334 = vsub.s32 %v331, %v333
  %v335 = vrot.slane %v321, %v334
  %v336 = vcombine.high %v328, %v328
  %v337 = vcombine.high %v335, %v335
  %v339 = vunpack.c.l.s4 1966171168
  %v340 = vunpack.c.0.s8 %v339
  %v341 = vlaneseq
  %v342 = vshrl.u32 %v341, 7
  %v343 = vsub.s32 %v340, %v342
  %v344 = vrot.slane %v328, %v343
  %v346 = vunpack.c.l.s4 1966171168
  %v347 = vunpack.c.0.s8 %v346
  %v348 = vlaneseq
  %v349 = vshrl.u32 %v348, 7
  %v350 = vsub.s32 %v347, %v349
  %v351 = vrot.slane %v335, %v350
  %v353 = vunpack.c.l.s4 1966171168
  %v354 = vunpack.c.0.s8 %v353
  %v355 = vlaneseq
  %v356 = vshrl.u32 %v355, 7
  %v357 = vsub.s32 %v354, %v356
  %v358 = vrot.slane %v336, %v357
  %v360 = vunpack.c.l.s4 1966171168
  %v361 = vunpack.c.0.s8 %v360
  %v362 = vlaneseq
  %v363 = vshrl.u32 %v362, 7
  %v364 = vsub.s32 %v361, %v363
  %v365 = vrot.slane %v337, %v364
  %v366 = vcombine.high %v344, %v344
  %v367 = vcombine.high %v358, %v358
  %v597 = vunpack.c.l.b16 %v47
  %v598 = vunpack.c.l.b16 %v48
  %v599 = vunpack.c.l.b16 %v49
  %v600 = vunpack.c.l.b16 %v50
  %v601 = vunpack.c.l.b16 %v51
  %v602 = vunpack.c.l.b16 %v52
  %v603 = vunpack.c.l.b16 %v53
  %v604 = vunpack.c.l.b16 %v54
  %v605 = vunpack.c.l.b16 %v55
  %v606 = vunpack.c.l.b16 %v56
  %v607 = vunpack.c.l.b16 %v57
  %v608 = vunpack.c.l.b16 %v58
  %v609 = vunpack.c.l.b16 %v59
  %v610 = vunpack.c.l.b16 %v60
  %v611 = vunpack.c.l.b16 %v61
  %v612 = vunpack.c.l.b16 %v62
  %v613 = vunpack.c.l.b16 %v63
  %v614 = vunpack.c.l.b16 %v64
  %v615 = vunpack.c.l.b16 %v65
  %v616 = vunpack.c.l.b16 %v66
  %v617 = vunpack.c.l.b16 %v67
  %v618 = vunpack.c.l.b16 %v68
  %v619 = vunpack.c.l.b16 %v69
  %v620 = vunpack.c.l.b16 %v70
  %v621 = vunpack.c.l.b16 %v71
  %v622 = vunpack.c.l.b16 %v72
  %v623 = vunpack.c.l.b16 %v73
  %v624 = vunpack.c.l.b16 %v74
  %v625 = vunpack.c.l.b16 %v75
  %v626 = vunpack.c.l.b16 %v76
  %v627 = vunpack.c.l.b16 %v77
  %v628 = vunpack.c.l.b16 %v78
  %v629 = vunpack.c.l.b16 %v79
  %v630 = vunpack.c.l.b16 %v80
  %v631 = vunpack.c.l.b16 %v81
  %v632 = vunpack.c.l.b16 %v82
  %v633 = vunpack.c.l.b16 %v83
  %v634 = vunpack.c.l.b16 %v84
  %v635 = vunpack.c.l.b16 %v85
  %v636 = vunpack.c.l.b16 %v86
  %v637 = vunpack.c.l.b16 %v87
  %v638 = vunpack.c.l.b16 %v88
  %v639 = vunpack.c.l.b16 %v89
  %v640 = vunpack.c.l.b16 %v90
  %v641 = vunpack.c.l.b16 %v91
  %v642 = vunpack.c.l.b16 %v92
  %v643 = vunpack.c.l.b16 %v93
  %v644 = vunpack.c.l.b16 %v94
  %v645 = vunpack.c.l.b16 %v95
  %v646 = vunpack.c.l.b16 %v96
  %v647 = vunpack.c.l.b16 %v97
  %v648 = vunpack.c.l.b16 %v98
  %v649 = vunpack.c.l.b16 %v99
  %v650 = vunpack.c.l.b16 %v100
  %v651 = vunpack.c.l.b16 %v101
  %v652 = vunpack.c.l.b16 %v102
  %v653 = vunpack.c.l.b16 %v103
  %v654 = vunpack.c.l.b16 %v104
  %v655 = vunpack.c.l.b16 %v105
  %v656 = vunpack.c.l.b16 %v106
  %v657 = vunpack.c.l.b16 %v107
  %v658 = vunpack.c.l.b16 %v108
  %v659 = vunpack.c.l.b16 %v109
  %v660 = vunpack.c.l.b16 %v110
  %v661 = vunpack.c.l.b16 %v111
  %v662 = vunpack.c.l.b16 %v112
  %v663 = vunpack.c.l.b16 %v113
  %v664 = vunpack.c.l.b16 %v114
  %v665 = vunpack.c.l.b16 %v115
  %v666 = vunpack.c.l.b16 %v116
  %v667 = vunpack.c.l.b16 %v117
  %v668 = vunpack.c.l.b16 %v118
  %v669 = vunpack.c.l.b16 %v119
  %v670 = vunpack.c.l.b16 %v120
  %v671 = vunpack.c.l.b16 %v121
  %v672 = vunpack.c.l.b16 %v122
  %v673 = vunpack.c.l.b16 %v123
  %v674 = vunpack.c.l.b16 %v124
  %v675 = vunpack.c.l.b16 %v125
  %v676 = vunpack.c.l.b16 %v126
  %v677 = vunpack.c.l.b16 %v127
  %v678 = vunpack.c.l.b16 %v128
  %v679 = vunpack.c.l.b16 %v129
  %v680 = vunpack.c.l.b16 %v130
  %v681 = vunpack.c.l.b16 %v131
  %v682 = vunpack.c.l.b16 %v132
  %v683 = vunpack.c.l.b16 %v133
  %v684 = vunpack.c.l.b16 %v134
  %v685 = vunpack.c.l.b16 %v135
  %v686 = vunpack.c.l.b16 %v136
  %v687 = vunpack.c.l.b16 %v137
  %v688 = vunpack.c.l.b16 %v138
  %v689 = vunpack.c.l.b16 %v139
  %v690 = vunpack.c.l.b16 %v140
  %v691 = vunpack.c.l.b16 %v141
  %v692 = vunpack.c.l.b16 %v142
  %v693 = vunpack.c.l.b16 %v143
  %v694 = vunpack.c.l.b16 %v144
  %v695 = vunpack.c.l.b16 %v145
  %v696 = vunpack.c.l.b16 %v146
  %v697 = vunpack.c.l.b16 %v147
  %v698 = vunpack.c.l.b16 %v148
  %v699 = vunpack.c.l.b16 %v149
  %v700 = vunpack.c.l.b16 %v150
  %v701 = vunpack.c.l.b16 %v151
  %v702 = vunpack.c.l.b16 %v152
  %v703 = vunpack.c.l.b16 %v153
  %v704 = vunpack.c.l.b16 %v154
  %v705 = vunpack.c.l.b16 %v155
  %v706 = vunpack.c.l.b16 %v156
  %v707 = vunpack.c.l.b16 %v157
  %v708 = vunpack.c.l.b16 %v158
  %v709 = vunpack.c.l.b16 %v159
  %v710 = vunpack.c.l.b16 %v160
  %v711 = vunpack.c.l.b16 %v161
  %v712 = vunpack.c.l.b16 %v162
  %v713 = vunpack.c.l.b16 %v163
  %v714 = vunpack.c.l.b16 %v164
  %v715 = vunpack.c.l.b16 %v165
  %v716 = vunpack.c.l.b16 %v166
  %v717 = vunpack.c.l.b16 %v167
  %v718 = vunpack.c.l.b16 %v168
  %v719 = vunpack.c.l.b16 %v169
  %v720 = vunpack.c.l.b16 %v170
  %v721 = vunpack.c.l.b16 %v171
  %v722 = vunpack.c.l.b16 %v172
  %v723 = vunpack.c.l.b16 %v173
  %v724 = vunpack.c.l.b16 %v174
  %v725 = vunpack.c.l.b16 %v175
  %v726 = vunpack.c.l.b16 %v176
  %v727 = vunpack.c.l.b16 %v177
  %v728 = vunpack.c.l.b16 %v178
  %v729 = vunpack.c.l.b16 %v179
  %v730 = vunpack.c.l.b16 %v180
  %v731 = vunpack.c.l.b16 %v181
  %v732 = vunpack.c.l.b16 %v182
  %v733 = vunpack.c.l.b16 %v183
  %v734 = vunpack.c.l.b16 %v184
  %v735 = vunpack.c.l.b16 %v185
  %v736 = vunpack.c.l.b16 %v186
  %v737 = vunpack.c.l.b16 %v187
  %v738 = vunpack.c.l.b16 %v188
  %v739 = vunpack.c.l.b16 %v189
  %v740 = vunpack.c.l.b16 %v190
  %v741 = vunpack.c.l.b16 %v191
  %v742 = vunpack.c.l.b16 %v192
  %v743 = vunpack.c.l.b16 %v193
  %v744 = vunpack.c.l.b16 %v194
  %v745 = vunpack.c.l.b16 %v195
  %v746 = vunpack.c.l.b16 %v196
  %v747 = vunpack.c.l.b16 %v197
  %v748 = vunpack.c.l.b16 %v198
  %v749 = vunpack.c.l.b16 %v199
  %v750 = vunpack.c.l.b16 %v200
  %v751 = vunpack.c.l.b16 %v201
  %v752 = vunpack.c.l.b16 %v202
  %v753 = vunpack.c.l.b16 %v203
  %v754 = vunpack.c.l.b16 %v204
  %v755 = vunpack.c.l.b16 %v205
  %v756 = vunpack.c.l.b16 %v206
  %v757 = vunpack.c.l.b16 %v207
  %v758 = vunpack.c.l.b16 %v208
  %v759 = vunpack.c.l.b16 %v209
  %v760 = vunpack.c.l.b16 %v210
  %v761 = vunpack.c.l.b16 %v211
  %v762 = vunpack.c.l.b16 %v212
  %v763 = vunpack.c.l.b16 %v213
  %v764 = vunpack.c.l.b16 %v214
  %v765 = vunpack.c.l.b16 %v215
  %v766 = vunpack.c.l.b16 %v216
  %v767 = vunpack.c.l.b16 %v217
  %v768 = vunpack.c.l.b16 %v218
  %v769 = vunpack.c.l.b16 %v219
  %v770 = vunpack.c.l.b16 %v220
  %v771 = vunpack.c.l.b16 %v221
  %v772 = vunpack.c.l.b16 %v222
  %v773 = vunpack.c.l.b16 %v223
  %v774 = vunpack.c.l.b16 %v224
  %v775 = vunpack.c.l.b16 %v225
  %v776 = vunpack.c.l.b16 %v226
  %v777 = vunpack.c.l.b16 %v227
  %v778 = vunpack.c.l.b16 %v228
  %v779 = vunpack.c.l.b16 %v229
  %v780 = vunpack.c.l.b16 %v230
  %v781 = vunpack.c.l.b16 %v231
  %v782 = vunpack.c.l.b16 %v232
  %v783 = vunpack.c.l.b16 %v233
  %v784 = vunpack.c.l.b16 %v234
  %v785 = vunpack.c.l.b16 %v235
  %v786 = vunpack.c.l.b16 %v236
  %v787 = vunpack.c.l.b16 %v237
  %v788 = vunpack.c.l.b16 %v238
  %v789 = vunpack.c.l.b16 %v239
  %v790 = vunpack.c.l.b16 %v240
  %v791 = vunpack.c.l.b16 %v241
  %v792 = vunpack.c.l.b16 %v242
  %v793 = vunpack.c.l.b16 %v243
  %v794 = vunpack.c.l.b16 %v244
  %v795 = vunpack.c.l.b16 %v245
  %v796 = vunpack.c.l.b16 %v246
  %v797 = vunpack.c.l.b16 %v247
  %v798 = vunpack.c.l.b16 %v248
  %v799 = vunpack.c.l.b16 %v249
  %v800 = vunpack.c.l.b16 %v250
  %v801 = vunpack.c.l.b16 %v251
  %v802 = vunpack.c.l.b16 %v252
  %v803 = vunpack.c.l.b16 %v253
  %v804 = vunpack.c.l.b16 %v254
  %v805 = vunpack.c.l.b16 %v255
  %v806 = vunpack.c.l.b16 %v256
  %v807 = vunpack.c.l.b16 %v257
  %v808 = vunpack.c.l.b16 %v258
  %v809 = vunpack.c.l.b16 %v259
  %v810 = vunpack.c.l.b16 %v260
  %v811 = vunpack.c.l.b16 %v261
  %v812 = vunpack.c.l.b16 %v262
  %v813 = vpack.c.b16 %v598, %v597
  %v814 = vpack.c.b16 %v600, %v599
  %v815 = vpack.c.b16 %v602, %v601
  %v816 = vpack.c.b16 %v604, %v603
  %v817 = vpack.c.b16 %v606, %v605
  %v818 = vpack.c.b16 %v608, %v607
  %v819 = vpack.c.b16 %v610, %v609
  %v820 = vpack.c.b16 %v612, %v611
  %v821 = vpack.c.b16 %v614, %v613
  %v822 = vpack.c.b16 %v616, %v615
  %v823 = vpack.c.b16 %v618, %v617
  %v824 = vpack.c.b16 %v620, %v619
  %v825 = vpack.c.b16 %v622, %v621
  %v826 = vpack.c.b16 %v624, %v623
  %v827 = vpack.c.b16 %v626, %v625
  %v828 = vpack.c.b16 %v628, %v627
  %v829 = vpack.c.b16 %v630, %v629
  %v830 = vpack.c.b16 %v632, %v631
  %v831 = vpack.c.b16 %v634, %v633
  %v832 = vpack.c.b16 %v636, %v635
  %v833 = vpack.c.b16 %v638, %v637
  %v834 = vpack.c.b16 %v640, %v639
  %v835 = vpack.c.b16 %v642, %v641
  %v836 = vpack.c.b16 %v644, %v643
  %v837 = vpack.c.b16 %v646, %v645
  %v838 = vpack.c.b16 %v648, %v647
  %v839 = vpack.c.b16 %v650, %v649
  %v840 = vpack.c.b16 %v652, %v651
  %v841 = vpack.c.b16 %v654, %v653
  %v842 = vpack.c.b16 %v656, %v655
  %v843 = vpack.c.b16 %v658, %v657
  %v844 = vpack.c.b16 %v660, %v659
  %v845 = vpack.c.b16 %v662, %v661
  %v846 = vpack.c.b16 %v664, %v663
  %v847 = vpack.c.b16 %v666, %v665
  %v848 = vpack.c.b16 %v668, %v667
  %v849 = vpack.c.b16 %v670, %v669
  %v850 = vpack.c.b16 %v672, %v671
  %v851 = vpack.c.b16 %v674, %v673
  %v852 = vpack.c.b16 %v676, %v675
  %v853 = vpack.c.b16 %v678, %v677
  %v854 = vpack.c.b16 %v680, %v679
  %v855 = vpack.c.b16 %v682, %v681
  %v856 = vpack.c.b16 %v684, %v683
  %v857 = vpack.c.b16 %v686, %v685
  %v858 = vpack.c.b16 %v688, %v687
  %v859 = vpack.c.b16 %v690, %v689
  %v860 = vpack.c.b16 %v692, %v691
  %v861 = vpack.c.b16 %v694, %v693
  %v862 = vpack.c.b16 %v696, %v695
  %v863 = vpack.c.b16 %v698, %v697
  %v864 = vpack.c.b16 %v700, %v699
  %v865 = vpack.c.b16 %v702, %v701
  %v866 = vpack.c.b16 %v704, %v703
  %v867 = vpack.c.b16 %v706, %v705
  %v868 = vpack.c.b16 %v708, %v707
  %v869 = vpack.c.b16 %v710, %v709
  %v870 = vpack.c.b16 %v712, %v711
  %v871 = vpack.c.b16 %v714, %v713
  %v872 = vpack.c.b16 %v716, %v715
  %v873 = vpack.c.b16 %v718, %v717
  %v874 = vpack.c.b16 %v720, %v719
  %v875 = vpack.c.b16 %v722, %v721
  %v876 = vpack.c.b16 %v724, %v723
  %v877 = vpack.c.b16 %v726, %v725
  %v878 = vpack.c.b16 %v728, %v727
  %v879 = vpack.c.b16 %v730, %v729
  %v880 = vpack.c.b16 %v732, %v731
  %v881 = vpack.c.b16 %v734, %v733
  %v882 = vpack.c.b16 %v736, %v735
  %v883 = vpack.c.b16 %v738, %v737
  %v884 = vpack.c.b16 %v740, %v739
  %v885 = vpack.c.b16 %v742, %v741
  %v886 = vpack.c.b16 %v744, %v743
  %v887 = vpack.c.b16 %v746, %v745
  %v888 = vpack.c.b16 %v748, %v747
  %v889 = vpack.c.b16 %v750, %v749
  %v890 = vpack.c.b16 %v752, %v751
  %v891 = vpack.c.b16 %v754, %v753
  %v892 = vpack.c.b16 %v756, %v755
  %v893 = vpack.c.b16 %v758, %v757
  %v894 = vpack.c.b16 %v760, %v759
  %v895 = vpack.c.b16 %v762, %v761
  %v896 = vpack.c.b16 %v764, %v763
  %v897 = vpack.c.b16 %v766, %v765
  %v898 = vpack.c.b16 %v768, %v767
  %v899 = vpack.c.b16 %v770, %v769
  %v900 = vpack.c.b16 %v772, %v771
  %v901 = vpack.c.b16 %v774, %v773
  %v902 = vpack.c.b16 %v776, %v775
  %v903 = vpack.c.b16 %v778, %v777
  %v904 = vpack.c.b16 %v780, %v779
  %v905 = vpack.c.b16 %v782, %v781
  %v906 = vpack.c.b16 %v784, %v783
  %v907 = vpack.c.b16 %v786, %v785
  %v908 = vpack.c.b16 %v788, %v787
  %v909 = vpack.c.b16 %v790, %v789
  %v910 = vpack.c.b16 %v792, %v791
  %v911 = vpack.c.b16 %v794, %v793
  %v912 = vpack.c.b16 %v796, %v795
  %v913 = vpack.c.b16 %v798, %v797
  %v914 = vpack.c.b16 %v800, %v799
  %v915 = vpack.c.b16 %v802, %v801
  %v916 = vpack.c.b16 %v804, %v803
  %v917 = vpack.c.b16 %v806, %v805
  %v918 = vpack.c.b16 %v808, %v807
  %v919 = vpack.c.b16 %v810, %v809
  %v920 = vpack.c.b16 %v812, %v811
  %vm1029 = vcmask 523264
  %v1031 = vsel %vm1029, %v365, 0
  %1033 = vmatprep.subr.bf16.mxu0 0
  %1034 = vmatpush1.bf16.msra.mxu0 %v820
  %1035 = vmatprep.subr.bf16.mxu0 0
  %1036 = vmatpush1.bf16.msra.mxu0 %v819
  %1037 = vmatprep.subr.bf16.mxu0 0
  %1038 = vmatpush1.bf16.msra.mxu0 %v818
  %1039 = vmatprep.subr.bf16.mxu0 0
  %1040 = vmatpush1.bf16.msra.mxu0 %v817
  %1041 = vmatprep.subr.bf16.mxu0 0
  %1042 = vmatpush1.bf16.msra.mxu0 %v816
  %1043 = vmatprep.subr.bf16.mxu0 0
  %1044 = vmatpush1.bf16.msra.mxu0 %v815
  %1045 = vmatprep.subr.bf16.mxu0 0
  %1046 = vmatpush1.bf16.msra.mxu0 %v814
  %1047 = vmatprep.subr.bf16.mxu0 0
  %1048 = vmatpush1.bf16.msra.mxu0 %v813
  %1049 = vmatprep.subr.bf16.mxu0 0
  %1050 = vmatpush2.bf16.msra.mxu0 %v828
  %1051 = vmatprep.subr.bf16.mxu0 0
  %1052 = vmatpush2.bf16.msra.mxu0 %v827
  %1053 = vmatprep.subr.bf16.mxu0 0
  %1054 = vmatpush2.bf16.msra.mxu0 %v826
  %1055 = vmatprep.subr.bf16.mxu0 0
  %1056 = vmatpush2.bf16.msra.mxu0 %v825
  %1057 = vmatprep.subr.bf16.mxu0 0
  %1058 = vmatpush2.bf16.msra.mxu0 %v824
  %1059 = vmatprep.subr.bf16.mxu0 0
  %1060 = vmatpush2.bf16.msra.mxu0 %v823
  %1061 = vmatprep.subr.bf16.mxu0 0
  %1062 = vmatpush2.bf16.msra.mxu0 %v822
  %1063 = vmatprep.subr.bf16.mxu0 0
  %1064 = vmatpush2.bf16.msra.mxu0 %v821
  %1065 = vmatprep.mubr.bf16.mxu0 %v309
  %1066 = vmatmul.mubr.bf16.gmra.mxu0 %v295
  %v1067 = vpop.f32.mrf.mxu0
  %v1068 = vadd.f32 %v268, %v1067
  %v1069 = vpop.f32.mrf.mxu0
  %v1070 = vpop.f32.mrf.mxu0
  %v1071 = vpop.f32.mrf.mxu0
  %1072 = vdwg.mxu0
  %1073 = vmatprep.subr.bf16.mxu0 0
  %1074 = vmatpush1.bf16.msra.mxu0 %v836
  %1075 = vmatprep.subr.bf16.mxu0 0
  %1076 = vmatpush1.bf16.msra.mxu0 %v835
  %1077 = vmatprep.subr.bf16.mxu0 0
  %1078 = vmatpush1.bf16.msra.mxu0 %v834
  %1079 = vmatprep.subr.bf16.mxu0 0
  %1080 = vmatpush1.bf16.msra.mxu0 %v833
  %1081 = vmatprep.subr.bf16.mxu0 0
  %1082 = vmatpush1.bf16.msra.mxu0 %v832
  %1083 = vmatprep.subr.bf16.mxu0 0
  %1084 = vmatpush1.bf16.msra.mxu0 %v831
  %1085 = vmatprep.subr.bf16.mxu0 0
  %1086 = vmatpush1.bf16.msra.mxu0 %v830
  %1087 = vmatprep.subr.bf16.mxu0 0
  %1088 = vmatpush1.bf16.msra.mxu0 %v829
  %1089 = vmatprep.subr.bf16.mxu0 0
  %1090 = vmatpush2.bf16.msra.mxu0 %v844
  %1091 = vmatprep.subr.bf16.mxu0 0
  %1092 = vmatpush2.bf16.msra.mxu0 %v843
  %1093 = vmatprep.subr.bf16.mxu0 0
  %1094 = vmatpush2.bf16.msra.mxu0 %v842
  %1095 = vmatprep.subr.bf16.mxu0 0
  %1096 = vmatpush2.bf16.msra.mxu0 %v841
  %1097 = vmatprep.subr.bf16.mxu0 0
  %1098 = vmatpush2.bf16.msra.mxu0 %v840
  %1099 = vmatprep.subr.bf16.mxu0 0
  %1100 = vmatpush2.bf16.msra.mxu0 %v839
  %1101 = vmatprep.subr.bf16.mxu0 0
  %1102 = vmatpush2.bf16.msra.mxu0 %v838
  %1103 = vmatprep.subr.bf16.mxu0 0
  %1104 = vmatpush2.bf16.msra.mxu0 %v837
  %1105 = vmatprep.mubr.bf16.mxu0 %v319
  %1106 = vmatmul.mubr.bf16.gmra.mxu0 %v317
  %v1107 = vpop.f32.mrf.mxu0
  %v1108 = vadd.f32 %v1068, %v1107
  %v1109 = vpop.f32.mrf.mxu0
  %v1110 = vpop.f32.mrf.mxu0
  %v1111 = vpop.f32.mrf.mxu0
  %1112 = vdwg.mxu0
  %1113 = vmatprep.subr.bf16.mxu0 0
  %1114 = vmatpush1.bf16.msra.mxu0 %v852
  %1115 = vmatprep.subr.bf16.mxu0 0
  %1116 = vmatpush1.bf16.msra.mxu0 %v851
  %1117 = vmatprep.subr.bf16.mxu0 0
  %1118 = vmatpush1.bf16.msra.mxu0 %v850
  %1119 = vmatprep.subr.bf16.mxu0 0
  %1120 = vmatpush1.bf16.msra.mxu0 %v849
  %1121 = vmatprep.subr.bf16.mxu0 0
  %1122 = vmatpush1.bf16.msra.mxu0 %v848
  %1123 = vmatprep.subr.bf16.mxu0 0
  %1124 = vmatpush1.bf16.msra.mxu0 %v847
  %1125 = vmatprep.subr.bf16.mxu0 0
  %1126 = vmatpush1.bf16.msra.mxu0 %v846
  %1127 = vmatprep.subr.bf16.mxu0 0
  %1128 = vmatpush1.bf16.msra.mxu0 %v845
  %1129 = vmatprep.subr.bf16.mxu0 0
  %1130 = vmatpush2.bf16.msra.mxu0 %v860
  %1131 = vmatprep.subr.bf16.mxu0 0
  %1132 = vmatpush2.bf16.msra.mxu0 %v859
  %1133 = vmatprep.subr.bf16.mxu0 0
  %1134 = vmatpush2.bf16.msra.mxu0 %v858
  %1135 = vmatprep.subr.bf16.mxu0 0
  %1136 = vmatpush2.bf16.msra.mxu0 %v857
  %1137 = vmatprep.subr.bf16.mxu0 0
  %1138 = vmatpush2.bf16.msra.mxu0 %v856
  %1139 = vmatprep.subr.bf16.mxu0 0
  %1140 = vmatpush2.bf16.msra.mxu0 %v855
  %1141 = vmatprep.subr.bf16.mxu0 0
  %1142 = vmatpush2.bf16.msra.mxu0 %v854
  %1143 = vmatprep.subr.bf16.mxu0 0
  %1144 = vmatpush2.bf16.msra.mxu0 %v853
  %1145 = vmatprep.mubr.bf16.mxu0 %v316
  %1146 = vmatmul.mubr.bf16.gmra.mxu0 %v302
  %v1147 = vpop.f32.mrf.mxu0
  %v1148 = vadd.f32 %v1108, %v1147
  %v1149 = vpop.f32.mrf.mxu0
  %v1150 = vpop.f32.mrf.mxu0
  %v1151 = vpop.f32.mrf.mxu0
  %1152 = vdwg.mxu0
  %1153 = vmatprep.subr.bf16.mxu0 0
  %1154 = vmatpush1.bf16.msra.mxu0 %v868
  %1155 = vmatprep.subr.bf16.mxu0 0
  %1156 = vmatpush1.bf16.msra.mxu0 %v867
  %1157 = vmatprep.subr.bf16.mxu0 0
  %1158 = vmatpush1.bf16.msra.mxu0 %v866
  %1159 = vmatprep.subr.bf16.mxu0 0
  %1160 = vmatpush1.bf16.msra.mxu0 %v865
  %1161 = vmatprep.subr.bf16.mxu0 0
  %1162 = vmatpush1.bf16.msra.mxu0 %v864
  %1163 = vmatprep.subr.bf16.mxu0 0
  %1164 = vmatpush1.bf16.msra.mxu0 %v863
  %1165 = vmatprep.subr.bf16.mxu0 0
  %1166 = vmatpush1.bf16.msra.mxu0 %v862
  %1167 = vmatprep.subr.bf16.mxu0 0
  %1168 = vmatpush1.bf16.msra.mxu0 %v861
  %1169 = vmatprep.subr.bf16.mxu0 0
  %1170 = vmatpush2.bf16.msra.mxu0 %v876
  %1171 = vmatprep.subr.bf16.mxu0 0
  %1172 = vmatpush2.bf16.msra.mxu0 %v875
  %1173 = vmatprep.subr.bf16.mxu0 0
  %1174 = vmatpush2.bf16.msra.mxu0 %v874
  %1175 = vmatprep.subr.bf16.mxu0 0
  %1176 = vmatpush2.bf16.msra.mxu0 %v873
  %1177 = vmatprep.subr.bf16.mxu0 0
  %1178 = vmatpush2.bf16.msra.mxu0 %v872
  %1179 = vmatprep.subr.bf16.mxu0 0
  %1180 = vmatpush2.bf16.msra.mxu0 %v871
  %1181 = vmatprep.subr.bf16.mxu0 0
  %1182 = vmatpush2.bf16.msra.mxu0 %v870
  %1183 = vmatprep.subr.bf16.mxu0 0
  %1184 = vmatpush2.bf16.msra.mxu0 %v869
  %1185 = vmatprep.mubr.bf16.mxu0 %v320
  %1186 = vmatmul.mubr.bf16.gmra.mxu0 %v318
  %v1187 = vpop.f32.mrf.mxu0
  %v1188 = vadd.f32 %v1148, %v1187
  %v1189 = vpop.f32.mrf.mxu0
  %v1190 = vpop.f32.mrf.mxu0
  %v1191 = vpop.f32.mrf.mxu0
  %1192 = vdwg.mxu0
  %1193 = vmatprep.subr.bf16.mxu0 0
  %1194 = vmatpush1.bf16.msra.mxu0 %v884
  %1195 = vmatprep.subr.bf16.mxu0 0
  %1196 = vmatpush1.bf16.msra.mxu0 %v883
  %1197 = vmatprep.subr.bf16.mxu0 0
  %1198 = vmatpush1.bf16.msra.mxu0 %v882
  %1199 = vmatprep.subr.bf16.mxu0 0
  %1200 = vmatpush1.bf16.msra.mxu0 %v881
  %1201 = vmatprep.subr.bf16.mxu0 0
  %1202 = vmatpush1.bf16.msra.mxu0 %v880
  %1203 = vmatprep.subr.bf16.mxu0 0
  %1204 = vmatpush1.bf16.msra.mxu0 %v879
  %1205 = vmatprep.subr.bf16.mxu0 0
  %1206 = vmatpush1.bf16.msra.mxu0 %v878
  %1207 = vmatprep.subr.bf16.mxu0 0
  %1208 = vmatpush1.bf16.msra.mxu0 %v877
  %1209 = vmatprep.subr.bf16.mxu0 0
  %1210 = vmatpush2.bf16.msra.mxu0 %v892
  %1211 = vmatprep.subr.bf16.mxu0 0
  %1212 = vmatpush2.bf16.msra.mxu0 %v891
  %1213 = vmatprep.subr.bf16.mxu0 0
  %1214 = vmatpush2.bf16.msra.mxu0 %v890
  %1215 = vmatprep.subr.bf16.mxu0 0
  %1216 = vmatpush2.bf16.msra.mxu0 %v889
  %1217 = vmatprep.subr.bf16.mxu0 0
  %1218 = vmatpush2.bf16.msra.mxu0 %v888
  %1219 = vmatprep.subr.bf16.mxu0 0
  %1220 = vmatpush2.bf16.msra.mxu0 %v887
  %1221 = vmatprep.subr.bf16.mxu0 0
  %1222 = vmatpush2.bf16.msra.mxu0 %v886
  %1223 = vmatprep.subr.bf16.mxu0 0
  %1224 = vmatpush2.bf16.msra.mxu0 %v885
  %1225 = vmatprep.mubr.bf16.mxu0 %v358
  %1226 = vmatmul.mubr.bf16.gmra.mxu0 %v344
  %v1227 = vpop.f32.mrf.mxu0
  %v1228 = vadd.f32 %v1188, %v1227
  %v1229 = vpop.f32.mrf.mxu0
  %v1230 = vpop.f32.mrf.mxu0
  %v1231 = vpop.f32.mrf.mxu0
  %1232 = vdwg.mxu0
  %1233 = vmatprep.subr.bf16.mxu0 0
  %1234 = vmatpush1.bf16.msra.mxu0 %v900
  %1235 = vmatprep.subr.bf16.mxu0 0
  %1236 = vmatpush1.bf16.msra.mxu0 %v899
  %1237 = vmatprep.subr.bf16.mxu0 0
  %1238 = vmatpush1.bf16.msra.mxu0 %v898
  %1239 = vmatprep.subr.bf16.mxu0 0
  %1240 = vmatpush1.bf16.msra.mxu0 %v897
  %1241 = vmatprep.subr.bf16.mxu0 0
  %1242 = vmatpush1.bf16.msra.mxu0 %v896
  %1243 = vmatprep.subr.bf16.mxu0 0
  %1244 = vmatpush1.bf16.msra.mxu0 %v895
  %1245 = vmatprep.subr.bf16.mxu0 0
  %1246 = vmatpush1.bf16.msra.mxu0 %v894
  %1247 = vmatprep.subr.bf16.mxu0 0
  %1248 = vmatpush1.bf16.msra.mxu0 %v893
  %1249 = vmatprep.subr.bf16.mxu0 0
  %1250 = vmatpush2.bf16.msra.mxu0 %v908
  %1251 = vmatprep.subr.bf16.mxu0 0
  %1252 = vmatpush2.bf16.msra.mxu0 %v907
  %1253 = vmatprep.subr.bf16.mxu0 0
  %1254 = vmatpush2.bf16.msra.mxu0 %v906
  %1255 = vmatprep.subr.bf16.mxu0 0
  %1256 = vmatpush2.bf16.msra.mxu0 %v905
  %1257 = vmatprep.subr.bf16.mxu0 0
  %1258 = vmatpush2.bf16.msra.mxu0 %v904
  %1259 = vmatprep.subr.bf16.mxu0 0
  %1260 = vmatpush2.bf16.msra.mxu0 %v903
  %1261 = vmatprep.subr.bf16.mxu0 0
  %1262 = vmatpush2.bf16.msra.mxu0 %v902
  %1263 = vmatprep.subr.bf16.mxu0 0
  %1264 = vmatpush2.bf16.msra.mxu0 %v901
  %1265 = vmatprep.mubr.bf16.mxu0 %v367
  %1266 = vmatmul.mubr.bf16.gmra.mxu0 %v366
  %v1267 = vpop.f32.mrf.mxu0
  %v1268 = vadd.f32 %v1228, %v1267
  %v1269 = vpop.f32.mrf.mxu0
  %v1270 = vpop.f32.mrf.mxu0
  %v1271 = vpop.f32.mrf.mxu0
  %1272 = vdwg.mxu0
  %1273 = vmatprep.subr.bf16.mxu0 0
  %1274 = vmatpush1.bf16.msra.mxu0 %v916
  %1275 = vmatprep.subr.bf16.mxu0 0
  %1276 = vmatpush1.bf16.msra.mxu0 %v915
  %1277 = vmatprep.subr.bf16.mxu0 0
  %1278 = vmatpush1.bf16.msra.mxu0 %v914
  %1279 = vmatprep.subr.bf16.mxu0 0
  %1280 = vmatpush1.bf16.msra.mxu0 %v913
  %1281 = vmatprep.subr.bf16.mxu0 0
  %1282 = vmatpush1.bf16.msra.mxu0 %v912
  %1283 = vmatprep.subr.bf16.mxu0 0
  %1284 = vmatpush1.bf16.msra.mxu0 %v911
  %1285 = vmatprep.subr.bf16.mxu0 0
  %1286 = vmatpush1.bf16.msra.mxu0 %v910
  %1287 = vmatprep.subr.bf16.mxu0 0
  %1288 = vmatpush1.bf16.msra.mxu0 %v909
  %1289 = vmatprep.subr.bf16.mxu0 0
  %1290 = vmatpush2.bf16.msra.mxu0 0
  %1291 = vmatprep.subr.bf16.mxu0 0
  %1292 = vmatpush2.bf16.msra.mxu0 0
  %1293 = vmatprep.subr.bf16.mxu0 0
  %1294 = vmatpush2.bf16.msra.mxu0 0
  %1295 = vmatprep.subr.bf16.mxu0 0
  %1296 = vmatpush2.bf16.msra.mxu0 0
  %1297 = vmatprep.subr.bf16.mxu0 0
  %1298 = vmatpush2.bf16.msra.mxu0 %v920
  %1299 = vmatprep.subr.bf16.mxu0 0
  %1300 = vmatpush2.bf16.msra.mxu0 %v919
  %1301 = vmatprep.subr.bf16.mxu0 0
  %1302 = vmatpush2.bf16.msra.mxu0 %v918
  %1303 = vmatprep.subr.bf16.mxu0 0
  %1304 = vmatpush2.bf16.msra.mxu0 %v917
  %1305 = vmatprep.mubr.bf16.mxu0 %v1031
  %1306 = vmatmul.mubr.bf16.gmra.mxu0 %v351
  %v1307 = vpop.f32.mrf.mxu0
  %v1308 = vadd.f32 %v1268, %v1307
  %v1309 = vpop.f32.mrf.mxu0
  %v1310 = vpop.f32.mrf.mxu0
  %v1311 = vpop.f32.mrf.mxu0
  %1312 = vdwg.mxu0
  %v1313 = vmax.f32 %v1308, 0.0
  %v1314 = vpack.c.bf16 %v1313, %v1313
  %v1315 = vld [vmem:[%s3] sm:$0xf]
  %v1316 = vld [vmem:[%s3 + $0x4] sm:$0xf]
  %v1317 = vld [vmem:[%s3 + $0x8] sm:$0xf]
  %v1318 = vld [vmem:[%s3 + $0xc] sm:$0xf]
  %v1319 = vld [vmem:[%s4] sm:$0x1]
  %v1321 = vlaneseq
  %v1322 = vshrl.u32 %v1321, 7
  %v1323 = vsub.s32 0, %v1322
  %v1324 = vrot.slane %v1319, %v1323
  %v1330 = vunpack.c.l.b16 %v1315
  %v1331 = vunpack.c.l.b16 %v1316
  %v1332 = vunpack.c.l.b16 %v1317
  %v1333 = vunpack.c.l.b16 %v1318
  %v1334 = vpack.c.b16 %v1331, %v1330
  %v1335 = vpack.c.b16 %v1333, %v1332
  %vm1338 = vcmask 261120
  %v1340 = vsel %vm1338, %v1314, 0
  %1342 = vmatprep.subr.bf16.mxu0 0
  %1343 = vmatpush1.bf16.msra.mxu0 0
  %1344 = vmatprep.subr.bf16.mxu0 0
  %1345 = vmatpush1.bf16.msra.mxu0 0
  %1346 = vmatprep.subr.bf16.mxu0 0
  %1347 = vmatpush1.bf16.msra.mxu0 0
  %1348 = vmatprep.subr.bf16.mxu0 0
  %1349 = vmatpush1.bf16.msra.mxu0 0
  %1350 = vmatprep.subr.bf16.mxu0 0
  %1351 = vmatpush1.bf16.msra.mxu0 0
  %1352 = vmatprep.subr.bf16.mxu0 0
  %1353 = vmatpush1.bf16.msra.mxu0 0
  %1354 = vmatprep.subr.bf16.mxu0 0
  %1355 = vmatpush1.bf16.msra.mxu0 %v1335
  %1356 = vmatprep.subr.bf16.mxu0 0
  %1357 = vmatpush1.bf16.msra.mxu0 %v1334
  %1358 = vmatprep.subr.bf16.mxu0 0
  %1359 = vmatpush2.bf16.msra.mxu0 0
  %1360 = vmatprep.subr.bf16.mxu0 0
  %1361 = vmatpush2.bf16.msra.mxu0 0
  %1362 = vmatprep.subr.bf16.mxu0 0
  %1363 = vmatpush2.bf16.msra.mxu0 0
  %1364 = vmatprep.subr.bf16.mxu0 0
  %1365 = vmatpush2.bf16.msra.mxu0 0
  %1366 = vmatprep.subr.bf16.mxu0 0
  %1367 = vmatpush2.bf16.msra.mxu0 0
  %1368 = vmatprep.subr.bf16.mxu0 0
  %1369 = vmatpush2.bf16.msra.mxu0 0
  %1370 = vmatprep.subr.bf16.mxu0 0
  %1371 = vmatpush2.bf16.msra.mxu0 0
  %1372 = vmatprep.subr.bf16.mxu0 0
  %1373 = vmatpush2.bf16.msra.mxu0 0
  %1374 = vmatprep.mubr.bf16.mxu0 0
  %1375 = vmatmul.mubr.bf16.gmra.mxu0 %v1340
  %v1376 = vpop.f32.mrf.mxu0
  %v1377 = vadd.f32 %v1324, %v1376
  %v1378 = vpop.f32.mrf.mxu0
  %v1379 = vpop.f32.mrf.mxu0
  %v1380 = vpop.f32.mrf.mxu0
  %1381 = vdwg.mxu0
  %v1382 = vmul.f32 %v1377, %v1377
  %1384 = vrot.lane.b32.xlu0 %v1382, 120
  %v1385 = vpop.permute.xlu0 %1384
  %v1387 = vadd.f32 %v1382, %v1385
  %v1388 = vrsqrt.pop %v1387
  %v1389 = vmul.f32 %v1387, %v1388
  %vm1390 = vcmp.eq.f32.partialorder %v1387, inf
  %v1391 = vsel %vm1390, %v1387, %v1389
  %vm1392 = vcmp.eq.f32.partialorder %v1387, 0.0
  %v1393 = vand.u32 %v1387, 2147483648
  %v1394 = vsel %vm1392, %v1393, %v1391
  %v1395 = vmax.f32 %v1394, 1e-12
  %v1396 = vrcp.pop %v1395
  %v1397 = vmul.f32 %v1377, %v1396
  %1399 = vrot.lane.b32.xlu0 %v1395, 8
  %v1400 = vpop.permute.xlu0 %1399
  %v1402 = vrcp.pop %v1400
  %v1403 = vmul.f32 %v1377, %v1402
  %vm1404 = vcmask 64512
  %v1405 = vsel %vm1404, %v1397, %v1403
  %v1406 = vld [vmem:[%s5] sm:$0xff]
  %v1407 = vld [vmem:[%s5 + $0x8] sm:$0xff]
  %v1408 = vld [vmem:[%s5 + $0x10] sm:$0x3]
  %v1409 = vld [vmem:[%s5 + $0x18] sm:$0xff]
  %v1410 = vld [vmem:[%s5 + $0x20] sm:$0xff]
  %v1411 = vld [vmem:[%s5 + $0x28] sm:$0x3]
  %v1414 = vunpack.c.l.s4 1966171168
  %v1415 = vunpack.c.0.s8 %v1414
  %v1416 = vlaneseq
  %v1417 = vshrl.u32 %v1416, 7
  %v1418 = vsub.s32 %v1415, %v1417
  %v1419 = vrot.slane %v1405, %v1418
  %v1420 = vcombine.high %v1419, %v1419
  %v1422 = vunpack.c.l.s4 1966171168
  %v1423 = vunpack.c.0.s8 %v1422
  %v1424 = vlaneseq
  %v1425 = vshrl.u32 %v1424, 7
  %v1426 = vsub.s32 %v1423, %v1425
  %v1427 = vrot.slane %v1419, %v1426
  %v1429 = vunpack.c.l.s4 1966171168
  %v1430 = vunpack.c.0.s8 %v1429
  %v1431 = vlaneseq
  %v1432 = vshrl.u32 %v1431, 7
  %v1433 = vsub.s32 %v1430, %v1432
  %v1434 = vrot.slane %v1420, %v1433
  %v1435 = vlaneseq
  %v1436 = vshrl.u32 %v1435, 7
  %v1437 = vsub.s32 0, %v1436
  %v1438 = vrot.slane %v1427, %v1437
  %v1439 = vlaneseq
  %v1440 = vshrl.u32 %v1439, 7
  %v1441 = vsub.s32 0, %v1440
  %v1442 = vrot.slane %v1434, %v1441
  %v1445 = vmul.f32 %v1406, %v1438
  %v1446 = vmul.f32 %v1407, %v1438
  %v1447 = vmul.f32 %v1408, %v1438
  %v1448 = vmul.f32 %v1409, %v1442
  %v1449 = vmul.f32 %v1410, %v1442
  %v1450 = vmul.f32 %v1411, %v1442
  %vm1451 = vcmask 130048
  %v1452 = vsel %vm1451, %v1445, 0.0
  %1453 = vadd.xlane.f32.xlu0 %v1452
  %v1454 = vpop.xlane.xlu0 %1453
  %v1455 = vsel %vm1451, %v1446, 0.0
  %1456 = vadd.xlane.f32.xlu0 %v1455
  %v1457 = vpop.xlane.xlu0 %1456
  %vm1458 = vcmask 123904
  %v1459 = vsel %vm1458, %v1447, 0.0
  %1460 = vadd.xlane.f32.xlu0 %v1459
  %v1461 = vpop.xlane.xlu0 %1460
  %v1462 = vsel %vm1451, %v1448, 0.0
  %1463 = vadd.xlane.f32.xlu0 %v1462
  %v1464 = vpop.xlane.xlu0 %1463
  %v1465 = vsel %vm1451, %v1449, 0.0
  %1466 = vadd.xlane.f32.xlu0 %v1465
  %v1467 = vpop.xlane.xlu0 %1466
  %v1468 = vsel %vm1458, %v1450, 0.0
  %1469 = vadd.xlane.f32.xlu0 %v1468
  %v1470 = vpop.xlane.xlu0 %1469
  %v1471 = vpack.c.bf16 %v1457, %v1454
  %v1472 = vpack.c.bf16 %v1461, %v1461
  %v1473 = vpack.c.bf16 %v1467, %v1464
  %v1474 = vpack.c.bf16 %v1470, %v1470
  %v1475 = vld [vmem:[%s7] sm:$0xf]
  %v1476 = vld [vmem:[%s7 + $0x4] sm:$0xf]
  %v1477 = vld [vmem:[%s7 + $0x8] sm:$0x1]
  %v1478 = vld [vmem:[%s8] sm:$0x1]
  %v1480 = vlaneseq
  %v1481 = vshrl.u32 %v1480, 7
  %v1482 = vsub.s32 0, %v1481
  %v1483 = vrot.slane %v1478, %v1482
  %v1489 = vunpack.c.l.b16 %v1471
  %v1490 = vunpack.c.h.b16 %v1471
  %v1491 = vunpack.c.l.b16 %v1472
  %v1492 = vunpack.c.l.b16 %v1473
  %v1493 = vunpack.c.h.b16 %v1473
  %v1494 = vunpack.c.l.b16 %v1474
  %v1495 = vlaneseq
  %v1496 = vand.u32 %v1495, 127
  %v1497 = vlaneseq
  %v1498 = vshrl.u32 %v1497, 7
  %v1499 = vsub.s32 %v1496, %v1498
  %v1500 = vrot.slane %v1489, %v1499
  %v1501 = vadd.s32 %v1496, 4294967288
  %v1502 = vlaneseq
  %v1503 = vshrl.u32 %v1502, 7
  %v1504 = vsub.s32 %v1501, %v1503
  %v1505 = vrot.slane %v1490, %v1504
  %vm1506 = vcmask 130112
  %v1507 = vsel %vm1506, %v1505, %v1500
  %v1508 = vadd.s32 %v1496, 4294967280
  %v1509 = vlaneseq
  %v1510 = vshrl.u32 %v1509, 7
  %v1511 = vsub.s32 %v1508, %v1510
  %v1512 = vrot.slane %v1491, %v1511
  %vm1513 = vcmask 195712
  %v1514 = vsel %vm1513, %v1512, %v1507
  %v1515 = vlaneseq
  %v1516 = vshrl.u32 %v1515, 7
  %v1517 = vsub.s32 %v1496, %v1516
  %v1518 = vrot.slane %v1492, %v1517
  %v1519 = vlaneseq
  %v1520 = vshrl.u32 %v1519, 7
  %v1521 = vsub.s32 %v1501, %v1520
  %v1522 = vrot.slane %v1493, %v1521
  %v1523 = vsel %vm1506, %v1522, %v1518
  %v1524 = vlaneseq
  %v1525 = vshrl.u32 %v1524, 7
  %v1526 = vsub.s32 %v1508, %v1525
  %v1527 = vrot.slane %v1494, %v1526
  %v1528 = vsel %vm1513, %v1527, %v1523
  %vm1529 = vcmask 1041409
  %v1530 = vsel %vm1529, %v1528, %v1514
  %v1531 = vpack.c.b16 %v1530, %v1530
  %v1535 = vunpack.c.l.b16 %v1475
  %v1536 = vunpack.c.l.b16 %v1476
  %v1537 = vunpack.c.l.b16 %v1477
  %v1538 = vpack.c.b16 %v1536, %v1535
  %v1539 = vpack.c.b16 %v1537, %v1537
  %vm1541 = vcmask 146432
  %v1543 = vsel %vm1541, %v1531, 0
  %vm1545 = vcmask 1040384
  %v1547 = vsel %vm1545, %v1539, 0
  %1549 = vmatprep.subr.bf16.mxu0 0
  %1550 = vmatpush1.bf16.msra.mxu0 0
  %1551 = vmatprep.subr.bf16.mxu0 0
  %1552 = vmatpush1.bf16.msra.mxu0 0
  %1553 = vmatprep.subr.bf16.mxu0 0
  %1554 = vmatpush1.bf16.msra.mxu0 0
  %1555 = vmatprep.subr.bf16.mxu0 0
  %1556 = vmatpush1.bf16.msra.mxu0 0
  %1557 = vmatprep.subr.bf16.mxu0 0
  %1558 = vmatpush1.bf16.msra.mxu0 0
  %1559 = vmatprep.subr.bf16.mxu0 0
  %1560 = vmatpush1.bf16.msra.mxu0 0
  %1561 = vmatprep.subr.bf16.mxu0 0
  %1562 = vmatpush1.bf16.msra.mxu0 %v1547
  %1563 = vmatprep.subr.bf16.mxu0 0
  %1564 = vmatpush1.bf16.msra.mxu0 %v1538
  %1565 = vmatprep.subr.bf16.mxu0 0
  %1566 = vmatpush2.bf16.msra.mxu0 0
  %1567 = vmatprep.subr.bf16.mxu0 0
  %1568 = vmatpush2.bf16.msra.mxu0 0
  %1569 = vmatprep.subr.bf16.mxu0 0
  %1570 = vmatpush2.bf16.msra.mxu0 0
  %1571 = vmatprep.subr.bf16.mxu0 0
  %1572 = vmatpush2.bf16.msra.mxu0 0
  %1573 = vmatprep.subr.bf16.mxu0 0
  %1574 = vmatpush2.bf16.msra.mxu0 0
  %1575 = vmatprep.subr.bf16.mxu0 0
  %1576 = vmatpush2.bf16.msra.mxu0 0
  %1577 = vmatprep.subr.bf16.mxu0 0
  %1578 = vmatpush2.bf16.msra.mxu0 0
  %1579 = vmatprep.subr.bf16.mxu0 0
  %1580 = vmatpush2.bf16.msra.mxu0 0
  %1581 = vmatprep.mubr.bf16.mxu0 0
  %1582 = vmatmul.mubr.bf16.gmra.mxu0 %v1543
  %v1583 = vpop.f32.mrf.mxu0
  %v1584 = vadd.f32 %v1483, %v1583
  %v1585 = vpop.f32.mrf.mxu0
  %v1586 = vpop.f32.mrf.mxu0
  %v1587 = vpop.f32.mrf.mxu0
  %1588 = vdwg.mxu0
  %v1589 = vmax.f32 %v1584, 0.0
  %v1590 = vpack.c.bf16 %v1589, %v1589
  %v1591 = vld [vmem:[%s9] sm:$0xf]
  %v1592 = vld [vmem:[%s9 + $0x4] sm:$0xf]
  %v1593 = vld [vmem:[%s9 + $0x8] sm:$0xf]
  %v1594 = vld [vmem:[%s9 + $0xc] sm:$0xf]
  %v1595 = vld [vmem:[%s9 + $0x10] sm:$0xf]
  %v1596 = vld [vmem:[%s9 + $0x14] sm:$0xf]
  %v1597 = vld [vmem:[%s9 + $0x18] sm:$0xf]
  %v1598 = vld [vmem:[%s9 + $0x1c] sm:$0xf]
  %v1599 = vld [vmem:[%s9 + $0x20] sm:$0xf]
  %v1600 = vld [vmem:[%s9 + $0x24] sm:$0xf]
  %v1601 = vld [vmem:[%s9 + $0x28] sm:$0xf]
  %v1602 = vld [vmem:[%s9 + $0x2c] sm:$0xf]
  %v1603 = vld [vmem:[%s9 + $0x30] sm:$0x3]
  %v1604 = vld [vmem:[%s10] sm:$0x1]
  %v1606 = vlaneseq
  %v1607 = vshrl.u32 %v1606, 7
  %v1608 = vsub.s32 0, %v1607
  %v1609 = vrot.slane %v1604, %v1608
  %v1624 = vunpack.c.l.b16 %v1591
  %v1625 = vunpack.c.l.b16 %v1592
  %v1626 = vunpack.c.l.b16 %v1593
  %v1627 = vunpack.c.l.b16 %v1594
  %v1628 = vunpack.c.l.b16 %v1595
  %v1629 = vunpack.c.l.b16 %v1596
  %v1630 = vunpack.c.l.b16 %v1597
  %v1631 = vunpack.c.l.b16 %v1598
  %v1632 = vunpack.c.l.b16 %v1599
  %v1633 = vunpack.c.l.b16 %v1600
  %v1634 = vunpack.c.l.b16 %v1601
  %v1635 = vunpack.c.l.b16 %v1602
  %v1636 = vunpack.c.l.b16 %v1603
  %v1637 = vpack.c.b16 %v1625, %v1624
  %v1638 = vpack.c.b16 %v1627, %v1626
  %v1639 = vpack.c.b16 %v1629, %v1628
  %v1640 = vpack.c.b16 %v1631, %v1630
  %v1641 = vpack.c.b16 %v1633, %v1632
  %v1642 = vpack.c.b16 %v1635, %v1634
  %v1643 = vpack.c.b16 %v1636, %v1636
  %vm1650 = vcmask 818176
  %v1652 = vsel %vm1650, %v1590, 0
  %vm1654 = vcmask 1041408
  %v1656 = vsel %vm1654, %v1643, 0
  %1658 = vmatprep.subr.bf16.mxu0 0
  %1659 = vmatpush1.bf16.msra.mxu0 0
  %1660 = vmatprep.subr.bf16.mxu0 0
  %1661 = vmatpush1.bf16.msra.mxu0 %v1656
  %1662 = vmatprep.subr.bf16.mxu0 0
  %1663 = vmatpush1.bf16.msra.mxu0 %v1642
  %1664 = vmatprep.subr.bf16.mxu0 0
  %1665 = vmatpush1.bf16.msra.mxu0 %v1641
  %1666 = vmatprep.subr.bf16.mxu0 0
  %1667 = vmatpush1.bf16.msra.mxu0 %v1640
  %1668 = vmatprep.subr.bf16.mxu0 0
  %1669 = vmatpush1.bf16.msra.mxu0 %v1639
  %1670 = vmatprep.subr.bf16.mxu0 0
  %1671 = vmatpush1.bf16.msra.mxu0 %v1638
  %1672 = vmatprep.subr.bf16.mxu0 0
  %1673 = vmatpush1.bf16.msra.mxu0 %v1637
  %1674 = vmatprep.subr.bf16.mxu0 0
  %1675 = vmatpush2.bf16.msra.mxu0 0
  %1676 = vmatprep.subr.bf16.mxu0 0
  %1677 = vmatpush2.bf16.msra.mxu0 0
  %1678 = vmatprep.subr.bf16.mxu0 0
  %1679 = vmatpush2.bf16.msra.mxu0 0
  %1680 = vmatprep.subr.bf16.mxu0 0
  %1681 = vmatpush2.bf16.msra.mxu0 0
  %1682 = vmatprep.subr.bf16.mxu0 0
  %1683 = vmatpush2.bf16.msra.mxu0 0
  %1684 = vmatprep.subr.bf16.mxu0 0
  %1685 = vmatpush2.bf16.msra.mxu0 0
  %1686 = vmatprep.subr.bf16.mxu0 0
  %1687 = vmatpush2.bf16.msra.mxu0 0
  %1688 = vmatprep.subr.bf16.mxu0 0
  %1689 = vmatpush2.bf16.msra.mxu0 0
  %1690 = vmatprep.mubr.bf16.mxu0 0
  %1691 = vmatmul.mubr.bf16.gmra.mxu0 %v1652
  %v1692 = vpop.f32.mrf.mxu0
  %v1693 = vadd.f32 %v1609, %v1692
  %v1694 = vpop.f32.mrf.mxu0
  %v1695 = vpop.f32.mrf.mxu0
  %v1696 = vpop.f32.mrf.mxu0
  %1697 = vdwg.mxu0
  %v1698 = vmax.f32 %v1693, 0.0
  %v1699 = vpack.c.bf16 %v1698, %v1698
  %v1700 = vld [vmem:[%s11] sm:$0xf]
  %v1701 = vld [vmem:[%s11 + $0x4] sm:$0xf]
  %v1702 = vld [vmem:[%s11 + $0x8] sm:$0xf]
  %v1703 = vld [vmem:[%s11 + $0xc] sm:$0xf]
  %v1704 = vld [vmem:[%s11 + $0x10] sm:$0xf]
  %v1705 = vld [vmem:[%s11 + $0x14] sm:$0xf]
  %v1706 = vld [vmem:[%s11 + $0x18] sm:$0xf]
  %v1707 = vld [vmem:[%s11 + $0x1c] sm:$0xf]
  %v1708 = vld [vmem:[%s11 + $0x20] sm:$0xf]
  %v1709 = vld [vmem:[%s11 + $0x24] sm:$0xf]
  %v1710 = vld [vmem:[%s11 + $0x28] sm:$0xf]
  %v1711 = vld [vmem:[%s11 + $0x2c] sm:$0xf]
  %v1712 = vld [vmem:[%s11 + $0x30] sm:$0x3]
  %v1713 = vld [vmem:[%s12] sm:$0x1]
  %v1715 = vlaneseq
  %v1716 = vshrl.u32 %v1715, 7
  %v1717 = vsub.s32 0, %v1716
  %v1718 = vrot.slane %v1713, %v1717
  %v1733 = vunpack.c.l.b16 %v1700
  %v1734 = vunpack.c.l.b16 %v1701
  %v1735 = vunpack.c.l.b16 %v1702
  %v1736 = vunpack.c.l.b16 %v1703
  %v1737 = vunpack.c.l.b16 %v1704
  %v1738 = vunpack.c.l.b16 %v1705
  %v1739 = vunpack.c.l.b16 %v1706
  %v1740 = vunpack.c.l.b16 %v1707
  %v1741 = vunpack.c.l.b16 %v1708
  %v1742 = vunpack.c.l.b16 %v1709
  %v1743 = vunpack.c.l.b16 %v1710
  %v1744 = vunpack.c.l.b16 %v1711
  %v1745 = vunpack.c.l.b16 %v1712
  %v1746 = vpack.c.b16 %v1734, %v1733
  %v1747 = vpack.c.b16 %v1736, %v1735
  %v1748 = vpack.c.b16 %v1738, %v1737
  %v1749 = vpack.c.b16 %v1740, %v1739
  %v1750 = vpack.c.b16 %v1742, %v1741
  %v1751 = vpack.c.b16 %v1744, %v1743
  %v1752 = vpack.c.b16 %v1745, %v1745
  %v1760 = vsel %vm1650, %v1699, 0
  %v1763 = vsel %vm1654, %v1752, 0
  %1765 = vmatprep.subr.bf16.mxu0 0
  %1766 = vmatpush1.bf16.msra.mxu0 0
  %1767 = vmatprep.subr.bf16.mxu0 0
  %1768 = vmatpush1.bf16.msra.mxu0 %v1763
  %1769 = vmatprep.subr.bf16.mxu0 0
  %1770 = vmatpush1.bf16.msra.mxu0 %v1751
  %1771 = vmatprep.subr.bf16.mxu0 0
  %1772 = vmatpush1.bf16.msra.mxu0 %v1750
  %1773 = vmatprep.subr.bf16.mxu0 0
  %1774 = vmatpush1.bf16.msra.mxu0 %v1749
  %1775 = vmatprep.subr.bf16.mxu0 0
  %1776 = vmatpush1.bf16.msra.mxu0 %v1748
  %1777 = vmatprep.subr.bf16.mxu0 0
  %1778 = vmatpush1.bf16.msra.mxu0 %v1747
  %1779 = vmatprep.subr.bf16.mxu0 0
  %1780 = vmatpush1.bf16.msra.mxu0 %v1746
  %1781 = vmatprep.subr.bf16.mxu0 0
  %1782 = vmatpush2.bf16.msra.mxu0 0
  %1783 = vmatprep.subr.bf16.mxu0 0
  %1784 = vmatpush2.bf16.msra.mxu0 0
  %1785 = vmatprep.subr.bf16.mxu0 0
  %1786 = vmatpush2.bf16.msra.mxu0 0
  %1787 = vmatprep.subr.bf16.mxu0 0
  %1788 = vmatpush2.bf16.msra.mxu0 0
  %1789 = vmatprep.subr.bf16.mxu0 0
  %1790 = vmatpush2.bf16.msra.mxu0 0
  %1791 = vmatprep.subr.bf16.mxu0 0
  %1792 = vmatpush2.bf16.msra.mxu0 0
  %1793 = vmatprep.subr.bf16.mxu0 0
  %1794 = vmatpush2.bf16.msra.mxu0 0
  %1795 = vmatprep.subr.bf16.mxu0 0
  %1796 = vmatpush2.bf16.msra.mxu0 0
  %1797 = vmatprep.mubr.bf16.mxu0 0
  %1798 = vmatmul.mubr.bf16.gmra.mxu0 %v1760
  %v1799 = vpop.f32.mrf.mxu0
  %v1800 = vadd.f32 %v1718, %v1799
  %v1801 = vpop.f32.mrf.mxu0
  %v1802 = vpop.f32.mrf.mxu0
  %v1803 = vpop.f32.mrf.mxu0
  %1804 = vdwg.mxu0
  %v1805 = vmul.f32 %v1800, %v1800
  %v1806 = vld [vmem:[%s6] sm:$0xff]
  %v1807 = vld [vmem:[%s6 + $0x8] sm:$0xff]
  %v1808 = vld [vmem:[%s6 + $0x10] sm:$0x3]
  %v1810 = vsel %vm1541, %v1805, 0
  %v1813 = vsel %vm1654, %v1808, 0
  %1815 = vmatprep.subr.mxu0 0.0
  %1816 = vmatpush1.msra.mxu0 0.0
  %1817 = vmatprep.subr.mxu0 0.0
  %1818 = vmatpush1.msra.mxu0 0.0
  %1819 = vmatprep.subr.mxu0 0.0
  %1820 = vmatpush1.msra.mxu0 0.0
  %1821 = vmatprep.subr.mxu0 0.0
  %1822 = vmatpush1.msra.mxu0 0.0
  %1823 = vmatprep.subr.mxu0 0.0
  %1824 = vmatpush1.msra.mxu0 0.0
  %1825 = vmatprep.subr.mxu0 0.0
  %1826 = vmatpush1.msra.mxu0 0.0
  %1827 = vmatprep.subr.mxu0 0.0
  %1828 = vmatpush1.msra.mxu0 0.0
  %1829 = vmatprep.subr.mxu0 0.0
  %1830 = vmatpush1.msra.mxu0 0.0
  %1831 = vmatprep.subr.mxu0 0.0
  %1832 = vmatpush1.msra.mxu0 0.0
  %1833 = vmatprep.subr.mxu0 0.0
  %1834 = vmatpush1.msra.mxu0 0.0
  %1835 = vmatprep.subr.mxu0 0.0
  %1836 = vmatpush1.msra.mxu0 0.0
  %1837 = vmatprep.subr.mxu0 0.0
  %1838 = vmatpush1.msra.mxu0 0.0
  %1839 = vmatprep.subr.mxu0 0.0
  %1840 = vmatpush1.msra.mxu0 0.0
  %1841 = vmatprep.subr.mxu0 0.0
  %1842 = vmatpush1.msra.mxu0 %v1813
  %1843 = vmatprep.subr.mxu0 0.0
  %1844 = vmatpush1.msra.mxu0 %v1807
  %1845 = vmatprep.subr.mxu0 0.0
  %1846 = vmatpush1.msra.mxu0 %v1806
  %1847 = vmatprep.subr.mxu0 0.0
  %1848 = vmatpush2.msra.mxu0 0.0
  %1849 = vmatprep.subr.mxu0 0.0
  %1850 = vmatpush2.msra.mxu0 0.0
  %1851 = vmatprep.subr.mxu0 0.0
  %1852 = vmatpush2.msra.mxu0 0.0
  %1853 = vmatprep.subr.mxu0 0.0
  %1854 = vmatpush2.msra.mxu0 0.0
  %1855 = vmatprep.subr.mxu0 0.0
  %1856 = vmatpush2.msra.mxu0 0.0
  %1857 = vmatprep.subr.mxu0 0.0
  %1858 = vmatpush2.msra.mxu0 0.0
  %1859 = vmatprep.subr.mxu0 0.0
  %1860 = vmatpush2.msra.mxu0 0.0
  %1861 = vmatprep.subr.mxu0 0.0
  %1862 = vmatpush2.msra.mxu0 0.0
  %1863 = vmatprep.subr.mxu0 0.0
  %1864 = vmatpush2.msra.mxu0 0.0
  %1865 = vmatprep.subr.mxu0 0.0
  %1866 = vmatpush2.msra.mxu0 0.0
  %1867 = vmatprep.subr.mxu0 0.0
  %1868 = vmatpush2.msra.mxu0 0.0
  %1869 = vmatprep.subr.mxu0 0.0
  %1870 = vmatpush2.msra.mxu0 0.0
  %1871 = vmatprep.subr.mxu0 0.0
  %1872 = vmatpush2.msra.mxu0 0.0
  %1873 = vmatprep.subr.mxu0 0.0
  %1874 = vmatpush2.msra.mxu0 0.0
  %1875 = vmatprep.subr.mxu0 0.0
  %1876 = vmatpush2.msra.mxu0 0.0
  %1877 = vmatprep.subr.mxu0 0.0
  %1878 = vmatpush2.msra.mxu0 0.0
  %1879 = vmatprep.mubr.f32.mxu0 0.0
  %1880 = vmatmul.mubr.f32.gmra.mxu0 %v1810
  %v1881 = vpop.f32.mrf.mxu0
  %v1882 = vadd.f32 0.0, %v1881
  %v1883 = vpop.f32.mrf.mxu0
  %1884 = vdwg.mxu0
  %v1885 = vrsqrt.pop %v1882
  %v1886 = vmul.f32 %v1882, %v1885
  %vm1887 = vcmp.eq.f32.partialorder %v1882, inf
  %v1888 = vsel %vm1887, %v1882, %v1886
  %vm1889 = vcmp.eq.f32.partialorder %v1882, 0.0
  %v1890 = vand.u32 %v1882, 2147483648
  %v1891 = vsel %vm1889, %v1890, %v1888
  %v1892 = vmax.f32 %v1891, 1e-12
  %v1893 = vrcp.pop %v1892
  %v1894 = vmul.f32 %v1800, %v1893
  %v1895 = vmul.f32 %v1894, 1.0540925
  %1897 = vrot.lane.b32.xlu0 %v1895, 16
  %v1898 = vpop.permute.xlu0 %1897
  %v1900 = vsel %vm1451, %v1405, %v1898
  %vm1901 = vcmask 277504
  %v1902 = vsel %vm1901, %v1900, 0.0
  %1903 = vst [vmem:[%s13] sm:$0x3] %v1902
  // Predicated region
  $region54: #{dnn_module_forward.7} parent=0 // pred_check
    _
  $region55: #{dnn_module_forward.7} parent=0 // pred_check_branch
    %1905 = sbr.rel (0) target = $region57
  $region56: #{dnn_module_forward.7} parent=0 // pred_region
    _
  $region57: #{dnn_module_forward.7} parent=0 // pred_fallthru
    _
  // Predicated region
  $region58: #{dnn_module_forward.7} parent=0 // pred_check
    _
  $region59: #{dnn_module_forward.7} parent=0 // pred_check_branch
    %1907 = sbr.rel (0) target = $region61
  $region60: #{dnn_module_forward.7} parent=0 // pred_region
    _
  $region61: #{dnn_module_forward.7} parent=0 // pred_fallthru
    _

// kernel: dnn_module_forward.6
$region0: #{dnn_module_forward.6}
  #allocation0 [shape = 'u32[]', space=smem, size = 0x4, offset = 0x4, fixed_abs, tag = 'smem constant byte address 0x4 - core index']
  #allocation1 [shape = 'u32[144,128]{1,0:T(1,128)}', space=vmem, size = 0x12000, scoped, tag = 'internal scratch']
  #allocation2 [shape = 'bf16[74,64]{1,0:T(8,128)(2,1)}', space=vmem, size = 0x5000, scoped, tag = 'scratch operand']
  %s0 = inlined_call_operand.vmem [shape: bf16[54,64], index: 0, kind: input, shape index: {}]
  %s1 = inlined_call_operand.vmem [shape: bf16[9,54,1], index: 1, kind: input, shape index: {}]
  %s2 = inlined_call_operand.vmem [shape: bf16[576,64], index: 2, kind: input, shape index: {}]
  %s3 = inlined_call_operand.vmem [shape: f32[1,64], index: 3, kind: input, shape index: {}]
  %s4 = inlined_call_operand.vmem [shape: bf16[576,64], index: 4, kind: input, shape index: {}]
  %s5 = inlined_call_operand.vmem [shape: f32[1,64], index: 5, kind: input, shape index: {}]
  %s6 = inlined_call_operand.vmem [shape: bf16[54,64], index: 6, kind: output, shape index: {}]
  %s7 = sld [smem:[#allocation0]]
  $region34: #{dnn_module_forward.6} parent=0
    _
  %s9 = ssub.s32 1, %s7
  %s10 = scalar_select 0, %s9, %s7
  // Predicated region
  $region2: #{dnn_module_forward.6} parent=0 // pred_check
    _
  $region3: #{dnn_module_forward.6} parent=0 // pred_check_branch
    %12 = sbr.rel (0) target = $region5
  $region4: #{dnn_module_forward.6} parent=0 // pred_region
    _
  $region5: #{dnn_module_forward.6} parent=0 // pred_fallthru
    _
  // Predicated region
  $region6: #{dnn_module_forward.6} parent=0 // pred_check
    _
  $region7: #{dnn_module_forward.6} parent=0 // pred_check_branch
    %14 = sbr.rel (0) target = $region9
  $region8: #{dnn_module_forward.6} parent=0 // pred_region
    _
  $region9: #{dnn_module_forward.6} parent=0 // pred_fallthru
    _
  // Predicated region
  $region10: #{dnn_module_forward.6} parent=0 // pred_check
    _
  $region11: #{dnn_module_forward.6} parent=0 // pred_check_branch
    %16 = sbr.rel (0) target = $region13
  $region12: #{dnn_module_forward.6} parent=0 // pred_region
    _
  $region13: #{dnn_module_forward.6} parent=0 // pred_fallthru
    _
  // Predicated region
  $region14: #{dnn_module_forward.6} parent=0 // pred_check
    _
  $region15: #{dnn_module_forward.6} parent=0 // pred_check_branch
    %18 = sbr.rel (0) target = $region17
  $region16: #{dnn_module_forward.6} parent=0 // pred_region
    _
  $region17: #{dnn_module_forward.6} parent=0 // pred_fallthru
    _
  // Predicated region
  $region18: #{dnn_module_forward.6} parent=0 // pred_check
    _
  $region19: #{dnn_module_forward.6} parent=0 // pred_check_branch
    %20 = sbr.rel (0) target = $region21
  $region20: #{dnn_module_forward.6} parent=0 // pred_region
    _
  $region21: #{dnn_module_forward.6} parent=0 // pred_fallthru
    _
  // Predicated region
  $region22: #{dnn_module_forward.6} parent=0 // pred_check
    _
  $region23: #{dnn_module_forward.6} parent=0 // pred_check_branch
    %22 = sbr.rel (0) target = $region25
  $region24: #{dnn_module_forward.6} parent=0 // pred_region
    _
  $region25: #{dnn_module_forward.6} parent=0 // pred_fallthru
    _
  %vm24 = vcmask 519168
  %25 = vst.msk [vmem:[#allocation2] sm:$0xf] %vm24, 0
  %26 = vst.msk [vmem:[#allocation2 + $0x4] sm:$0xf] %vm24, 0
  %27 = vst.msk [vmem:[#allocation2 + $0x8] sm:$0xf] %vm24, 0
  %28 = vst.msk [vmem:[#allocation2 + $0xc] sm:$0xf] %vm24, 0
  %29 = vst.msk [vmem:[#allocation2 + $0x10] sm:$0xf] %vm24, 0
  %30 = vst.msk [vmem:[#allocation2 + $0x14] sm:$0xf] %vm24, 0
  %31 = vst.msk [vmem:[#allocation2 + $0x18] sm:$0xf] %vm24, 0
  %32 = vst.msk [vmem:[#allocation2 + $0x1c] sm:$0xf] %vm24, 0
  %33 = vst.msk [vmem:[#allocation2 + $0x20] sm:$0xf] %vm24, 0
  %vm34 = vcmask 516096
  %35 = vst.msk [vmem:[#allocation2 + $0x24] sm:$0x1] %vm34, 0
  %v36 = vld [vmem:[%s0] sm:$0xf]
  %v37 = vld [vmem:[%s0 + $0x4] sm:$0xf]
  %v38 = vld [vmem:[%s0 + $0x8] sm:$0xf]
  %v39 = vld [vmem:[%s0 + $0xc] sm:$0xf]
  %v40 = vld [vmem:[%s0 + $0x10] sm:$0xf]
  %v41 = vld [vmem:[%s0 + $0x14] sm:$0xf]
  %v42 = vld [vmem:[%s0 + $0x18] sm:$0x7]
  %vm50 = vcmask 1040384
  %vm51 = vcmask 1044484
  %vm52 = vmor %vm50, %vm51
  %v53 = vrot.slane %v36, 7
  %v54 = vrot.slane %v53, 4
  %v55 = vrot.slane %v37, 7
  %v56 = vsel %vm52, %v54, %v55
  %v57 = vrot.slane %v55, 4
  %v58 = vrot.slane %v38, 7
  %v59 = vsel %vm52, %v57, %v58
  %v60 = vrot.slane %v58, 4
  %v61 = vrot.slane %v39, 7
  %v62 = vsel %vm52, %v60, %v61
  %v63 = vrot.slane %v61, 4
  %v64 = vrot.slane %v40, 7
  %v65 = vsel %vm52, %v63, %v64
  %v66 = vrot.slane %v64, 4
  %v67 = vrot.slane %v41, 7
  %v68 = vsel %vm52, %v66, %v67
  %v69 = vrot.slane %v67, 4
  %v70 = vrot.slane %v42, 7
  %v71 = vsel %vm52, %v69, %v70
  %vm79 = vcmask 519169
  %80 = vst.msk [vmem:[#allocation2 + $0x4] sm:$0xe] %vm79, %v53
  %81 = vst.msk [vmem:[#allocation2 + $0x8] sm:$0xf] %vm24, %v56
  %82 = vst.msk [vmem:[#allocation2 + $0xc] sm:$0xf] %vm24, %v59
  %83 = vst.msk [vmem:[#allocation2 + $0x10] sm:$0xf] %vm24, %v62
  %84 = vst.msk [vmem:[#allocation2 + $0x14] sm:$0xf] %vm24, %v65
  %85 = vst.msk [vmem:[#allocation2 + $0x18] sm:$0xf] %vm24, %v68
  %86 = vst.msk [vmem:[#allocation2 + $0x1c] sm:$0xf] %vm24, %v71
  %v87 = vld [vmem:[#allocation2] sm:$0xf]
  %v88 = vld [vmem:[#allocation2 + $0x4] sm:$0xf]
  %v89 = vld [vmem:[#allocation2 + $0x8] sm:$0xf]
  %v90 = vld [vmem:[#allocation2 + $0xc] sm:$0xf]
  %v91 = vld [vmem:[#allocation2 + $0x10] sm:$0xf]
  %v92 = vld [vmem:[#allocation2 + $0x14] sm:$0xf]
  %v93 = vld [vmem:[#allocation2 + $0x18] sm:$0x7]
  %v94 = vld [vmem:[%s1] sm:$0xf]
  %v95 = vld [vmem:[%s1 + $0x4] sm:$0xf]
  %v96 = vld [vmem:[%s1 + $0x8] sm:$0xf]
  %v97 = vld [vmem:[%s1 + $0xc] sm:$0xf]
  %v98 = vld [vmem:[%s1 + $0x10] sm:$0xf]
  %v99 = vld [vmem:[%s1 + $0x14] sm:$0xf]
  %v100 = vld [vmem:[%s1 + $0x18] sm:$0x7]
  %102 = vset.pattern.permute.xlu0 0
  %103 = vperm.xlu0 %102, %v94
  %v104 = vpop.permute.xlu0 %103
  %v107 = vunpack.c.l.s4 839922192
  %v108 = vunpack.c.0.s8 %v107
  %v109 = vlaneseq
  %v110 = vshrl.u32 %v109, 7
  %v111 = vsub.s32 %v108, %v110
  %v112 = vrot.slane %v104, %v111
  %114 = vset.pattern.permute.xlu0 0
  %115 = vperm.xlu0 %114, %v95
  %v116 = vpop.permute.xlu0 %115
  %v119 = vunpack.c.l.s4 839922192
  %v120 = vunpack.c.0.s8 %v119
  %v121 = vlaneseq
  %v122 = vshrl.u32 %v121, 7
  %v123 = vsub.s32 %v120, %v122
  %v124 = vrot.slane %v116, %v123
  %126 = vset.pattern.permute.xlu0 0
  %127 = vperm.xlu0 %126, %v96
  %v128 = vpop.permute.xlu0 %127
  %v131 = vunpack.c.l.s4 839922192
  %v132 = vunpack.c.0.s8 %v131
  %v133 = vlaneseq
  %v134 = vshrl.u32 %v133, 7
  %v135 = vsub.s32 %v132, %v134
  %v136 = vrot.slane %v128, %v135
  %138 = vset.pattern.permute.xlu0 0
  %139 = vperm.xlu0 %138, %v97
  %v140 = vpop.permute.xlu0 %139
  %v143 = vunpack.c.l.s4 839922192
  %v144 = vunpack.c.0.s8 %v143
  %v145 = vlaneseq
  %v146 = vshrl.u32 %v145, 7
  %v147 = vsub.s32 %v144, %v146
  %v148 = vrot.slane %v140, %v147
  %150 = vset.pattern.permute.xlu0 0
  %151 = vperm.xlu0 %150, %v98
  %v152 = vpop.permute.xlu0 %151
  %v155 = vunpack.c.l.s4 839922192
  %v156 = vunpack.c.0.s8 %v155
  %v157 = vlaneseq
  %v158 = vshrl.u32 %v157, 7
  %v159 = vsub.s32 %v156, %v158
  %v160 = vrot.slane %v152, %v159
  %162 = vset.pattern.permute.xlu0 0
  %163 = vperm.xlu0 %162, %v99
  %v164 = vpop.permute.xlu0 %163
  %v167 = vunpack.c.l.s4 839922192
  %v168 = vunpack.c.0.s8 %v167
  %v169 = vlaneseq
  %v170 = vshrl.u32 %v169, 7
  %v171 = vsub.s32 %v168, %v170
  %v172 = vrot.slane %v164, %v171
  %174 = vset.pattern.permute.xlu0 0
  %175 = vperm.xlu0 %174, %v100
  %v176 = vpop.permute.xlu0 %175
  %v179 = vunpack.c.l.s4 839922192
  %v180 = vunpack.c.0.s8 %v179
  %v181 = vlaneseq
  %v182 = vshrl.u32 %v181, 7
  %v183 = vsub.s32 %v180, %v182
  %v184 = vrot.slane %v176, %v183
  %v185 = vmul.bf16 %v87, %v112
  %v186 = vmul.bf16 %v88, %v124
  %v187 = vmul.bf16 %v89, %v136
  %v188 = vmul.bf16 %v90, %v148
  %v189 = vmul.bf16 %v91, %v160
  %v190 = vmul.bf16 %v92, %v172
  %v191 = vmul.bf16 %v93, %v184
  %v192 = vld [vmem:[#allocation2 + $0x18] sm:$0xf]
  %s193 = scalar_lea.vmem %s1, 28
  %v194 = vld [vmem:[%s193] sm:$0xf]
  %v195 = vld [vmem:[%s193 + $0x4] sm:$0xf]
  %v196 = vld [vmem:[%s193 + $0x8] sm:$0xf]
  %v197 = vld [vmem:[%s193 + $0xc] sm:$0xf]
  %v198 = vld [vmem:[%s193 + $0x10] sm:$0xf]
  %v199 = vld [vmem:[%s193 + $0x14] sm:$0xf]
  %v200 = vld [vmem:[%s193 + $0x18] sm:$0x7]
  %202 = vset.pattern.permute.xlu0 0
  %203 = vperm.xlu0 %202, %v194
  %v204 = vpop.permute.xlu0 %203
  %v207 = vunpack.c.l.s4 839922192
  %v208 = vunpack.c.0.s8 %v207
  %v209 = vlaneseq
  %v210 = vshrl.u32 %v209, 7
  %v211 = vsub.s32 %v208, %v210
  %v212 = vrot.slane %v204, %v211
  %214 = vset.pattern.permute.xlu0 0
  %215 = vperm.xlu0 %214, %v195
  %v216 = vpop.permute.xlu0 %215
  %v219 = vunpack.c.l.s4 839922192
  %v220 = vunpack.c.0.s8 %v219
  %v221 = vlaneseq
  %v222 = vshrl.u32 %v221, 7
  %v223 = vsub.s32 %v220, %v222
  %v224 = vrot.slane %v216, %v223
  %226 = vset.pattern.permute.xlu0 0
  %227 = vperm.xlu0 %226, %v196
  %v228 = vpop.permute.xlu0 %227
  %v231 = vunpack.c.l.s4 839922192
  %v232 = vunpack.c.0.s8 %v231
  %v233 = vlaneseq
  %v234 = vshrl.u32 %v233, 7
  %v235 = vsub.s32 %v232, %v234
  %v236 = vrot.slane %v228, %v235
  %238 = vset.pattern.permute.xlu0 0
  %239 = vperm.xlu0 %238, %v197
  %v240 = vpop.permute.xlu0 %239
  %v243 = vunpack.c.l.s4 839922192
  %v244 = vunpack.c.0.s8 %v243
  %v245 = vlaneseq
  %v246 = vshrl.u32 %v245, 7
  %v247 = vsub.s32 %v244, %v246
  %v248 = vrot.slane %v240, %v247
  %250 = vset.pattern.permute.xlu0 0
  %251 = vperm.xlu0 %250, %v198
  %v252 = vpop.permute.xlu0 %251
  %v255 = vunpack.c.l.s4 839922192
  %v256 = vunpack.c.0.s8 %v255
  %v257 = vlaneseq
  %v258 = vshrl.u32 %v257, 7
  %v259 = vsub.s32 %v256, %v258
  %v260 = vrot.slane %v252, %v259
  %262 = vset.pattern.permute.xlu0 0
  %263 = vperm.xlu0 %262, %v199
  %v264 = vpop.permute.xlu0 %263
  %v267 = vunpack.c.l.s4 839922192
  %v268 = vunpack.c.0.s8 %v267
  %v269 = vlaneseq
  %v270 = vshrl.u32 %v269, 7
  %v271 = vsub.s32 %v268, %v270
  %v272 = vrot.slane %v264, %v271
  %274 = vset.pattern.permute.xlu0 0
  %275 = vperm.xlu0 %274, %v200
  %v276 = vpop.permute.xlu0 %275
  %v279 = vunpack.c.l.s4 839922192
  %v280 = vunpack.c.0.s8 %v279
  %v281 = vlaneseq
  %v282 = vshrl.u32 %v281, 7
  %v283 = vsub.s32 %v280, %v282
  %v284 = vrot.slane %v276, %v283
  %vm285 = vsmask.f32 256
  %vm286 = vsmask.f32 4368
  %vm287 = vmor %vm285, %vm286
  %v289 = vshrl.u32 %v212, 16
  %v291 = vrot.slane %v289, 7
  %v292 = vshll.u32 %v212, 16
  %v294 = vor.u32 %v291, %v292
  %v295 = vrot.slane %v291, 4
  %v297 = vshrl.u32 %v224, 16
  %v299 = vrot.slane %v297, 7
  %v300 = vshll.u32 %v224, 16
  %v302 = vor.u32 %v299, %v300
  %v303 = vsel %vm287, %v295, %v302
  %v304 = vrot.slane %v299, 4
  %v306 = vshrl.u32 %v236, 16
  %v308 = vrot.slane %v306, 7
  %v309 = vshll.u32 %v236, 16
  %v311 = vor.u32 %v308, %v309
  %v312 = vsel %vm287, %v304, %v311
  %v313 = vrot.slane %v308, 4
  %v315 = vshrl.u32 %v248, 16
  %v317 = vrot.slane %v315, 7
  %v318 = vshll.u32 %v248, 16
  %v320 = vor.u32 %v317, %v318
  %v321 = vsel %vm287, %v313, %v320
  %v322 = vrot.slane %v317, 4
  %v324 = vshrl.u32 %v260, 16
  %v326 = vrot.slane %v324, 7
  %v327 = vshll.u32 %v260, 16
  %v329 = vor.u32 %v326, %v327
  %v330 = vsel %vm287, %v322, %v329
  %v331 = vrot.slane %v326, 4
  %v333 = vshrl.u32 %v272, 16
  %v335 = vrot.slane %v333, 7
  %v336 = vshll.u32 %v272, 16
  %v338 = vor.u32 %v335, %v336
  %v339 = vsel %vm287, %v331, %v338
  %v340 = vrot.slane %v335, 4
  %v342 = vshrl.u32 %v284, 16
  %v344 = vrot.slane %v342, 7
  %v345 = vshll.u32 %v284, 16
  %v347 = vor.u32 %v344, %v345
  %v348 = vsel %vm287, %v340, %v347
  %v356 = vmul.bf16 %v87, %v294
  %v357 = vmul.bf16 %v88, %v303
  %v358 = vmul.bf16 %v89, %v312
  %v359 = vmul.bf16 %v90, %v321
  %v360 = vmul.bf16 %v91, %v330
  %v361 = vmul.bf16 %v92, %v339
  %v362 = vmul.bf16 %v192, %v348
  %v363 = vld [vmem:[#allocation2] sm:$0xe]
  %s364 = scalar_lea.vmem %s1, 56
  %v365 = vld [vmem:[%s364] sm:$0xf]
  %v366 = vld [vmem:[%s364 + $0x4] sm:$0xf]
  %v367 = vld [vmem:[%s364 + $0x8] sm:$0xf]
  %v368 = vld [vmem:[%s364 + $0xc] sm:$0xf]
  %v369 = vld [vmem:[%s364 + $0x10] sm:$0xf]
  %v370 = vld [vmem:[%s364 + $0x14] sm:$0xf]
  %v371 = vld [vmem:[%s364 + $0x18] sm:$0x7]
  %373 = vset.pattern.permute.xlu0 0
  %374 = vperm.xlu0 %373, %v365
  %v375 = vpop.permute.xlu0 %374
  %v378 = vunpack.c.l.s4 839922192
  %v379 = vunpack.c.0.s8 %v378
  %v380 = vlaneseq
  %v381 = vshrl.u32 %v380, 7
  %v382 = vsub.s32 %v379, %v381
  %v383 = vrot.slane %v375, %v382
  %385 = vset.pattern.permute.xlu0 0
  %386 = vperm.xlu0 %385, %v366
  %v387 = vpop.permute.xlu0 %386
  %v390 = vunpack.c.l.s4 839922192
  %v391 = vunpack.c.0.s8 %v390
  %v392 = vlaneseq
  %v393 = vshrl.u32 %v392, 7
  %v394 = vsub.s32 %v391, %v393
  %v395 = vrot.slane %v387, %v394
  %397 = vset.pattern.permute.xlu0 0
  %398 = vperm.xlu0 %397, %v367
  %v399 = vpop.permute.xlu0 %398
  %v402 = vunpack.c.l.s4 839922192
  %v403 = vunpack.c.0.s8 %v402
  %v404 = vlaneseq
  %v405 = vshrl.u32 %v404, 7
  %v406 = vsub.s32 %v403, %v405
  %v407 = vrot.slane %v399, %v406
  %409 = vset.pattern.permute.xlu0 0
  %410 = vperm.xlu0 %409, %v368
  %v411 = vpop.permute.xlu0 %410
  %v414 = vunpack.c.l.s4 839922192
  %v415 = vunpack.c.0.s8 %v414
  %v416 = vlaneseq
  %v417 = vshrl.u32 %v416, 7
  %v418 = vsub.s32 %v415, %v417
  %v419 = vrot.slane %v411, %v418
  %421 = vset.pattern.permute.xlu0 0
  %422 = vperm.xlu0 %421, %v369
  %v423 = vpop.permute.xlu0 %422
  %v426 = vunpack.c.l.s4 839922192
  %v427 = vunpack.c.0.s8 %v426
  %v428 = vlaneseq
  %v429 = vshrl.u32 %v428, 7
  %v430 = vsub.s32 %v427, %v429
  %v431 = vrot.slane %v423, %v430
  %433 = vset.pattern.permute.xlu0 0
  %434 = vperm.xlu0 %433, %v370
  %v435 = vpop.permute.xlu0 %434
  %v438 = vunpack.c.l.s4 839922192
  %v439 = vunpack.c.0.s8 %v438
  %v440 = vlaneseq
  %v441 = vshrl.u32 %v440, 7
  %v442 = vsub.s32 %v439, %v441
  %v443 = vrot.slane %v435, %v442
  %445 = vset.pattern.permute.xlu0 0
  %446 = vperm.xlu0 %445, %v371
  %v447 = vpop.permute.xlu0 %446
  %v450 = vunpack.c.l.s4 839922192
  %v451 = vunpack.c.0.s8 %v450
  %v452 = vlaneseq
  %v453 = vshrl.u32 %v452, 7
  %v454 = vsub.s32 %v451, %v453
  %v455 = vrot.slane %v447, %v454
  %v463 = vrot.slane %v383, 7
  %v464 = vrot.slane %v463, 4
  %v465 = vrot.slane %v395, 7
  %v466 = vsel %vm52, %v464, %v465
  %v467 = vrot.slane %v465, 4
  %v468 = vrot.slane %v407, 7
  %v469 = vsel %vm52, %v467, %v468
  %v470 = vrot.slane %v468, 4
  %v471 = vrot.slane %v419, 7
  %v472 = vsel %vm52, %v470, %v471
  %v473 = vrot.slane %v471, 4
  %v474 = vrot.slane %v431, 7
  %v475 = vsel %vm52, %v473, %v474
  %v476 = vrot.slane %v474, 4
  %v477 = vrot.slane %v443, 7
  %v478 = vsel %vm52, %v476, %v477
  %v479 = vrot.slane %v477, 4
  %v480 = vrot.slane %v455, 7
  %v481 = vsel %vm52, %v479, %v480
  %v489 = vmul.bf16 %v363, %v463
  %v490 = vmul.bf16 %v88, %v466
  %v491 = vmul.bf16 %v89, %v469
  %v492 = vmul.bf16 %v90, %v472
  %v493 = vmul.bf16 %v91, %v475
  %v494 = vmul.bf16 %v92, %v478
  %v495 = vmul.bf16 %v192, %v481
  %v496 = vld [vmem:[#allocation2 + $0x4] sm:$0xf]
  %v497 = vld [vmem:[#allocation2 + $0x8] sm:$0xf]
  %v498 = vld [vmem:[#allocation2 + $0xc] sm:$0xf]
  %v499 = vld [vmem:[#allocation2 + $0x10] sm:$0xf]
  %v500 = vld [vmem:[#allocation2 + $0x14] sm:$0xf]
  %v501 = vld [vmem:[#allocation2 + $0x18] sm:$0xf]
  %v502 = vld [vmem:[#allocation2 + $0x1c] sm:$0xf]
  %s503 = scalar_lea.vmem %s1, 84
  %v504 = vld [vmem:[%s503] sm:$0xf]
  %v505 = vld [vmem:[%s503 + $0x4] sm:$0xf]
  %v506 = vld [vmem:[%s503 + $0x8] sm:$0xf]
  %v507 = vld [vmem:[%s503 + $0xc] sm:$0xf]
  %v508 = vld [vmem:[%s503 + $0x10] sm:$0xf]
  %v509 = vld [vmem:[%s503 + $0x14] sm:$0xf]
  %v510 = vld [vmem:[%s503 + $0x18] sm:$0x7]
  %512 = vset.pattern.permute.xlu0 0
  %513 = vperm.xlu0 %512, %v504
  %v514 = vpop.permute.xlu0 %513
  %v517 = vunpack.c.l.s4 839922192
  %v518 = vunpack.c.0.s8 %v517
  %v519 = vlaneseq
  %v520 = vshrl.u32 %v519, 7
  %v521 = vsub.s32 %v518, %v520
  %v522 = vrot.slane %v514, %v521
  %524 = vset.pattern.permute.xlu0 0
  %525 = vperm.xlu0 %524, %v505
  %v526 = vpop.permute.xlu0 %525
  %v529 = vunpack.c.l.s4 839922192
  %v530 = vunpack.c.0.s8 %v529
  %v531 = vlaneseq
  %v532 = vshrl.u32 %v531, 7
  %v533 = vsub.s32 %v530, %v532
  %v534 = vrot.slane %v526, %v533
  %536 = vset.pattern.permute.xlu0 0
  %537 = vperm.xlu0 %536, %v506
  %v538 = vpop.permute.xlu0 %537
  %v541 = vunpack.c.l.s4 839922192
  %v542 = vunpack.c.0.s8 %v541
  %v543 = vlaneseq
  %v544 = vshrl.u32 %v543, 7
  %v545 = vsub.s32 %v542, %v544
  %v546 = vrot.slane %v538, %v545
  %548 = vset.pattern.permute.xlu0 0
  %549 = vperm.xlu0 %548, %v507
  %v550 = vpop.permute.xlu0 %549
  %v553 = vunpack.c.l.s4 839922192
  %v554 = vunpack.c.0.s8 %v553
  %v555 = vlaneseq
  %v556 = vshrl.u32 %v555, 7
  %v557 = vsub.s32 %v554, %v556
  %v558 = vrot.slane %v550, %v557
  %560 = vset.pattern.permute.xlu0 0
  %561 = vperm.xlu0 %560, %v508
  %v562 = vpop.permute.xlu0 %561
  %v565 = vunpack.c.l.s4 839922192
  %v566 = vunpack.c.0.s8 %v565
  %v567 = vlaneseq
  %v568 = vshrl.u32 %v567, 7
  %v569 = vsub.s32 %v566, %v568
  %v570 = vrot.slane %v562, %v569
  %572 = vset.pattern.permute.xlu0 0
  %573 = vperm.xlu0 %572, %v509
  %v574 = vpop.permute.xlu0 %573
  %v577 = vunpack.c.l.s4 839922192
  %v578 = vunpack.c.0.s8 %v577
  %v579 = vlaneseq
  %v580 = vshrl.u32 %v579, 7
  %v581 = vsub.s32 %v578, %v580
  %v582 = vrot.slane %v574, %v581
  %584 = vset.pattern.permute.xlu0 0
  %585 = vperm.xlu0 %584, %v510
  %v586 = vpop.permute.xlu0 %585
  %v589 = vunpack.c.l.s4 839922192
  %v590 = vunpack.c.0.s8 %v589
  %v591 = vlaneseq
  %v592 = vshrl.u32 %v591, 7
  %v593 = vsub.s32 %v590, %v592
  %v594 = vrot.slane %v586, %v593
  %v596 = vshrl.u32 %v522, 16
  %v598 = vrot.slane %v596, 7
  %v599 = vshll.u32 %v522, 16
  %v601 = vor.u32 %v598, %v599
  %v602 = vrot.slane %v598, 4
  %v604 = vshrl.u32 %v534, 16
  %v606 = vrot.slane %v604, 7
  %v607 = vshll.u32 %v534, 16
  %v609 = vor.u32 %v606, %v607
  %v610 = vsel %vm287, %v602, %v609
  %v611 = vrot.slane %v606, 4
  %v613 = vshrl.u32 %v546, 16
  %v615 = vrot.slane %v613, 7
  %v616 = vshll.u32 %v546, 16
  %v618 = vor.u32 %v615, %v616
  %v619 = vsel %vm287, %v611, %v618
  %v620 = vrot.slane %v615, 4
  %v622 = vshrl.u32 %v558, 16
  %v624 = vrot.slane %v622, 7
  %v625 = vshll.u32 %v558, 16
  %v627 = vor.u32 %v624, %v625
  %v628 = vsel %vm287, %v620, %v627
  %v629 = vrot.slane %v624, 4
  %v631 = vshrl.u32 %v570, 16
  %v633 = vrot.slane %v631, 7
  %v634 = vshll.u32 %v570, 16
  %v636 = vor.u32 %v633, %v634
  %v637 = vsel %vm287, %v629, %v636
  %v638 = vrot.slane %v633, 4
  %v640 = vshrl.u32 %v582, 16
  %v642 = vrot.slane %v640, 7
  %v643 = vshll.u32 %v582, 16
  %v645 = vor.u32 %v642, %v643
  %v646 = vsel %vm287, %v638, %v645
  %v647 = vrot.slane %v642, 4
  %v649 = vshrl.u32 %v594, 16
  %v651 = vrot.slane %v649, 7
  %v652 = vshll.u32 %v594, 16
  %v654 = vor.u32 %v651, %v652
  %v655 = vsel %vm287, %v647, %v654
  %v663 = vmul.bf16 %v496, %v601
  %v664 = vmul.bf16 %v497, %v610
  %v665 = vmul.bf16 %v498, %v619
  %v666 = vmul.bf16 %v499, %v628
  %v667 = vmul.bf16 %v500, %v637
  %v668 = vmul.bf16 %v501, %v646
  %v669 = vmul.bf16 %v502, %v655
  %v670 = vld [vmem:[#allocation2 + $0x4] sm:$0xe]
  %v671 = vld [vmem:[#allocation2 + $0x8] sm:$0xf]
  %v672 = vld [vmem:[#allocation2 + $0xc] sm:$0xf]
  %v673 = vld [vmem:[#allocation2 + $0x10] sm:$0xf]
  %v674 = vld [vmem:[#allocation2 + $0x14] sm:$0xf]
  %v675 = vld [vmem:[#allocation2 + $0x18] sm:$0xf]
  %v676 = vld [vmem:[#allocation2 + $0x1c] sm:$0xf]
  %v677 = vld [vmem:[#allocation2 + $0x20] sm:$0x1]
  %s678 = scalar_lea.vmem %s1, 140
  %v679 = vld [vmem:[%s678] sm:$0xf]
  %v680 = vld [vmem:[%s678 + $0x4] sm:$0xf]
  %v681 = vld [vmem:[%s678 + $0x8] sm:$0xf]
  %v682 = vld [vmem:[%s678 + $0xc] sm:$0xf]
  %v683 = vld [vmem:[%s678 + $0x10] sm:$0xf]
  %v684 = vld [vmem:[%s678 + $0x14] sm:$0xf]
  %v685 = vld [vmem:[%s678 + $0x18] sm:$0x7]
  %687 = vset.pattern.permute.xlu0 0
  %688 = vperm.xlu0 %687, %v679
  %v689 = vpop.permute.xlu0 %688
  %v692 = vunpack.c.l.s4 839922192
  %v693 = vunpack.c.0.s8 %v692
  %v694 = vlaneseq
  %v695 = vshrl.u32 %v694, 7
  %v696 = vsub.s32 %v693, %v695
  %v697 = vrot.slane %v689, %v696
  %699 = vset.pattern.permute.xlu0 0
  %700 = vperm.xlu0 %699, %v680
  %v701 = vpop.permute.xlu0 %700
  %v704 = vunpack.c.l.s4 839922192
  %v705 = vunpack.c.0.s8 %v704
  %v706 = vlaneseq
  %v707 = vshrl.u32 %v706, 7
  %v708 = vsub.s32 %v705, %v707
  %v709 = vrot.slane %v701, %v708
  %711 = vset.pattern.permute.xlu0 0
  %712 = vperm.xlu0 %711, %v681
  %v713 = vpop.permute.xlu0 %712
  %v716 = vunpack.c.l.s4 839922192
  %v717 = vunpack.c.0.s8 %v716
  %v718 = vlaneseq
  %v719 = vshrl.u32 %v718, 7
  %v720 = vsub.s32 %v717, %v719
  %v721 = vrot.slane %v713, %v720
  %723 = vset.pattern.permute.xlu0 0
  %724 = vperm.xlu0 %723, %v682
  %v725 = vpop.permute.xlu0 %724
  %v728 = vunpack.c.l.s4 839922192
  %v729 = vunpack.c.0.s8 %v728
  %v730 = vlaneseq
  %v731 = vshrl.u32 %v730, 7
  %v732 = vsub.s32 %v729, %v731
  %v733 = vrot.slane %v725, %v732
  %735 = vset.pattern.permute.xlu0 0
  %736 = vperm.xlu0 %735, %v683
  %v737 = vpop.permute.xlu0 %736
  %v740 = vunpack.c.l.s4 839922192
  %v741 = vunpack.c.0.s8 %v740
  %v742 = vlaneseq
  %v743 = vshrl.u32 %v742, 7
  %v744 = vsub.s32 %v741, %v743
  %v745 = vrot.slane %v737, %v744
  %747 = vset.pattern.permute.xlu0 0
  %748 = vperm.xlu0 %747, %v684
  %v749 = vpop.permute.xlu0 %748
  %v752 = vunpack.c.l.s4 839922192
  %v753 = vunpack.c.0.s8 %v752
  %v754 = vlaneseq
  %v755 = vshrl.u32 %v754, 7
  %v756 = vsub.s32 %v753, %v755
  %v757 = vrot.slane %v749, %v756
  %759 = vset.pattern.permute.xlu0 0
  %760 = vperm.xlu0 %759, %v685
  %v761 = vpop.permute.xlu0 %760
  %v764 = vunpack.c.l.s4 839922192
  %v765 = vunpack.c.0.s8 %v764
  %v766 = vlaneseq
  %v767 = vshrl.u32 %v766, 7
  %v768 = vsub.s32 %v765, %v767
  %v769 = vrot.slane %v761, %v768
  %vm770 = vsmask.f32 1280
  %vm771 = vsmask.f32 5392
  %vm772 = vmor %vm770, %vm771
  %v774 = vshrl.u32 %v697, 16
  %v776 = vrot.slane %v774, 6
  %v777 = vshll.u32 %v697, 16
  %v779 = vrot.slane %v777, 7
  %v780 = vor.u32 %v776, %v779
  %v781 = vrot.slane %v780, 4
  %v783 = vshrl.u32 %v709, 16
  %v785 = vrot.slane %v783, 6
  %v786 = vshll.u32 %v709, 16
  %v788 = vrot.slane %v786, 7
  %v789 = vor.u32 %v785, %v788
  %v790 = vsel %vm772, %v781, %v789
  %v791 = vrot.slane %v789, 4
  %v793 = vshrl.u32 %v721, 16
  %v795 = vrot.slane %v793, 6
  %v796 = vshll.u32 %v721, 16
  %v798 = vrot.slane %v796, 7
  %v799 = vor.u32 %v795, %v798
  %v800 = vsel %vm772, %v791, %v799
  %v801 = vrot.slane %v799, 4
  %v803 = vshrl.u32 %v733, 16
  %v805 = vrot.slane %v803, 6
  %v806 = vshll.u32 %v733, 16
  %v808 = vrot.slane %v806, 7
  %v809 = vor.u32 %v805, %v808
  %v810 = vsel %vm772, %v801, %v809
  %v811 = vrot.slane %v809, 4
  %v813 = vshrl.u32 %v745, 16
  %v815 = vrot.slane %v813, 6
  %v816 = vshll.u32 %v745, 16
  %v818 = vrot.slane %v816, 7
  %v819 = vor.u32 %v815, %v818
  %v820 = vsel %vm772, %v811, %v819
  %v821 = vrot.slane %v819, 4
  %v823 = vshrl.u32 %v757, 16
  %v825 = vrot.slane %v823, 6
  %v826 = vshll.u32 %v757, 16
  %v828 = vrot.slane %v826, 7
  %v829 = vor.u32 %v825, %v828
  %v830 = vsel %vm772, %v821, %v829
  %v831 = vrot.slane %v829, 4
  %v833 = vshrl.u32 %v769, 16
  %v835 = vrot.slane %v833, 6
  %v836 = vshll.u32 %v769, 16
  %v838 = vrot.slane %v836, 7
  %v839 = vor.u32 %v835, %v838
  %v840 = vsel %vm772, %v831, %v839
  %v841 = vrot.slane %v835, 4
  %v850 = vmul.bf16 %v670, %v780
  %v851 = vmul.bf16 %v671, %v790
  %v852 = vmul.bf16 %v672, %v800
  %v853 = vmul.bf16 %v673, %v810
  %v854 = vmul.bf16 %v674, %v820
  %v855 = vmul.bf16 %v675, %v830
  %v856 = vmul.bf16 %v676, %v840
  %v857 = vmul.bf16 %v677, %v841
  %v858 = vld [vmem:[#allocation2 + $0x8] sm:$0xe]
  %v859 = vld [vmem:[#allocation2 + $0x20] sm:$0xf]
  %s860 = scalar_lea.vmem %s1, 168
  %v861 = vld [vmem:[%s860] sm:$0xf]
  %v862 = vld [vmem:[%s860 + $0x4] sm:$0xf]
  %v863 = vld [vmem:[%s860 + $0x8] sm:$0xf]
  %v864 = vld [vmem:[%s860 + $0xc] sm:$0xf]
  %v865 = vld [vmem:[%s860 + $0x10] sm:$0xf]
  %v866 = vld [vmem:[%s860 + $0x14] sm:$0xf]
  %v867 = vld [vmem:[%s860 + $0x18] sm:$0x7]
  %869 = vset.pattern.permute.xlu0 0
  %870 = vperm.xlu0 %869, %v861
  %v871 = vpop.permute.xlu0 %870
  %v874 = vunpack.c.l.s4 839922192
  %v875 = vunpack.c.0.s8 %v874
  %v876 = vlaneseq
  %v877 = vshrl.u32 %v876, 7
  %v878 = vsub.s32 %v875, %v877
  %v879 = vrot.slane %v871, %v878
  %881 = vset.pattern.permute.xlu0 0
  %882 = vperm.xlu0 %881, %v862
  %v883 = vpop.permute.xlu0 %882
  %v886 = vunpack.c.l.s4 839922192
  %v887 = vunpack.c.0.s8 %v886
  %v888 = vlaneseq
  %v889 = vshrl.u32 %v888, 7
  %v890 = vsub.s32 %v887, %v889
  %v891 = vrot.slane %v883, %v890
  %893 = vset.pattern.permute.xlu0 0
  %894 = vperm.xlu0 %893, %v863
  %v895 = vpop.permute.xlu0 %894
  %v898 = vunpack.c.l.s4 839922192
  %v899 = vunpack.c.0.s8 %v898
  %v900 = vlaneseq
  %v901 = vshrl.u32 %v900, 7
  %v902 = vsub.s32 %v899, %v901
  %v903 = vrot.slane %v895, %v902
  %905 = vset.pattern.permute.xlu0 0
  %906 = vperm.xlu0 %905, %v864
  %v907 = vpop.permute.xlu0 %906
  %v910 = vunpack.c.l.s4 839922192
  %v911 = vunpack.c.0.s8 %v910
  %v912 = vlaneseq
  %v913 = vshrl.u32 %v912, 7
  %v914 = vsub.s32 %v911, %v913
  %v915 = vrot.slane %v907, %v914
  %917 = vset.pattern.permute.xlu0 0
  %918 = vperm.xlu0 %917, %v865
  %v919 = vpop.permute.xlu0 %918
  %v922 = vunpack.c.l.s4 839922192
  %v923 = vunpack.c.0.s8 %v922
  %v924 = vlaneseq
  %v925 = vshrl.u32 %v924, 7
  %v926 = vsub.s32 %v923, %v925
  %v927 = vrot.slane %v919, %v926
  %929 = vset.pattern.permute.xlu0 0
  %930 = vperm.xlu0 %929, %v866
  %v931 = vpop.permute.xlu0 %930
  %v934 = vunpack.c.l.s4 839922192
  %v935 = vunpack.c.0.s8 %v934
  %v936 = vlaneseq
  %v937 = vshrl.u32 %v936, 7
  %v938 = vsub.s32 %v935, %v937
  %v939 = vrot.slane %v931, %v938
  %941 = vset.pattern.permute.xlu0 0
  %942 = vperm.xlu0 %941, %v867
  %v943 = vpop.permute.xlu0 %942
  %v946 = vunpack.c.l.s4 839922192
  %v947 = vunpack.c.0.s8 %v946
  %v948 = vlaneseq
  %v949 = vshrl.u32 %v948, 7
  %v950 = vsub.s32 %v947, %v949
  %v951 = vrot.slane %v943, %v950
  %v959 = vrot.slane %v879, 7
  %v960 = vrot.slane %v959, 4
  %v961 = vrot.slane %v891, 7
  %v962 = vsel %vm52, %v960, %v961
  %v963 = vrot.slane %v961, 4
  %v964 = vrot.slane %v903, 7
  %v965 = vsel %vm52, %v963, %v964
  %v966 = vrot.slane %v964, 4
  %v967 = vrot.slane %v915, 7
  %v968 = vsel %vm52, %v966, %v967
  %v969 = vrot.slane %v967, 4
  %v970 = vrot.slane %v927, 7
  %v971 = vsel %vm52, %v969, %v970
  %v972 = vrot.slane %v970, 4
  %v973 = vrot.slane %v939, 7
  %v974 = vsel %vm52, %v972, %v973
  %v975 = vrot.slane %v973, 4
  %v976 = vrot.slane %v951, 7
  %v977 = vsel %vm52, %v975, %v976
  %v985 = vmul.bf16 %v858, %v959
  %v986 = vmul.bf16 %v672, %v962
  %v987 = vmul.bf16 %v673, %v965
  %v988 = vmul.bf16 %v674, %v968
  %v989 = vmul.bf16 %v675, %v971
  %v990 = vmul.bf16 %v676, %v974
  %v991 = vmul.bf16 %v859, %v977
  %v992 = vld [vmem:[#allocation2 + $0x8] sm:$0xe]
  %v993 = vld [vmem:[#allocation2 + $0xc] sm:$0xf]
  %v994 = vld [vmem:[#allocation2 + $0x10] sm:$0xf]
  %v995 = vld [vmem:[#allocation2 + $0x14] sm:$0xf]
  %v996 = vld [vmem:[#allocation2 + $0x18] sm:$0xf]
  %v997 = vld [vmem:[#allocation2 + $0x1c] sm:$0xf]
  %v998 = vld [vmem:[#allocation2 + $0x20] sm:$0xf]
  %v999 = vld [vmem:[#allocation2 + $0x24] sm:$0x1]
  %s1000 = scalar_lea.vmem %s1, 196
  %v1001 = vld [vmem:[%s1000] sm:$0xf]
  %v1002 = vld [vmem:[%s1000 + $0x4] sm:$0xf]
  %v1003 = vld [vmem:[%s1000 + $0x8] sm:$0xf]
  %v1004 = vld [vmem:[%s1000 + $0xc] sm:$0xf]
  %v1005 = vld [vmem:[%s1000 + $0x10] sm:$0xf]
  %v1006 = vld [vmem:[%s1000 + $0x14] sm:$0xf]
  %v1007 = vld [vmem:[%s1000 + $0x18] sm:$0x7]
  %1009 = vset.pattern.permute.xlu0 0
  %1010 = vperm.xlu0 %1009, %v1001
  %v1011 = vpop.permute.xlu0 %1010
  %v1014 = vunpack.c.l.s4 839922192
  %v1015 = vunpack.c.0.s8 %v1014
  %v1016 = vlaneseq
  %v1017 = vshrl.u32 %v1016, 7
  %v1018 = vsub.s32 %v1015, %v1017
  %v1019 = vrot.slane %v1011, %v1018
  %1021 = vset.pattern.permute.xlu0 0
  %1022 = vperm.xlu0 %1021, %v1002
  %v1023 = vpop.permute.xlu0 %1022
  %v1026 = vunpack.c.l.s4 839922192
  %v1027 = vunpack.c.0.s8 %v1026
  %v1028 = vlaneseq
  %v1029 = vshrl.u32 %v1028, 7
  %v1030 = vsub.s32 %v1027, %v1029
  %v1031 = vrot.slane %v1023, %v1030
  %1033 = vset.pattern.permute.xlu0 0
  %1034 = vperm.xlu0 %1033, %v1003
  %v1035 = vpop.permute.xlu0 %1034
  %v1038 = vunpack.c.l.s4 839922192
  %v1039 = vunpack.c.0.s8 %v1038
  %v1040 = vlaneseq
  %v1041 = vshrl.u32 %v1040, 7
  %v1042 = vsub.s32 %v1039, %v1041
  %v1043 = vrot.slane %v1035, %v1042
  %1045 = vset.pattern.permute.xlu0 0
  %1046 = vperm.xlu0 %1045, %v1004
  %v1047 = vpop.permute.xlu0 %1046
  %v1050 = vunpack.c.l.s4 839922192
  %v1051 = vunpack.c.0.s8 %v1050
  %v1052 = vlaneseq
  %v1053 = vshrl.u32 %v1052, 7
  %v1054 = vsub.s32 %v1051, %v1053
  %v1055 = vrot.slane %v1047, %v1054
  %1057 = vset.pattern.permute.xlu0 0
  %1058 = vperm.xlu0 %1057, %v1005
  %v1059 = vpop.permute.xlu0 %1058
  %v1062 = vunpack.c.l.s4 839922192
  %v1063 = vunpack.c.0.s8 %v1062
  %v1064 = vlaneseq
  %v1065 = vshrl.u32 %v1064, 7
  %v1066 = vsub.s32 %v1063, %v1065
  %v1067 = vrot.slane %v1059, %v1066
  %1069 = vset.pattern.permute.xlu0 0
  %1070 = vperm.xlu0 %1069, %v1006
  %v1071 = vpop.permute.xlu0 %1070
  %v1074 = vunpack.c.l.s4 839922192
  %v1075 = vunpack.c.0.s8 %v1074
  %v1076 = vlaneseq
  %v1077 = vshrl.u32 %v1076, 7
  %v1078 = vsub.s32 %v1075, %v1077
  %v1079 = vrot.slane %v1071, %v1078
  %1081 = vset.pattern.permute.xlu0 0
  %1082 = vperm.xlu0 %1081, %v1007
  %v1083 = vpop.permute.xlu0 %1082
  %v1086 = vunpack.c.l.s4 839922192
  %v1087 = vunpack.c.0.s8 %v1086
  %v1088 = vlaneseq
  %v1089 = vshrl.u32 %v1088, 7
  %v1090 = vsub.s32 %v1087, %v1089
  %v1091 = vrot.slane %v1083, %v1090
  %v1093 = vshrl.u32 %v1019, 16
  %v1095 = vrot.slane %v1093, 6
  %v1096 = vshll.u32 %v1019, 16
  %v1098 = vrot.slane %v1096, 7
  %v1099 = vor.u32 %v1095, %v1098
  %v1100 = vrot.slane %v1099, 4
  %v1102 = vshrl.u32 %v1031, 16
  %v1104 = vrot.slane %v1102, 6
  %v1105 = vshll.u32 %v1031, 16
  %v1107 = vrot.slane %v1105, 7
  %v1108 = vor.u32 %v1104, %v1107
  %v1109 = vsel %vm772, %v1100, %v1108
  %v1110 = vrot.slane %v1108, 4
  %v1112 = vshrl.u32 %v1043, 16
  %v1114 = vrot.slane %v1112, 6
  %v1115 = vshll.u32 %v1043, 16
  %v1117 = vrot.slane %v1115, 7
  %v1118 = vor.u32 %v1114, %v1117
  %v1119 = vsel %vm772, %v1110, %v1118
  %v1120 = vrot.slane %v1118, 4
  %v1122 = vshrl.u32 %v1055, 16
  %v1124 = vrot.slane %v1122, 6
  %v1125 = vshll.u32 %v1055, 16
  %v1127 = vrot.slane %v1125, 7
  %v1128 = vor.u32 %v1124, %v1127
  %v1129 = vsel %vm772, %v1120, %v1128
  %v1130 = vrot.slane %v1128, 4
  %v1132 = vshrl.u32 %v1067, 16
  %v1134 = vrot.slane %v1132, 6
  %v1135 = vshll.u32 %v1067, 16
  %v1137 = vrot.slane %v1135, 7
  %v1138 = vor.u32 %v1134, %v1137
  %v1139 = vsel %vm772, %v1130, %v1138
  %v1140 = vrot.slane %v1138, 4
  %v1142 = vshrl.u32 %v1079, 16
  %v1144 = vrot.slane %v1142, 6
  %v1145 = vshll.u32 %v1079, 16
  %v1147 = vrot.slane %v1145, 7
  %v1148 = vor.u32 %v1144, %v1147
  %v1149 = vsel %vm772, %v1140, %v1148
  %v1150 = vrot.slane %v1148, 4
  %v1152 = vshrl.u32 %v1091, 16
  %v1154 = vrot.slane %v1152, 6
  %v1155 = vshll.u32 %v1091, 16
  %v1157 = vrot.slane %v1155, 7
  %v1158 = vor.u32 %v1154, %v1157
  %v1159 = vsel %vm772, %v1150, %v1158
  %v1160 = vrot.slane %v1154, 4
  %v1169 = vmul.bf16 %v992, %v1099
  %v1170 = vmul.bf16 %v993, %v1109
  %v1171 = vmul.bf16 %v994, %v1119
  %v1172 = vmul.bf16 %v995, %v1129
  %v1173 = vmul.bf16 %v996, %v1139
  %v1174 = vmul.bf16 %v997, %v1149
  %v1175 = vmul.bf16 %v998, %v1159
  %v1176 = vmul.bf16 %v999, %v1160
  %v1177 = vld [vmem:[#allocation2 + $0x8] sm:$0xc]
  %s1178 = scalar_lea.vmem %s1, 224
  %v1179 = vld [vmem:[%s1178] sm:$0xf]
  %v1180 = vld [vmem:[%s1178 + $0x4] sm:$0xf]
  %v1181 = vld [vmem:[%s1178 + $0x8] sm:$0xf]
  %v1182 = vld [vmem:[%s1178 + $0xc] sm:$0xf]
  %v1183 = vld [vmem:[%s1178 + $0x10] sm:$0xf]
  %v1184 = vld [vmem:[%s1178 + $0x14] sm:$0xf]
  %v1185 = vld [vmem:[%s1178 + $0x18] sm:$0x7]
  %1187 = vset.pattern.permute.xlu0 0
  %1188 = vperm.xlu0 %1187, %v1179
  %v1189 = vpop.permute.xlu0 %1188
  %v1192 = vunpack.c.l.s4 839922192
  %v1193 = vunpack.c.0.s8 %v1192
  %v1194 = vlaneseq
  %v1195 = vshrl.u32 %v1194, 7
  %v1196 = vsub.s32 %v1193, %v1195
  %v1197 = vrot.slane %v1189, %v1196
  %1199 = vset.pattern.permute.xlu0 0
  %1200 = vperm.xlu0 %1199, %v1180
  %v1201 = vpop.permute.xlu0 %1200
  %v1204 = vunpack.c.l.s4 839922192
  %v1205 = vunpack.c.0.s8 %v1204
  %v1206 = vlaneseq
  %v1207 = vshrl.u32 %v1206, 7
  %v1208 = vsub.s32 %v1205, %v1207
  %v1209 = vrot.slane %v1201, %v1208
  %1211 = vset.pattern.permute.xlu0 0
  %1212 = vperm.xlu0 %1211, %v1181
  %v1213 = vpop.permute.xlu0 %1212
  %v1216 = vunpack.c.l.s4 839922192
  %v1217 = vunpack.c.0.s8 %v1216
  %v1218 = vlaneseq
  %v1219 = vshrl.u32 %v1218, 7
  %v1220 = vsub.s32 %v1217, %v1219
  %v1221 = vrot.slane %v1213, %v1220
  %1223 = vset.pattern.permute.xlu0 0
  %1224 = vperm.xlu0 %1223, %v1182
  %v1225 = vpop.permute.xlu0 %1224
  %v1228 = vunpack.c.l.s4 839922192
  %v1229 = vunpack.c.0.s8 %v1228
  %v1230 = vlaneseq
  %v1231 = vshrl.u32 %v1230, 7
  %v1232 = vsub.s32 %v1229, %v1231
  %v1233 = vrot.slane %v1225, %v1232
  %1235 = vset.pattern.permute.xlu0 0
  %1236 = vperm.xlu0 %1235, %v1183
  %v1237 = vpop.permute.xlu0 %1236
  %v1240 = vunpack.c.l.s4 839922192
  %v1241 = vunpack.c.0.s8 %v1240
  %v1242 = vlaneseq
  %v1243 = vshrl.u32 %v1242, 7
  %v1244 = vsub.s32 %v1241, %v1243
  %v1245 = vrot.slane %v1237, %v1244
  %1247 = vset.pattern.permute.xlu0 0
  %1248 = vperm.xlu0 %1247, %v1184
  %v1249 = vpop.permute.xlu0 %1248
  %v1252 = vunpack.c.l.s4 839922192
  %v1253 = vunpack.c.0.s8 %v1252
  %v1254 = vlaneseq
  %v1255 = vshrl.u32 %v1254, 7
  %v1256 = vsub.s32 %v1253, %v1255
  %v1257 = vrot.slane %v1249, %v1256
  %1259 = vset.pattern.permute.xlu0 0
  %1260 = vperm.xlu0 %1259, %v1185
  %v1261 = vpop.permute.xlu0 %1260
  %v1264 = vunpack.c.l.s4 839922192
  %v1265 = vunpack.c.0.s8 %v1264
  %v1266 = vlaneseq
  %v1267 = vshrl.u32 %v1266, 7
  %v1268 = vsub.s32 %v1265, %v1267
  %v1269 = vrot.slane %v1261, %v1268
  %vm1277 = vcmask 1041408
  %vm1278 = vcmask 1045508
  %vm1279 = vmor %vm1277, %vm1278
  %v1280 = vrot.slane %v1197, 6
  %v1281 = vrot.slane %v1280, 4
  %v1282 = vrot.slane %v1209, 6
  %v1283 = vsel %vm1279, %v1281, %v1282
  %v1284 = vrot.slane %v1282, 4
  %v1285 = vrot.slane %v1221, 6
  %v1286 = vsel %vm1279, %v1284, %v1285
  %v1287 = vrot.slane %v1285, 4
  %v1288 = vrot.slane %v1233, 6
  %v1289 = vsel %vm1279, %v1287, %v1288
  %v1290 = vrot.slane %v1288, 4
  %v1291 = vrot.slane %v1245, 6
  %v1292 = vsel %vm1279, %v1290, %v1291
  %v1293 = vrot.slane %v1291, 4
  %v1294 = vrot.slane %v1257, 6
  %v1295 = vsel %vm1279, %v1293, %v1294
  %v1296 = vrot.slane %v1294, 4
  %v1297 = vrot.slane %v1269, 6
  %v1298 = vsel %vm1279, %v1296, %v1297
  %v1299 = vrot.slane %v1297, 4
  %v1308 = vmul.bf16 %v1177, %v1280
  %v1309 = vmul.bf16 %v993, %v1283
  %v1310 = vmul.bf16 %v994, %v1286
  %v1311 = vmul.bf16 %v995, %v1289
  %v1312 = vmul.bf16 %v996, %v1292
  %v1313 = vmul.bf16 %v997, %v1295
  %v1314 = vmul.bf16 %v998, %v1298
  %v1315 = vmul.bf16 %v999, %v1299
  %v1323 = vunpack.c.l.b16 %v185
  %v1324 = vunpack.c.l.b16 %v186
  %v1325 = vunpack.c.l.b16 %v187
  %v1326 = vunpack.c.l.b16 %v188
  %v1327 = vunpack.c.l.b16 %v189
  %v1328 = vunpack.c.l.b16 %v190
  %v1329 = vunpack.c.l.b16 %v191
  %v1330 = vpack.c.b16 %v1324, %v1323
  %v1331 = vpack.c.b16 %v1326, %v1325
  %v1332 = vpack.c.b16 %v1328, %v1327
  %v1333 = vpack.c.b16 %v1329, %v1329
  %v1341 = vunpack.c.l.b16 %v356
  %v1342 = vunpack.c.l.b16 %v357
  %v1343 = vunpack.c.l.b16 %v358
  %v1344 = vunpack.c.l.b16 %v359
  %v1345 = vunpack.c.l.b16 %v360
  %v1346 = vunpack.c.l.b16 %v361
  %v1347 = vunpack.c.l.b16 %v362
  %v1348 = vpack.c.b16 %v1342, %v1341
  %v1349 = vpack.c.b16 %v1344, %v1343
  %v1350 = vpack.c.b16 %v1346, %v1345
  %v1351 = vpack.c.b16 %v1347, %v1347
  %vm1352 = vsmask.f32 7424
  %v1354 = vshrl.u32 %v1348, 16
  %v1356 = vshll.u32 %v1348, 16
  %v1358 = vrot.slane %v1356, 1
  %v1359 = vor.u32 %v1354, %v1358
  %v1361 = vshll.u32 %v1349, 16
  %v1363 = vrot.slane %v1361, 1
  %v1364 = vsel %vm1352, %v1359, %v1363
  %v1365 = vshrl.u32 %v1349, 16
  %v1367 = vor.u32 %v1365, %v1363
  %v1369 = vshll.u32 %v1350, 16
  %v1371 = vrot.slane %v1369, 1
  %v1372 = vsel %vm1352, %v1367, %v1371
  %v1373 = vshrl.u32 %v1350, 16
  %v1375 = vor.u32 %v1373, %v1371
  %v1377 = vshll.u32 %v1351, 16
  %v1379 = vrot.slane %v1377, 1
  %v1380 = vsel %vm1352, %v1375, %v1379
  %v1381 = vshrl.u32 %v1351, 16
  %v1383 = vor.u32 %v1381, %v1379
  %1384 = vrot.lane.b32.xlu0 %v1364, 64
  %v1385 = vpop.permute.xlu0 %1384
  %1386 = vrot.lane.b32.xlu0 %v1372, 64
  %v1387 = vpop.permute.xlu0 %1386
  %1388 = vrot.lane.b32.xlu0 %v1380, 64
  %v1389 = vpop.permute.xlu0 %1388
  %1390 = vrot.lane.b32.xlu0 %v1383, 64
  %v1391 = vpop.permute.xlu0 %1390
  %v1399 = vunpack.c.l.b16 %v489
  %v1400 = vunpack.c.l.b16 %v490
  %v1401 = vunpack.c.l.b16 %v491
  %v1402 = vunpack.c.l.b16 %v492
  %v1403 = vunpack.c.l.b16 %v493
  %v1404 = vunpack.c.l.b16 %v494
  %v1405 = vunpack.c.l.b16 %v495
  %v1406 = vpack.c.b16 %v1400, %v1399
  %v1407 = vpack.c.b16 %v1402, %v1401
  %v1408 = vpack.c.b16 %v1404, %v1403
  %v1409 = vpack.c.b16 %v1405, %v1405
  %vm1410 = vcmask 1046528
  %v1411 = vrot.slane %v1406, 1
  %v1412 = vrot.slane %v1407, 1
  %v1413 = vsel %vm1410, %v1411, %v1412
  %v1414 = vrot.slane %v1408, 1
  %v1415 = vsel %vm1410, %v1412, %v1414
  %v1416 = vrot.slane %v1409, 1
  %v1417 = vsel %vm1410, %v1414, %v1416
  %v1425 = vunpack.c.l.b16 %v663
  %v1426 = vunpack.c.l.b16 %v664
  %v1427 = vunpack.c.l.b16 %v665
  %v1428 = vunpack.c.l.b16 %v666
  %v1429 = vunpack.c.l.b16 %v667
  %v1430 = vunpack.c.l.b16 %v668
  %v1431 = vunpack.c.l.b16 %v669
  %v1432 = vpack.c.b16 %v1426, %v1425
  %v1433 = vpack.c.b16 %v1428, %v1427
  %v1434 = vpack.c.b16 %v1430, %v1429
  %v1435 = vpack.c.b16 %v1431, %v1431
  %v1437 = vshrl.u32 %v1432, 16
  %v1439 = vshll.u32 %v1432, 16
  %v1441 = vrot.slane %v1439, 1
  %v1442 = vor.u32 %v1437, %v1441
  %v1444 = vshll.u32 %v1433, 16
  %v1446 = vrot.slane %v1444, 1
  %v1447 = vsel %vm1352, %v1442, %v1446
  %v1448 = vshrl.u32 %v1433, 16
  %v1450 = vor.u32 %v1448, %v1446
  %v1452 = vshll.u32 %v1434, 16
  %v1454 = vrot.slane %v1452, 1
  %v1455 = vsel %vm1352, %v1450, %v1454
  %v1456 = vshrl.u32 %v1434, 16
  %v1458 = vor.u32 %v1456, %v1454
  %v1460 = vshll.u32 %v1435, 16
  %v1462 = vrot.slane %v1460, 1
  %v1463 = vsel %vm1352, %v1458, %v1462
  %v1464 = vshrl.u32 %v1435, 16
  %v1466 = vor.u32 %v1464, %v1462
  %1467 = vrot.lane.b32.xlu0 %v1447, 64
  %v1468 = vpop.permute.xlu0 %1467
  %1469 = vrot.lane.b32.xlu0 %v1455, 64
  %v1470 = vpop.permute.xlu0 %1469
  %1471 = vrot.lane.b32.xlu0 %v1463, 64
  %v1472 = vpop.permute.xlu0 %1471
  %1473 = vrot.lane.b32.xlu0 %v1466, 64
  %v1474 = vpop.permute.xlu0 %1473
  %v1482 = vunpack.c.l.b16 %v670
  %v1483 = vunpack.c.l.b16 %v497
  %v1484 = vunpack.c.l.b16 %v498
  %v1485 = vunpack.c.l.b16 %v499
  %v1486 = vunpack.c.l.b16 %v500
  %v1487 = vunpack.c.l.b16 %v501
  %v1488 = vunpack.c.l.b16 %v502
  %v1489 = vpack.c.b16 %v1483, %v1482
  %v1490 = vpack.c.b16 %v1485, %v1484
  %v1491 = vpack.c.b16 %v1487, %v1486
  %v1492 = vpack.c.b16 %v1488, %v1488
  %v1493 = vrot.slane %v1489, 1
  %v1494 = vrot.slane %v1490, 1
  %v1495 = vsel %vm1410, %v1493, %v1494
  %v1496 = vrot.slane %v1491, 1
  %v1497 = vsel %vm1410, %v1494, %v1496
  %v1498 = vrot.slane %v1492, 1
  %v1499 = vsel %vm1410, %v1496, %v1498
  %v1508 = vunpack.c.l.b16 %v850
  %v1509 = vunpack.c.l.b16 %v851
  %v1510 = vunpack.c.l.b16 %v852
  %v1511 = vunpack.c.l.b16 %v853
  %v1512 = vunpack.c.l.b16 %v854
  %v1513 = vunpack.c.l.b16 %v855
  %v1514 = vunpack.c.l.b16 %v856
  %v1515 = vunpack.c.l.b16 %v857
  %v1516 = vpack.c.b16 %v1509, %v1508
  %v1517 = vpack.c.b16 %v1511, %v1510
  %v1518 = vpack.c.b16 %v1513, %v1512
  %v1519 = vpack.c.b16 %v1515, %v1514
  %vm1520 = vsmask.f32 6400
  %v1522 = vshrl.u32 %v1516, 16
  %v1524 = vrot.slane %v1522, 1
  %v1525 = vshll.u32 %v1516, 16
  %v1527 = vrot.slane %v1525, 2
  %v1528 = vor.u32 %v1524, %v1527
  %v1530 = vshrl.u32 %v1517, 16
  %v1532 = vrot.slane %v1530, 1
  %v1533 = vshll.u32 %v1517, 16
  %v1535 = vrot.slane %v1533, 2
  %v1536 = vor.u32 %v1532, %v1535
  %v1537 = vsel %vm1520, %v1528, %v1536
  %v1539 = vshrl.u32 %v1518, 16
  %v1541 = vrot.slane %v1539, 1
  %v1542 = vshll.u32 %v1518, 16
  %v1544 = vrot.slane %v1542, 2
  %v1545 = vor.u32 %v1541, %v1544
  %v1546 = vsel %vm1520, %v1536, %v1545
  %v1548 = vshrl.u32 %v1519, 16
  %v1550 = vrot.slane %v1548, 1
  %v1551 = vshll.u32 %v1519, 16
  %v1553 = vrot.slane %v1551, 2
  %v1554 = vor.u32 %v1550, %v1553
  %v1555 = vsel %vm1520, %v1545, %v1554
  %1556 = vrot.lane.b32.xlu0 %v1537, 64
  %v1557 = vpop.permute.xlu0 %1556
  %1558 = vrot.lane.b32.xlu0 %v1546, 64
  %v1559 = vpop.permute.xlu0 %1558
  %1560 = vrot.lane.b32.xlu0 %v1555, 64
  %v1561 = vpop.permute.xlu0 %1560
  %1562 = vrot.lane.b32.xlu0 %v1554, 64
  %v1563 = vpop.permute.xlu0 %1562
  %v1571 = vunpack.c.l.b16 %v985
  %v1572 = vunpack.c.l.b16 %v986
  %v1573 = vunpack.c.l.b16 %v987
  %v1574 = vunpack.c.l.b16 %v988
  %v1575 = vunpack.c.l.b16 %v989
  %v1576 = vunpack.c.l.b16 %v990
  %v1577 = vunpack.c.l.b16 %v991
  %v1578 = vpack.c.b16 %v1572, %v1571
  %v1579 = vpack.c.b16 %v1574, %v1573
  %v1580 = vpack.c.b16 %v1576, %v1575
  %v1581 = vpack.c.b16 %v1577, %v1577
  %v1582 = vrot.slane %v1578, 1
  %v1583 = vrot.slane %v1579, 1
  %v1584 = vsel %vm1410, %v1582, %v1583
  %v1585 = vrot.slane %v1580, 1
  %v1586 = vsel %vm1410, %v1583, %v1585
  %v1587 = vrot.slane %v1581, 1
  %v1588 = vsel %vm1410, %v1585, %v1587
  %v1597 = vunpack.c.l.b16 %v1169
  %v1598 = vunpack.c.l.b16 %v1170
  %v1599 = vunpack.c.l.b16 %v1171
  %v1600 = vunpack.c.l.b16 %v1172
  %v1601 = vunpack.c.l.b16 %v1173
  %v1602 = vunpack.c.l.b16 %v1174
  %v1603 = vunpack.c.l.b16 %v1175
  %v1604 = vunpack.c.l.b16 %v1176
  %v1605 = vpack.c.b16 %v1598, %v1597
  %v1606 = vpack.c.b16 %v1600, %v1599
  %v1607 = vpack.c.b16 %v1602, %v1601
  %v1608 = vpack.c.b16 %v1604, %v1603
  %v1610 = vshrl.u32 %v1605, 16
  %v1612 = vrot.slane %v1610, 1
  %v1613 = vshll.u32 %v1605, 16
  %v1615 = vrot.slane %v1613, 2
  %v1616 = vor.u32 %v1612, %v1615
  %v1618 = vshrl.u32 %v1606, 16
  %v1620 = vrot.slane %v1618, 1
  %v1621 = vshll.u32 %v1606, 16
  %v1623 = vrot.slane %v1621, 2
  %v1624 = vor.u32 %v1620, %v1623
  %v1625 = vsel %vm1520, %v1616, %v1624
  %v1627 = vshrl.u32 %v1607, 16
  %v1629 = vrot.slane %v1627, 1
  %v1630 = vshll.u32 %v1607, 16
  %v1632 = vrot.slane %v1630, 2
  %v1633 = vor.u32 %v1629, %v1632
  %v1634 = vsel %vm1520, %v1624, %v1633
  %v1636 = vshrl.u32 %v1608, 16
  %v1638 = vrot.slane %v1636, 1
  %v1639 = vshll.u32 %v1608, 16
  %v1641 = vrot.slane %v1639, 2
  %v1642 = vor.u32 %v1638, %v1641
  %v1643 = vsel %vm1520, %v1633, %v1642
  %1644 = vrot.lane.b32.xlu0 %v1625, 64
  %v1645 = vpop.permute.xlu0 %1644
  %1646 = vrot.lane.b32.xlu0 %v1634, 64
  %v1647 = vpop.permute.xlu0 %1646
  %1648 = vrot.lane.b32.xlu0 %v1643, 64
  %v1649 = vpop.permute.xlu0 %1648
  %1650 = vrot.lane.b32.xlu0 %v1642, 64
  %v1651 = vpop.permute.xlu0 %1650
  %v1660 = vunpack.c.l.b16 %v1308
  %v1661 = vunpack.c.l.b16 %v1309
  %v1662 = vunpack.c.l.b16 %v1310
  %v1663 = vunpack.c.l.b16 %v1311
  %v1664 = vunpack.c.l.b16 %v1312
  %v1665 = vunpack.c.l.b16 %v1313
  %v1666 = vunpack.c.l.b16 %v1314
  %v1667 = vunpack.c.l.b16 %v1315
  %v1668 = vpack.c.b16 %v1661, %v1660
  %v1669 = vpack.c.b16 %v1663, %v1662
  %v1670 = vpack.c.b16 %v1665, %v1664
  %v1671 = vpack.c.b16 %v1667, %v1666
  %vm1672 = vcmask 1045504
  %v1673 = vrot.slane %v1668, 2
  %v1674 = vrot.slane %v1669, 2
  %v1675 = vsel %vm1672, %v1673, %v1674
  %v1676 = vrot.slane %v1670, 2
  %v1677 = vsel %vm1672, %v1674, %v1676
  %v1678 = vrot.slane %v1671, 2
  %v1679 = vsel %vm1672, %v1676, %v1678
  %vm1680 = vcmask 523264
  %v1683 = vsel %vm1680, %v1330, %v1385
  %v1687 = vsel %vm1680, %v1331, %v1387
  %v1691 = vsel %vm1680, %v1332, %v1389
  %v1695 = vsel %vm1680, %v1333, %v1391
  %v1699 = vsel %vm1680, %v1413, %v1468
  %v1703 = vsel %vm1680, %v1415, %v1470
  %v1707 = vsel %vm1680, %v1417, %v1472
  %v1711 = vsel %vm1680, %v1416, %v1474
  %v1715 = vsel %vm1680, %v1495, %v1557
  %v1719 = vsel %vm1680, %v1497, %v1559
  %v1723 = vsel %vm1680, %v1499, %v1561
  %v1727 = vsel %vm1680, %v1498, %v1563
  %v1731 = vsel %vm1680, %v1584, %v1645
  %v1735 = vsel %vm1680, %v1586, %v1647
  %v1739 = vsel %vm1680, %v1588, %v1649
  %v1743 = vsel %vm1680, %v1587, %v1651
  %v1745 = vld [vmem:[%s2] sm:$0xf]
  %v1746 = vld [vmem:[%s2 + $0x4] sm:$0xf]
  %v1747 = vld [vmem:[%s2 + $0x8] sm:$0xf]
  %v1748 = vld [vmem:[%s2 + $0xc] sm:$0xf]
  %v1749 = vld [vmem:[%s2 + $0x10] sm:$0xf]
  %v1750 = vld [vmem:[%s2 + $0x14] sm:$0xf]
  %v1751 = vld [vmem:[%s2 + $0x18] sm:$0xf]
  %v1752 = vld [vmem:[%s2 + $0x1c] sm:$0xf]
  %v1753 = vld [vmem:[%s2 + $0x20] sm:$0xf]
  %v1754 = vld [vmem:[%s2 + $0x24] sm:$0xf]
  %v1755 = vld [vmem:[%s2 + $0x28] sm:$0xf]
  %v1756 = vld [vmem:[%s2 + $0x2c] sm:$0xf]
  %v1757 = vld [vmem:[%s2 + $0x30] sm:$0xf]
  %v1758 = vld [vmem:[%s2 + $0x34] sm:$0xf]
  %v1759 = vld [vmem:[%s2 + $0x38] sm:$0xf]
  %v1760 = vld [vmem:[%s2 + $0x3c] sm:$0xf]
  %v1761 = vld [vmem:[%s2 + $0x40] sm:$0xf]
  %v1762 = vld [vmem:[%s2 + $0x44] sm:$0xf]
  %v1763 = vld [vmem:[%s2 + $0x48] sm:$0xf]
  %v1764 = vld [vmem:[%s2 + $0x4c] sm:$0xf]
  %v1765 = vld [vmem:[%s2 + $0x50] sm:$0xf]
  %v1766 = vld [vmem:[%s2 + $0x54] sm:$0xf]
  %v1767 = vld [vmem:[%s2 + $0x58] sm:$0xf]
  %v1768 = vld [vmem:[%s2 + $0x5c] sm:$0xf]
  %v1769 = vld [vmem:[%s2 + $0x60] sm:$0xf]
  %v1770 = vld [vmem:[%s2 + $0x64] sm:$0xf]
  %v1771 = vld [vmem:[%s2 + $0x68] sm:$0xf]
  %v1772 = vld [vmem:[%s2 + $0x6c] sm:$0xf]
  %v1773 = vld [vmem:[%s2 + $0x70] sm:$0xf]
  %v1774 = vld [vmem:[%s2 + $0x74] sm:$0xf]
  %v1775 = vld [vmem:[%s2 + $0x78] sm:$0xf]
  %v1776 = vld [vmem:[%s2 + $0x7c] sm:$0xf]
  %v1777 = vld [vmem:[%s2 + $0x80] sm:$0xf]
  %v1778 = vld [vmem:[%s2 + $0x84] sm:$0xf]
  %v1779 = vld [vmem:[%s2 + $0x88] sm:$0xf]
  %v1780 = vld [vmem:[%s2 + $0x8c] sm:$0xf]
  %v1781 = vld [vmem:[%s2 + $0x90] sm:$0xf]
  %v1782 = vld [vmem:[%s2 + $0x94] sm:$0xf]
  %v1783 = vld [vmem:[%s2 + $0x98] sm:$0xf]
  %v1784 = vld [vmem:[%s2 + $0x9c] sm:$0xf]
  %v1785 = vld [vmem:[%s2 + $0xa0] sm:$0xf]
  %v1786 = vld [vmem:[%s2 + $0xa4] sm:$0xf]
  %v1787 = vld [vmem:[%s2 + $0xa8] sm:$0xf]
  %v1788 = vld [vmem:[%s2 + $0xac] sm:$0xf]
  %v1789 = vld [vmem:[%s2 + $0xb0] sm:$0xf]
  %v1790 = vld [vmem:[%s2 + $0xb4] sm:$0xf]
  %v1791 = vld [vmem:[%s2 + $0xb8] sm:$0xf]
  %v1792 = vld [vmem:[%s2 + $0xbc] sm:$0xf]
  %v1793 = vld [vmem:[%s2 + $0xc0] sm:$0xf]
  %v1794 = vld [vmem:[%s2 + $0xc4] sm:$0xf]
  %v1795 = vld [vmem:[%s2 + $0xc8] sm:$0xf]
  %v1796 = vld [vmem:[%s2 + $0xcc] sm:$0xf]
  %v1797 = vld [vmem:[%s2 + $0xd0] sm:$0xf]
  %v1798 = vld [vmem:[%s2 + $0xd4] sm:$0xf]
  %v1799 = vld [vmem:[%s2 + $0xd8] sm:$0xf]
  %v1800 = vld [vmem:[%s2 + $0xdc] sm:$0xf]
  %v1801 = vld [vmem:[%s2 + $0xe0] sm:$0xf]
  %v1802 = vld [vmem:[%s2 + $0xe4] sm:$0xf]
  %v1803 = vld [vmem:[%s2 + $0xe8] sm:$0xf]
  %v1804 = vld [vmem:[%s2 + $0xec] sm:$0xf]
  %v1805 = vld [vmem:[%s2 + $0xf0] sm:$0xf]
  %v1806 = vld [vmem:[%s2 + $0xf4] sm:$0xf]
  %v1807 = vld [vmem:[%s2 + $0xf8] sm:$0xf]
  %v1808 = vld [vmem:[%s2 + $0xfc] sm:$0xf]
  %v1809 = vld [vmem:[%s2 + $0x100] sm:$0xf]
  %v1810 = vld [vmem:[%s2 + $0x104] sm:$0xf]
  %v1811 = vld [vmem:[%s2 + $0x108] sm:$0xf]
  %v1812 = vld [vmem:[%s2 + $0x10c] sm:$0xf]
  %v1813 = vld [vmem:[%s2 + $0x110] sm:$0xf]
  %v1814 = vld [vmem:[%s2 + $0x114] sm:$0xf]
  %v1815 = vld [vmem:[%s2 + $0x118] sm:$0xf]
  %v1816 = vld [vmem:[%s2 + $0x11c] sm:$0xf]
  %v1817 = vld [vmem:[%s3] sm:$0x1]
  %v1819 = vlaneseq
  %v1820 = vshrl.u32 %v1819, 7
  %v1821 = vsub.s32 0, %v1820
  %v1822 = vrot.slane %v1817, %v1821
  %v1896 = vunpack.c.l.b16 %v1745
  %v1897 = vunpack.c.l.b16 %v1746
  %v1898 = vunpack.c.l.b16 %v1747
  %v1899 = vunpack.c.l.b16 %v1748
  %v1900 = vunpack.c.l.b16 %v1749
  %v1901 = vunpack.c.l.b16 %v1750
  %v1902 = vunpack.c.l.b16 %v1751
  %v1903 = vunpack.c.l.b16 %v1752
  %v1904 = vunpack.c.l.b16 %v1753
  %v1905 = vunpack.c.l.b16 %v1754
  %v1906 = vunpack.c.l.b16 %v1755
  %v1907 = vunpack.c.l.b16 %v1756
  %v1908 = vunpack.c.l.b16 %v1757
  %v1909 = vunpack.c.l.b16 %v1758
  %v1910 = vunpack.c.l.b16 %v1759
  %v1911 = vunpack.c.l.b16 %v1760
  %v1912 = vunpack.c.l.b16 %v1761
  %v1913 = vunpack.c.l.b16 %v1762
  %v1914 = vunpack.c.l.b16 %v1763
  %v1915 = vunpack.c.l.b16 %v1764
  %v1916 = vunpack.c.l.b16 %v1765
  %v1917 = vunpack.c.l.b16 %v1766
  %v1918 = vunpack.c.l.b16 %v1767
  %v1919 = vunpack.c.l.b16 %v1768
  %v1920 = vunpack.c.l.b16 %v1769
  %v1921 = vunpack.c.l.b16 %v1770
  %v1922 = vunpack.c.l.b16 %v1771
  %v1923 = vunpack.c.l.b16 %v1772
  %v1924 = vunpack.c.l.b16 %v1773
  %v1925 = vunpack.c.l.b16 %v1774
  %v1926 = vunpack.c.l.b16 %v1775
  %v1927 = vunpack.c.l.b16 %v1776
  %v1928 = vunpack.c.l.b16 %v1777
  %v1929 = vunpack.c.l.b16 %v1778
  %v1930 = vunpack.c.l.b16 %v1779
  %v1931 = vunpack.c.l.b16 %v1780
  %v1932 = vunpack.c.l.b16 %v1781
  %v1933 = vunpack.c.l.b16 %v1782
  %v1934 = vunpack.c.l.b16 %v1783
  %v1935 = vunpack.c.l.b16 %v1784
  %v1936 = vunpack.c.l.b16 %v1785
  %v1937 = vunpack.c.l.b16 %v1786
  %v1938 = vunpack.c.l.b16 %v1787
  %v1939 = vunpack.c.l.b16 %v1788
  %v1940 = vunpack.c.l.b16 %v1789
  %v1941 = vunpack.c.l.b16 %v1790
  %v1942 = vunpack.c.l.b16 %v1791
  %v1943 = vunpack.c.l.b16 %v1792
  %v1944 = vunpack.c.l.b16 %v1793
  %v1945 = vunpack.c.l.b16 %v1794
  %v1946 = vunpack.c.l.b16 %v1795
  %v1947 = vunpack.c.l.b16 %v1796
  %v1948 = vunpack.c.l.b16 %v1797
  %v1949 = vunpack.c.l.b16 %v1798
  %v1950 = vunpack.c.l.b16 %v1799
  %v1951 = vunpack.c.l.b16 %v1800
  %v1952 = vunpack.c.l.b16 %v1801
  %v1953 = vunpack.c.l.b16 %v1802
  %v1954 = vunpack.c.l.b16 %v1803
  %v1955 = vunpack.c.l.b16 %v1804
  %v1956 = vunpack.c.l.b16 %v1805
  %v1957 = vunpack.c.l.b16 %v1806
  %v1958 = vunpack.c.l.b16 %v1807
  %v1959 = vunpack.c.l.b16 %v1808
  %v1960 = vunpack.c.l.b16 %v1809
  %v1961 = vunpack.c.l.b16 %v1810
  %v1962 = vunpack.c.l.b16 %v1811
  %v1963 = vunpack.c.l.b16 %v1812
  %v1964 = vunpack.c.l.b16 %v1813
  %v1965 = vunpack.c.l.b16 %v1814
  %v1966 = vunpack.c.l.b16 %v1815
  %v1967 = vunpack.c.l.b16 %v1816
  %v1968 = vpack.c.b16 %v1897, %v1896
  %v1969 = vpack.c.b16 %v1899, %v1898
  %v1970 = vpack.c.b16 %v1901, %v1900
  %v1971 = vpack.c.b16 %v1903, %v1902
  %v1972 = vpack.c.b16 %v1905, %v1904
  %v1973 = vpack.c.b16 %v1907, %v1906
  %v1974 = vpack.c.b16 %v1909, %v1908
  %v1975 = vpack.c.b16 %v1911, %v1910
  %v1976 = vpack.c.b16 %v1913, %v1912
  %v1977 = vpack.c.b16 %v1915, %v1914
  %v1978 = vpack.c.b16 %v1917, %v1916
  %v1979 = vpack.c.b16 %v1919, %v1918
  %v1980 = vpack.c.b16 %v1921, %v1920
  %v1981 = vpack.c.b16 %v1923, %v1922
  %v1982 = vpack.c.b16 %v1925, %v1924
  %v1983 = vpack.c.b16 %v1927, %v1926
  %v1984 = vpack.c.b16 %v1929, %v1928
  %v1985 = vpack.c.b16 %v1931, %v1930
  %v1986 = vpack.c.b16 %v1933, %v1932
  %v1987 = vpack.c.b16 %v1935, %v1934
  %v1988 = vpack.c.b16 %v1937, %v1936
  %v1989 = vpack.c.b16 %v1939, %v1938
  %v1990 = vpack.c.b16 %v1941, %v1940
  %v1991 = vpack.c.b16 %v1943, %v1942
  %v1992 = vpack.c.b16 %v1945, %v1944
  %v1993 = vpack.c.b16 %v1947, %v1946
  %v1994 = vpack.c.b16 %v1949, %v1948
  %v1995 = vpack.c.b16 %v1951, %v1950
  %v1996 = vpack.c.b16 %v1953, %v1952
  %v1997 = vpack.c.b16 %v1955, %v1954
  %v1998 = vpack.c.b16 %v1957, %v1956
  %v1999 = vpack.c.b16 %v1959, %v1958
  %v2000 = vpack.c.b16 %v1961, %v1960
  %v2001 = vpack.c.b16 %v1963, %v1962
  %v2002 = vpack.c.b16 %v1965, %v1964
  %v2003 = vpack.c.b16 %v1967, %v1966
  %v2041 = vsel %vm1680, %v1675, 0
  %v2044 = vsel %vm1680, %v1677, 0
  %v2047 = vsel %vm1680, %v1679, 0
  %v2050 = vsel %vm1680, %v1678, 0
  %2052 = vmatprep.subr.bf16.mxu0 0
  %2053 = vmatpush1.bf16.msra.mxu0 %v1975
  %2054 = vmatprep.subr.bf16.mxu0 0
  %2055 = vmatpush1.bf16.msra.mxu0 %v1974
  %2056 = vmatprep.subr.bf16.mxu0 0
  %2057 = vmatpush1.bf16.msra.mxu0 %v1973
  %2058 = vmatprep.subr.bf16.mxu0 0
  %2059 = vmatpush1.bf16.msra.mxu0 %v1972
  %2060 = vmatprep.subr.bf16.mxu0 0
  %2061 = vmatpush1.bf16.msra.mxu0 %v1971
  %2062 = vmatprep.subr.bf16.mxu0 0
  %2063 = vmatpush1.bf16.msra.mxu0 %v1970
  %2064 = vmatprep.subr.bf16.mxu0 0
  %2065 = vmatpush1.bf16.msra.mxu0 %v1969
  %2066 = vmatprep.subr.bf16.mxu0 0
  %2067 = vmatpush1.bf16.msra.mxu0 %v1968
  %2068 = vmatprep.subr.bf16.mxu0 0
  %2069 = vmatpush2.bf16.msra.mxu0 %v1983
  %2070 = vmatprep.subr.bf16.mxu0 0
  %2071 = vmatpush2.bf16.msra.mxu0 %v1982
  %2072 = vmatprep.subr.bf16.mxu0 0
  %2073 = vmatpush2.bf16.msra.mxu0 %v1981
  %2074 = vmatprep.subr.bf16.mxu0 0
  %2075 = vmatpush2.bf16.msra.mxu0 %v1980
  %2076 = vmatprep.subr.bf16.mxu0 0
  %2077 = vmatpush2.bf16.msra.mxu0 %v1979
  %2078 = vmatprep.subr.bf16.mxu0 0
  %2079 = vmatpush2.bf16.msra.mxu0 %v1978
  %2080 = vmatprep.subr.bf16.mxu0 0
  %2081 = vmatpush2.bf16.msra.mxu0 %v1977
  %2082 = vmatprep.subr.bf16.mxu0 0
  %2083 = vmatpush2.bf16.msra.mxu0 %v1976
  %2084 = vmatprep.mubr.bf16.mxu0 %v1699
  %2085 = vmatmul.mubr.bf16.gmra.mxu0 %v1683
  %v2086 = vpop.f32.mrf.mxu0
  %v2087 = vadd.f32 %v1822, %v2086
  %v2088 = vpop.f32.mrf.mxu0
  %v2089 = vpop.f32.mrf.mxu0
  %v2090 = vadd.f32 %v1822, %v2089
  %v2091 = vpop.f32.mrf.mxu0
  %2092 = vmatprep.mubr.bf16.mxu0 %v1703
  %2093 = vmatmul.mubr.bf16.gmra.mxu0 %v1687
  %v2094 = vpop.f32.mrf.mxu0
  %v2095 = vadd.f32 %v1822, %v2094
  %v2096 = vpop.f32.mrf.mxu0
  %v2097 = vpop.f32.mrf.mxu0
  %v2098 = vadd.f32 %v1822, %v2097
  %v2099 = vpop.f32.mrf.mxu0
  %2100 = vmatprep.mubr.bf16.mxu0 %v1707
  %2101 = vmatmul.mubr.bf16.gmra.mxu0 %v1691
  %v2102 = vpop.f32.mrf.mxu0
  %v2103 = vadd.f32 %v1822, %v2102
  %v2104 = vpop.f32.mrf.mxu0
  %v2105 = vpop.f32.mrf.mxu0
  %v2106 = vadd.f32 %v1822, %v2105
  %v2107 = vpop.f32.mrf.mxu0
  %2108 = vmatprep.mubr.bf16.mxu0 %v1711
  %2109 = vmatmul.mubr.bf16.gmra.mxu0 %v1695
  %v2110 = vpop.f32.mrf.mxu0
  %v2111 = vadd.f32 %v1822, %v2110
  %v2112 = vpop.f32.mrf.mxu0
  %v2113 = vpop.f32.mrf.mxu0
  %v2114 = vpop.f32.mrf.mxu0
  %2115 = vdwg.mxu0
  %2116 = vmatprep.subr.bf16.mxu0 0
  %2117 = vmatpush1.bf16.msra.mxu0 %v1991
  %2118 = vmatprep.subr.bf16.mxu0 0
  %2119 = vmatpush1.bf16.msra.mxu0 %v1990
  %2120 = vmatprep.subr.bf16.mxu0 0
  %2121 = vmatpush1.bf16.msra.mxu0 %v1989
  %2122 = vmatprep.subr.bf16.mxu0 0
  %2123 = vmatpush1.bf16.msra.mxu0 %v1988
  %2124 = vmatprep.subr.bf16.mxu0 0
  %2125 = vmatpush1.bf16.msra.mxu0 %v1987
  %2126 = vmatprep.subr.bf16.mxu0 0
  %2127 = vmatpush1.bf16.msra.mxu0 %v1986
  %2128 = vmatprep.subr.bf16.mxu0 0
  %2129 = vmatpush1.bf16.msra.mxu0 %v1985
  %2130 = vmatprep.subr.bf16.mxu0 0
  %2131 = vmatpush1.bf16.msra.mxu0 %v1984
  %2132 = vmatprep.subr.bf16.mxu0 0
  %2133 = vmatpush2.bf16.msra.mxu0 %v1999
  %2134 = vmatprep.subr.bf16.mxu0 0
  %2135 = vmatpush2.bf16.msra.mxu0 %v1998
  %2136 = vmatprep.subr.bf16.mxu0 0
  %2137 = vmatpush2.bf16.msra.mxu0 %v1997
  %2138 = vmatprep.subr.bf16.mxu0 0
  %2139 = vmatpush2.bf16.msra.mxu0 %v1996
  %2140 = vmatprep.subr.bf16.mxu0 0
  %2141 = vmatpush2.bf16.msra.mxu0 %v1995
  %2142 = vmatprep.subr.bf16.mxu0 0
  %2143 = vmatpush2.bf16.msra.mxu0 %v1994
  %2144 = vmatprep.subr.bf16.mxu0 0
  %2145 = vmatpush2.bf16.msra.mxu0 %v1993
  %2146 = vmatprep.subr.bf16.mxu0 0
  %2147 = vmatpush2.bf16.msra.mxu0 %v1992
  %2148 = vmatprep.mubr.bf16.mxu0 %v1731
  %2149 = vmatmul.mubr.bf16.gmra.mxu0 %v1715
  %v2150 = vpop.f32.mrf.mxu0
  %v2151 = vadd.f32 %v2087, %v2150
  %v2152 = vpop.f32.mrf.mxu0
  %v2153 = vpop.f32.mrf.mxu0
  %v2154 = vadd.f32 %v2090, %v2153
  %v2155 = vpop.f32.mrf.mxu0
  %2156 = vmatprep.mubr.bf16.mxu0 %v1735
  %2157 = vmatmul.mubr.bf16.gmra.mxu0 %v1719
  %v2158 = vpop.f32.mrf.mxu0
  %v2159 = vadd.f32 %v2095, %v2158
  %v2160 = vpop.f32.mrf.mxu0
  %v2161 = vpop.f32.mrf.mxu0
  %v2162 = vadd.f32 %v2098, %v2161
  %v2163 = vpop.f32.mrf.mxu0
  %2164 = vmatprep.mubr.bf16.mxu0 %v1739
  %2165 = vmatmul.mubr.bf16.gmra.mxu0 %v1723
  %v2166 = vpop.f32.mrf.mxu0
  %v2167 = vadd.f32 %v2103, %v2166
  %v2168 = vpop.f32.mrf.mxu0
  %v2169 = vpop.f32.mrf.mxu0
  %v2170 = vadd.f32 %v2106, %v2169
  %v2171 = vpop.f32.mrf.mxu0
  %2172 = vmatprep.mubr.bf16.mxu0 %v1743
  %2173 = vmatmul.mubr.bf16.gmra.mxu0 %v1727
  %v2174 = vpop.f32.mrf.mxu0
  %v2175 = vadd.f32 %v2111, %v2174
  %v2176 = vpop.f32.mrf.mxu0
  %v2177 = vpop.f32.mrf.mxu0
  %v2178 = vpop.f32.mrf.mxu0
  %2179 = vdwg.mxu0
  %2180 = vmatprep.subr.bf16.mxu0 0
  %2181 = vmatpush1.bf16.msra.mxu0 0
  %2182 = vmatprep.subr.bf16.mxu0 0
  %2183 = vmatpush1.bf16.msra.mxu0 0
  %2184 = vmatprep.subr.bf16.mxu0 0
  %2185 = vmatpush1.bf16.msra.mxu0 0
  %2186 = vmatprep.subr.bf16.mxu0 0
  %2187 = vmatpush1.bf16.msra.mxu0 0
  %2188 = vmatprep.subr.bf16.mxu0 0
  %2189 = vmatpush1.bf16.msra.mxu0 %v2003
  %2190 = vmatprep.subr.bf16.mxu0 0
  %2191 = vmatpush1.bf16.msra.mxu0 %v2002
  %2192 = vmatprep.subr.bf16.mxu0 0
  %2193 = vmatpush1.bf16.msra.mxu0 %v2001
  %2194 = vmatprep.subr.bf16.mxu0 0
  %2195 = vmatpush1.bf16.msra.mxu0 %v2000
  %2196 = vmatprep.subr.bf16.mxu0 0
  %2197 = vmatpush2.bf16.msra.mxu0 0
  %2198 = vmatprep.subr.bf16.mxu0 0
  %2199 = vmatpush2.bf16.msra.mxu0 0
  %2200 = vmatprep.subr.bf16.mxu0 0
  %2201 = vmatpush2.bf16.msra.mxu0 0
  %2202 = vmatprep.subr.bf16.mxu0 0
  %2203 = vmatpush2.bf16.msra.mxu0 0
  %2204 = vmatprep.subr.bf16.mxu0 0
  %2205 = vmatpush2.bf16.msra.mxu0 0
  %2206 = vmatprep.subr.bf16.mxu0 0
  %2207 = vmatpush2.bf16.msra.mxu0 0
  %2208 = vmatprep.subr.bf16.mxu0 0
  %2209 = vmatpush2.bf16.msra.mxu0 0
  %2210 = vmatprep.subr.bf16.mxu0 0
  %2211 = vmatpush2.bf16.msra.mxu0 0
  %2212 = vmatprep.mubr.bf16.mxu0 0
  %2213 = vmatmul.mubr.bf16.gmra.mxu0 %v2041
  %v2214 = vpop.f32.mrf.mxu0
  %v2215 = vadd.f32 %v2151, %v2214
  %v2216 = vpop.f32.mrf.mxu0
  %v2217 = vpop.f32.mrf.mxu0
  %v2218 = vadd.f32 %v2154, %v2217
  %v2219 = vpop.f32.mrf.mxu0
  %2220 = vmatprep.mubr.bf16.mxu0 0
  %2221 = vmatmul.mubr.bf16.gmra.mxu0 %v2044
  %v2222 = vpop.f32.mrf.mxu0
  %v2223 = vadd.f32 %v2159, %v2222
  %v2224 = vpop.f32.mrf.mxu0
  %v2225 = vpop.f32.mrf.mxu0
  %v2226 = vadd.f32 %v2162, %v2225
  %v2227 = vpop.f32.mrf.mxu0
  %2228 = vmatprep.mubr.bf16.mxu0 0
  %2229 = vmatmul.mubr.bf16.gmra.mxu0 %v2047
  %v2230 = vpop.f32.mrf.mxu0
  %v2231 = vadd.f32 %v2167, %v2230
  %v2232 = vpop.f32.mrf.mxu0
  %v2233 = vpop.f32.mrf.mxu0
  %v2234 = vadd.f32 %v2170, %v2233
  %v2235 = vpop.f32.mrf.mxu0
  %2236 = vmatprep.mubr.bf16.mxu0 0
  %2237 = vmatmul.mubr.bf16.gmra.mxu0 %v2050
  %v2238 = vpop.f32.mrf.mxu0
  %v2239 = vadd.f32 %v2175, %v2238
  %v2240 = vpop.f32.mrf.mxu0
  %v2241 = vpop.f32.mrf.mxu0
  %v2242 = vpop.f32.mrf.mxu0
  %2243 = vdwg.mxu0
  %v2244 = vmax.f32 %v2215, 0.0
  %v2245 = vmax.f32 %v2218, 0.0
  %v2246 = vmax.f32 %v2223, 0.0
  %v2247 = vmax.f32 %v2226, 0.0
  %v2248 = vmax.f32 %v2231, 0.0
  %v2249 = vmax.f32 %v2234, 0.0
  %v2250 = vmax.f32 %v2239, 0.0
  %v2251 = vpack.c.bf16 %v2245, %v2244
  %v2252 = vpack.c.bf16 %v2247, %v2246
  %v2253 = vpack.c.bf16 %v2249, %v2248
  %v2254 = vpack.c.bf16 %v2250, %v2250
  %v2259 = vunpack.c.l.b16 %v2251
  %v2260 = vunpack.c.h.b16 %v2251
  %v2261 = vunpack.c.l.b16 %v2252
  %v2262 = vunpack.c.h.b16 %v2252
  %v2263 = vunpack.c.l.b16 %v2253
  %v2264 = vunpack.c.h.b16 %v2253
  %v2265 = vunpack.c.l.b16 %v2254
  %v2266 = vpack.c.b16 %v2259, %v2259
  %v2267 = vpack.c.b16 %v2260, %v2260
  %v2268 = vpack.c.b16 %v2261, %v2261
  %v2269 = vpack.c.b16 %v2262, %v2262
  %v2270 = vpack.c.b16 %v2263, %v2263
  %v2271 = vpack.c.b16 %v2264, %v2264
  %v2272 = vpack.c.b16 %v2265, %v2265
  %v2273 = vrot.slane %v2266, 7
  %v2274 = vrot.slane %v2273, 4
  %v2275 = vrot.slane %v2267, 7
  %v2276 = vsel %vm52, %v2274, %v2275
  %v2277 = vrot.slane %v2275, 4
  %v2278 = vrot.slane %v2268, 7
  %v2279 = vsel %vm52, %v2277, %v2278
  %v2280 = vrot.slane %v2278, 4
  %v2281 = vrot.slane %v2269, 7
  %v2282 = vsel %vm52, %v2280, %v2281
  %v2283 = vrot.slane %v2281, 4
  %v2284 = vrot.slane %v2270, 7
  %v2285 = vsel %vm52, %v2283, %v2284
  %v2286 = vrot.slane %v2284, 4
  %v2287 = vrot.slane %v2271, 7
  %v2288 = vsel %vm52, %v2286, %v2287
  %v2289 = vrot.slane %v2287, 4
  %v2290 = vrot.slane %v2272, 7
  %v2291 = vsel %vm52, %v2289, %v2290
  %2299 = vst.msk [vmem:[#allocation2 + $0x4] sm:$0xe] %vm79, %v2273
  %2300 = vst.msk [vmem:[#allocation2 + $0x8] sm:$0xf] %vm24, %v2276
  %2301 = vst.msk [vmem:[#allocation2 + $0xc] sm:$0xf] %vm24, %v2279
  %2302 = vst.msk [vmem:[#allocation2 + $0x10] sm:$0xf] %vm24, %v2282
  %2303 = vst.msk [vmem:[#allocation2 + $0x14] sm:$0xf] %vm24, %v2285
  %2304 = vst.msk [vmem:[#allocation2 + $0x18] sm:$0xf] %vm24, %v2288
  %2305 = vst.msk [vmem:[#allocation2 + $0x1c] sm:$0xf] %vm24, %v2291
  %v2306 = vld [vmem:[#allocation2] sm:$0xf]
  %v2307 = vld [vmem:[#allocation2 + $0x4] sm:$0xf]
  %v2308 = vld [vmem:[#allocation2 + $0x8] sm:$0xf]
  %v2309 = vld [vmem:[#allocation2 + $0xc] sm:$0xf]
  %v2310 = vld [vmem:[#allocation2 + $0x10] sm:$0xf]
  %v2311 = vld [vmem:[#allocation2 + $0x14] sm:$0xf]
  %v2312 = vld [vmem:[#allocation2 + $0x18] sm:$0x7]
  %v2313 = vld [vmem:[%s1] sm:$0xf]
  %v2314 = vld [vmem:[%s1 + $0x4] sm:$0xf]
  %v2315 = vld [vmem:[%s1 + $0x8] sm:$0xf]
  %v2316 = vld [vmem:[%s1 + $0xc] sm:$0xf]
  %v2317 = vld [vmem:[%s1 + $0x10] sm:$0xf]
  %v2318 = vld [vmem:[%s1 + $0x14] sm:$0xf]
  %v2319 = vld [vmem:[%s1 + $0x18] sm:$0x7]
  %2321 = vset.pattern.permute.xlu0 0
  %2322 = vperm.xlu0 %2321, %v2313
  %v2323 = vpop.permute.xlu0 %2322
  %v2326 = vunpack.c.l.s4 839922192
  %v2327 = vunpack.c.0.s8 %v2326
  %v2328 = vlaneseq
  %v2329 = vshrl.u32 %v2328, 7
  %v2330 = vsub.s32 %v2327, %v2329
  %v2331 = vrot.slane %v2323, %v2330
  %2333 = vset.pattern.permute.xlu0 0
  %2334 = vperm.xlu0 %2333, %v2314
  %v2335 = vpop.permute.xlu0 %2334
  %v2338 = vunpack.c.l.s4 839922192
  %v2339 = vunpack.c.0.s8 %v2338
  %v2340 = vlaneseq
  %v2341 = vshrl.u32 %v2340, 7
  %v2342 = vsub.s32 %v2339, %v2341
  %v2343 = vrot.slane %v2335, %v2342
  %2345 = vset.pattern.permute.xlu0 0
  %2346 = vperm.xlu0 %2345, %v2315
  %v2347 = vpop.permute.xlu0 %2346
  %v2350 = vunpack.c.l.s4 839922192
  %v2351 = vunpack.c.0.s8 %v2350
  %v2352 = vlaneseq
  %v2353 = vshrl.u32 %v2352, 7
  %v2354 = vsub.s32 %v2351, %v2353
  %v2355 = vrot.slane %v2347, %v2354
  %2357 = vset.pattern.permute.xlu0 0
  %2358 = vperm.xlu0 %2357, %v2316
  %v2359 = vpop.permute.xlu0 %2358
  %v2362 = vunpack.c.l.s4 839922192
  %v2363 = vunpack.c.0.s8 %v2362
  %v2364 = vlaneseq
  %v2365 = vshrl.u32 %v2364, 7
  %v2366 = vsub.s32 %v2363, %v2365
  %v2367 = vrot.slane %v2359, %v2366
  %2369 = vset.pattern.permute.xlu0 0
  %2370 = vperm.xlu0 %2369, %v2317
  %v2371 = vpop.permute.xlu0 %2370
  %v2374 = vunpack.c.l.s4 839922192
  %v2375 = vunpack.c.0.s8 %v2374
  %v2376 = vlaneseq
  %v2377 = vshrl.u32 %v2376, 7
  %v2378 = vsub.s32 %v2375, %v2377
  %v2379 = vrot.slane %v2371, %v2378
  %2381 = vset.pattern.permute.xlu0 0
  %2382 = vperm.xlu0 %2381, %v2318
  %v2383 = vpop.permute.xlu0 %2382
  %v2386 = vunpack.c.l.s4 839922192
  %v2387 = vunpack.c.0.s8 %v2386
  %v2388 = vlaneseq
  %v2389 = vshrl.u32 %v2388, 7
  %v2390 = vsub.s32 %v2387, %v2389
  %v2391 = vrot.slane %v2383, %v2390
  %2393 = vset.pattern.permute.xlu0 0
  %2394 = vperm.xlu0 %2393, %v2319
  %v2395 = vpop.permute.xlu0 %2394
  %v2398 = vunpack.c.l.s4 839922192
  %v2399 = vunpack.c.0.s8 %v2398
  %v2400 = vlaneseq
  %v2401 = vshrl.u32 %v2400, 7
  %v2402 = vsub.s32 %v2399, %v2401
  %v2403 = vrot.slane %v2395, %v2402
  %v2404 = vmul.bf16 %v2306, %v2331
  %v2405 = vmul.bf16 %v2307, %v2343
  %v2406 = vmul.bf16 %v2308, %v2355
  %v2407 = vmul.bf16 %v2309, %v2367
  %v2408 = vmul.bf16 %v2310, %v2379
  %v2409 = vmul.bf16 %v2311, %v2391
  %v2410 = vmul.bf16 %v2312, %v2403
  %v2411 = vld [vmem:[#allocation2 + $0x18] sm:$0xf]
  %v2412 = vld [vmem:[%s193] sm:$0xf]
  %v2413 = vld [vmem:[%s193 + $0x4] sm:$0xf]
  %v2414 = vld [vmem:[%s193 + $0x8] sm:$0xf]
  %v2415 = vld [vmem:[%s193 + $0xc] sm:$0xf]
  %v2416 = vld [vmem:[%s193 + $0x10] sm:$0xf]
  %v2417 = vld [vmem:[%s193 + $0x14] sm:$0xf]
  %v2418 = vld [vmem:[%s193 + $0x18] sm:$0x7]
  %2420 = vset.pattern.permute.xlu0 0
  %2421 = vperm.xlu0 %2420, %v2412
  %v2422 = vpop.permute.xlu0 %2421
  %v2425 = vunpack.c.l.s4 839922192
  %v2426 = vunpack.c.0.s8 %v2425
  %v2427 = vlaneseq
  %v2428 = vshrl.u32 %v2427, 7
  %v2429 = vsub.s32 %v2426, %v2428
  %v2430 = vrot.slane %v2422, %v2429
  %2432 = vset.pattern.permute.xlu0 0
  %2433 = vperm.xlu0 %2432, %v2413
  %v2434 = vpop.permute.xlu0 %2433
  %v2437 = vunpack.c.l.s4 839922192
  %v2438 = vunpack.c.0.s8 %v2437
  %v2439 = vlaneseq
  %v2440 = vshrl.u32 %v2439, 7
  %v2441 = vsub.s32 %v2438, %v2440
  %v2442 = vrot.slane %v2434, %v2441
  %2444 = vset.pattern.permute.xlu0 0
  %2445 = vperm.xlu0 %2444, %v2414
  %v2446 = vpop.permute.xlu0 %2445
  %v2449 = vunpack.c.l.s4 839922192
  %v2450 = vunpack.c.0.s8 %v2449
  %v2451 = vlaneseq
  %v2452 = vshrl.u32 %v2451, 7
  %v2453 = vsub.s32 %v2450, %v2452
  %v2454 = vrot.slane %v2446, %v2453
  %2456 = vset.pattern.permute.xlu0 0
  %2457 = vperm.xlu0 %2456, %v2415
  %v2458 = vpop.permute.xlu0 %2457
  %v2461 = vunpack.c.l.s4 839922192
  %v2462 = vunpack.c.0.s8 %v2461
  %v2463 = vlaneseq
  %v2464 = vshrl.u32 %v2463, 7
  %v2465 = vsub.s32 %v2462, %v2464
  %v2466 = vrot.slane %v2458, %v2465
  %2468 = vset.pattern.permute.xlu0 0
  %2469 = vperm.xlu0 %2468, %v2416
  %v2470 = vpop.permute.xlu0 %2469
  %v2473 = vunpack.c.l.s4 839922192
  %v2474 = vunpack.c.0.s8 %v2473
  %v2475 = vlaneseq
  %v2476 = vshrl.u32 %v2475, 7
  %v2477 = vsub.s32 %v2474, %v2476
  %v2478 = vrot.slane %v2470, %v2477
  %2480 = vset.pattern.permute.xlu0 0
  %2481 = vperm.xlu0 %2480, %v2417
  %v2482 = vpop.permute.xlu0 %2481
  %v2485 = vunpack.c.l.s4 839922192
  %v2486 = vunpack.c.0.s8 %v2485
  %v2487 = vlaneseq
  %v2488 = vshrl.u32 %v2487, 7
  %v2489 = vsub.s32 %v2486, %v2488
  %v2490 = vrot.slane %v2482, %v2489
  %2492 = vset.pattern.permute.xlu0 0
  %2493 = vperm.xlu0 %2492, %v2418
  %v2494 = vpop.permute.xlu0 %2493
  %v2497 = vunpack.c.l.s4 839922192
  %v2498 = vunpack.c.0.s8 %v2497
  %v2499 = vlaneseq
  %v2500 = vshrl.u32 %v2499, 7
  %v2501 = vsub.s32 %v2498, %v2500
  %v2502 = vrot.slane %v2494, %v2501
  %v2504 = vshrl.u32 %v2430, 16
  %v2506 = vrot.slane %v2504, 7
  %v2507 = vshll.u32 %v2430, 16
  %v2509 = vor.u32 %v2506, %v2507
  %v2510 = vrot.slane %v2506, 4
  %v2512 = vshrl.u32 %v2442, 16
  %v2514 = vrot.slane %v2512, 7
  %v2515 = vshll.u32 %v2442, 16
  %v2517 = vor.u32 %v2514, %v2515
  %v2518 = vsel %vm287, %v2510, %v2517
  %v2519 = vrot.slane %v2514, 4
  %v2521 = vshrl.u32 %v2454, 16
  %v2523 = vrot.slane %v2521, 7
  %v2524 = vshll.u32 %v2454, 16
  %v2526 = vor.u32 %v2523, %v2524
  %v2527 = vsel %vm287, %v2519, %v2526
  %v2528 = vrot.slane %v2523, 4
  %v2530 = vshrl.u32 %v2466, 16
  %v2532 = vrot.slane %v2530, 7
  %v2533 = vshll.u32 %v2466, 16
  %v2535 = vor.u32 %v2532, %v2533
  %v2536 = vsel %vm287, %v2528, %v2535
  %v2537 = vrot.slane %v2532, 4
  %v2539 = vshrl.u32 %v2478, 16
  %v2541 = vrot.slane %v2539, 7
  %v2542 = vshll.u32 %v2478, 16
  %v2544 = vor.u32 %v2541, %v2542
  %v2545 = vsel %vm287, %v2537, %v2544
  %v2546 = vrot.slane %v2541, 4
  %v2548 = vshrl.u32 %v2490, 16
  %v2550 = vrot.slane %v2548, 7
  %v2551 = vshll.u32 %v2490, 16
  %v2553 = vor.u32 %v2550, %v2551
  %v2554 = vsel %vm287, %v2546, %v2553
  %v2555 = vrot.slane %v2550, 4
  %v2557 = vshrl.u32 %v2502, 16
  %v2559 = vrot.slane %v2557, 7
  %v2560 = vshll.u32 %v2502, 16
  %v2562 = vor.u32 %v2559, %v2560
  %v2563 = vsel %vm287, %v2555, %v2562
  %v2571 = vmul.bf16 %v2306, %v2509
  %v2572 = vmul.bf16 %v2307, %v2518
  %v2573 = vmul.bf16 %v2308, %v2527
  %v2574 = vmul.bf16 %v2309, %v2536
  %v2575 = vmul.bf16 %v2310, %v2545
  %v2576 = vmul.bf16 %v2311, %v2554
  %v2577 = vmul.bf16 %v2411, %v2563
  %v2578 = vld [vmem:[#allocation2] sm:$0xe]
  %v2579 = vld [vmem:[%s364] sm:$0xf]
  %v2580 = vld [vmem:[%s364 + $0x4] sm:$0xf]
  %v2581 = vld [vmem:[%s364 + $0x8] sm:$0xf]
  %v2582 = vld [vmem:[%s364 + $0xc] sm:$0xf]
  %v2583 = vld [vmem:[%s364 + $0x10] sm:$0xf]
  %v2584 = vld [vmem:[%s364 + $0x14] sm:$0xf]
  %v2585 = vld [vmem:[%s364 + $0x18] sm:$0x7]
  %2587 = vset.pattern.permute.xlu0 0
  %2588 = vperm.xlu0 %2587, %v2579
  %v2589 = vpop.permute.xlu0 %2588
  %v2592 = vunpack.c.l.s4 839922192
  %v2593 = vunpack.c.0.s8 %v2592
  %v2594 = vlaneseq
  %v2595 = vshrl.u32 %v2594, 7
  %v2596 = vsub.s32 %v2593, %v2595
  %v2597 = vrot.slane %v2589, %v2596
  %2599 = vset.pattern.permute.xlu0 0
  %2600 = vperm.xlu0 %2599, %v2580
  %v2601 = vpop.permute.xlu0 %2600
  %v2604 = vunpack.c.l.s4 839922192
  %v2605 = vunpack.c.0.s8 %v2604
  %v2606 = vlaneseq
  %v2607 = vshrl.u32 %v2606, 7
  %v2608 = vsub.s32 %v2605, %v2607
  %v2609 = vrot.slane %v2601, %v2608
  %2611 = vset.pattern.permute.xlu0 0
  %2612 = vperm.xlu0 %2611, %v2581
  %v2613 = vpop.permute.xlu0 %2612
  %v2616 = vunpack.c.l.s4 839922192
  %v2617 = vunpack.c.0.s8 %v2616
  %v2618 = vlaneseq
  %v2619 = vshrl.u32 %v2618, 7
  %v2620 = vsub.s32 %v2617, %v2619
  %v2621 = vrot.slane %v2613, %v2620
  %2623 = vset.pattern.permute.xlu0 0
  %2624 = vperm.xlu0 %2623, %v2582
  %v2625 = vpop.permute.xlu0 %2624
  %v2628 = vunpack.c.l.s4 839922192
  %v2629 = vunpack.c.0.s8 %v2628
  %v2630 = vlaneseq
  %v2631 = vshrl.u32 %v2630, 7
  %v2632 = vsub.s32 %v2629, %v2631
  %v2633 = vrot.slane %v2625, %v2632
  %2635 = vset.pattern.permute.xlu0 0
  %2636 = vperm.xlu0 %2635, %v2583
  %v2637 = vpop.permute.xlu0 %2636
  %v2640 = vunpack.c.l.s4 839922192
  %v2641 = vunpack.c.0.s8 %v2640
  %v2642 = vlaneseq
  %v2643 = vshrl.u32 %v2642, 7
  %v2644 = vsub.s32 %v2641, %v2643
  %v2645 = vrot.slane %v2637, %v2644
  %2647 = vset.pattern.permute.xlu0 0
  %2648 = vperm.xlu0 %2647, %v2584
  %v2649 = vpop.permute.xlu0 %2648
  %v2652 = vunpack.c.l.s4 839922192
  %v2653 = vunpack.c.0.s8 %v2652
  %v2654 = vlaneseq
  %v2655 = vshrl.u32 %v2654, 7
  %v2656 = vsub.s32 %v2653, %v2655
  %v2657 = vrot.slane %v2649, %v2656
  %2659 = vset.pattern.permute.xlu0 0
  %2660 = vperm.xlu0 %2659, %v2585
  %v2661 = vpop.permute.xlu0 %2660
  %v2664 = vunpack.c.l.s4 839922192
  %v2665 = vunpack.c.0.s8 %v2664
  %v2666 = vlaneseq
  %v2667 = vshrl.u32 %v2666, 7
  %v2668 = vsub.s32 %v2665, %v2667
  %v2669 = vrot.slane %v2661, %v2668
  %v2677 = vrot.slane %v2597, 7
  %v2678 = vrot.slane %v2677, 4
  %v2679 = vrot.slane %v2609, 7
  %v2680 = vsel %vm52, %v2678, %v2679
  %v2681 = vrot.slane %v2679, 4
  %v2682 = vrot.slane %v2621, 7
  %v2683 = vsel %vm52, %v2681, %v2682
  %v2684 = vrot.slane %v2682, 4
  %v2685 = vrot.slane %v2633, 7
  %v2686 = vsel %vm52, %v2684, %v2685
  %v2687 = vrot.slane %v2685, 4
  %v2688 = vrot.slane %v2645, 7
  %v2689 = vsel %vm52, %v2687, %v2688
  %v2690 = vrot.slane %v2688, 4
  %v2691 = vrot.slane %v2657, 7
  %v2692 = vsel %vm52, %v2690, %v2691
  %v2693 = vrot.slane %v2691, 4
  %v2694 = vrot.slane %v2669, 7
  %v2695 = vsel %vm52, %v2693, %v2694
  %v2703 = vmul.bf16 %v2578, %v2677
  %v2704 = vmul.bf16 %v2307, %v2680
  %v2705 = vmul.bf16 %v2308, %v2683
  %v2706 = vmul.bf16 %v2309, %v2686
  %v2707 = vmul.bf16 %v2310, %v2689
  %v2708 = vmul.bf16 %v2311, %v2692
  %v2709 = vmul.bf16 %v2411, %v2695
  %v2710 = vld [vmem:[#allocation2 + $0x4] sm:$0xf]
  %v2711 = vld [vmem:[#allocation2 + $0x8] sm:$0xf]
  %v2712 = vld [vmem:[#allocation2 + $0xc] sm:$0xf]
  %v2713 = vld [vmem:[#allocation2 + $0x10] sm:$0xf]
  %v2714 = vld [vmem:[#allocation2 + $0x14] sm:$0xf]
  %v2715 = vld [vmem:[#allocation2 + $0x18] sm:$0xf]
  %v2716 = vld [vmem:[#allocation2 + $0x1c] sm:$0xf]
  %v2717 = vld [vmem:[%s503] sm:$0xf]
  %v2718 = vld [vmem:[%s503 + $0x4] sm:$0xf]
  %v2719 = vld [vmem:[%s503 + $0x8] sm:$0xf]
  %v2720 = vld [vmem:[%s503 + $0xc] sm:$0xf]
  %v2721 = vld [vmem:[%s503 + $0x10] sm:$0xf]
  %v2722 = vld [vmem:[%s503 + $0x14] sm:$0xf]
  %v2723 = vld [vmem:[%s503 + $0x18] sm:$0x7]
  %2725 = vset.pattern.permute.xlu0 0
  %2726 = vperm.xlu0 %2725, %v2717
  %v2727 = vpop.permute.xlu0 %2726
  %v2730 = vunpack.c.l.s4 839922192
  %v2731 = vunpack.c.0.s8 %v2730
  %v2732 = vlaneseq
  %v2733 = vshrl.u32 %v2732, 7
  %v2734 = vsub.s32 %v2731, %v2733
  %v2735 = vrot.slane %v2727, %v2734
  %2737 = vset.pattern.permute.xlu0 0
  %2738 = vperm.xlu0 %2737, %v2718
  %v2739 = vpop.permute.xlu0 %2738
  %v2742 = vunpack.c.l.s4 839922192
  %v2743 = vunpack.c.0.s8 %v2742
  %v2744 = vlaneseq
  %v2745 = vshrl.u32 %v2744, 7
  %v2746 = vsub.s32 %v2743, %v2745
  %v2747 = vrot.slane %v2739, %v2746
  %2749 = vset.pattern.permute.xlu0 0
  %2750 = vperm.xlu0 %2749, %v2719
  %v2751 = vpop.permute.xlu0 %2750
  %v2754 = vunpack.c.l.s4 839922192
  %v2755 = vunpack.c.0.s8 %v2754
  %v2756 = vlaneseq
  %v2757 = vshrl.u32 %v2756, 7
  %v2758 = vsub.s32 %v2755, %v2757
  %v2759 = vrot.slane %v2751, %v2758
  %2761 = vset.pattern.permute.xlu0 0
  %2762 = vperm.xlu0 %2761, %v2720
  %v2763 = vpop.permute.xlu0 %2762
  %v2766 = vunpack.c.l.s4 839922192
  %v2767 = vunpack.c.0.s8 %v2766
  %v2768 = vlaneseq
  %v2769 = vshrl.u32 %v2768, 7
  %v2770 = vsub.s32 %v2767, %v2769
  %v2771 = vrot.slane %v2763, %v2770
  %2773 = vset.pattern.permute.xlu0 0
  %2774 = vperm.xlu0 %2773, %v2721
  %v2775 = vpop.permute.xlu0 %2774
  %v2778 = vunpack.c.l.s4 839922192
  %v2779 = vunpack.c.0.s8 %v2778
  %v2780 = vlaneseq
  %v2781 = vshrl.u32 %v2780, 7
  %v2782 = vsub.s32 %v2779, %v2781
  %v2783 = vrot.slane %v2775, %v2782
  %2785 = vset.pattern.permute.xlu0 0
  %2786 = vperm.xlu0 %2785, %v2722
  %v2787 = vpop.permute.xlu0 %2786
  %v2790 = vunpack.c.l.s4 839922192
  %v2791 = vunpack.c.0.s8 %v2790
  %v2792 = vlaneseq
  %v2793 = vshrl.u32 %v2792, 7
  %v2794 = vsub.s32 %v2791, %v2793
  %v2795 = vrot.slane %v2787, %v2794
  %2797 = vset.pattern.permute.xlu0 0
  %2798 = vperm.xlu0 %2797, %v2723
  %v2799 = vpop.permute.xlu0 %2798
  %v2802 = vunpack.c.l.s4 839922192
  %v2803 = vunpack.c.0.s8 %v2802
  %v2804 = vlaneseq
  %v2805 = vshrl.u32 %v2804, 7
  %v2806 = vsub.s32 %v2803, %v2805
  %v2807 = vrot.slane %v2799, %v2806
  %v2809 = vshrl.u32 %v2735, 16
  %v2811 = vrot.slane %v2809, 7
  %v2812 = vshll.u32 %v2735, 16
  %v2814 = vor.u32 %v2811, %v2812
  %v2815 = vrot.slane %v2811, 4
  %v2817 = vshrl.u32 %v2747, 16
  %v2819 = vrot.slane %v2817, 7
  %v2820 = vshll.u32 %v2747, 16
  %v2822 = vor.u32 %v2819, %v2820
  %v2823 = vsel %vm287, %v2815, %v2822
  %v2824 = vrot.slane %v2819, 4
  %v2826 = vshrl.u32 %v2759, 16
  %v2828 = vrot.slane %v2826, 7
  %v2829 = vshll.u32 %v2759, 16
  %v2831 = vor.u32 %v2828, %v2829
  %v2832 = vsel %vm287, %v2824, %v2831
  %v2833 = vrot.slane %v2828, 4
  %v2835 = vshrl.u32 %v2771, 16
  %v2837 = vrot.slane %v2835, 7
  %v2838 = vshll.u32 %v2771, 16
  %v2840 = vor.u32 %v2837, %v2838
  %v2841 = vsel %vm287, %v2833, %v2840
  %v2842 = vrot.slane %v2837, 4
  %v2844 = vshrl.u32 %v2783, 16
  %v2846 = vrot.slane %v2844, 7
  %v2847 = vshll.u32 %v2783, 16
  %v2849 = vor.u32 %v2846, %v2847
  %v2850 = vsel %vm287, %v2842, %v2849
  %v2851 = vrot.slane %v2846, 4
  %v2853 = vshrl.u32 %v2795, 16
  %v2855 = vrot.slane %v2853, 7
  %v2856 = vshll.u32 %v2795, 16
  %v2858 = vor.u32 %v2855, %v2856
  %v2859 = vsel %vm287, %v2851, %v2858
  %v2860 = vrot.slane %v2855, 4
  %v2862 = vshrl.u32 %v2807, 16
  %v2864 = vrot.slane %v2862, 7
  %v2865 = vshll.u32 %v2807, 16
  %v2867 = vor.u32 %v2864, %v2865
  %v2868 = vsel %vm287, %v2860, %v2867
  %v2876 = vmul.bf16 %v2710, %v2814
  %v2877 = vmul.bf16 %v2711, %v2823
  %v2878 = vmul.bf16 %v2712, %v2832
  %v2879 = vmul.bf16 %v2713, %v2841
  %v2880 = vmul.bf16 %v2714, %v2850
  %v2881 = vmul.bf16 %v2715, %v2859
  %v2882 = vmul.bf16 %v2716, %v2868
  %v2883 = vld [vmem:[#allocation2 + $0x4] sm:$0xe]
  %v2884 = vld [vmem:[#allocation2 + $0x8] sm:$0xf]
  %v2885 = vld [vmem:[#allocation2 + $0xc] sm:$0xf]
  %v2886 = vld [vmem:[#allocation2 + $0x10] sm:$0xf]
  %v2887 = vld [vmem:[#allocation2 + $0x14] sm:$0xf]
  %v2888 = vld [vmem:[#allocation2 + $0x18] sm:$0xf]
  %v2889 = vld [vmem:[#allocation2 + $0x1c] sm:$0xf]
  %v2890 = vld [vmem:[#allocation2 + $0x20] sm:$0x1]
  %v2891 = vld [vmem:[%s678] sm:$0xf]
  %v2892 = vld [vmem:[%s678 + $0x4] sm:$0xf]
  %v2893 = vld [vmem:[%s678 + $0x8] sm:$0xf]
  %v2894 = vld [vmem:[%s678 + $0xc] sm:$0xf]
  %v2895 = vld [vmem:[%s678 + $0x10] sm:$0xf]
  %v2896 = vld [vmem:[%s678 + $0x14] sm:$0xf]
  %v2897 = vld [vmem:[%s678 + $0x18] sm:$0x7]
  %2899 = vset.pattern.permute.xlu0 0
  %2900 = vperm.xlu0 %2899, %v2891
  %v2901 = vpop.permute.xlu0 %2900
  %v2904 = vunpack.c.l.s4 839922192
  %v2905 = vunpack.c.0.s8 %v2904
  %v2906 = vlaneseq
  %v2907 = vshrl.u32 %v2906, 7
  %v2908 = vsub.s32 %v2905, %v2907
  %v2909 = vrot.slane %v2901, %v2908
  %2911 = vset.pattern.permute.xlu0 0
  %2912 = vperm.xlu0 %2911, %v2892
  %v2913 = vpop.permute.xlu0 %2912
  %v2916 = vunpack.c.l.s4 839922192
  %v2917 = vunpack.c.0.s8 %v2916
  %v2918 = vlaneseq
  %v2919 = vshrl.u32 %v2918, 7
  %v2920 = vsub.s32 %v2917, %v2919
  %v2921 = vrot.slane %v2913, %v2920
  %2923 = vset.pattern.permute.xlu0 0
  %2924 = vperm.xlu0 %2923, %v2893
  %v2925 = vpop.permute.xlu0 %2924
  %v2928 = vunpack.c.l.s4 839922192
  %v2929 = vunpack.c.0.s8 %v2928
  %v2930 = vlaneseq
  %v2931 = vshrl.u32 %v2930, 7
  %v2932 = vsub.s32 %v2929, %v2931
  %v2933 = vrot.slane %v2925, %v2932
  %2935 = vset.pattern.permute.xlu0 0
  %2936 = vperm.xlu0 %2935, %v2894
  %v2937 = vpop.permute.xlu0 %2936
  %v2940 = vunpack.c.l.s4 839922192
  %v2941 = vunpack.c.0.s8 %v2940
  %v2942 = vlaneseq
  %v2943 = vshrl.u32 %v2942, 7
  %v2944 = vsub.s32 %v2941, %v2943
  %v2945 = vrot.slane %v2937, %v2944
  %2947 = vset.pattern.permute.xlu0 0
  %2948 = vperm.xlu0 %2947, %v2895
  %v2949 = vpop.permute.xlu0 %2948
  %v2952 = vunpack.c.l.s4 839922192
  %v2953 = vunpack.c.0.s8 %v2952
  %v2954 = vlaneseq
  %v2955 = vshrl.u32 %v2954, 7
  %v2956 = vsub.s32 %v2953, %v2955
  %v2957 = vrot.slane %v2949, %v2956
  %2959 = vset.pattern.permute.xlu0 0
  %2960 = vperm.xlu0 %2959, %v2896
  %v2961 = vpop.permute.xlu0 %2960
  %v2964 = vunpack.c.l.s4 839922192
  %v2965 = vunpack.c.0.s8 %v2964
  %v2966 = vlaneseq
  %v2967 = vshrl.u32 %v2966, 7
  %v2968 = vsub.s32 %v2965, %v2967
  %v2969 = vrot.slane %v2961, %v2968
  %2971 = vset.pattern.permute.xlu0 0
  %2972 = vperm.xlu0 %2971, %v2897
  %v2973 = vpop.permute.xlu0 %2972
  %v2976 = vunpack.c.l.s4 839922192
  %v2977 = vunpack.c.0.s8 %v2976
  %v2978 = vlaneseq
  %v2979 = vshrl.u32 %v2978, 7
  %v2980 = vsub.s32 %v2977, %v2979
  %v2981 = vrot.slane %v2973, %v2980
  %v2983 = vshrl.u32 %v2909, 16
  %v2985 = vrot.slane %v2983, 6
  %v2986 = vshll.u32 %v2909, 16
  %v2988 = vrot.slane %v2986, 7
  %v2989 = vor.u32 %v2985, %v2988
  %v2990 = vrot.slane %v2989, 4
  %v2992 = vshrl.u32 %v2921, 16
  %v2994 = vrot.slane %v2992, 6
  %v2995 = vshll.u32 %v2921, 16
  %v2997 = vrot.slane %v2995, 7
  %v2998 = vor.u32 %v2994, %v2997
  %v2999 = vsel %vm772, %v2990, %v2998
  %v3000 = vrot.slane %v2998, 4
  %v3002 = vshrl.u32 %v2933, 16
  %v3004 = vrot.slane %v3002, 6
  %v3005 = vshll.u32 %v2933, 16
  %v3007 = vrot.slane %v3005, 7
  %v3008 = vor.u32 %v3004, %v3007
  %v3009 = vsel %vm772, %v3000, %v3008
  %v3010 = vrot.slane %v3008, 4
  %v3012 = vshrl.u32 %v2945, 16
  %v3014 = vrot.slane %v3012, 6
  %v3015 = vshll.u32 %v2945, 16
  %v3017 = vrot.slane %v3015, 7
  %v3018 = vor.u32 %v3014, %v3017
  %v3019 = vsel %vm772, %v3010, %v3018
  %v3020 = vrot.slane %v3018, 4
  %v3022 = vshrl.u32 %v2957, 16
  %v3024 = vrot.slane %v3022, 6
  %v3025 = vshll.u32 %v2957, 16
  %v3027 = vrot.slane %v3025, 7
  %v3028 = vor.u32 %v3024, %v3027
  %v3029 = vsel %vm772, %v3020, %v3028
  %v3030 = vrot.slane %v3028, 4
  %v3032 = vshrl.u32 %v2969, 16
  %v3034 = vrot.slane %v3032, 6
  %v3035 = vshll.u32 %v2969, 16
  %v3037 = vrot.slane %v3035, 7
  %v3038 = vor.u32 %v3034, %v3037
  %v3039 = vsel %vm772, %v3030, %v3038
  %v3040 = vrot.slane %v3038, 4
  %v3042 = vshrl.u32 %v2981, 16
  %v3044 = vrot.slane %v3042, 6
  %v3045 = vshll.u32 %v2981, 16
  %v3047 = vrot.slane %v3045, 7
  %v3048 = vor.u32 %v3044, %v3047
  %v3049 = vsel %vm772, %v3040, %v3048
  %v3050 = vrot.slane %v3044, 4
  %v3059 = vmul.bf16 %v2883, %v2989
  %v3060 = vmul.bf16 %v2884, %v2999
  %v3061 = vmul.bf16 %v2885, %v3009
  %v3062 = vmul.bf16 %v2886, %v3019
  %v3063 = vmul.bf16 %v2887, %v3029
  %v3064 = vmul.bf16 %v2888, %v3039
  %v3065 = vmul.bf16 %v2889, %v3049
  %v3066 = vmul.bf16 %v2890, %v3050
  %v3067 = vld [vmem:[#allocation2 + $0x8] sm:$0xe]
  %v3068 = vld [vmem:[#allocation2 + $0x20] sm:$0xf]
  %v3069 = vld [vmem:[%s860] sm:$0xf]
  %v3070 = vld [vmem:[%s860 + $0x4] sm:$0xf]
  %v3071 = vld [vmem:[%s860 + $0x8] sm:$0xf]
  %v3072 = vld [vmem:[%s860 + $0xc] sm:$0xf]
  %v3073 = vld [vmem:[%s860 + $0x10] sm:$0xf]
  %v3074 = vld [vmem:[%s860 + $0x14] sm:$0xf]
  %v3075 = vld [vmem:[%s860 + $0x18] sm:$0x7]
  %3077 = vset.pattern.permute.xlu0 0
  %3078 = vperm.xlu0 %3077, %v3069
  %v3079 = vpop.permute.xlu0 %3078
  %v3082 = vunpack.c.l.s4 839922192
  %v3083 = vunpack.c.0.s8 %v3082
  %v3084 = vlaneseq
  %v3085 = vshrl.u32 %v3084, 7
  %v3086 = vsub.s32 %v3083, %v3085
  %v3087 = vrot.slane %v3079, %v3086
  %3089 = vset.pattern.permute.xlu0 0
  %3090 = vperm.xlu0 %3089, %v3070
  %v3091 = vpop.permute.xlu0 %3090
  %v3094 = vunpack.c.l.s4 839922192
  %v3095 = vunpack.c.0.s8 %v3094
  %v3096 = vlaneseq
  %v3097 = vshrl.u32 %v3096, 7
  %v3098 = vsub.s32 %v3095, %v3097
  %v3099 = vrot.slane %v3091, %v3098
  %3101 = vset.pattern.permute.xlu0 0
  %3102 = vperm.xlu0 %3101, %v3071
  %v3103 = vpop.permute.xlu0 %3102
  %v3106 = vunpack.c.l.s4 839922192
  %v3107 = vunpack.c.0.s8 %v3106
  %v3108 = vlaneseq
  %v3109 = vshrl.u32 %v3108, 7
  %v3110 = vsub.s32 %v3107, %v3109
  %v3111 = vrot.slane %v3103, %v3110
  %3113 = vset.pattern.permute.xlu0 0
  %3114 = vperm.xlu0 %3113, %v3072
  %v3115 = vpop.permute.xlu0 %3114
  %v3118 = vunpack.c.l.s4 839922192
  %v3119 = vunpack.c.0.s8 %v3118
  %v3120 = vlaneseq
  %v3121 = vshrl.u32 %v3120, 7
  %v3122 = vsub.s32 %v3119, %v3121
  %v3123 = vrot.slane %v3115, %v3122
  %3125 = vset.pattern.permute.xlu0 0
  %3126 = vperm.xlu0 %3125, %v3073
  %v3127 = vpop.permute.xlu0 %3126
  %v3130 = vunpack.c.l.s4 839922192
  %v3131 = vunpack.c.0.s8 %v3130
  %v3132 = vlaneseq
  %v3133 = vshrl.u32 %v3132, 7
  %v3134 = vsub.s32 %v3131, %v3133
  %v3135 = vrot.slane %v3127, %v3134
  %3137 = vset.pattern.permute.xlu0 0
  %3138 = vperm.xlu0 %3137, %v3074
  %v3139 = vpop.permute.xlu0 %3138
  %v3142 = vunpack.c.l.s4 839922192
  %v3143 = vunpack.c.0.s8 %v3142
  %v3144 = vlaneseq
  %v3145 = vshrl.u32 %v3144, 7
  %v3146 = vsub.s32 %v3143, %v3145
  %v3147 = vrot.slane %v3139, %v3146
  %3149 = vset.pattern.permute.xlu0 0
  %3150 = vperm.xlu0 %3149, %v3075
  %v3151 = vpop.permute.xlu0 %3150
  %v3154 = vunpack.c.l.s4 839922192
  %v3155 = vunpack.c.0.s8 %v3154
  %v3156 = vlaneseq
  %v3157 = vshrl.u32 %v3156, 7
  %v3158 = vsub.s32 %v3155, %v3157
  %v3159 = vrot.slane %v3151, %v3158
  %v3167 = vrot.slane %v3087, 7
  %v3168 = vrot.slane %v3167, 4
  %v3169 = vrot.slane %v3099, 7
  %v3170 = vsel %vm52, %v3168, %v3169
  %v3171 = vrot.slane %v3169, 4
  %v3172 = vrot.slane %v3111, 7
  %v3173 = vsel %vm52, %v3171, %v3172
  %v3174 = vrot.slane %v3172, 4
  %v3175 = vrot.slane %v3123, 7
  %v3176 = vsel %vm52, %v3174, %v3175
  %v3177 = vrot.slane %v3175, 4
  %v3178 = vrot.slane %v3135, 7
  %v3179 = vsel %vm52, %v3177, %v3178
  %v3180 = vrot.slane %v3178, 4
  %v3181 = vrot.slane %v3147, 7
  %v3182 = vsel %vm52, %v3180, %v3181
  %v3183 = vrot.slane %v3181, 4
  %v3184 = vrot.slane %v3159, 7
  %v3185 = vsel %vm52, %v3183, %v3184
  %v3193 = vmul.bf16 %v3067, %v3167
  %v3194 = vmul.bf16 %v2885, %v3170
  %v3195 = vmul.bf16 %v2886, %v3173
  %v3196 = vmul.bf16 %v2887, %v3176
  %v3197 = vmul.bf16 %v2888, %v3179
  %v3198 = vmul.bf16 %v2889, %v3182
  %v3199 = vmul.bf16 %v3068, %v3185
  %v3200 = vld [vmem:[#allocation2 + $0x8] sm:$0xe]
  %v3201 = vld [vmem:[#allocation2 + $0xc] sm:$0xf]
  %v3202 = vld [vmem:[#allocation2 + $0x10] sm:$0xf]
  %v3203 = vld [vmem:[#allocation2 + $0x14] sm:$0xf]
  %v3204 = vld [vmem:[#allocation2 + $0x18] sm:$0xf]
  %v3205 = vld [vmem:[#allocation2 + $0x1c] sm:$0xf]
  %v3206 = vld [vmem:[#allocation2 + $0x20] sm:$0xf]
  %v3207 = vld [vmem:[#allocation2 + $0x24] sm:$0x1]
  %v3208 = vld [vmem:[%s1000] sm:$0xf]
  %v3209 = vld [vmem:[%s1000 + $0x4] sm:$0xf]
  %v3210 = vld [vmem:[%s1000 + $0x8] sm:$0xf]
  %v3211 = vld [vmem:[%s1000 + $0xc] sm:$0xf]
  %v3212 = vld [vmem:[%s1000 + $0x10] sm:$0xf]
  %v3213 = vld [vmem:[%s1000 + $0x14] sm:$0xf]
  %v3214 = vld [vmem:[%s1000 + $0x18] sm:$0x7]
  %3216 = vset.pattern.permute.xlu0 0
  %3217 = vperm.xlu0 %3216, %v3208
  %v3218 = vpop.permute.xlu0 %3217
  %v3221 = vunpack.c.l.s4 839922192
  %v3222 = vunpack.c.0.s8 %v3221
  %v3223 = vlaneseq
  %v3224 = vshrl.u32 %v3223, 7
  %v3225 = vsub.s32 %v3222, %v3224
  %v3226 = vrot.slane %v3218, %v3225
  %3228 = vset.pattern.permute.xlu0 0
  %3229 = vperm.xlu0 %3228, %v3209
  %v3230 = vpop.permute.xlu0 %3229
  %v3233 = vunpack.c.l.s4 839922192
  %v3234 = vunpack.c.0.s8 %v3233
  %v3235 = vlaneseq
  %v3236 = vshrl.u32 %v3235, 7
  %v3237 = vsub.s32 %v3234, %v3236
  %v3238 = vrot.slane %v3230, %v3237
  %3240 = vset.pattern.permute.xlu0 0
  %3241 = vperm.xlu0 %3240, %v3210
  %v3242 = vpop.permute.xlu0 %3241
  %v3245 = vunpack.c.l.s4 839922192
  %v3246 = vunpack.c.0.s8 %v3245
  %v3247 = vlaneseq
  %v3248 = vshrl.u32 %v3247, 7
  %v3249 = vsub.s32 %v3246, %v3248
  %v3250 = vrot.slane %v3242, %v3249
  %3252 = vset.pattern.permute.xlu0 0
  %3253 = vperm.xlu0 %3252, %v3211
  %v3254 = vpop.permute.xlu0 %3253
  %v3257 = vunpack.c.l.s4 839922192
  %v3258 = vunpack.c.0.s8 %v3257
  %v3259 = vlaneseq
  %v3260 = vshrl.u32 %v3259, 7
  %v3261 = vsub.s32 %v3258, %v3260
  %v3262 = vrot.slane %v3254, %v3261
  %3264 = vset.pattern.permute.xlu0 0
  %3265 = vperm.xlu0 %3264, %v3212
  %v3266 = vpop.permute.xlu0 %3265
  %v3269 = vunpack.c.l.s4 839922192
  %v3270 = vunpack.c.0.s8 %v3269
  %v3271 = vlaneseq
  %v3272 = vshrl.u32 %v3271, 7
  %v3273 = vsub.s32 %v3270, %v3272
  %v3274 = vrot.slane %v3266, %v3273
  %3276 = vset.pattern.permute.xlu0 0
  %3277 = vperm.xlu0 %3276, %v3213
  %v3278 = vpop.permute.xlu0 %3277
  %v3281 = vunpack.c.l.s4 839922192
  %v3282 = vunpack.c.0.s8 %v3281
  %v3283 = vlaneseq
  %v3284 = vshrl.u32 %v3283, 7
  %v3285 = vsub.s32 %v3282, %v3284
  %v3286 = vrot.slane %v3278, %v3285
  %3288 = vset.pattern.permute.xlu0 0
  %3289 = vperm.xlu0 %3288, %v3214
  %v3290 = vpop.permute.xlu0 %3289
  %v3293 = vunpack.c.l.s4 839922192
  %v3294 = vunpack.c.0.s8 %v3293
  %v3295 = vlaneseq
  %v3296 = vshrl.u32 %v3295, 7
  %v3297 = vsub.s32 %v3294, %v3296
  %v3298 = vrot.slane %v3290, %v3297
  %v3300 = vshrl.u32 %v3226, 16
  %v3302 = vrot.slane %v3300, 6
  %v3303 = vshll.u32 %v3226, 16
  %v3305 = vrot.slane %v3303, 7
  %v3306 = vor.u32 %v3302, %v3305
  %v3307 = vrot.slane %v3306, 4
  %v3309 = vshrl.u32 %v3238, 16
  %v3311 = vrot.slane %v3309, 6
  %v3312 = vshll.u32 %v3238, 16
  %v3314 = vrot.slane %v3312, 7
  %v3315 = vor.u32 %v3311, %v3314
  %v3316 = vsel %vm772, %v3307, %v3315
  %v3317 = vrot.slane %v3315, 4
  %v3319 = vshrl.u32 %v3250, 16
  %v3321 = vrot.slane %v3319, 6
  %v3322 = vshll.u32 %v3250, 16
  %v3324 = vrot.slane %v3322, 7
  %v3325 = vor.u32 %v3321, %v3324
  %v3326 = vsel %vm772, %v3317, %v3325
  %v3327 = vrot.slane %v3325, 4
  %v3329 = vshrl.u32 %v3262, 16
  %v3331 = vrot.slane %v3329, 6
  %v3332 = vshll.u32 %v3262, 16
  %v3334 = vrot.slane %v3332, 7
  %v3335 = vor.u32 %v3331, %v3334
  %v3336 = vsel %vm772, %v3327, %v3335
  %v3337 = vrot.slane %v3335, 4
  %v3339 = vshrl.u32 %v3274, 16
  %v3341 = vrot.slane %v3339, 6
  %v3342 = vshll.u32 %v3274, 16
  %v3344 = vrot.slane %v3342, 7
  %v3345 = vor.u32 %v3341, %v3344
  %v3346 = vsel %vm772, %v3337, %v3345
  %v3347 = vrot.slane %v3345, 4
  %v3349 = vshrl.u32 %v3286, 16
  %v3351 = vrot.slane %v3349, 6
  %v3352 = vshll.u32 %v3286, 16
  %v3354 = vrot.slane %v3352, 7
  %v3355 = vor.u32 %v3351, %v3354
  %v3356 = vsel %vm772, %v3347, %v3355
  %v3357 = vrot.slane %v3355, 4
  %v3359 = vshrl.u32 %v3298, 16
  %v3361 = vrot.slane %v3359, 6
  %v3362 = vshll.u32 %v3298, 16
  %v3364 = vrot.slane %v3362, 7
  %v3365 = vor.u32 %v3361, %v3364
  %v3366 = vsel %vm772, %v3357, %v3365
  %v3367 = vrot.slane %v3361, 4
  %v3376 = vmul.bf16 %v3200, %v3306
  %v3377 = vmul.bf16 %v3201, %v3316
  %v3378 = vmul.bf16 %v3202, %v3326
  %v3379 = vmul.bf16 %v3203, %v3336
  %v3380 = vmul.bf16 %v3204, %v3346
  %v3381 = vmul.bf16 %v3205, %v3356
  %v3382 = vmul.bf16 %v3206, %v3366
  %v3383 = vmul.bf16 %v3207, %v3367
  %v3384 = vld [vmem:[#allocation2 + $0x8] sm:$0xc]
  %v3385 = vld [vmem:[%s1178] sm:$0xf]
  %v3386 = vld [vmem:[%s1178 + $0x4] sm:$0xf]
  %v3387 = vld [vmem:[%s1178 + $0x8] sm:$0xf]
  %v3388 = vld [vmem:[%s1178 + $0xc] sm:$0xf]
  %v3389 = vld [vmem:[%s1178 + $0x10] sm:$0xf]
  %v3390 = vld [vmem:[%s1178 + $0x14] sm:$0xf]
  %v3391 = vld [vmem:[%s1178 + $0x18] sm:$0x7]
  %3393 = vset.pattern.permute.xlu0 0
  %3394 = vperm.xlu0 %3393, %v3385
  %v3395 = vpop.permute.xlu0 %3394
  %v3398 = vunpack.c.l.s4 839922192
  %v3399 = vunpack.c.0.s8 %v3398
  %v3400 = vlaneseq
  %v3401 = vshrl.u32 %v3400, 7
  %v3402 = vsub.s32 %v3399, %v3401
  %v3403 = vrot.slane %v3395, %v3402
  %3405 = vset.pattern.permute.xlu0 0
  %3406 = vperm.xlu0 %3405, %v3386
  %v3407 = vpop.permute.xlu0 %3406
  %v3410 = vunpack.c.l.s4 839922192
  %v3411 = vunpack.c.0.s8 %v3410
  %v3412 = vlaneseq
  %v3413 = vshrl.u32 %v3412, 7
  %v3414 = vsub.s32 %v3411, %v3413
  %v3415 = vrot.slane %v3407, %v3414
  %3417 = vset.pattern.permute.xlu0 0
  %3418 = vperm.xlu0 %3417, %v3387
  %v3419 = vpop.permute.xlu0 %3418
  %v3422 = vunpack.c.l.s4 839922192
  %v3423 = vunpack.c.0.s8 %v3422
  %v3424 = vlaneseq
  %v3425 = vshrl.u32 %v3424, 7
  %v3426 = vsub.s32 %v3423, %v3425
  %v3427 = vrot.slane %v3419, %v3426
  %3429 = vset.pattern.permute.xlu0 0
  %3430 = vperm.xlu0 %3429, %v3388
  %v3431 = vpop.permute.xlu0 %3430
  %v3434 = vunpack.c.l.s4 839922192
  %v3435 = vunpack.c.0.s8 %v3434
  %v3436 = vlaneseq
  %v3437 = vshrl.u32 %v3436, 7
  %v3438 = vsub.s32 %v3435, %v3437
  %v3439 = vrot.slane %v3431, %v3438
  %3441 = vset.pattern.permute.xlu0 0
  %3442 = vperm.xlu0 %3441, %v3389
  %v3443 = vpop.permute.xlu0 %3442
  %v3446 = vunpack.c.l.s4 839922192
  %v3447 = vunpack.c.0.s8 %v3446
  %v3448 = vlaneseq
  %v3449 = vshrl.u32 %v3448, 7
  %v3450 = vsub.s32 %v3447, %v3449
  %v3451 = vrot.slane %v3443, %v3450
  %3453 = vset.pattern.permute.xlu0 0
  %3454 = vperm.xlu0 %3453, %v3390
  %v3455 = vpop.permute.xlu0 %3454
  %v3458 = vunpack.c.l.s4 839922192
  %v3459 = vunpack.c.0.s8 %v3458
  %v3460 = vlaneseq
  %v3461 = vshrl.u32 %v3460, 7
  %v3462 = vsub.s32 %v3459, %v3461
  %v3463 = vrot.slane %v3455, %v3462
  %3465 = vset.pattern.permute.xlu0 0
  %3466 = vperm.xlu0 %3465, %v3391
  %v3467 = vpop.permute.xlu0 %3466
  %v3470 = vunpack.c.l.s4 839922192
  %v3471 = vunpack.c.0.s8 %v3470
  %v3472 = vlaneseq
  %v3473 = vshrl.u32 %v3472, 7
  %v3474 = vsub.s32 %v3471, %v3473
  %v3475 = vrot.slane %v3467, %v3474
  %v3483 = vrot.slane %v3403, 6
  %v3484 = vrot.slane %v3483, 4
  %v3485 = vrot.slane %v3415, 6
  %v3486 = vsel %vm1279, %v3484, %v3485
  %v3487 = vrot.slane %v3485, 4
  %v3488 = vrot.slane %v3427, 6
  %v3489 = vsel %vm1279, %v3487, %v3488
  %v3490 = vrot.slane %v3488, 4
  %v3491 = vrot.slane %v3439, 6
  %v3492 = vsel %vm1279, %v3490, %v3491
  %v3493 = vrot.slane %v3491, 4
  %v3494 = vrot.slane %v3451, 6
  %v3495 = vsel %vm1279, %v3493, %v3494
  %v3496 = vrot.slane %v3494, 4
  %v3497 = vrot.slane %v3463, 6
  %v3498 = vsel %vm1279, %v3496, %v3497
  %v3499 = vrot.slane %v3497, 4
  %v3500 = vrot.slane %v3475, 6
  %v3501 = vsel %vm1279, %v3499, %v3500
  %v3502 = vrot.slane %v3500, 4
  %v3511 = vmul.bf16 %v3384, %v3483
  %v3512 = vmul.bf16 %v3201, %v3486
  %v3513 = vmul.bf16 %v3202, %v3489
  %v3514 = vmul.bf16 %v3203, %v3492
  %v3515 = vmul.bf16 %v3204, %v3495
  %v3516 = vmul.bf16 %v3205, %v3498
  %v3517 = vmul.bf16 %v3206, %v3501
  %v3518 = vmul.bf16 %v3207, %v3502
  %v3526 = vunpack.c.l.b16 %v2404
  %v3527 = vunpack.c.l.b16 %v2405
  %v3528 = vunpack.c.l.b16 %v2406
  %v3529 = vunpack.c.l.b16 %v2407
  %v3530 = vunpack.c.l.b16 %v2408
  %v3531 = vunpack.c.l.b16 %v2409
  %v3532 = vunpack.c.l.b16 %v2410
  %v3533 = vpack.c.b16 %v3527, %v3526
  %v3534 = vpack.c.b16 %v3529, %v3528
  %v3535 = vpack.c.b16 %v3531, %v3530
  %v3536 = vpack.c.b16 %v3532, %v3532
  %v3544 = vunpack.c.l.b16 %v2571
  %v3545 = vunpack.c.l.b16 %v2572
  %v3546 = vunpack.c.l.b16 %v2573
  %v3547 = vunpack.c.l.b16 %v2574
  %v3548 = vunpack.c.l.b16 %v2575
  %v3549 = vunpack.c.l.b16 %v2576
  %v3550 = vunpack.c.l.b16 %v2577
  %v3551 = vpack.c.b16 %v3545, %v3544
  %v3552 = vpack.c.b16 %v3547, %v3546
  %v3553 = vpack.c.b16 %v3549, %v3548
  %v3554 = vpack.c.b16 %v3550, %v3550
  %v3556 = vshrl.u32 %v3551, 16
  %v3558 = vshll.u32 %v3551, 16
  %v3560 = vrot.slane %v3558, 1
  %v3561 = vor.u32 %v3556, %v3560
  %v3563 = vshll.u32 %v3552, 16
  %v3565 = vrot.slane %v3563, 1
  %v3566 = vsel %vm1352, %v3561, %v3565
  %v3567 = vshrl.u32 %v3552, 16
  %v3569 = vor.u32 %v3567, %v3565
  %v3571 = vshll.u32 %v3553, 16
  %v3573 = vrot.slane %v3571, 1
  %v3574 = vsel %vm1352, %v3569, %v3573
  %v3575 = vshrl.u32 %v3553, 16
  %v3577 = vor.u32 %v3575, %v3573
  %v3579 = vshll.u32 %v3554, 16
  %v3581 = vrot.slane %v3579, 1
  %v3582 = vsel %vm1352, %v3577, %v3581
  %v3583 = vshrl.u32 %v3554, 16
  %v3585 = vor.u32 %v3583, %v3581
  %3586 = vrot.lane.b32.xlu0 %v3566, 64
  %v3587 = vpop.permute.xlu0 %3586
  %3588 = vrot.lane.b32.xlu0 %v3574, 64
  %v3589 = vpop.permute.xlu0 %3588
  %3590 = vrot.lane.b32.xlu0 %v3582, 64
  %v3591 = vpop.permute.xlu0 %3590
  %3592 = vrot.lane.b32.xlu0 %v3585, 64
  %v3593 = vpop.permute.xlu0 %3592
  %v3601 = vunpack.c.l.b16 %v2703
  %v3602 = vunpack.c.l.b16 %v2704
  %v3603 = vunpack.c.l.b16 %v2705
  %v3604 = vunpack.c.l.b16 %v2706
  %v3605 = vunpack.c.l.b16 %v2707
  %v3606 = vunpack.c.l.b16 %v2708
  %v3607 = vunpack.c.l.b16 %v2709
  %v3608 = vpack.c.b16 %v3602, %v3601
  %v3609 = vpack.c.b16 %v3604, %v3603
  %v3610 = vpack.c.b16 %v3606, %v3605
  %v3611 = vpack.c.b16 %v3607, %v3607
  %v3612 = vrot.slane %v3608, 1
  %v3613 = vrot.slane %v3609, 1
  %v3614 = vsel %vm1410, %v3612, %v3613
  %v3615 = vrot.slane %v3610, 1
  %v3616 = vsel %vm1410, %v3613, %v3615
  %v3617 = vrot.slane %v3611, 1
  %v3618 = vsel %vm1410, %v3615, %v3617
  %v3626 = vunpack.c.l.b16 %v2876
  %v3627 = vunpack.c.l.b16 %v2877
  %v3628 = vunpack.c.l.b16 %v2878
  %v3629 = vunpack.c.l.b16 %v2879
  %v3630 = vunpack.c.l.b16 %v2880
  %v3631 = vunpack.c.l.b16 %v2881
  %v3632 = vunpack.c.l.b16 %v2882
  %v3633 = vpack.c.b16 %v3627, %v3626
  %v3634 = vpack.c.b16 %v3629, %v3628
  %v3635 = vpack.c.b16 %v3631, %v3630
  %v3636 = vpack.c.b16 %v3632, %v3632
  %v3638 = vshrl.u32 %v3633, 16
  %v3640 = vshll.u32 %v3633, 16
  %v3642 = vrot.slane %v3640, 1
  %v3643 = vor.u32 %v3638, %v3642
  %v3645 = vshll.u32 %v3634, 16
  %v3647 = vrot.slane %v3645, 1
  %v3648 = vsel %vm1352, %v3643, %v3647
  %v3649 = vshrl.u32 %v3634, 16
  %v3651 = vor.u32 %v3649, %v3647
  %v3653 = vshll.u32 %v3635, 16
  %v3655 = vrot.slane %v3653, 1
  %v3656 = vsel %vm1352, %v3651, %v3655
  %v3657 = vshrl.u32 %v3635, 16
  %v3659 = vor.u32 %v3657, %v3655
  %v3661 = vshll.u32 %v3636, 16
  %v3663 = vrot.slane %v3661, 1
  %v3664 = vsel %vm1352, %v3659, %v3663
  %v3665 = vshrl.u32 %v3636, 16
  %v3667 = vor.u32 %v3665, %v3663
  %3668 = vrot.lane.b32.xlu0 %v3648, 64
  %v3669 = vpop.permute.xlu0 %3668
  %3670 = vrot.lane.b32.xlu0 %v3656, 64
  %v3671 = vpop.permute.xlu0 %3670
  %3672 = vrot.lane.b32.xlu0 %v3664, 64
  %v3673 = vpop.permute.xlu0 %3672
  %3674 = vrot.lane.b32.xlu0 %v3667, 64
  %v3675 = vpop.permute.xlu0 %3674
  %v3683 = vunpack.c.l.b16 %v2883
  %v3684 = vunpack.c.l.b16 %v2711
  %v3685 = vunpack.c.l.b16 %v2712
  %v3686 = vunpack.c.l.b16 %v2713
  %v3687 = vunpack.c.l.b16 %v2714
  %v3688 = vunpack.c.l.b16 %v2715
  %v3689 = vunpack.c.l.b16 %v2716
  %v3690 = vpack.c.b16 %v3684, %v3683
  %v3691 = vpack.c.b16 %v3686, %v3685
  %v3692 = vpack.c.b16 %v3688, %v3687
  %v3693 = vpack.c.b16 %v3689, %v3689
  %v3694 = vrot.slane %v3690, 1
  %v3695 = vrot.slane %v3691, 1
  %v3696 = vsel %vm1410, %v3694, %v3695
  %v3697 = vrot.slane %v3692, 1
  %v3698 = vsel %vm1410, %v3695, %v3697
  %v3699 = vrot.slane %v3693, 1
  %v3700 = vsel %vm1410, %v3697, %v3699
  %v3709 = vunpack.c.l.b16 %v3059
  %v3710 = vunpack.c.l.b16 %v3060
  %v3711 = vunpack.c.l.b16 %v3061
  %v3712 = vunpack.c.l.b16 %v3062
  %v3713 = vunpack.c.l.b16 %v3063
  %v3714 = vunpack.c.l.b16 %v3064
  %v3715 = vunpack.c.l.b16 %v3065
  %v3716 = vunpack.c.l.b16 %v3066
  %v3717 = vpack.c.b16 %v3710, %v3709
  %v3718 = vpack.c.b16 %v3712, %v3711
  %v3719 = vpack.c.b16 %v3714, %v3713
  %v3720 = vpack.c.b16 %v3716, %v3715
  %v3722 = vshrl.u32 %v3717, 16
  %v3724 = vrot.slane %v3722, 1
  %v3725 = vshll.u32 %v3717, 16
  %v3727 = vrot.slane %v3725, 2
  %v3728 = vor.u32 %v3724, %v3727
  %v3730 = vshrl.u32 %v3718, 16
  %v3732 = vrot.slane %v3730, 1
  %v3733 = vshll.u32 %v3718, 16
  %v3735 = vrot.slane %v3733, 2
  %v3736 = vor.u32 %v3732, %v3735
  %v3737 = vsel %vm1520, %v3728, %v3736
  %v3739 = vshrl.u32 %v3719, 16
  %v3741 = vrot.slane %v3739, 1
  %v3742 = vshll.u32 %v3719, 16
  %v3744 = vrot.slane %v3742, 2
  %v3745 = vor.u32 %v3741, %v3744
  %v3746 = vsel %vm1520, %v3736, %v3745
  %v3748 = vshrl.u32 %v3720, 16
  %v3750 = vrot.slane %v3748, 1
  %v3751 = vshll.u32 %v3720, 16
  %v3753 = vrot.slane %v3751, 2
  %v3754 = vor.u32 %v3750, %v3753
  %v3755 = vsel %vm1520, %v3745, %v3754
  %3756 = vrot.lane.b32.xlu0 %v3737, 64
  %v3757 = vpop.permute.xlu0 %3756
  %3758 = vrot.lane.b32.xlu0 %v3746, 64
  %v3759 = vpop.permute.xlu0 %3758
  %3760 = vrot.lane.b32.xlu0 %v3755, 64
  %v3761 = vpop.permute.xlu0 %3760
  %3762 = vrot.lane.b32.xlu0 %v3754, 64
  %v3763 = vpop.permute.xlu0 %3762
  %v3771 = vunpack.c.l.b16 %v3193
  %v3772 = vunpack.c.l.b16 %v3194
  %v3773 = vunpack.c.l.b16 %v3195
  %v3774 = vunpack.c.l.b16 %v3196
  %v3775 = vunpack.c.l.b16 %v3197
  %v3776 = vunpack.c.l.b16 %v3198
  %v3777 = vunpack.c.l.b16 %v3199
  %v3778 = vpack.c.b16 %v3772, %v3771
  %v3779 = vpack.c.b16 %v3774, %v3773
  %v3780 = vpack.c.b16 %v3776, %v3775
  %v3781 = vpack.c.b16 %v3777, %v3777
  %v3782 = vrot.slane %v3778, 1
  %v3783 = vrot.slane %v3779, 1
  %v3784 = vsel %vm1410, %v3782, %v3783
  %v3785 = vrot.slane %v3780, 1
  %v3786 = vsel %vm1410, %v3783, %v3785
  %v3787 = vrot.slane %v3781, 1
  %v3788 = vsel %vm1410, %v3785, %v3787
  %v3797 = vunpack.c.l.b16 %v3376
  %v3798 = vunpack.c.l.b16 %v3377
  %v3799 = vunpack.c.l.b16 %v3378
  %v3800 = vunpack.c.l.b16 %v3379
  %v3801 = vunpack.c.l.b16 %v3380
  %v3802 = vunpack.c.l.b16 %v3381
  %v3803 = vunpack.c.l.b16 %v3382
  %v3804 = vunpack.c.l.b16 %v3383
  %v3805 = vpack.c.b16 %v3798, %v3797
  %v3806 = vpack.c.b16 %v3800, %v3799
  %v3807 = vpack.c.b16 %v3802, %v3801
  %v3808 = vpack.c.b16 %v3804, %v3803
  %v3810 = vshrl.u32 %v3805, 16
  %v3812 = vrot.slane %v3810, 1
  %v3813 = vshll.u32 %v3805, 16
  %v3815 = vrot.slane %v3813, 2
  %v3816 = vor.u32 %v3812, %v3815
  %v3818 = vshrl.u32 %v3806, 16
  %v3820 = vrot.slane %v3818, 1
  %v3821 = vshll.u32 %v3806, 16
  %v3823 = vrot.slane %v3821, 2
  %v3824 = vor.u32 %v3820, %v3823
  %v3825 = vsel %vm1520, %v3816, %v3824
  %v3827 = vshrl.u32 %v3807, 16
  %v3829 = vrot.slane %v3827, 1
  %v3830 = vshll.u32 %v3807, 16
  %v3832 = vrot.slane %v3830, 2
  %v3833 = vor.u32 %v3829, %v3832
  %v3834 = vsel %vm1520, %v3824, %v3833
  %v3836 = vshrl.u32 %v3808, 16
  %v3838 = vrot.slane %v3836, 1
  %v3839 = vshll.u32 %v3808, 16
  %v3841 = vrot.slane %v3839, 2
  %v3842 = vor.u32 %v3838, %v3841
  %v3843 = vsel %vm1520, %v3833, %v3842
  %3844 = vrot.lane.b32.xlu0 %v3825, 64
  %v3845 = vpop.permute.xlu0 %3844
  %3846 = vrot.lane.b32.xlu0 %v3834, 64
  %v3847 = vpop.permute.xlu0 %3846
  %3848 = vrot.lane.b32.xlu0 %v3843, 64
  %v3849 = vpop.permute.xlu0 %3848
  %3850 = vrot.lane.b32.xlu0 %v3842, 64
  %v3851 = vpop.permute.xlu0 %3850
  %v3860 = vunpack.c.l.b16 %v3511
  %v3861 = vunpack.c.l.b16 %v3512
  %v3862 = vunpack.c.l.b16 %v3513
  %v3863 = vunpack.c.l.b16 %v3514
  %v3864 = vunpack.c.l.b16 %v3515
  %v3865 = vunpack.c.l.b16 %v3516
  %v3866 = vunpack.c.l.b16 %v3517
  %v3867 = vunpack.c.l.b16 %v3518
  %v3868 = vpack.c.b16 %v3861, %v3860
  %v3869 = vpack.c.b16 %v3863, %v3862
  %v3870 = vpack.c.b16 %v3865, %v3864
  %v3871 = vpack.c.b16 %v3867, %v3866
  %v3872 = vrot.slane %v3868, 2
  %v3873 = vrot.slane %v3869, 2
  %v3874 = vsel %vm1672, %v3872, %v3873
  %v3875 = vrot.slane %v3870, 2
  %v3876 = vsel %vm1672, %v3873, %v3875
  %v3877 = vrot.slane %v3871, 2
  %v3878 = vsel %vm1672, %v3875, %v3877
  %v3881 = vsel %vm1680, %v3533, %v3587
  %v3885 = vsel %vm1680, %v3534, %v3589
  %v3889 = vsel %vm1680, %v3535, %v3591
  %v3893 = vsel %vm1680, %v3536, %v3593
  %v3897 = vsel %vm1680, %v3614, %v3669
  %v3901 = vsel %vm1680, %v3616, %v3671
  %v3905 = vsel %vm1680, %v3618, %v3673
  %v3909 = vsel %vm1680, %v3617, %v3675
  %v3913 = vsel %vm1680, %v3696, %v3757
  %v3917 = vsel %vm1680, %v3698, %v3759
  %v3921 = vsel %vm1680, %v3700, %v3761
  %v3925 = vsel %vm1680, %v3699, %v3763
  %v3929 = vsel %vm1680, %v3784, %v3845
  %v3933 = vsel %vm1680, %v3786, %v3847
  %v3937 = vsel %vm1680, %v3788, %v3849
  %v3941 = vsel %vm1680, %v3787, %v3851
  %v3943 = vld [vmem:[%s4] sm:$0xf]
  %v3944 = vld [vmem:[%s4 + $0x4] sm:$0xf]
  %v3945 = vld [vmem:[%s4 + $0x8] sm:$0xf]
  %v3946 = vld [vmem:[%s4 + $0xc] sm:$0xf]
  %v3947 = vld [vmem:[%s4 + $0x10] sm:$0xf]
  %v3948 = vld [vmem:[%s4 + $0x14] sm:$0xf]
  %v3949 = vld [vmem:[%s4 + $0x18] sm:$0xf]
  %v3950 = vld [vmem:[%s4 + $0x1c] sm:$0xf]
  %v3951 = vld [vmem:[%s4 + $0x20] sm:$0xf]
  %v3952 = vld [vmem:[%s4 + $0x24] sm:$0xf]
  %v3953 = vld [vmem:[%s4 + $0x28] sm:$0xf]
  %v3954 = vld [vmem:[%s4 + $0x2c] sm:$0xf]
  %v3955 = vld [vmem:[%s4 + $0x30] sm:$0xf]
  %v3956 = vld [vmem:[%s4 + $0x34] sm:$0xf]
  %v3957 = vld [vmem:[%s4 + $0x38] sm:$0xf]
  %v3958 = vld [vmem:[%s4 + $0x3c] sm:$0xf]
  %v3959 = vld [vmem:[%s4 + $0x40] sm:$0xf]
  %v3960 = vld [vmem:[%s4 + $0x44] sm:$0xf]
  %v3961 = vld [vmem:[%s4 + $0x48] sm:$0xf]
  %v3962 = vld [vmem:[%s4 + $0x4c] sm:$0xf]
  %v3963 = vld [vmem:[%s4 + $0x50] sm:$0xf]
  %v3964 = vld [vmem:[%s4 + $0x54] sm:$0xf]
  %v3965 = vld [vmem:[%s4 + $0x58] sm:$0xf]
  %v3966 = vld [vmem:[%s4 + $0x5c] sm:$0xf]
  %v3967 = vld [vmem:[%s4 + $0x60] sm:$0xf]
  %v3968 = vld [vmem:[%s4 + $0x64] sm:$0xf]
  %v3969 = vld [vmem:[%s4 + $0x68] sm:$0xf]
  %v3970 = vld [vmem:[%s4 + $0x6c] sm:$0xf]
  %v3971 = vld [vmem:[%s4 + $0x70] sm:$0xf]
  %v3972 = vld [vmem:[%s4 + $0x74] sm:$0xf]
  %v3973 = vld [vmem:[%s4 + $0x78] sm:$0xf]
  %v3974 = vld [vmem:[%s4 + $0x7c] sm:$0xf]
  %v3975 = vld [vmem:[%s4 + $0x80] sm:$0xf]
  %v3976 = vld [vmem:[%s4 + $0x84] sm:$0xf]
  %v3977 = vld [vmem:[%s4 + $0x88] sm:$0xf]
  %v3978 = vld [vmem:[%s4 + $0x8c] sm:$0xf]
  %v3979 = vld [vmem:[%s4 + $0x90] sm:$0xf]
  %v3980 = vld [vmem:[%s4 + $0x94] sm:$0xf]
  %v3981 = vld [vmem:[%s4 + $0x98] sm:$0xf]
  %v3982 = vld [vmem:[%s4 + $0x9c] sm:$0xf]
  %v3983 = vld [vmem:[%s4 + $0xa0] sm:$0xf]
  %v3984 = vld [vmem:[%s4 + $0xa4] sm:$0xf]
  %v3985 = vld [vmem:[%s4 + $0xa8] sm:$0xf]
  %v3986 = vld [vmem:[%s4 + $0xac] sm:$0xf]
  %v3987 = vld [vmem:[%s4 + $0xb0] sm:$0xf]
  %v3988 = vld [vmem:[%s4 + $0xb4] sm:$0xf]
  %v3989 = vld [vmem:[%s4 + $0xb8] sm:$0xf]
  %v3990 = vld [vmem:[%s4 + $0xbc] sm:$0xf]
  %v3991 = vld [vmem:[%s4 + $0xc0] sm:$0xf]
  %v3992 = vld [vmem:[%s4 + $0xc4] sm:$0xf]
  %v3993 = vld [vmem:[%s4 + $0xc8] sm:$0xf]
  %v3994 = vld [vmem:[%s4 + $0xcc] sm:$0xf]
  %v3995 = vld [vmem:[%s4 + $0xd0] sm:$0xf]
  %v3996 = vld [vmem:[%s4 + $0xd4] sm:$0xf]
  %v3997 = vld [vmem:[%s4 + $0xd8] sm:$0xf]
  %v3998 = vld [vmem:[%s4 + $0xdc] sm:$0xf]
  %v3999 = vld [vmem:[%s4 + $0xe0] sm:$0xf]
  %v4000 = vld [vmem:[%s4 + $0xe4] sm:$0xf]
  %v4001 = vld [vmem:[%s4 + $0xe8] sm:$0xf]
  %v4002 = vld [vmem:[%s4 + $0xec] sm:$0xf]
  %v4003 = vld [vmem:[%s4 + $0xf0] sm:$0xf]
  %v4004 = vld [vmem:[%s4 + $0xf4] sm:$0xf]
  %v4005 = vld [vmem:[%s4 + $0xf8] sm:$0xf]
  %v4006 = vld [vmem:[%s4 + $0xfc] sm:$0xf]
  %v4007 = vld [vmem:[%s4 + $0x100] sm:$0xf]
  %v4008 = vld [vmem:[%s4 + $0x104] sm:$0xf]
  %v4009 = vld [vmem:[%s4 + $0x108] sm:$0xf]
  %v4010 = vld [vmem:[%s4 + $0x10c] sm:$0xf]
  %v4011 = vld [vmem:[%s4 + $0x110] sm:$0xf]
  %v4012 = vld [vmem:[%s4 + $0x114] sm:$0xf]
  %v4013 = vld [vmem:[%s4 + $0x118] sm:$0xf]
  %v4014 = vld [vmem:[%s4 + $0x11c] sm:$0xf]
  %v4015 = vld [vmem:[%s5] sm:$0x1]
  %v4017 = vlaneseq
  %v4018 = vshrl.u32 %v4017, 7
  %v4019 = vsub.s32 0, %v4018
  %v4020 = vrot.slane %v4015, %v4019
  %v4094 = vunpack.c.l.b16 %v3943
  %v4095 = vunpack.c.l.b16 %v3944
  %v4096 = vunpack.c.l.b16 %v3945
  %v4097 = vunpack.c.l.b16 %v3946
  %v4098 = vunpack.c.l.b16 %v3947
  %v4099 = vunpack.c.l.b16 %v3948
  %v4100 = vunpack.c.l.b16 %v3949
  %v4101 = vunpack.c.l.b16 %v3950
  %v4102 = vunpack.c.l.b16 %v3951
  %v4103 = vunpack.c.l.b16 %v3952
  %v4104 = vunpack.c.l.b16 %v3953
  %v4105 = vunpack.c.l.b16 %v3954
  %v4106 = vunpack.c.l.b16 %v3955
  %v4107 = vunpack.c.l.b16 %v3956
  %v4108 = vunpack.c.l.b16 %v3957
  %v4109 = vunpack.c.l.b16 %v3958
  %v4110 = vunpack.c.l.b16 %v3959
  %v4111 = vunpack.c.l.b16 %v3960
  %v4112 = vunpack.c.l.b16 %v3961
  %v4113 = vunpack.c.l.b16 %v3962
  %v4114 = vunpack.c.l.b16 %v3963
  %v4115 = vunpack.c.l.b16 %v3964
  %v4116 = vunpack.c.l.b16 %v3965
  %v4117 = vunpack.c.l.b16 %v3966
  %v4118 = vunpack.c.l.b16 %v3967
  %v4119 = vunpack.c.l.b16 %v3968
  %v4120 = vunpack.c.l.b16 %v3969
  %v4121 = vunpack.c.l.b16 %v3970
  %v4122 = vunpack.c.l.b16 %v3971
  %v4123 = vunpack.c.l.b16 %v3972
  %v4124 = vunpack.c.l.b16 %v3973
  %v4125 = vunpack.c.l.b16 %v3974
  %v4126 = vunpack.c.l.b16 %v3975
  %v4127 = vunpack.c.l.b16 %v3976
  %v4128 = vunpack.c.l.b16 %v3977
  %v4129 = vunpack.c.l.b16 %v3978
  %v4130 = vunpack.c.l.b16 %v3979
  %v4131 = vunpack.c.l.b16 %v3980
  %v4132 = vunpack.c.l.b16 %v3981
  %v4133 = vunpack.c.l.b16 %v3982
  %v4134 = vunpack.c.l.b16 %v3983
  %v4135 = vunpack.c.l.b16 %v3984
  %v4136 = vunpack.c.l.b16 %v3985
  %v4137 = vunpack.c.l.b16 %v3986
  %v4138 = vunpack.c.l.b16 %v3987
  %v4139 = vunpack.c.l.b16 %v3988
  %v4140 = vunpack.c.l.b16 %v3989
  %v4141 = vunpack.c.l.b16 %v3990
  %v4142 = vunpack.c.l.b16 %v3991
  %v4143 = vunpack.c.l.b16 %v3992
  %v4144 = vunpack.c.l.b16 %v3993
  %v4145 = vunpack.c.l.b16 %v3994
  %v4146 = vunpack.c.l.b16 %v3995
  %v4147 = vunpack.c.l.b16 %v3996
  %v4148 = vunpack.c.l.b16 %v3997
  %v4149 = vunpack.c.l.b16 %v3998
  %v4150 = vunpack.c.l.b16 %v3999
  %v4151 = vunpack.c.l.b16 %v4000
  %v4152 = vunpack.c.l.b16 %v4001
  %v4153 = vunpack.c.l.b16 %v4002
  %v4154 = vunpack.c.l.b16 %v4003
  %v4155 = vunpack.c.l.b16 %v4004
  %v4156 = vunpack.c.l.b16 %v4005
  %v4157 = vunpack.c.l.b16 %v4006
  %v4158 = vunpack.c.l.b16 %v4007
  %v4159 = vunpack.c.l.b16 %v4008
  %v4160 = vunpack.c.l.b16 %v4009
  %v4161 = vunpack.c.l.b16 %v4010
  %v4162 = vunpack.c.l.b16 %v4011
  %v4163 = vunpack.c.l.b16 %v4012
  %v4164 = vunpack.c.l.b16 %v4013
  %v4165 = vunpack.c.l.b16 %v4014
  %v4166 = vpack.c.b16 %v4095, %v4094
  %v4167 = vpack.c.b16 %v4097, %v4096
  %v4168 = vpack.c.b16 %v4099, %v4098
  %v4169 = vpack.c.b16 %v4101, %v4100
  %v4170 = vpack.c.b16 %v4103, %v4102
  %v4171 = vpack.c.b16 %v4105, %v4104
  %v4172 = vpack.c.b16 %v4107, %v4106
  %v4173 = vpack.c.b16 %v4109, %v4108
  %v4174 = vpack.c.b16 %v4111, %v4110
  %v4175 = vpack.c.b16 %v4113, %v4112
  %v4176 = vpack.c.b16 %v4115, %v4114
  %v4177 = vpack.c.b16 %v4117, %v4116
  %v4178 = vpack.c.b16 %v4119, %v4118
  %v4179 = vpack.c.b16 %v4121, %v4120
  %v4180 = vpack.c.b16 %v4123, %v4122
  %v4181 = vpack.c.b16 %v4125, %v4124
  %v4182 = vpack.c.b16 %v4127, %v4126
  %v4183 = vpack.c.b16 %v4129, %v4128
  %v4184 = vpack.c.b16 %v4131, %v4130
  %v4185 = vpack.c.b16 %v4133, %v4132
  %v4186 = vpack.c.b16 %v4135, %v4134
  %v4187 = vpack.c.b16 %v4137, %v4136
  %v4188 = vpack.c.b16 %v4139, %v4138
  %v4189 = vpack.c.b16 %v4141, %v4140
  %v4190 = vpack.c.b16 %v4143, %v4142
  %v4191 = vpack.c.b16 %v4145, %v4144
  %v4192 = vpack.c.b16 %v4147, %v4146
  %v4193 = vpack.c.b16 %v4149, %v4148
  %v4194 = vpack.c.b16 %v4151, %v4150
  %v4195 = vpack.c.b16 %v4153, %v4152
  %v4196 = vpack.c.b16 %v4155, %v4154
  %v4197 = vpack.c.b16 %v4157, %v4156
  %v4198 = vpack.c.b16 %v4159, %v4158
  %v4199 = vpack.c.b16 %v4161, %v4160
  %v4200 = vpack.c.b16 %v4163, %v4162
  %v4201 = vpack.c.b16 %v4165, %v4164
  %v4239 = vsel %vm1680, %v3874, 0
  %v4242 = vsel %vm1680, %v3876, 0
  %v4245 = vsel %vm1680, %v3878, 0
  %v4248 = vsel %vm1680, %v3877, 0
  %4250 = vmatprep.subr.bf16.mxu0 0
  %4251 = vmatpush1.bf16.msra.mxu0 %v4173
  %4252 = vmatprep.subr.bf16.mxu0 0
  %4253 = vmatpush1.bf16.msra.mxu0 %v4172
  %4254 = vmatprep.subr.bf16.mxu0 0
  %4255 = vmatpush1.bf16.msra.mxu0 %v4171
  %4256 = vmatprep.subr.bf16.mxu0 0
  %4257 = vmatpush1.bf16.msra.mxu0 %v4170
  %4258 = vmatprep.subr.bf16.mxu0 0
  %4259 = vmatpush1.bf16.msra.mxu0 %v4169
  %4260 = vmatprep.subr.bf16.mxu0 0
  %4261 = vmatpush1.bf16.msra.mxu0 %v4168
  %4262 = vmatprep.subr.bf16.mxu0 0
  %4263 = vmatpush1.bf16.msra.mxu0 %v4167
  %4264 = vmatprep.subr.bf16.mxu0 0
  %4265 = vmatpush1.bf16.msra.mxu0 %v4166
  %4266 = vmatprep.subr.bf16.mxu0 0
  %4267 = vmatpush2.bf16.msra.mxu0 %v4181
  %4268 = vmatprep.subr.bf16.mxu0 0
  %4269 = vmatpush2.bf16.msra.mxu0 %v4180
  %4270 = vmatprep.subr.bf16.mxu0 0
  %4271 = vmatpush2.bf16.msra.mxu0 %v4179
  %4272 = vmatprep.subr.bf16.mxu0 0
  %4273 = vmatpush2.bf16.msra.mxu0 %v4178
  %4274 = vmatprep.subr.bf16.mxu0 0
  %4275 = vmatpush2.bf16.msra.mxu0 %v4177
  %4276 = vmatprep.subr.bf16.mxu0 0
  %4277 = vmatpush2.bf16.msra.mxu0 %v4176
  %4278 = vmatprep.subr.bf16.mxu0 0
  %4279 = vmatpush2.bf16.msra.mxu0 %v4175
  %4280 = vmatprep.subr.bf16.mxu0 0
  %4281 = vmatpush2.bf16.msra.mxu0 %v4174
  %4282 = vmatprep.mubr.bf16.mxu0 %v3897
  %4283 = vmatmul.mubr.bf16.gmra.mxu0 %v3881
  %v4284 = vpop.f32.mrf.mxu0
  %v4285 = vadd.f32 %v4020, %v4284
  %v4286 = vpop.f32.mrf.mxu0
  %v4287 = vpop.f32.mrf.mxu0
  %v4288 = vadd.f32 %v4020, %v4287
  %v4289 = vpop.f32.mrf.mxu0
  %4290 = vmatprep.mubr.bf16.mxu0 %v3901
  %4291 = vmatmul.mubr.bf16.gmra.mxu0 %v3885
  %v4292 = vpop.f32.mrf.mxu0
  %v4293 = vadd.f32 %v4020, %v4292
  %v4294 = vpop.f32.mrf.mxu0
  %v4295 = vpop.f32.mrf.mxu0
  %v4296 = vadd.f32 %v4020, %v4295
  %v4297 = vpop.f32.mrf.mxu0
  %4298 = vmatprep.mubr.bf16.mxu0 %v3905
  %4299 = vmatmul.mubr.bf16.gmra.mxu0 %v3889
  %v4300 = vpop.f32.mrf.mxu0
  %v4301 = vadd.f32 %v4020, %v4300
  %v4302 = vpop.f32.mrf.mxu0
  %v4303 = vpop.f32.mrf.mxu0
  %v4304 = vadd.f32 %v4020, %v4303
  %v4305 = vpop.f32.mrf.mxu0
  %4306 = vmatprep.mubr.bf16.mxu0 %v3909
  %4307 = vmatmul.mubr.bf16.gmra.mxu0 %v3893
  %v4308 = vpop.f32.mrf.mxu0
  %v4309 = vadd.f32 %v4020, %v4308
  %v4310 = vpop.f32.mrf.mxu0
  %v4311 = vpop.f32.mrf.mxu0
  %v4312 = vpop.f32.mrf.mxu0
  %4313 = vdwg.mxu0
  %4314 = vmatprep.subr.bf16.mxu0 0
  %4315 = vmatpush1.bf16.msra.mxu0 %v4189
  %4316 = vmatprep.subr.bf16.mxu0 0
  %4317 = vmatpush1.bf16.msra.mxu0 %v4188
  %4318 = vmatprep.subr.bf16.mxu0 0
  %4319 = vmatpush1.bf16.msra.mxu0 %v4187
  %4320 = vmatprep.subr.bf16.mxu0 0
  %4321 = vmatpush1.bf16.msra.mxu0 %v4186
  %4322 = vmatprep.subr.bf16.mxu0 0
  %4323 = vmatpush1.bf16.msra.mxu0 %v4185
  %4324 = vmatprep.subr.bf16.mxu0 0
  %4325 = vmatpush1.bf16.msra.mxu0 %v4184
  %4326 = vmatprep.subr.bf16.mxu0 0
  %4327 = vmatpush1.bf16.msra.mxu0 %v4183
  %4328 = vmatprep.subr.bf16.mxu0 0
  %4329 = vmatpush1.bf16.msra.mxu0 %v4182
  %4330 = vmatprep.subr.bf16.mxu0 0
  %4331 = vmatpush2.bf16.msra.mxu0 %v4197
  %4332 = vmatprep.subr.bf16.mxu0 0
  %4333 = vmatpush2.bf16.msra.mxu0 %v4196
  %4334 = vmatprep.subr.bf16.mxu0 0
  %4335 = vmatpush2.bf16.msra.mxu0 %v4195
  %4336 = vmatprep.subr.bf16.mxu0 0
  %4337 = vmatpush2.bf16.msra.mxu0 %v4194
  %4338 = vmatprep.subr.bf16.mxu0 0
  %4339 = vmatpush2.bf16.msra.mxu0 %v4193
  %4340 = vmatprep.subr.bf16.mxu0 0
  %4341 = vmatpush2.bf16.msra.mxu0 %v4192
  %4342 = vmatprep.subr.bf16.mxu0 0
  %4343 = vmatpush2.bf16.msra.mxu0 %v4191
  %4344 = vmatprep.subr.bf16.mxu0 0
  %4345 = vmatpush2.bf16.msra.mxu0 %v4190
  %4346 = vmatprep.mubr.bf16.mxu0 %v3929
  %4347 = vmatmul.mubr.bf16.gmra.mxu0 %v3913
  %v4348 = vpop.f32.mrf.mxu0
  %v4349 = vadd.f32 %v4285, %v4348
  %v4350 = vpop.f32.mrf.mxu0
  %v4351 = vpop.f32.mrf.mxu0
  %v4352 = vadd.f32 %v4288, %v4351
  %v4353 = vpop.f32.mrf.mxu0
  %4354 = vmatprep.mubr.bf16.mxu0 %v3933
  %4355 = vmatmul.mubr.bf16.gmra.mxu0 %v3917
  %v4356 = vpop.f32.mrf.mxu0
  %v4357 = vadd.f32 %v4293, %v4356
  %v4358 = vpop.f32.mrf.mxu0
  %v4359 = vpop.f32.mrf.mxu0
  %v4360 = vadd.f32 %v4296, %v4359
  %v4361 = vpop.f32.mrf.mxu0
  %4362 = vmatprep.mubr.bf16.mxu0 %v3937
  %4363 = vmatmul.mubr.bf16.gmra.mxu0 %v3921
  %v4364 = vpop.f32.mrf.mxu0
  %v4365 = vadd.f32 %v4301, %v4364
  %v4366 = vpop.f32.mrf.mxu0
  %v4367 = vpop.f32.mrf.mxu0
  %v4368 = vadd.f32 %v4304, %v4367
  %v4369 = vpop.f32.mrf.mxu0
  %4370 = vmatprep.mubr.bf16.mxu0 %v3941
  %4371 = vmatmul.mubr.bf16.gmra.mxu0 %v3925
  %v4372 = vpop.f32.mrf.mxu0
  %v4373 = vadd.f32 %v4309, %v4372
  %v4374 = vpop.f32.mrf.mxu0
  %v4375 = vpop.f32.mrf.mxu0
  %v4376 = vpop.f32.mrf.mxu0
  %4377 = vdwg.mxu0
  %4378 = vmatprep.subr.bf16.mxu0 0
  %4379 = vmatpush1.bf16.msra.mxu0 0
  %4380 = vmatprep.subr.bf16.mxu0 0
  %4381 = vmatpush1.bf16.msra.mxu0 0
  %4382 = vmatprep.subr.bf16.mxu0 0
  %4383 = vmatpush1.bf16.msra.mxu0 0
  %4384 = vmatprep.subr.bf16.mxu0 0
  %4385 = vmatpush1.bf16.msra.mxu0 0
  %4386 = vmatprep.subr.bf16.mxu0 0
  %4387 = vmatpush1.bf16.msra.mxu0 %v4201
  %4388 = vmatprep.subr.bf16.mxu0 0
  %4389 = vmatpush1.bf16.msra.mxu0 %v4200
  %4390 = vmatprep.subr.bf16.mxu0 0
  %4391 = vmatpush1.bf16.msra.mxu0 %v4199
  %4392 = vmatprep.subr.bf16.mxu0 0
  %4393 = vmatpush1.bf16.msra.mxu0 %v4198
  %4394 = vmatprep.subr.bf16.mxu0 0
  %4395 = vmatpush2.bf16.msra.mxu0 0
  %4396 = vmatprep.subr.bf16.mxu0 0
  %4397 = vmatpush2.bf16.msra.mxu0 0
  %4398 = vmatprep.subr.bf16.mxu0 0
  %4399 = vmatpush2.bf16.msra.mxu0 0
  %4400 = vmatprep.subr.bf16.mxu0 0
  %4401 = vmatpush2.bf16.msra.mxu0 0
  %4402 = vmatprep.subr.bf16.mxu0 0
  %4403 = vmatpush2.bf16.msra.mxu0 0
  %4404 = vmatprep.subr.bf16.mxu0 0
  %4405 = vmatpush2.bf16.msra.mxu0 0
  %4406 = vmatprep.subr.bf16.mxu0 0
  %4407 = vmatpush2.bf16.msra.mxu0 0
  %4408 = vmatprep.subr.bf16.mxu0 0
  %4409 = vmatpush2.bf16.msra.mxu0 0
  %4410 = vmatprep.mubr.bf16.mxu0 0
  %4411 = vmatmul.mubr.bf16.gmra.mxu0 %v4239
  %v4412 = vpop.f32.mrf.mxu0
  %v4413 = vadd.f32 %v4349, %v4412
  %v4414 = vpop.f32.mrf.mxu0
  %v4415 = vpop.f32.mrf.mxu0
  %v4416 = vadd.f32 %v4352, %v4415
  %v4417 = vpop.f32.mrf.mxu0
  %4418 = vmatprep.mubr.bf16.mxu0 0
  %4419 = vmatmul.mubr.bf16.gmra.mxu0 %v4242
  %v4420 = vpop.f32.mrf.mxu0
  %v4421 = vadd.f32 %v4357, %v4420
  %v4422 = vpop.f32.mrf.mxu0
  %v4423 = vpop.f32.mrf.mxu0
  %v4424 = vadd.f32 %v4360, %v4423
  %v4425 = vpop.f32.mrf.mxu0
  %4426 = vmatprep.mubr.bf16.mxu0 0
  %4427 = vmatmul.mubr.bf16.gmra.mxu0 %v4245
  %v4428 = vpop.f32.mrf.mxu0
  %v4429 = vadd.f32 %v4365, %v4428
  %v4430 = vpop.f32.mrf.mxu0
  %v4431 = vpop.f32.mrf.mxu0
  %v4432 = vadd.f32 %v4368, %v4431
  %v4433 = vpop.f32.mrf.mxu0
  %4434 = vmatprep.mubr.bf16.mxu0 0
  %4435 = vmatmul.mubr.bf16.gmra.mxu0 %v4248
  %v4436 = vpop.f32.mrf.mxu0
  %v4437 = vadd.f32 %v4373, %v4436
  %v4438 = vpop.f32.mrf.mxu0
  %v4439 = vpop.f32.mrf.mxu0
  %v4440 = vpop.f32.mrf.mxu0
  %4441 = vdwg.mxu0
  %v4442 = vmax.f32 %v4413, 0.0
  %v4443 = vmax.f32 %v4416, 0.0
  %v4444 = vmax.f32 %v4421, 0.0
  %v4445 = vmax.f32 %v4424, 0.0
  %v4446 = vmax.f32 %v4429, 0.0
  %v4447 = vmax.f32 %v4432, 0.0
  %v4448 = vmax.f32 %v4437, 0.0
  %v4449 = vpack.c.bf16 %v4443, %v4442
  %v4450 = vpack.c.bf16 %v4445, %v4444
  %v4451 = vpack.c.bf16 %v4447, %v4446
  %v4452 = vpack.c.bf16 %v4448, %v4448
  %v4457 = vunpack.c.l.b16 %v4449
  %v4458 = vunpack.c.h.b16 %v4449
  %v4459 = vunpack.c.l.b16 %v4450
  %v4460 = vunpack.c.h.b16 %v4450
  %v4461 = vunpack.c.l.b16 %v4451
  %v4462 = vunpack.c.h.b16 %v4451
  %v4463 = vunpack.c.l.b16 %v4452
  %v4464 = vpack.c.b16 %v4457, %v4457
  %v4465 = vpack.c.b16 %v4458, %v4458
  %v4466 = vpack.c.b16 %v4459, %v4459
  %v4467 = vpack.c.b16 %v4460, %v4460
  %v4468 = vpack.c.b16 %v4461, %v4461
  %v4469 = vpack.c.b16 %v4462, %v4462
  %v4470 = vpack.c.b16 %v4463, %v4463
  %4478 = vst.msk [vmem:[%s6] sm:$0xf] %vm24, %v4464
  %4479 = vst.msk [vmem:[%s6 + $0x4] sm:$0xf] %vm24, %v4465
  %4480 = vst.msk [vmem:[%s6 + $0x8] sm:$0xf] %vm24, %v4466
  %4481 = vst.msk [vmem:[%s6 + $0xc] sm:$0xf] %vm24, %v4467
  %4482 = vst.msk [vmem:[%s6 + $0x10] sm:$0xf] %vm24, %v4468
  %4483 = vst.msk [vmem:[%s6 + $0x14] sm:$0xf] %vm24, %v4469
  %vm4484 = vcmask 518144
  %4485 = vst.msk [vmem:[%s6 + $0x18] sm:$0x7] %vm4484, %v4470
  // Predicated region
  $region26: #{dnn_module_forward.6} parent=0 // pred_check
    _
  $region27: #{dnn_module_forward.6} parent=0 // pred_check_branch
    %4487 = sbr.rel (0) target = $region29
  $region28: #{dnn_module_forward.6} parent=0 // pred_region
    _
  $region29: #{dnn_module_forward.6} parent=0 // pred_fallthru
    _
  // Predicated region
  $region30: #{dnn_module_forward.6} parent=0 // pred_check
    _
  $region31: #{dnn_module_forward.6} parent=0 // pred_check_branch
    %4489 = sbr.rel (0) target = $region33
  $region32: #{dnn_module_forward.6} parent=0 // pred_region
    _
  $region33: #{dnn_module_forward.6} parent=0 // pred_fallthru
    _

// kernel: dnn_module_forward.4
$region0: #{dnn_module_forward.4}
  #allocation0 [shape = 'u32[]', space=smem, size = 0x4, offset = 0x4, fixed_abs, tag = 'smem constant byte address 0x4 - core index']
  #allocation1 [shape = 'u32[144,128]{1,0:T(1,128)}', space=vmem, size = 0x12000, scoped, tag = 'internal scratch']
  #allocation2 [shape = 'bf16[92,64]{1,0:T(8,128)(2,1)}', space=vmem, size = 0x6000, scoped, tag = 'scratch operand']
  %s0 = inlined_call_operand.vmem [shape: bf16[72,64], index: 0, kind: input, shape index: {}]
  %s1 = inlined_call_operand.vmem [shape: bf16[9,72,1], index: 1, kind: input, shape index: {}]
  %s2 = inlined_call_operand.vmem [shape: bf16[576,64], index: 2, kind: input, shape index: {}]
  %s3 = inlined_call_operand.vmem [shape: f32[1,64], index: 3, kind: input, shape index: {}]
  %s4 = inlined_call_operand.vmem [shape: bf16[576,64], index: 4, kind: input, shape index: {}]
  %s5 = inlined_call_operand.vmem [shape: f32[1,64], index: 5, kind: input, shape index: {}]
  %s6 = inlined_call_operand.vmem [shape: bf16[72,64], index: 6, kind: output, shape index: {}]
  %s7 = sld [smem:[#allocation0]]
  $region34: #{dnn_module_forward.4} parent=0
    _
  %s9 = ssub.s32 1, %s7
  %s10 = scalar_select 0, %s9, %s7
  // Predicated region
  $region2: #{dnn_module_forward.4} parent=0 // pred_check
    _
  $region3: #{dnn_module_forward.4} parent=0 // pred_check_branch
    %12 = sbr.rel (0) target = $region5
  $region4: #{dnn_module_forward.4} parent=0 // pred_region
    _
  $region5: #{dnn_module_forward.4} parent=0 // pred_fallthru
    _
  // Predicated region
  $region6: #{dnn_module_forward.4} parent=0 // pred_check
    _
  $region7: #{dnn_module_forward.4} parent=0 // pred_check_branch
    %14 = sbr.rel (0) target = $region9
  $region8: #{dnn_module_forward.4} parent=0 // pred_region
    _
  $region9: #{dnn_module_forward.4} parent=0 // pred_fallthru
    _
  // Predicated region
  $region10: #{dnn_module_forward.4} parent=0 // pred_check
    _
  $region11: #{dnn_module_forward.4} parent=0 // pred_check_branch
    %16 = sbr.rel (0) target = $region13
  $region12: #{dnn_module_forward.4} parent=0 // pred_region
    _
  $region13: #{dnn_module_forward.4} parent=0 // pred_fallthru
    _
  // Predicated region
  $region14: #{dnn_module_forward.4} parent=0 // pred_check
    _
  $region15: #{dnn_module_forward.4} parent=0 // pred_check_branch
    %18 = sbr.rel (0) target = $region17
  $region16: #{dnn_module_forward.4} parent=0 // pred_region
    _
  $region17: #{dnn_module_forward.4} parent=0 // pred_fallthru
    _
  // Predicated region
  $region18: #{dnn_module_forward.4} parent=0 // pred_check
    _
  $region19: #{dnn_module_forward.4} parent=0 // pred_check_branch
    %20 = sbr.rel (0) target = $region21
  $region20: #{dnn_module_forward.4} parent=0 // pred_region
    _
  $region21: #{dnn_module_forward.4} parent=0 // pred_fallthru
    _
  // Predicated region
  $region22: #{dnn_module_forward.4} parent=0 // pred_check
    _
  $region23: #{dnn_module_forward.4} parent=0 // pred_check_branch
    %22 = sbr.rel (0) target = $region25
  $region24: #{dnn_module_forward.4} parent=0 // pred_region
    _
  $region25: #{dnn_module_forward.4} parent=0 // pred_fallthru
    _
  %vm24 = vcmask 519168
  %25 = vst.msk [vmem:[#allocation2] sm:$0xf] %vm24, 0
  %26 = vst.msk [vmem:[#allocation2 + $0x4] sm:$0xf] %vm24, 0
  %27 = vst.msk [vmem:[#allocation2 + $0x8] sm:$0xf] %vm24, 0
  %28 = vst.msk [vmem:[#allocation2 + $0xc] sm:$0xf] %vm24, 0
  %29 = vst.msk [vmem:[#allocation2 + $0x10] sm:$0xf] %vm24, 0
  %30 = vst.msk [vmem:[#allocation2 + $0x14] sm:$0xf] %vm24, 0
  %31 = vst.msk [vmem:[#allocation2 + $0x18] sm:$0xf] %vm24, 0
  %32 = vst.msk [vmem:[#allocation2 + $0x1c] sm:$0xf] %vm24, 0
  %33 = vst.msk [vmem:[#allocation2 + $0x20] sm:$0xf] %vm24, 0
  %34 = vst.msk [vmem:[#allocation2 + $0x24] sm:$0xf] %vm24, 0
  %35 = vst.msk [vmem:[#allocation2 + $0x28] sm:$0xf] %vm24, 0
  %vm36 = vcmask 517120
  %37 = vst.msk [vmem:[#allocation2 + $0x2c] sm:$0x3] %vm36, 0
  %v38 = vld [vmem:[%s0] sm:$0xf]
  %v39 = vld [vmem:[%s0 + $0x4] sm:$0xf]
  %v40 = vld [vmem:[%s0 + $0x8] sm:$0xf]
  %v41 = vld [vmem:[%s0 + $0xc] sm:$0xf]
  %v42 = vld [vmem:[%s0 + $0x10] sm:$0xf]
  %v43 = vld [vmem:[%s0 + $0x14] sm:$0xf]
  %v44 = vld [vmem:[%s0 + $0x18] sm:$0xf]
  %v45 = vld [vmem:[%s0 + $0x1c] sm:$0xf]
  %v46 = vld [vmem:[%s0 + $0x20] sm:$0xf]
  %vm56 = vcmask 1040384
  %vm57 = vcmask 1044484
  %vm58 = vmor %vm56, %vm57
  %v59 = vrot.slane %v38, 7
  %v60 = vrot.slane %v59, 4
  %v61 = vrot.slane %v39, 7
  %v62 = vsel %vm58, %v60, %v61
  %v63 = vrot.slane %v61, 4
  %v64 = vrot.slane %v40, 7
  %v65 = vsel %vm58, %v63, %v64
  %v66 = vrot.slane %v64, 4
  %v67 = vrot.slane %v41, 7
  %v68 = vsel %vm58, %v66, %v67
  %v69 = vrot.slane %v67, 4
  %v70 = vrot.slane %v42, 7
  %v71 = vsel %vm58, %v69, %v70
  %v72 = vrot.slane %v70, 4
  %v73 = vrot.slane %v43, 7
  %v74 = vsel %vm58, %v72, %v73
  %v75 = vrot.slane %v73, 4
  %v76 = vrot.slane %v44, 7
  %v77 = vsel %vm58, %v75, %v76
  %v78 = vrot.slane %v76, 4
  %v79 = vrot.slane %v45, 7
  %v80 = vsel %vm58, %v78, %v79
  %v81 = vrot.slane %v79, 4
  %v82 = vrot.slane %v46, 7
  %v83 = vsel %vm58, %v81, %v82
  %v84 = vrot.slane %v82, 4
  %vm95 = vcmask 519169
  %96 = vst.msk [vmem:[#allocation2 + $0x4] sm:$0xe] %vm95, %v59
  %97 = vst.msk [vmem:[#allocation2 + $0x8] sm:$0xf] %vm24, %v62
  %98 = vst.msk [vmem:[#allocation2 + $0xc] sm:$0xf] %vm24, %v65
  %99 = vst.msk [vmem:[#allocation2 + $0x10] sm:$0xf] %vm24, %v68
  %100 = vst.msk [vmem:[#allocation2 + $0x14] sm:$0xf] %vm24, %v71
  %101 = vst.msk [vmem:[#allocation2 + $0x18] sm:$0xf] %vm24, %v74
  %102 = vst.msk [vmem:[#allocation2 + $0x1c] sm:$0xf] %vm24, %v77
  %103 = vst.msk [vmem:[#allocation2 + $0x20] sm:$0xf] %vm24, %v80
  %104 = vst.msk [vmem:[#allocation2 + $0x24] sm:$0xf] %vm24, %v83
  %vm105 = vcmask 516096
  %106 = vst.msk [vmem:[#allocation2 + $0x28] sm:$0x1] %vm105, %v84
  %v107 = vld [vmem:[#allocation2] sm:$0xf]
  %v108 = vld [vmem:[#allocation2 + $0x4] sm:$0xf]
  %v109 = vld [vmem:[#allocation2 + $0x8] sm:$0xf]
  %v110 = vld [vmem:[#allocation2 + $0xc] sm:$0xf]
  %v111 = vld [vmem:[#allocation2 + $0x10] sm:$0xf]
  %v112 = vld [vmem:[#allocation2 + $0x14] sm:$0xf]
  %v113 = vld [vmem:[#allocation2 + $0x18] sm:$0xf]
  %v114 = vld [vmem:[#allocation2 + $0x1c] sm:$0xf]
  %v115 = vld [vmem:[#allocation2 + $0x20] sm:$0xf]
  %v116 = vld [vmem:[%s1] sm:$0xf]
  %v117 = vld [vmem:[%s1 + $0x4] sm:$0xf]
  %v118 = vld [vmem:[%s1 + $0x8] sm:$0xf]
  %v119 = vld [vmem:[%s1 + $0xc] sm:$0xf]
  %v120 = vld [vmem:[%s1 + $0x10] sm:$0xf]
  %v121 = vld [vmem:[%s1 + $0x14] sm:$0xf]
  %v122 = vld [vmem:[%s1 + $0x18] sm:$0xf]
  %v123 = vld [vmem:[%s1 + $0x1c] sm:$0xf]
  %v124 = vld [vmem:[%s1 + $0x20] sm:$0xf]
  %126 = vset.pattern.permute.xlu0 0
  %127 = vperm.xlu0 %126, %v116
  %v128 = vpop.permute.xlu0 %127
  %v131 = vunpack.c.l.s4 839922192
  %v132 = vunpack.c.0.s8 %v131
  %v133 = vlaneseq
  %v134 = vshrl.u32 %v133, 7
  %v135 = vsub.s32 %v132, %v134
  %v136 = vrot.slane %v128, %v135
  %138 = vset.pattern.permute.xlu0 0
  %139 = vperm.xlu0 %138, %v117
  %v140 = vpop.permute.xlu0 %139
  %v143 = vunpack.c.l.s4 839922192
  %v144 = vunpack.c.0.s8 %v143
  %v145 = vlaneseq
  %v146 = vshrl.u32 %v145, 7
  %v147 = vsub.s32 %v144, %v146
  %v148 = vrot.slane %v140, %v147
  %150 = vset.pattern.permute.xlu0 0
  %151 = vperm.xlu0 %150, %v118
  %v152 = vpop.permute.xlu0 %151
  %v155 = vunpack.c.l.s4 839922192
  %v156 = vunpack.c.0.s8 %v155
  %v157 = vlaneseq
  %v158 = vshrl.u32 %v157, 7
  %v159 = vsub.s32 %v156, %v158
  %v160 = vrot.slane %v152, %v159
  %162 = vset.pattern.permute.xlu0 0
  %163 = vperm.xlu0 %162, %v119
  %v164 = vpop.permute.xlu0 %163
  %v167 = vunpack.c.l.s4 839922192
  %v168 = vunpack.c.0.s8 %v167
  %v169 = vlaneseq
  %v170 = vshrl.u32 %v169, 7
  %v171 = vsub.s32 %v168, %v170
  %v172 = vrot.slane %v164, %v171
  %174 = vset.pattern.permute.xlu0 0
  %175 = vperm.xlu0 %174, %v120
  %v176 = vpop.permute.xlu0 %175
  %v179 = vunpack.c.l.s4 839922192
  %v180 = vunpack.c.0.s8 %v179
  %v181 = vlaneseq
  %v182 = vshrl.u32 %v181, 7
  %v183 = vsub.s32 %v180, %v182
  %v184 = vrot.slane %v176, %v183
  %186 = vset.pattern.permute.xlu0 0
  %187 = vperm.xlu0 %186, %v121
  %v188 = vpop.permute.xlu0 %187
  %v191 = vunpack.c.l.s4 839922192
  %v192 = vunpack.c.0.s8 %v191
  %v193 = vlaneseq
  %v194 = vshrl.u32 %v193, 7
  %v195 = vsub.s32 %v192, %v194
  %v196 = vrot.slane %v188, %v195
  %198 = vset.pattern.permute.xlu0 0
  %199 = vperm.xlu0 %198, %v122
  %v200 = vpop.permute.xlu0 %199
  %v203 = vunpack.c.l.s4 839922192
  %v204 = vunpack.c.0.s8 %v203
  %v205 = vlaneseq
  %v206 = vshrl.u32 %v205, 7
  %v207 = vsub.s32 %v204, %v206
  %v208 = vrot.slane %v200, %v207
  %210 = vset.pattern.permute.xlu0 0
  %211 = vperm.xlu0 %210, %v123
  %v212 = vpop.permute.xlu0 %211
  %v215 = vunpack.c.l.s4 839922192
  %v216 = vunpack.c.0.s8 %v215
  %v217 = vlaneseq
  %v218 = vshrl.u32 %v217, 7
  %v219 = vsub.s32 %v216, %v218
  %v220 = vrot.slane %v212, %v219
  %222 = vset.pattern.permute.xlu0 0
  %223 = vperm.xlu0 %222, %v124
  %v224 = vpop.permute.xlu0 %223
  %v227 = vunpack.c.l.s4 839922192
  %v228 = vunpack.c.0.s8 %v227
  %v229 = vlaneseq
  %v230 = vshrl.u32 %v229, 7
  %v231 = vsub.s32 %v228, %v230
  %v232 = vrot.slane %v224, %v231
  %v233 = vmul.bf16 %v107, %v136
  %v234 = vmul.bf16 %v108, %v148
  %v235 = vmul.bf16 %v109, %v160
  %v236 = vmul.bf16 %v110, %v172
  %v237 = vmul.bf16 %v111, %v184
  %v238 = vmul.bf16 %v112, %v196
  %v239 = vmul.bf16 %v113, %v208
  %v240 = vmul.bf16 %v114, %v220
  %v241 = vmul.bf16 %v115, %v232
  %v242 = vld [vmem:[#allocation2] sm:$0xf]
  %v243 = vld [vmem:[#allocation2 + $0x4] sm:$0xf]
  %v244 = vld [vmem:[#allocation2 + $0x8] sm:$0xf]
  %v245 = vld [vmem:[#allocation2 + $0xc] sm:$0xf]
  %v246 = vld [vmem:[#allocation2 + $0x10] sm:$0xf]
  %v247 = vld [vmem:[#allocation2 + $0x14] sm:$0xf]
  %v248 = vld [vmem:[#allocation2 + $0x18] sm:$0xf]
  %v249 = vld [vmem:[#allocation2 + $0x1c] sm:$0xf]
  %v250 = vld [vmem:[#allocation2 + $0x20] sm:$0xf]
  %v251 = vld [vmem:[#allocation2 + $0x24] sm:$0x1]
  %s252 = scalar_lea.vmem %s1, 36
  %v253 = vld [vmem:[%s252] sm:$0xf]
  %v254 = vld [vmem:[%s252 + $0x4] sm:$0xf]
  %v255 = vld [vmem:[%s252 + $0x8] sm:$0xf]
  %v256 = vld [vmem:[%s252 + $0xc] sm:$0xf]
  %v257 = vld [vmem:[%s252 + $0x10] sm:$0xf]
  %v258 = vld [vmem:[%s252 + $0x14] sm:$0xf]
  %v259 = vld [vmem:[%s252 + $0x18] sm:$0xf]
  %v260 = vld [vmem:[%s252 + $0x1c] sm:$0xf]
  %v261 = vld [vmem:[%s252 + $0x20] sm:$0xf]
  %263 = vset.pattern.permute.xlu0 0
  %264 = vperm.xlu0 %263, %v253
  %v265 = vpop.permute.xlu0 %264
  %v268 = vunpack.c.l.s4 839922192
  %v269 = vunpack.c.0.s8 %v268
  %v270 = vlaneseq
  %v271 = vshrl.u32 %v270, 7
  %v272 = vsub.s32 %v269, %v271
  %v273 = vrot.slane %v265, %v272
  %275 = vset.pattern.permute.xlu0 0
  %276 = vperm.xlu0 %275, %v254
  %v277 = vpop.permute.xlu0 %276
  %v280 = vunpack.c.l.s4 839922192
  %v281 = vunpack.c.0.s8 %v280
  %v282 = vlaneseq
  %v283 = vshrl.u32 %v282, 7
  %v284 = vsub.s32 %v281, %v283
  %v285 = vrot.slane %v277, %v284
  %287 = vset.pattern.permute.xlu0 0
  %288 = vperm.xlu0 %287, %v255
  %v289 = vpop.permute.xlu0 %288
  %v292 = vunpack.c.l.s4 839922192
  %v293 = vunpack.c.0.s8 %v292
  %v294 = vlaneseq
  %v295 = vshrl.u32 %v294, 7
  %v296 = vsub.s32 %v293, %v295
  %v297 = vrot.slane %v289, %v296
  %299 = vset.pattern.permute.xlu0 0
  %300 = vperm.xlu0 %299, %v256
  %v301 = vpop.permute.xlu0 %300
  %v304 = vunpack.c.l.s4 839922192
  %v305 = vunpack.c.0.s8 %v304
  %v306 = vlaneseq
  %v307 = vshrl.u32 %v306, 7
  %v308 = vsub.s32 %v305, %v307
  %v309 = vrot.slane %v301, %v308
  %311 = vset.pattern.permute.xlu0 0
  %312 = vperm.xlu0 %311, %v257
  %v313 = vpop.permute.xlu0 %312
  %v316 = vunpack.c.l.s4 839922192
  %v317 = vunpack.c.0.s8 %v316
  %v318 = vlaneseq
  %v319 = vshrl.u32 %v318, 7
  %v320 = vsub.s32 %v317, %v319
  %v321 = vrot.slane %v313, %v320
  %323 = vset.pattern.permute.xlu0 0
  %324 = vperm.xlu0 %323, %v258
  %v325 = vpop.permute.xlu0 %324
  %v328 = vunpack.c.l.s4 839922192
  %v329 = vunpack.c.0.s8 %v328
  %v330 = vlaneseq
  %v331 = vshrl.u32 %v330, 7
  %v332 = vsub.s32 %v329, %v331
  %v333 = vrot.slane %v325, %v332
  %335 = vset.pattern.permute.xlu0 0
  %336 = vperm.xlu0 %335, %v259
  %v337 = vpop.permute.xlu0 %336
  %v340 = vunpack.c.l.s4 839922192
  %v341 = vunpack.c.0.s8 %v340
  %v342 = vlaneseq
  %v343 = vshrl.u32 %v342, 7
  %v344 = vsub.s32 %v341, %v343
  %v345 = vrot.slane %v337, %v344
  %347 = vset.pattern.permute.xlu0 0
  %348 = vperm.xlu0 %347, %v260
  %v349 = vpop.permute.xlu0 %348
  %v352 = vunpack.c.l.s4 839922192
  %v353 = vunpack.c.0.s8 %v352
  %v354 = vlaneseq
  %v355 = vshrl.u32 %v354, 7
  %v356 = vsub.s32 %v353, %v355
  %v357 = vrot.slane %v349, %v356
  %359 = vset.pattern.permute.xlu0 0
  %360 = vperm.xlu0 %359, %v261
  %v361 = vpop.permute.xlu0 %360
  %v364 = vunpack.c.l.s4 839922192
  %v365 = vunpack.c.0.s8 %v364
  %v366 = vlaneseq
  %v367 = vshrl.u32 %v366, 7
  %v368 = vsub.s32 %v365, %v367
  %v369 = vrot.slane %v361, %v368
  %vm370 = vsmask.f32 256
  %vm371 = vsmask.f32 4368
  %vm372 = vmor %vm370, %vm371
  %v374 = vshrl.u32 %v273, 16
  %v376 = vrot.slane %v374, 7
  %v377 = vshll.u32 %v273, 16
  %v379 = vor.u32 %v376, %v377
  %v380 = vrot.slane %v376, 4
  %v382 = vshrl.u32 %v285, 16
  %v384 = vrot.slane %v382, 7
  %v385 = vshll.u32 %v285, 16
  %v387 = vor.u32 %v384, %v385
  %v388 = vsel %vm372, %v380, %v387
  %v389 = vrot.slane %v384, 4
  %v391 = vshrl.u32 %v297, 16
  %v393 = vrot.slane %v391, 7
  %v394 = vshll.u32 %v297, 16
  %v396 = vor.u32 %v393, %v394
  %v397 = vsel %vm372, %v389, %v396
  %v398 = vrot.slane %v393, 4
  %v400 = vshrl.u32 %v309, 16
  %v402 = vrot.slane %v400, 7
  %v403 = vshll.u32 %v309, 16
  %v405 = vor.u32 %v402, %v403
  %v406 = vsel %vm372, %v398, %v405
  %v407 = vrot.slane %v402, 4
  %v409 = vshrl.u32 %v321, 16
  %v411 = vrot.slane %v409, 7
  %v412 = vshll.u32 %v321, 16
  %v414 = vor.u32 %v411, %v412
  %v415 = vsel %vm372, %v407, %v414
  %v416 = vrot.slane %v411, 4
  %v418 = vshrl.u32 %v333, 16
  %v420 = vrot.slane %v418, 7
  %v421 = vshll.u32 %v333, 16
  %v423 = vor.u32 %v420, %v421
  %v424 = vsel %vm372, %v416, %v423
  %v425 = vrot.slane %v420, 4
  %v427 = vshrl.u32 %v345, 16
  %v429 = vrot.slane %v427, 7
  %v430 = vshll.u32 %v345, 16
  %v432 = vor.u32 %v429, %v430
  %v433 = vsel %vm372, %v425, %v432
  %v434 = vrot.slane %v429, 4
  %v436 = vshrl.u32 %v357, 16
  %v438 = vrot.slane %v436, 7
  %v439 = vshll.u32 %v357, 16
  %v441 = vor.u32 %v438, %v439
  %v442 = vsel %vm372, %v434, %v441
  %v443 = vrot.slane %v438, 4
  %v445 = vshrl.u32 %v369, 16
  %v447 = vrot.slane %v445, 7
  %v448 = vshll.u32 %v369, 16
  %v450 = vor.u32 %v447, %v448
  %v451 = vsel %vm372, %v443, %v450
  %v452 = vrot.slane %v447, 4
  %v463 = vmul.bf16 %v242, %v379
  %v464 = vmul.bf16 %v243, %v388
  %v465 = vmul.bf16 %v244, %v397
  %v466 = vmul.bf16 %v245, %v406
  %v467 = vmul.bf16 %v246, %v415
  %v468 = vmul.bf16 %v247, %v424
  %v469 = vmul.bf16 %v248, %v433
  %v470 = vmul.bf16 %v249, %v442
  %v471 = vmul.bf16 %v250, %v451
  %v472 = vmul.bf16 %v251, %v452
  %v473 = vld [vmem:[#allocation2] sm:$0xe]
  %s474 = scalar_lea.vmem %s1, 72
  %v475 = vld [vmem:[%s474] sm:$0xf]
  %v476 = vld [vmem:[%s474 + $0x4] sm:$0xf]
  %v477 = vld [vmem:[%s474 + $0x8] sm:$0xf]
  %v478 = vld [vmem:[%s474 + $0xc] sm:$0xf]
  %v479 = vld [vmem:[%s474 + $0x10] sm:$0xf]
  %v480 = vld [vmem:[%s474 + $0x14] sm:$0xf]
  %v481 = vld [vmem:[%s474 + $0x18] sm:$0xf]
  %v482 = vld [vmem:[%s474 + $0x1c] sm:$0xf]
  %v483 = vld [vmem:[%s474 + $0x20] sm:$0xf]
  %485 = vset.pattern.permute.xlu0 0
  %486 = vperm.xlu0 %485, %v475
  %v487 = vpop.permute.xlu0 %486
  %v490 = vunpack.c.l.s4 839922192
  %v491 = vunpack.c.0.s8 %v490
  %v492 = vlaneseq
  %v493 = vshrl.u32 %v492, 7
  %v494 = vsub.s32 %v491, %v493
  %v495 = vrot.slane %v487, %v494
  %497 = vset.pattern.permute.xlu0 0
  %498 = vperm.xlu0 %497, %v476
  %v499 = vpop.permute.xlu0 %498
  %v502 = vunpack.c.l.s4 839922192
  %v503 = vunpack.c.0.s8 %v502
  %v504 = vlaneseq
  %v505 = vshrl.u32 %v504, 7
  %v506 = vsub.s32 %v503, %v505
  %v507 = vrot.slane %v499, %v506
  %509 = vset.pattern.permute.xlu0 0
  %510 = vperm.xlu0 %509, %v477
  %v511 = vpop.permute.xlu0 %510
  %v514 = vunpack.c.l.s4 839922192
  %v515 = vunpack.c.0.s8 %v514
  %v516 = vlaneseq
  %v517 = vshrl.u32 %v516, 7
  %v518 = vsub.s32 %v515, %v517
  %v519 = vrot.slane %v511, %v518
  %521 = vset.pattern.permute.xlu0 0
  %522 = vperm.xlu0 %521, %v478
  %v523 = vpop.permute.xlu0 %522
  %v526 = vunpack.c.l.s4 839922192
  %v527 = vunpack.c.0.s8 %v526
  %v528 = vlaneseq
  %v529 = vshrl.u32 %v528, 7
  %v530 = vsub.s32 %v527, %v529
  %v531 = vrot.slane %v523, %v530
  %533 = vset.pattern.permute.xlu0 0
  %534 = vperm.xlu0 %533, %v479
  %v535 = vpop.permute.xlu0 %534
  %v538 = vunpack.c.l.s4 839922192
  %v539 = vunpack.c.0.s8 %v538
  %v540 = vlaneseq
  %v541 = vshrl.u32 %v540, 7
  %v542 = vsub.s32 %v539, %v541
  %v543 = vrot.slane %v535, %v542
  %545 = vset.pattern.permute.xlu0 0
  %546 = vperm.xlu0 %545, %v480
  %v547 = vpop.permute.xlu0 %546
  %v550 = vunpack.c.l.s4 839922192
  %v551 = vunpack.c.0.s8 %v550
  %v552 = vlaneseq
  %v553 = vshrl.u32 %v552, 7
  %v554 = vsub.s32 %v551, %v553
  %v555 = vrot.slane %v547, %v554
  %557 = vset.pattern.permute.xlu0 0
  %558 = vperm.xlu0 %557, %v481
  %v559 = vpop.permute.xlu0 %558
  %v562 = vunpack.c.l.s4 839922192
  %v563 = vunpack.c.0.s8 %v562
  %v564 = vlaneseq
  %v565 = vshrl.u32 %v564, 7
  %v566 = vsub.s32 %v563, %v565
  %v567 = vrot.slane %v559, %v566
  %569 = vset.pattern.permute.xlu0 0
  %570 = vperm.xlu0 %569, %v482
  %v571 = vpop.permute.xlu0 %570
  %v574 = vunpack.c.l.s4 839922192
  %v575 = vunpack.c.0.s8 %v574
  %v576 = vlaneseq
  %v577 = vshrl.u32 %v576, 7
  %v578 = vsub.s32 %v575, %v577
  %v579 = vrot.slane %v571, %v578
  %581 = vset.pattern.permute.xlu0 0
  %582 = vperm.xlu0 %581, %v483
  %v583 = vpop.permute.xlu0 %582
  %v586 = vunpack.c.l.s4 839922192
  %v587 = vunpack.c.0.s8 %v586
  %v588 = vlaneseq
  %v589 = vshrl.u32 %v588, 7
  %v590 = vsub.s32 %v587, %v589
  %v591 = vrot.slane %v583, %v590
  %v601 = vrot.slane %v495, 7
  %v602 = vrot.slane %v601, 4
  %v603 = vrot.slane %v507, 7
  %v604 = vsel %vm58, %v602, %v603
  %v605 = vrot.slane %v603, 4
  %v606 = vrot.slane %v519, 7
  %v607 = vsel %vm58, %v605, %v606
  %v608 = vrot.slane %v606, 4
  %v609 = vrot.slane %v531, 7
  %v610 = vsel %vm58, %v608, %v609
  %v611 = vrot.slane %v609, 4
  %v612 = vrot.slane %v543, 7
  %v613 = vsel %vm58, %v611, %v612
  %v614 = vrot.slane %v612, 4
  %v615 = vrot.slane %v555, 7
  %v616 = vsel %vm58, %v614, %v615
  %v617 = vrot.slane %v615, 4
  %v618 = vrot.slane %v567, 7
  %v619 = vsel %vm58, %v617, %v618
  %v620 = vrot.slane %v618, 4
  %v621 = vrot.slane %v579, 7
  %v622 = vsel %vm58, %v620, %v621
  %v623 = vrot.slane %v621, 4
  %v624 = vrot.slane %v591, 7
  %v625 = vsel %vm58, %v623, %v624
  %v626 = vrot.slane %v624, 4
  %v637 = vmul.bf16 %v473, %v601
  %v638 = vmul.bf16 %v243, %v604
  %v639 = vmul.bf16 %v244, %v607
  %v640 = vmul.bf16 %v245, %v610
  %v641 = vmul.bf16 %v246, %v613
  %v642 = vmul.bf16 %v247, %v616
  %v643 = vmul.bf16 %v248, %v619
  %v644 = vmul.bf16 %v249, %v622
  %v645 = vmul.bf16 %v250, %v625
  %v646 = vmul.bf16 %v251, %v626
  %v647 = vld [vmem:[#allocation2 + $0x4] sm:$0xf]
  %v648 = vld [vmem:[#allocation2 + $0x8] sm:$0xf]
  %v649 = vld [vmem:[#allocation2 + $0xc] sm:$0xf]
  %v650 = vld [vmem:[#allocation2 + $0x10] sm:$0xf]
  %v651 = vld [vmem:[#allocation2 + $0x14] sm:$0xf]
  %v652 = vld [vmem:[#allocation2 + $0x18] sm:$0xf]
  %v653 = vld [vmem:[#allocation2 + $0x1c] sm:$0xf]
  %v654 = vld [vmem:[#allocation2 + $0x20] sm:$0xf]
  %v655 = vld [vmem:[#allocation2 + $0x24] sm:$0xf]
  %v656 = vld [vmem:[#allocation2 + $0x28] sm:$0x1]
  %s657 = scalar_lea.vmem %s1, 108
  %v658 = vld [vmem:[%s657] sm:$0xf]
  %v659 = vld [vmem:[%s657 + $0x4] sm:$0xf]
  %v660 = vld [vmem:[%s657 + $0x8] sm:$0xf]
  %v661 = vld [vmem:[%s657 + $0xc] sm:$0xf]
  %v662 = vld [vmem:[%s657 + $0x10] sm:$0xf]
  %v663 = vld [vmem:[%s657 + $0x14] sm:$0xf]
  %v664 = vld [vmem:[%s657 + $0x18] sm:$0xf]
  %v665 = vld [vmem:[%s657 + $0x1c] sm:$0xf]
  %v666 = vld [vmem:[%s657 + $0x20] sm:$0xf]
  %668 = vset.pattern.permute.xlu0 0
  %669 = vperm.xlu0 %668, %v658
  %v670 = vpop.permute.xlu0 %669
  %v673 = vunpack.c.l.s4 839922192
  %v674 = vunpack.c.0.s8 %v673
  %v675 = vlaneseq
  %v676 = vshrl.u32 %v675, 7
  %v677 = vsub.s32 %v674, %v676
  %v678 = vrot.slane %v670, %v677
  %680 = vset.pattern.permute.xlu0 0
  %681 = vperm.xlu0 %680, %v659
  %v682 = vpop.permute.xlu0 %681
  %v685 = vunpack.c.l.s4 839922192
  %v686 = vunpack.c.0.s8 %v685
  %v687 = vlaneseq
  %v688 = vshrl.u32 %v687, 7
  %v689 = vsub.s32 %v686, %v688
  %v690 = vrot.slane %v682, %v689
  %692 = vset.pattern.permute.xlu0 0
  %693 = vperm.xlu0 %692, %v660
  %v694 = vpop.permute.xlu0 %693
  %v697 = vunpack.c.l.s4 839922192
  %v698 = vunpack.c.0.s8 %v697
  %v699 = vlaneseq
  %v700 = vshrl.u32 %v699, 7
  %v701 = vsub.s32 %v698, %v700
  %v702 = vrot.slane %v694, %v701
  %704 = vset.pattern.permute.xlu0 0
  %705 = vperm.xlu0 %704, %v661
  %v706 = vpop.permute.xlu0 %705
  %v709 = vunpack.c.l.s4 839922192
  %v710 = vunpack.c.0.s8 %v709
  %v711 = vlaneseq
  %v712 = vshrl.u32 %v711, 7
  %v713 = vsub.s32 %v710, %v712
  %v714 = vrot.slane %v706, %v713
  %716 = vset.pattern.permute.xlu0 0
  %717 = vperm.xlu0 %716, %v662
  %v718 = vpop.permute.xlu0 %717
  %v721 = vunpack.c.l.s4 839922192
  %v722 = vunpack.c.0.s8 %v721
  %v723 = vlaneseq
  %v724 = vshrl.u32 %v723, 7
  %v725 = vsub.s32 %v722, %v724
  %v726 = vrot.slane %v718, %v725
  %728 = vset.pattern.permute.xlu0 0
  %729 = vperm.xlu0 %728, %v663
  %v730 = vpop.permute.xlu0 %729
  %v733 = vunpack.c.l.s4 839922192
  %v734 = vunpack.c.0.s8 %v733
  %v735 = vlaneseq
  %v736 = vshrl.u32 %v735, 7
  %v737 = vsub.s32 %v734, %v736
  %v738 = vrot.slane %v730, %v737
  %740 = vset.pattern.permute.xlu0 0
  %741 = vperm.xlu0 %740, %v664
  %v742 = vpop.permute.xlu0 %741
  %v745 = vunpack.c.l.s4 839922192
  %v746 = vunpack.c.0.s8 %v745
  %v747 = vlaneseq
  %v748 = vshrl.u32 %v747, 7
  %v749 = vsub.s32 %v746, %v748
  %v750 = vrot.slane %v742, %v749
  %752 = vset.pattern.permute.xlu0 0
  %753 = vperm.xlu0 %752, %v665
  %v754 = vpop.permute.xlu0 %753
  %v757 = vunpack.c.l.s4 839922192
  %v758 = vunpack.c.0.s8 %v757
  %v759 = vlaneseq
  %v760 = vshrl.u32 %v759, 7
  %v761 = vsub.s32 %v758, %v760
  %v762 = vrot.slane %v754, %v761
  %764 = vset.pattern.permute.xlu0 0
  %765 = vperm.xlu0 %764, %v666
  %v766 = vpop.permute.xlu0 %765
  %v769 = vunpack.c.l.s4 839922192
  %v770 = vunpack.c.0.s8 %v769
  %v771 = vlaneseq
  %v772 = vshrl.u32 %v771, 7
  %v773 = vsub.s32 %v770, %v772
  %v774 = vrot.slane %v766, %v773
  %v776 = vshrl.u32 %v678, 16
  %v778 = vrot.slane %v776, 7
  %v779 = vshll.u32 %v678, 16
  %v781 = vor.u32 %v778, %v779
  %v782 = vrot.slane %v778, 4
  %v784 = vshrl.u32 %v690, 16
  %v786 = vrot.slane %v784, 7
  %v787 = vshll.u32 %v690, 16
  %v789 = vor.u32 %v786, %v787
  %v790 = vsel %vm372, %v782, %v789
  %v791 = vrot.slane %v786, 4
  %v793 = vshrl.u32 %v702, 16
  %v795 = vrot.slane %v793, 7
  %v796 = vshll.u32 %v702, 16
  %v798 = vor.u32 %v795, %v796
  %v799 = vsel %vm372, %v791, %v798
  %v800 = vrot.slane %v795, 4
  %v802 = vshrl.u32 %v714, 16
  %v804 = vrot.slane %v802, 7
  %v805 = vshll.u32 %v714, 16
  %v807 = vor.u32 %v804, %v805
  %v808 = vsel %vm372, %v800, %v807
  %v809 = vrot.slane %v804, 4
  %v811 = vshrl.u32 %v726, 16
  %v813 = vrot.slane %v811, 7
  %v814 = vshll.u32 %v726, 16
  %v816 = vor.u32 %v813, %v814
  %v817 = vsel %vm372, %v809, %v816
  %v818 = vrot.slane %v813, 4
  %v820 = vshrl.u32 %v738, 16
  %v822 = vrot.slane %v820, 7
  %v823 = vshll.u32 %v738, 16
  %v825 = vor.u32 %v822, %v823
  %v826 = vsel %vm372, %v818, %v825
  %v827 = vrot.slane %v822, 4
  %v829 = vshrl.u32 %v750, 16
  %v831 = vrot.slane %v829, 7
  %v832 = vshll.u32 %v750, 16
  %v834 = vor.u32 %v831, %v832
  %v835 = vsel %vm372, %v827, %v834
  %v836 = vrot.slane %v831, 4
  %v838 = vshrl.u32 %v762, 16
  %v840 = vrot.slane %v838, 7
  %v841 = vshll.u32 %v762, 16
  %v843 = vor.u32 %v840, %v841
  %v844 = vsel %vm372, %v836, %v843
  %v845 = vrot.slane %v840, 4
  %v847 = vshrl.u32 %v774, 16
  %v849 = vrot.slane %v847, 7
  %v850 = vshll.u32 %v774, 16
  %v852 = vor.u32 %v849, %v850
  %v853 = vsel %vm372, %v845, %v852
  %v854 = vrot.slane %v849, 4
  %v865 = vmul.bf16 %v647, %v781
  %v866 = vmul.bf16 %v648, %v790
  %v867 = vmul.bf16 %v649, %v799
  %v868 = vmul.bf16 %v650, %v808
  %v869 = vmul.bf16 %v651, %v817
  %v870 = vmul.bf16 %v652, %v826
  %v871 = vmul.bf16 %v653, %v835
  %v872 = vmul.bf16 %v654, %v844
  %v873 = vmul.bf16 %v655, %v853
  %v874 = vmul.bf16 %v656, %v854
  %v875 = vld [vmem:[#allocation2 + $0x4] sm:$0xe]
  %v876 = vld [vmem:[#allocation2 + $0x28] sm:$0x3]
  %s877 = scalar_lea.vmem %s1, 180
  %v878 = vld [vmem:[%s877] sm:$0xf]
  %v879 = vld [vmem:[%s877 + $0x4] sm:$0xf]
  %v880 = vld [vmem:[%s877 + $0x8] sm:$0xf]
  %v881 = vld [vmem:[%s877 + $0xc] sm:$0xf]
  %v882 = vld [vmem:[%s877 + $0x10] sm:$0xf]
  %v883 = vld [vmem:[%s877 + $0x14] sm:$0xf]
  %v884 = vld [vmem:[%s877 + $0x18] sm:$0xf]
  %v885 = vld [vmem:[%s877 + $0x1c] sm:$0xf]
  %v886 = vld [vmem:[%s877 + $0x20] sm:$0xf]
  %888 = vset.pattern.permute.xlu0 0
  %889 = vperm.xlu0 %888, %v878
  %v890 = vpop.permute.xlu0 %889
  %v893 = vunpack.c.l.s4 839922192
  %v894 = vunpack.c.0.s8 %v893
  %v895 = vlaneseq
  %v896 = vshrl.u32 %v895, 7
  %v897 = vsub.s32 %v894, %v896
  %v898 = vrot.slane %v890, %v897
  %900 = vset.pattern.permute.xlu0 0
  %901 = vperm.xlu0 %900, %v879
  %v902 = vpop.permute.xlu0 %901
  %v905 = vunpack.c.l.s4 839922192
  %v906 = vunpack.c.0.s8 %v905
  %v907 = vlaneseq
  %v908 = vshrl.u32 %v907, 7
  %v909 = vsub.s32 %v906, %v908
  %v910 = vrot.slane %v902, %v909
  %912 = vset.pattern.permute.xlu0 0
  %913 = vperm.xlu0 %912, %v880
  %v914 = vpop.permute.xlu0 %913
  %v917 = vunpack.c.l.s4 839922192
  %v918 = vunpack.c.0.s8 %v917
  %v919 = vlaneseq
  %v920 = vshrl.u32 %v919, 7
  %v921 = vsub.s32 %v918, %v920
  %v922 = vrot.slane %v914, %v921
  %924 = vset.pattern.permute.xlu0 0
  %925 = vperm.xlu0 %924, %v881
  %v926 = vpop.permute.xlu0 %925
  %v929 = vunpack.c.l.s4 839922192
  %v930 = vunpack.c.0.s8 %v929
  %v931 = vlaneseq
  %v932 = vshrl.u32 %v931, 7
  %v933 = vsub.s32 %v930, %v932
  %v934 = vrot.slane %v926, %v933
  %936 = vset.pattern.permute.xlu0 0
  %937 = vperm.xlu0 %936, %v882
  %v938 = vpop.permute.xlu0 %937
  %v941 = vunpack.c.l.s4 839922192
  %v942 = vunpack.c.0.s8 %v941
  %v943 = vlaneseq
  %v944 = vshrl.u32 %v943, 7
  %v945 = vsub.s32 %v942, %v944
  %v946 = vrot.slane %v938, %v945
  %948 = vset.pattern.permute.xlu0 0
  %949 = vperm.xlu0 %948, %v883
  %v950 = vpop.permute.xlu0 %949
  %v953 = vunpack.c.l.s4 839922192
  %v954 = vunpack.c.0.s8 %v953
  %v955 = vlaneseq
  %v956 = vshrl.u32 %v955, 7
  %v957 = vsub.s32 %v954, %v956
  %v958 = vrot.slane %v950, %v957
  %960 = vset.pattern.permute.xlu0 0
  %961 = vperm.xlu0 %960, %v884
  %v962 = vpop.permute.xlu0 %961
  %v965 = vunpack.c.l.s4 839922192
  %v966 = vunpack.c.0.s8 %v965
  %v967 = vlaneseq
  %v968 = vshrl.u32 %v967, 7
  %v969 = vsub.s32 %v966, %v968
  %v970 = vrot.slane %v962, %v969
  %972 = vset.pattern.permute.xlu0 0
  %973 = vperm.xlu0 %972, %v885
  %v974 = vpop.permute.xlu0 %973
  %v977 = vunpack.c.l.s4 839922192
  %v978 = vunpack.c.0.s8 %v977
  %v979 = vlaneseq
  %v980 = vshrl.u32 %v979, 7
  %v981 = vsub.s32 %v978, %v980
  %v982 = vrot.slane %v974, %v981
  %984 = vset.pattern.permute.xlu0 0
  %985 = vperm.xlu0 %984, %v886
  %v986 = vpop.permute.xlu0 %985
  %v989 = vunpack.c.l.s4 839922192
  %v990 = vunpack.c.0.s8 %v989
  %v991 = vlaneseq
  %v992 = vshrl.u32 %v991, 7
  %v993 = vsub.s32 %v990, %v992
  %v994 = vrot.slane %v986, %v993
  %vm995 = vsmask.f32 1280
  %vm996 = vsmask.f32 5392
  %vm997 = vmor %vm995, %vm996
  %v999 = vshrl.u32 %v898, 16
  %v1001 = vrot.slane %v999, 6
  %v1002 = vshll.u32 %v898, 16
  %v1004 = vrot.slane %v1002, 7
  %v1005 = vor.u32 %v1001, %v1004
  %v1006 = vrot.slane %v1005, 4
  %v1008 = vshrl.u32 %v910, 16
  %v1010 = vrot.slane %v1008, 6
  %v1011 = vshll.u32 %v910, 16
  %v1013 = vrot.slane %v1011, 7
  %v1014 = vor.u32 %v1010, %v1013
  %v1015 = vsel %vm997, %v1006, %v1014
  %v1016 = vrot.slane %v1014, 4
  %v1018 = vshrl.u32 %v922, 16
  %v1020 = vrot.slane %v1018, 6
  %v1021 = vshll.u32 %v922, 16
  %v1023 = vrot.slane %v1021, 7
  %v1024 = vor.u32 %v1020, %v1023
  %v1025 = vsel %vm997, %v1016, %v1024
  %v1026 = vrot.slane %v1024, 4
  %v1028 = vshrl.u32 %v934, 16
  %v1030 = vrot.slane %v1028, 6
  %v1031 = vshll.u32 %v934, 16
  %v1033 = vrot.slane %v1031, 7
  %v1034 = vor.u32 %v1030, %v1033
  %v1035 = vsel %vm997, %v1026, %v1034
  %v1036 = vrot.slane %v1034, 4
  %v1038 = vshrl.u32 %v946, 16
  %v1040 = vrot.slane %v1038, 6
  %v1041 = vshll.u32 %v946, 16
  %v1043 = vrot.slane %v1041, 7
  %v1044 = vor.u32 %v1040, %v1043
  %v1045 = vsel %vm997, %v1036, %v1044
  %v1046 = vrot.slane %v1044, 4
  %v1048 = vshrl.u32 %v958, 16
  %v1050 = vrot.slane %v1048, 6
  %v1051 = vshll.u32 %v958, 16
  %v1053 = vrot.slane %v1051, 7
  %v1054 = vor.u32 %v1050, %v1053
  %v1055 = vsel %vm997, %v1046, %v1054
  %v1056 = vrot.slane %v1054, 4
  %v1058 = vshrl.u32 %v970, 16
  %v1060 = vrot.slane %v1058, 6
  %v1061 = vshll.u32 %v970, 16
  %v1063 = vrot.slane %v1061, 7
  %v1064 = vor.u32 %v1060, %v1063
  %v1065 = vsel %vm997, %v1056, %v1064
  %v1066 = vrot.slane %v1064, 4
  %v1068 = vshrl.u32 %v982, 16
  %v1070 = vrot.slane %v1068, 6
  %v1071 = vshll.u32 %v982, 16
  %v1073 = vrot.slane %v1071, 7
  %v1074 = vor.u32 %v1070, %v1073
  %v1075 = vsel %vm997, %v1066, %v1074
  %v1076 = vrot.slane %v1074, 4
  %v1078 = vshrl.u32 %v994, 16
  %v1080 = vrot.slane %v1078, 6
  %v1081 = vshll.u32 %v994, 16
  %v1083 = vrot.slane %v1081, 7
  %v1084 = vor.u32 %v1080, %v1083
  %v1085 = vsel %vm997, %v1076, %v1084
  %v1086 = vrot.slane %v1084, 4
  %v1097 = vmul.bf16 %v875, %v1005
  %v1098 = vmul.bf16 %v648, %v1015
  %v1099 = vmul.bf16 %v649, %v1025
  %v1100 = vmul.bf16 %v650, %v1035
  %v1101 = vmul.bf16 %v651, %v1045
  %v1102 = vmul.bf16 %v652, %v1055
  %v1103 = vmul.bf16 %v653, %v1065
  %v1104 = vmul.bf16 %v654, %v1075
  %v1105 = vmul.bf16 %v655, %v1085
  %v1106 = vmul.bf16 %v876, %v1086
  %v1107 = vld [vmem:[#allocation2 + $0x8] sm:$0xe]
  %v1108 = vld [vmem:[#allocation2 + $0xc] sm:$0xf]
  %v1109 = vld [vmem:[#allocation2 + $0x10] sm:$0xf]
  %v1110 = vld [vmem:[#allocation2 + $0x14] sm:$0xf]
  %v1111 = vld [vmem:[#allocation2 + $0x18] sm:$0xf]
  %v1112 = vld [vmem:[#allocation2 + $0x1c] sm:$0xf]
  %v1113 = vld [vmem:[#allocation2 + $0x20] sm:$0xf]
  %v1114 = vld [vmem:[#allocation2 + $0x24] sm:$0xf]
  %v1115 = vld [vmem:[#allocation2 + $0x28] sm:$0xf]
  %v1116 = vld [vmem:[#allocation2 + $0x2c] sm:$0x1]
  %s1117 = scalar_lea.vmem %s1, 216
  %v1118 = vld [vmem:[%s1117] sm:$0xf]
  %v1119 = vld [vmem:[%s1117 + $0x4] sm:$0xf]
  %v1120 = vld [vmem:[%s1117 + $0x8] sm:$0xf]
  %v1121 = vld [vmem:[%s1117 + $0xc] sm:$0xf]
  %v1122 = vld [vmem:[%s1117 + $0x10] sm:$0xf]
  %v1123 = vld [vmem:[%s1117 + $0x14] sm:$0xf]
  %v1124 = vld [vmem:[%s1117 + $0x18] sm:$0xf]
  %v1125 = vld [vmem:[%s1117 + $0x1c] sm:$0xf]
  %v1126 = vld [vmem:[%s1117 + $0x20] sm:$0xf]
  %1128 = vset.pattern.permute.xlu0 0
  %1129 = vperm.xlu0 %1128, %v1118
  %v1130 = vpop.permute.xlu0 %1129
  %v1133 = vunpack.c.l.s4 839922192
  %v1134 = vunpack.c.0.s8 %v1133
  %v1135 = vlaneseq
  %v1136 = vshrl.u32 %v1135, 7
  %v1137 = vsub.s32 %v1134, %v1136
  %v1138 = vrot.slane %v1130, %v1137
  %1140 = vset.pattern.permute.xlu0 0
  %1141 = vperm.xlu0 %1140, %v1119
  %v1142 = vpop.permute.xlu0 %1141
  %v1145 = vunpack.c.l.s4 839922192
  %v1146 = vunpack.c.0.s8 %v1145
  %v1147 = vlaneseq
  %v1148 = vshrl.u32 %v1147, 7
  %v1149 = vsub.s32 %v1146, %v1148
  %v1150 = vrot.slane %v1142, %v1149
  %1152 = vset.pattern.permute.xlu0 0
  %1153 = vperm.xlu0 %1152, %v1120
  %v1154 = vpop.permute.xlu0 %1153
  %v1157 = vunpack.c.l.s4 839922192
  %v1158 = vunpack.c.0.s8 %v1157
  %v1159 = vlaneseq
  %v1160 = vshrl.u32 %v1159, 7
  %v1161 = vsub.s32 %v1158, %v1160
  %v1162 = vrot.slane %v1154, %v1161
  %1164 = vset.pattern.permute.xlu0 0
  %1165 = vperm.xlu0 %1164, %v1121
  %v1166 = vpop.permute.xlu0 %1165
  %v1169 = vunpack.c.l.s4 839922192
  %v1170 = vunpack.c.0.s8 %v1169
  %v1171 = vlaneseq
  %v1172 = vshrl.u32 %v1171, 7
  %v1173 = vsub.s32 %v1170, %v1172
  %v1174 = vrot.slane %v1166, %v1173
  %1176 = vset.pattern.permute.xlu0 0
  %1177 = vperm.xlu0 %1176, %v1122
  %v1178 = vpop.permute.xlu0 %1177
  %v1181 = vunpack.c.l.s4 839922192
  %v1182 = vunpack.c.0.s8 %v1181
  %v1183 = vlaneseq
  %v1184 = vshrl.u32 %v1183, 7
  %v1185 = vsub.s32 %v1182, %v1184
  %v1186 = vrot.slane %v1178, %v1185
  %1188 = vset.pattern.permute.xlu0 0
  %1189 = vperm.xlu0 %1188, %v1123
  %v1190 = vpop.permute.xlu0 %1189
  %v1193 = vunpack.c.l.s4 839922192
  %v1194 = vunpack.c.0.s8 %v1193
  %v1195 = vlaneseq
  %v1196 = vshrl.u32 %v1195, 7
  %v1197 = vsub.s32 %v1194, %v1196
  %v1198 = vrot.slane %v1190, %v1197
  %1200 = vset.pattern.permute.xlu0 0
  %1201 = vperm.xlu0 %1200, %v1124
  %v1202 = vpop.permute.xlu0 %1201
  %v1205 = vunpack.c.l.s4 839922192
  %v1206 = vunpack.c.0.s8 %v1205
  %v1207 = vlaneseq
  %v1208 = vshrl.u32 %v1207, 7
  %v1209 = vsub.s32 %v1206, %v1208
  %v1210 = vrot.slane %v1202, %v1209
  %1212 = vset.pattern.permute.xlu0 0
  %1213 = vperm.xlu0 %1212, %v1125
  %v1214 = vpop.permute.xlu0 %1213
  %v1217 = vunpack.c.l.s4 839922192
  %v1218 = vunpack.c.0.s8 %v1217
  %v1219 = vlaneseq
  %v1220 = vshrl.u32 %v1219, 7
  %v1221 = vsub.s32 %v1218, %v1220
  %v1222 = vrot.slane %v1214, %v1221
  %1224 = vset.pattern.permute.xlu0 0
  %1225 = vperm.xlu0 %1224, %v1126
  %v1226 = vpop.permute.xlu0 %1225
  %v1229 = vunpack.c.l.s4 839922192
  %v1230 = vunpack.c.0.s8 %v1229
  %v1231 = vlaneseq
  %v1232 = vshrl.u32 %v1231, 7
  %v1233 = vsub.s32 %v1230, %v1232
  %v1234 = vrot.slane %v1226, %v1233
  %v1244 = vrot.slane %v1138, 7
  %v1245 = vrot.slane %v1244, 4
  %v1246 = vrot.slane %v1150, 7
  %v1247 = vsel %vm58, %v1245, %v1246
  %v1248 = vrot.slane %v1246, 4
  %v1249 = vrot.slane %v1162, 7
  %v1250 = vsel %vm58, %v1248, %v1249
  %v1251 = vrot.slane %v1249, 4
  %v1252 = vrot.slane %v1174, 7
  %v1253 = vsel %vm58, %v1251, %v1252
  %v1254 = vrot.slane %v1252, 4
  %v1255 = vrot.slane %v1186, 7
  %v1256 = vsel %vm58, %v1254, %v1255
  %v1257 = vrot.slane %v1255, 4
  %v1258 = vrot.slane %v1198, 7
  %v1259 = vsel %vm58, %v1257, %v1258
  %v1260 = vrot.slane %v1258, 4
  %v1261 = vrot.slane %v1210, 7
  %v1262 = vsel %vm58, %v1260, %v1261
  %v1263 = vrot.slane %v1261, 4
  %v1264 = vrot.slane %v1222, 7
  %v1265 = vsel %vm58, %v1263, %v1264
  %v1266 = vrot.slane %v1264, 4
  %v1267 = vrot.slane %v1234, 7
  %v1268 = vsel %vm58, %v1266, %v1267
  %v1269 = vrot.slane %v1267, 4
  %v1280 = vmul.bf16 %v1107, %v1244
  %v1281 = vmul.bf16 %v1108, %v1247
  %v1282 = vmul.bf16 %v1109, %v1250
  %v1283 = vmul.bf16 %v1110, %v1253
  %v1284 = vmul.bf16 %v1111, %v1256
  %v1285 = vmul.bf16 %v1112, %v1259
  %v1286 = vmul.bf16 %v1113, %v1262
  %v1287 = vmul.bf16 %v1114, %v1265
  %v1288 = vmul.bf16 %v1115, %v1268
  %v1289 = vmul.bf16 %v1116, %v1269
  %v1290 = vld [vmem:[#allocation2 + $0x2c] sm:$0x3]
  %s1291 = scalar_lea.vmem %s1, 252
  %v1292 = vld [vmem:[%s1291] sm:$0xf]
  %v1293 = vld [vmem:[%s1291 + $0x4] sm:$0xf]
  %v1294 = vld [vmem:[%s1291 + $0x8] sm:$0xf]
  %v1295 = vld [vmem:[%s1291 + $0xc] sm:$0xf]
  %v1296 = vld [vmem:[%s1291 + $0x10] sm:$0xf]
  %v1297 = vld [vmem:[%s1291 + $0x14] sm:$0xf]
  %v1298 = vld [vmem:[%s1291 + $0x18] sm:$0xf]
  %v1299 = vld [vmem:[%s1291 + $0x1c] sm:$0xf]
  %v1300 = vld [vmem:[%s1291 + $0x20] sm:$0xf]
  %1302 = vset.pattern.permute.xlu0 0
  %1303 = vperm.xlu0 %1302, %v1292
  %v1304 = vpop.permute.xlu0 %1303
  %v1307 = vunpack.c.l.s4 839922192
  %v1308 = vunpack.c.0.s8 %v1307
  %v1309 = vlaneseq
  %v1310 = vshrl.u32 %v1309, 7
  %v1311 = vsub.s32 %v1308, %v1310
  %v1312 = vrot.slane %v1304, %v1311
  %1314 = vset.pattern.permute.xlu0 0
  %1315 = vperm.xlu0 %1314, %v1293
  %v1316 = vpop.permute.xlu0 %1315
  %v1319 = vunpack.c.l.s4 839922192
  %v1320 = vunpack.c.0.s8 %v1319
  %v1321 = vlaneseq
  %v1322 = vshrl.u32 %v1321, 7
  %v1323 = vsub.s32 %v1320, %v1322
  %v1324 = vrot.slane %v1316, %v1323
  %1326 = vset.pattern.permute.xlu0 0
  %1327 = vperm.xlu0 %1326, %v1294
  %v1328 = vpop.permute.xlu0 %1327
  %v1331 = vunpack.c.l.s4 839922192
  %v1332 = vunpack.c.0.s8 %v1331
  %v1333 = vlaneseq
  %v1334 = vshrl.u32 %v1333, 7
  %v1335 = vsub.s32 %v1332, %v1334
  %v1336 = vrot.slane %v1328, %v1335
  %1338 = vset.pattern.permute.xlu0 0
  %1339 = vperm.xlu0 %1338, %v1295
  %v1340 = vpop.permute.xlu0 %1339
  %v1343 = vunpack.c.l.s4 839922192
  %v1344 = vunpack.c.0.s8 %v1343
  %v1345 = vlaneseq
  %v1346 = vshrl.u32 %v1345, 7
  %v1347 = vsub.s32 %v1344, %v1346
  %v1348 = vrot.slane %v1340, %v1347
  %1350 = vset.pattern.permute.xlu0 0
  %1351 = vperm.xlu0 %1350, %v1296
  %v1352 = vpop.permute.xlu0 %1351
  %v1355 = vunpack.c.l.s4 839922192
  %v1356 = vunpack.c.0.s8 %v1355
  %v1357 = vlaneseq
  %v1358 = vshrl.u32 %v1357, 7
  %v1359 = vsub.s32 %v1356, %v1358
  %v1360 = vrot.slane %v1352, %v1359
  %1362 = vset.pattern.permute.xlu0 0
  %1363 = vperm.xlu0 %1362, %v1297
  %v1364 = vpop.permute.xlu0 %1363
  %v1367 = vunpack.c.l.s4 839922192
  %v1368 = vunpack.c.0.s8 %v1367
  %v1369 = vlaneseq
  %v1370 = vshrl.u32 %v1369, 7
  %v1371 = vsub.s32 %v1368, %v1370
  %v1372 = vrot.slane %v1364, %v1371
  %1374 = vset.pattern.permute.xlu0 0
  %1375 = vperm.xlu0 %1374, %v1298
  %v1376 = vpop.permute.xlu0 %1375
  %v1379 = vunpack.c.l.s4 839922192
  %v1380 = vunpack.c.0.s8 %v1379
  %v1381 = vlaneseq
  %v1382 = vshrl.u32 %v1381, 7
  %v1383 = vsub.s32 %v1380, %v1382
  %v1384 = vrot.slane %v1376, %v1383
  %1386 = vset.pattern.permute.xlu0 0
  %1387 = vperm.xlu0 %1386, %v1299
  %v1388 = vpop.permute.xlu0 %1387
  %v1391 = vunpack.c.l.s4 839922192
  %v1392 = vunpack.c.0.s8 %v1391
  %v1393 = vlaneseq
  %v1394 = vshrl.u32 %v1393, 7
  %v1395 = vsub.s32 %v1392, %v1394
  %v1396 = vrot.slane %v1388, %v1395
  %1398 = vset.pattern.permute.xlu0 0
  %1399 = vperm.xlu0 %1398, %v1300
  %v1400 = vpop.permute.xlu0 %1399
  %v1403 = vunpack.c.l.s4 839922192
  %v1404 = vunpack.c.0.s8 %v1403
  %v1405 = vlaneseq
  %v1406 = vshrl.u32 %v1405, 7
  %v1407 = vsub.s32 %v1404, %v1406
  %v1408 = vrot.slane %v1400, %v1407
  %v1410 = vshrl.u32 %v1312, 16
  %v1412 = vrot.slane %v1410, 6
  %v1413 = vshll.u32 %v1312, 16
  %v1415 = vrot.slane %v1413, 7
  %v1416 = vor.u32 %v1412, %v1415
  %v1417 = vrot.slane %v1416, 4
  %v1419 = vshrl.u32 %v1324, 16
  %v1421 = vrot.slane %v1419, 6
  %v1422 = vshll.u32 %v1324, 16
  %v1424 = vrot.slane %v1422, 7
  %v1425 = vor.u32 %v1421, %v1424
  %v1426 = vsel %vm997, %v1417, %v1425
  %v1427 = vrot.slane %v1425, 4
  %v1429 = vshrl.u32 %v1336, 16
  %v1431 = vrot.slane %v1429, 6
  %v1432 = vshll.u32 %v1336, 16
  %v1434 = vrot.slane %v1432, 7
  %v1435 = vor.u32 %v1431, %v1434
  %v1436 = vsel %vm997, %v1427, %v1435
  %v1437 = vrot.slane %v1435, 4
  %v1439 = vshrl.u32 %v1348, 16
  %v1441 = vrot.slane %v1439, 6
  %v1442 = vshll.u32 %v1348, 16
  %v1444 = vrot.slane %v1442, 7
  %v1445 = vor.u32 %v1441, %v1444
  %v1446 = vsel %vm997, %v1437, %v1445
  %v1447 = vrot.slane %v1445, 4
  %v1449 = vshrl.u32 %v1360, 16
  %v1451 = vrot.slane %v1449, 6
  %v1452 = vshll.u32 %v1360, 16
  %v1454 = vrot.slane %v1452, 7
  %v1455 = vor.u32 %v1451, %v1454
  %v1456 = vsel %vm997, %v1447, %v1455
  %v1457 = vrot.slane %v1455, 4
  %v1459 = vshrl.u32 %v1372, 16
  %v1461 = vrot.slane %v1459, 6
  %v1462 = vshll.u32 %v1372, 16
  %v1464 = vrot.slane %v1462, 7
  %v1465 = vor.u32 %v1461, %v1464
  %v1466 = vsel %vm997, %v1457, %v1465
  %v1467 = vrot.slane %v1465, 4
  %v1469 = vshrl.u32 %v1384, 16
  %v1471 = vrot.slane %v1469, 6
  %v1472 = vshll.u32 %v1384, 16
  %v1474 = vrot.slane %v1472, 7
  %v1475 = vor.u32 %v1471, %v1474
  %v1476 = vsel %vm997, %v1467, %v1475
  %v1477 = vrot.slane %v1475, 4
  %v1479 = vshrl.u32 %v1396, 16
  %v1481 = vrot.slane %v1479, 6
  %v1482 = vshll.u32 %v1396, 16
  %v1484 = vrot.slane %v1482, 7
  %v1485 = vor.u32 %v1481, %v1484
  %v1486 = vsel %vm997, %v1477, %v1485
  %v1487 = vrot.slane %v1485, 4
  %v1489 = vshrl.u32 %v1408, 16
  %v1491 = vrot.slane %v1489, 6
  %v1492 = vshll.u32 %v1408, 16
  %v1494 = vrot.slane %v1492, 7
  %v1495 = vor.u32 %v1491, %v1494
  %v1496 = vsel %vm997, %v1487, %v1495
  %v1497 = vrot.slane %v1495, 4
  %v1508 = vmul.bf16 %v1107, %v1416
  %v1509 = vmul.bf16 %v1108, %v1426
  %v1510 = vmul.bf16 %v1109, %v1436
  %v1511 = vmul.bf16 %v1110, %v1446
  %v1512 = vmul.bf16 %v1111, %v1456
  %v1513 = vmul.bf16 %v1112, %v1466
  %v1514 = vmul.bf16 %v1113, %v1476
  %v1515 = vmul.bf16 %v1114, %v1486
  %v1516 = vmul.bf16 %v1115, %v1496
  %v1517 = vmul.bf16 %v1290, %v1497
  %v1518 = vld [vmem:[#allocation2 + $0x8] sm:$0xc]
  %s1519 = scalar_lea.vmem %s1, 288
  %v1520 = vld [vmem:[%s1519] sm:$0xf]
  %v1521 = vld [vmem:[%s1519 + $0x4] sm:$0xf]
  %v1522 = vld [vmem:[%s1519 + $0x8] sm:$0xf]
  %v1523 = vld [vmem:[%s1519 + $0xc] sm:$0xf]
  %v1524 = vld [vmem:[%s1519 + $0x10] sm:$0xf]
  %v1525 = vld [vmem:[%s1519 + $0x14] sm:$0xf]
  %v1526 = vld [vmem:[%s1519 + $0x18] sm:$0xf]
  %v1527 = vld [vmem:[%s1519 + $0x1c] sm:$0xf]
  %v1528 = vld [vmem:[%s1519 + $0x20] sm:$0xf]
  %1530 = vset.pattern.permute.xlu0 0
  %1531 = vperm.xlu0 %1530, %v1520
  %v1532 = vpop.permute.xlu0 %1531
  %v1535 = vunpack.c.l.s4 839922192
  %v1536 = vunpack.c.0.s8 %v1535
  %v1537 = vlaneseq
  %v1538 = vshrl.u32 %v1537, 7
  %v1539 = vsub.s32 %v1536, %v1538
  %v1540 = vrot.slane %v1532, %v1539
  %1542 = vset.pattern.permute.xlu0 0
  %1543 = vperm.xlu0 %1542, %v1521
  %v1544 = vpop.permute.xlu0 %1543
  %v1547 = vunpack.c.l.s4 839922192
  %v1548 = vunpack.c.0.s8 %v1547
  %v1549 = vlaneseq
  %v1550 = vshrl.u32 %v1549, 7
  %v1551 = vsub.s32 %v1548, %v1550
  %v1552 = vrot.slane %v1544, %v1551
  %1554 = vset.pattern.permute.xlu0 0
  %1555 = vperm.xlu0 %1554, %v1522
  %v1556 = vpop.permute.xlu0 %1555
  %v1559 = vunpack.c.l.s4 839922192
  %v1560 = vunpack.c.0.s8 %v1559
  %v1561 = vlaneseq
  %v1562 = vshrl.u32 %v1561, 7
  %v1563 = vsub.s32 %v1560, %v1562
  %v1564 = vrot.slane %v1556, %v1563
  %1566 = vset.pattern.permute.xlu0 0
  %1567 = vperm.xlu0 %1566, %v1523
  %v1568 = vpop.permute.xlu0 %1567
  %v1571 = vunpack.c.l.s4 839922192
  %v1572 = vunpack.c.0.s8 %v1571
  %v1573 = vlaneseq
  %v1574 = vshrl.u32 %v1573, 7
  %v1575 = vsub.s32 %v1572, %v1574
  %v1576 = vrot.slane %v1568, %v1575
  %1578 = vset.pattern.permute.xlu0 0
  %1579 = vperm.xlu0 %1578, %v1524
  %v1580 = vpop.permute.xlu0 %1579
  %v1583 = vunpack.c.l.s4 839922192
  %v1584 = vunpack.c.0.s8 %v1583
  %v1585 = vlaneseq
  %v1586 = vshrl.u32 %v1585, 7
  %v1587 = vsub.s32 %v1584, %v1586
  %v1588 = vrot.slane %v1580, %v1587
  %1590 = vset.pattern.permute.xlu0 0
  %1591 = vperm.xlu0 %1590, %v1525
  %v1592 = vpop.permute.xlu0 %1591
  %v1595 = vunpack.c.l.s4 839922192
  %v1596 = vunpack.c.0.s8 %v1595
  %v1597 = vlaneseq
  %v1598 = vshrl.u32 %v1597, 7
  %v1599 = vsub.s32 %v1596, %v1598
  %v1600 = vrot.slane %v1592, %v1599
  %1602 = vset.pattern.permute.xlu0 0
  %1603 = vperm.xlu0 %1602, %v1526
  %v1604 = vpop.permute.xlu0 %1603
  %v1607 = vunpack.c.l.s4 839922192
  %v1608 = vunpack.c.0.s8 %v1607
  %v1609 = vlaneseq
  %v1610 = vshrl.u32 %v1609, 7
  %v1611 = vsub.s32 %v1608, %v1610
  %v1612 = vrot.slane %v1604, %v1611
  %1614 = vset.pattern.permute.xlu0 0
  %1615 = vperm.xlu0 %1614, %v1527
  %v1616 = vpop.permute.xlu0 %1615
  %v1619 = vunpack.c.l.s4 839922192
  %v1620 = vunpack.c.0.s8 %v1619
  %v1621 = vlaneseq
  %v1622 = vshrl.u32 %v1621, 7
  %v1623 = vsub.s32 %v1620, %v1622
  %v1624 = vrot.slane %v1616, %v1623
  %1626 = vset.pattern.permute.xlu0 0
  %1627 = vperm.xlu0 %1626, %v1528
  %v1628 = vpop.permute.xlu0 %1627
  %v1631 = vunpack.c.l.s4 839922192
  %v1632 = vunpack.c.0.s8 %v1631
  %v1633 = vlaneseq
  %v1634 = vshrl.u32 %v1633, 7
  %v1635 = vsub.s32 %v1632, %v1634
  %v1636 = vrot.slane %v1628, %v1635
  %vm1646 = vcmask 1041408
  %vm1647 = vcmask 1045508
  %vm1648 = vmor %vm1646, %vm1647
  %v1649 = vrot.slane %v1540, 6
  %v1650 = vrot.slane %v1649, 4
  %v1651 = vrot.slane %v1552, 6
  %v1652 = vsel %vm1648, %v1650, %v1651
  %v1653 = vrot.slane %v1651, 4
  %v1654 = vrot.slane %v1564, 6
  %v1655 = vsel %vm1648, %v1653, %v1654
  %v1656 = vrot.slane %v1654, 4
  %v1657 = vrot.slane %v1576, 6
  %v1658 = vsel %vm1648, %v1656, %v1657
  %v1659 = vrot.slane %v1657, 4
  %v1660 = vrot.slane %v1588, 6
  %v1661 = vsel %vm1648, %v1659, %v1660
  %v1662 = vrot.slane %v1660, 4
  %v1663 = vrot.slane %v1600, 6
  %v1664 = vsel %vm1648, %v1662, %v1663
  %v1665 = vrot.slane %v1663, 4
  %v1666 = vrot.slane %v1612, 6
  %v1667 = vsel %vm1648, %v1665, %v1666
  %v1668 = vrot.slane %v1666, 4
  %v1669 = vrot.slane %v1624, 6
  %v1670 = vsel %vm1648, %v1668, %v1669
  %v1671 = vrot.slane %v1669, 4
  %v1672 = vrot.slane %v1636, 6
  %v1673 = vsel %vm1648, %v1671, %v1672
  %v1674 = vrot.slane %v1672, 4
  %v1685 = vmul.bf16 %v1518, %v1649
  %v1686 = vmul.bf16 %v1108, %v1652
  %v1687 = vmul.bf16 %v1109, %v1655
  %v1688 = vmul.bf16 %v1110, %v1658
  %v1689 = vmul.bf16 %v1111, %v1661
  %v1690 = vmul.bf16 %v1112, %v1664
  %v1691 = vmul.bf16 %v1113, %v1667
  %v1692 = vmul.bf16 %v1114, %v1670
  %v1693 = vmul.bf16 %v1115, %v1673
  %v1694 = vmul.bf16 %v1290, %v1674
  %v1704 = vunpack.c.l.b16 %v233
  %v1705 = vunpack.c.l.b16 %v234
  %v1706 = vunpack.c.l.b16 %v235
  %v1707 = vunpack.c.l.b16 %v236
  %v1708 = vunpack.c.l.b16 %v237
  %v1709 = vunpack.c.l.b16 %v238
  %v1710 = vunpack.c.l.b16 %v239
  %v1711 = vunpack.c.l.b16 %v240
  %v1712 = vunpack.c.l.b16 %v241
  %v1713 = vpack.c.b16 %v1705, %v1704
  %v1714 = vpack.c.b16 %v1707, %v1706
  %v1715 = vpack.c.b16 %v1709, %v1708
  %v1716 = vpack.c.b16 %v1711, %v1710
  %v1717 = vpack.c.b16 %v1712, %v1712
  %v1728 = vunpack.c.l.b16 %v463
  %v1729 = vunpack.c.l.b16 %v464
  %v1730 = vunpack.c.l.b16 %v465
  %v1731 = vunpack.c.l.b16 %v466
  %v1732 = vunpack.c.l.b16 %v467
  %v1733 = vunpack.c.l.b16 %v468
  %v1734 = vunpack.c.l.b16 %v469
  %v1735 = vunpack.c.l.b16 %v470
  %v1736 = vunpack.c.l.b16 %v471
  %v1737 = vunpack.c.l.b16 %v472
  %v1738 = vpack.c.b16 %v1729, %v1728
  %v1739 = vpack.c.b16 %v1731, %v1730
  %v1740 = vpack.c.b16 %v1733, %v1732
  %v1741 = vpack.c.b16 %v1735, %v1734
  %v1742 = vpack.c.b16 %v1737, %v1736
  %vm1743 = vsmask.f32 7424
  %v1745 = vshrl.u32 %v1738, 16
  %v1747 = vshll.u32 %v1738, 16
  %v1749 = vrot.slane %v1747, 1
  %v1750 = vor.u32 %v1745, %v1749
  %v1752 = vshll.u32 %v1739, 16
  %v1754 = vrot.slane %v1752, 1
  %v1755 = vsel %vm1743, %v1750, %v1754
  %v1756 = vshrl.u32 %v1739, 16
  %v1758 = vor.u32 %v1756, %v1754
  %v1760 = vshll.u32 %v1740, 16
  %v1762 = vrot.slane %v1760, 1
  %v1763 = vsel %vm1743, %v1758, %v1762
  %v1764 = vshrl.u32 %v1740, 16
  %v1766 = vor.u32 %v1764, %v1762
  %v1768 = vshll.u32 %v1741, 16
  %v1770 = vrot.slane %v1768, 1
  %v1771 = vsel %vm1743, %v1766, %v1770
  %v1772 = vshrl.u32 %v1741, 16
  %v1774 = vor.u32 %v1772, %v1770
  %v1776 = vshll.u32 %v1742, 16
  %v1778 = vrot.slane %v1776, 1
  %v1779 = vsel %vm1743, %v1774, %v1778
  %v1780 = vshrl.u32 %v1742, 16
  %v1782 = vor.u32 %v1780, %v1778
  %1783 = vrot.lane.b32.xlu0 %v1755, 64
  %v1784 = vpop.permute.xlu0 %1783
  %1785 = vrot.lane.b32.xlu0 %v1763, 64
  %v1786 = vpop.permute.xlu0 %1785
  %1787 = vrot.lane.b32.xlu0 %v1771, 64
  %v1788 = vpop.permute.xlu0 %1787
  %1789 = vrot.lane.b32.xlu0 %v1779, 64
  %v1790 = vpop.permute.xlu0 %1789
  %1791 = vrot.lane.b32.xlu0 %v1782, 64
  %v1792 = vpop.permute.xlu0 %1791
  %v1803 = vunpack.c.l.b16 %v637
  %v1804 = vunpack.c.l.b16 %v638
  %v1805 = vunpack.c.l.b16 %v639
  %v1806 = vunpack.c.l.b16 %v640
  %v1807 = vunpack.c.l.b16 %v641
  %v1808 = vunpack.c.l.b16 %v642
  %v1809 = vunpack.c.l.b16 %v643
  %v1810 = vunpack.c.l.b16 %v644
  %v1811 = vunpack.c.l.b16 %v645
  %v1812 = vunpack.c.l.b16 %v646
  %v1813 = vpack.c.b16 %v1804, %v1803
  %v1814 = vpack.c.b16 %v1806, %v1805
  %v1815 = vpack.c.b16 %v1808, %v1807
  %v1816 = vpack.c.b16 %v1810, %v1809
  %v1817 = vpack.c.b16 %v1812, %v1811
  %vm1818 = vcmask 1046528
  %v1819 = vrot.slane %v1813, 1
  %v1820 = vrot.slane %v1814, 1
  %v1821 = vsel %vm1818, %v1819, %v1820
  %v1822 = vrot.slane %v1815, 1
  %v1823 = vsel %vm1818, %v1820, %v1822
  %v1824 = vrot.slane %v1816, 1
  %v1825 = vsel %vm1818, %v1822, %v1824
  %v1826 = vrot.slane %v1817, 1
  %v1827 = vsel %vm1818, %v1824, %v1826
  %v1838 = vunpack.c.l.b16 %v865
  %v1839 = vunpack.c.l.b16 %v866
  %v1840 = vunpack.c.l.b16 %v867
  %v1841 = vunpack.c.l.b16 %v868
  %v1842 = vunpack.c.l.b16 %v869
  %v1843 = vunpack.c.l.b16 %v870
  %v1844 = vunpack.c.l.b16 %v871
  %v1845 = vunpack.c.l.b16 %v872
  %v1846 = vunpack.c.l.b16 %v873
  %v1847 = vunpack.c.l.b16 %v874
  %v1848 = vpack.c.b16 %v1839, %v1838
  %v1849 = vpack.c.b16 %v1841, %v1840
  %v1850 = vpack.c.b16 %v1843, %v1842
  %v1851 = vpack.c.b16 %v1845, %v1844
  %v1852 = vpack.c.b16 %v1847, %v1846
  %v1854 = vshrl.u32 %v1848, 16
  %v1856 = vshll.u32 %v1848, 16
  %v1858 = vrot.slane %v1856, 1
  %v1859 = vor.u32 %v1854, %v1858
  %v1861 = vshll.u32 %v1849, 16
  %v1863 = vrot.slane %v1861, 1
  %v1864 = vsel %vm1743, %v1859, %v1863
  %v1865 = vshrl.u32 %v1849, 16
  %v1867 = vor.u32 %v1865, %v1863
  %v1869 = vshll.u32 %v1850, 16
  %v1871 = vrot.slane %v1869, 1
  %v1872 = vsel %vm1743, %v1867, %v1871
  %v1873 = vshrl.u32 %v1850, 16
  %v1875 = vor.u32 %v1873, %v1871
  %v1877 = vshll.u32 %v1851, 16
  %v1879 = vrot.slane %v1877, 1
  %v1880 = vsel %vm1743, %v1875, %v1879
  %v1881 = vshrl.u32 %v1851, 16
  %v1883 = vor.u32 %v1881, %v1879
  %v1885 = vshll.u32 %v1852, 16
  %v1887 = vrot.slane %v1885, 1
  %v1888 = vsel %vm1743, %v1883, %v1887
  %v1889 = vshrl.u32 %v1852, 16
  %v1891 = vor.u32 %v1889, %v1887
  %1892 = vrot.lane.b32.xlu0 %v1864, 64
  %v1893 = vpop.permute.xlu0 %1892
  %1894 = vrot.lane.b32.xlu0 %v1872, 64
  %v1895 = vpop.permute.xlu0 %1894
  %1896 = vrot.lane.b32.xlu0 %v1880, 64
  %v1897 = vpop.permute.xlu0 %1896
  %1898 = vrot.lane.b32.xlu0 %v1888, 64
  %v1899 = vpop.permute.xlu0 %1898
  %1900 = vrot.lane.b32.xlu0 %v1891, 64
  %v1901 = vpop.permute.xlu0 %1900
  %v1912 = vunpack.c.l.b16 %v875
  %v1913 = vunpack.c.l.b16 %v648
  %v1914 = vunpack.c.l.b16 %v649
  %v1915 = vunpack.c.l.b16 %v650
  %v1916 = vunpack.c.l.b16 %v651
  %v1917 = vunpack.c.l.b16 %v652
  %v1918 = vunpack.c.l.b16 %v653
  %v1919 = vunpack.c.l.b16 %v654
  %v1920 = vunpack.c.l.b16 %v655
  %v1921 = vunpack.c.l.b16 %v656
  %v1922 = vpack.c.b16 %v1913, %v1912
  %v1923 = vpack.c.b16 %v1915, %v1914
  %v1924 = vpack.c.b16 %v1917, %v1916
  %v1925 = vpack.c.b16 %v1919, %v1918
  %v1926 = vpack.c.b16 %v1921, %v1920
  %v1927 = vrot.slane %v1922, 1
  %v1928 = vrot.slane %v1923, 1
  %v1929 = vsel %vm1818, %v1927, %v1928
  %v1930 = vrot.slane %v1924, 1
  %v1931 = vsel %vm1818, %v1928, %v1930
  %v1932 = vrot.slane %v1925, 1
  %v1933 = vsel %vm1818, %v1930, %v1932
  %v1934 = vrot.slane %v1926, 1
  %v1935 = vsel %vm1818, %v1932, %v1934
  %v1946 = vunpack.c.l.b16 %v1097
  %v1947 = vunpack.c.l.b16 %v1098
  %v1948 = vunpack.c.l.b16 %v1099
  %v1949 = vunpack.c.l.b16 %v1100
  %v1950 = vunpack.c.l.b16 %v1101
  %v1951 = vunpack.c.l.b16 %v1102
  %v1952 = vunpack.c.l.b16 %v1103
  %v1953 = vunpack.c.l.b16 %v1104
  %v1954 = vunpack.c.l.b16 %v1105
  %v1955 = vunpack.c.l.b16 %v1106
  %v1956 = vpack.c.b16 %v1947, %v1946
  %v1957 = vpack.c.b16 %v1949, %v1948
  %v1958 = vpack.c.b16 %v1951, %v1950
  %v1959 = vpack.c.b16 %v1953, %v1952
  %v1960 = vpack.c.b16 %v1955, %v1954
  %vm1961 = vsmask.f32 6400
  %v1963 = vshrl.u32 %v1956, 16
  %v1965 = vrot.slane %v1963, 1
  %v1966 = vshll.u32 %v1956, 16
  %v1968 = vrot.slane %v1966, 2
  %v1969 = vor.u32 %v1965, %v1968
  %v1971 = vshrl.u32 %v1957, 16
  %v1973 = vrot.slane %v1971, 1
  %v1974 = vshll.u32 %v1957, 16
  %v1976 = vrot.slane %v1974, 2
  %v1977 = vor.u32 %v1973, %v1976
  %v1978 = vsel %vm1961, %v1969, %v1977
  %v1980 = vshrl.u32 %v1958, 16
  %v1982 = vrot.slane %v1980, 1
  %v1983 = vshll.u32 %v1958, 16
  %v1985 = vrot.slane %v1983, 2
  %v1986 = vor.u32 %v1982, %v1985
  %v1987 = vsel %vm1961, %v1977, %v1986
  %v1989 = vshrl.u32 %v1959, 16
  %v1991 = vrot.slane %v1989, 1
  %v1992 = vshll.u32 %v1959, 16
  %v1994 = vrot.slane %v1992, 2
  %v1995 = vor.u32 %v1991, %v1994
  %v1996 = vsel %vm1961, %v1986, %v1995
  %v1998 = vshrl.u32 %v1960, 16
  %v2000 = vrot.slane %v1998, 1
  %v2001 = vshll.u32 %v1960, 16
  %v2003 = vrot.slane %v2001, 2
  %v2004 = vor.u32 %v2000, %v2003
  %v2005 = vsel %vm1961, %v1995, %v2004
  %2006 = vrot.lane.b32.xlu0 %v1978, 64
  %v2007 = vpop.permute.xlu0 %2006
  %2008 = vrot.lane.b32.xlu0 %v1987, 64
  %v2009 = vpop.permute.xlu0 %2008
  %2010 = vrot.lane.b32.xlu0 %v1996, 64
  %v2011 = vpop.permute.xlu0 %2010
  %2012 = vrot.lane.b32.xlu0 %v2005, 64
  %v2013 = vpop.permute.xlu0 %2012
  %2014 = vrot.lane.b32.xlu0 %v2004, 64
  %v2015 = vpop.permute.xlu0 %2014
  %v2026 = vunpack.c.l.b16 %v1280
  %v2027 = vunpack.c.l.b16 %v1281
  %v2028 = vunpack.c.l.b16 %v1282
  %v2029 = vunpack.c.l.b16 %v1283
  %v2030 = vunpack.c.l.b16 %v1284
  %v2031 = vunpack.c.l.b16 %v1285
  %v2032 = vunpack.c.l.b16 %v1286
  %v2033 = vunpack.c.l.b16 %v1287
  %v2034 = vunpack.c.l.b16 %v1288
  %v2035 = vunpack.c.l.b16 %v1289
  %v2036 = vpack.c.b16 %v2027, %v2026
  %v2037 = vpack.c.b16 %v2029, %v2028
  %v2038 = vpack.c.b16 %v2031, %v2030
  %v2039 = vpack.c.b16 %v2033, %v2032
  %v2040 = vpack.c.b16 %v2035, %v2034
  %v2041 = vrot.slane %v2036, 1
  %v2042 = vrot.slane %v2037, 1
  %v2043 = vsel %vm1818, %v2041, %v2042
  %v2044 = vrot.slane %v2038, 1
  %v2045 = vsel %vm1818, %v2042, %v2044
  %v2046 = vrot.slane %v2039, 1
  %v2047 = vsel %vm1818, %v2044, %v2046
  %v2048 = vrot.slane %v2040, 1
  %v2049 = vsel %vm1818, %v2046, %v2048
  %v2060 = vunpack.c.l.b16 %v1508
  %v2061 = vunpack.c.l.b16 %v1509
  %v2062 = vunpack.c.l.b16 %v1510
  %v2063 = vunpack.c.l.b16 %v1511
  %v2064 = vunpack.c.l.b16 %v1512
  %v2065 = vunpack.c.l.b16 %v1513
  %v2066 = vunpack.c.l.b16 %v1514
  %v2067 = vunpack.c.l.b16 %v1515
  %v2068 = vunpack.c.l.b16 %v1516
  %v2069 = vunpack.c.l.b16 %v1517
  %v2070 = vpack.c.b16 %v2061, %v2060
  %v2071 = vpack.c.b16 %v2063, %v2062
  %v2072 = vpack.c.b16 %v2065, %v2064
  %v2073 = vpack.c.b16 %v2067, %v2066
  %v2074 = vpack.c.b16 %v2069, %v2068
  %v2076 = vshrl.u32 %v2070, 16
  %v2078 = vrot.slane %v2076, 1
  %v2079 = vshll.u32 %v2070, 16
  %v2081 = vrot.slane %v2079, 2
  %v2082 = vor.u32 %v2078, %v2081
  %v2084 = vshrl.u32 %v2071, 16
  %v2086 = vrot.slane %v2084, 1
  %v2087 = vshll.u32 %v2071, 16
  %v2089 = vrot.slane %v2087, 2
  %v2090 = vor.u32 %v2086, %v2089
  %v2091 = vsel %vm1961, %v2082, %v2090
  %v2093 = vshrl.u32 %v2072, 16
  %v2095 = vrot.slane %v2093, 1
  %v2096 = vshll.u32 %v2072, 16
  %v2098 = vrot.slane %v2096, 2
  %v2099 = vor.u32 %v2095, %v2098
  %v2100 = vsel %vm1961, %v2090, %v2099
  %v2102 = vshrl.u32 %v2073, 16
  %v2104 = vrot.slane %v2102, 1
  %v2105 = vshll.u32 %v2073, 16
  %v2107 = vrot.slane %v2105, 2
  %v2108 = vor.u32 %v2104, %v2107
  %v2109 = vsel %vm1961, %v2099, %v2108
  %v2111 = vshrl.u32 %v2074, 16
  %v2113 = vrot.slane %v2111, 1
  %v2114 = vshll.u32 %v2074, 16
  %v2116 = vrot.slane %v2114, 2
  %v2117 = vor.u32 %v2113, %v2116
  %v2118 = vsel %vm1961, %v2108, %v2117
  %2119 = vrot.lane.b32.xlu0 %v2091, 64
  %v2120 = vpop.permute.xlu0 %2119
  %2121 = vrot.lane.b32.xlu0 %v2100, 64
  %v2122 = vpop.permute.xlu0 %2121
  %2123 = vrot.lane.b32.xlu0 %v2109, 64
  %v2124 = vpop.permute.xlu0 %2123
  %2125 = vrot.lane.b32.xlu0 %v2118, 64
  %v2126 = vpop.permute.xlu0 %2125
  %2127 = vrot.lane.b32.xlu0 %v2117, 64
  %v2128 = vpop.permute.xlu0 %2127
  %v2139 = vunpack.c.l.b16 %v1685
  %v2140 = vunpack.c.l.b16 %v1686
  %v2141 = vunpack.c.l.b16 %v1687
  %v2142 = vunpack.c.l.b16 %v1688
  %v2143 = vunpack.c.l.b16 %v1689
  %v2144 = vunpack.c.l.b16 %v1690
  %v2145 = vunpack.c.l.b16 %v1691
  %v2146 = vunpack.c.l.b16 %v1692
  %v2147 = vunpack.c.l.b16 %v1693
  %v2148 = vunpack.c.l.b16 %v1694
  %v2149 = vpack.c.b16 %v2140, %v2139
  %v2150 = vpack.c.b16 %v2142, %v2141
  %v2151 = vpack.c.b16 %v2144, %v2143
  %v2152 = vpack.c.b16 %v2146, %v2145
  %v2153 = vpack.c.b16 %v2148, %v2147
  %vm2154 = vcmask 1045504
  %v2155 = vrot.slane %v2149, 2
  %v2156 = vrot.slane %v2150, 2
  %v2157 = vsel %vm2154, %v2155, %v2156
  %v2158 = vrot.slane %v2151, 2
  %v2159 = vsel %vm2154, %v2156, %v2158
  %v2160 = vrot.slane %v2152, 2
  %v2161 = vsel %vm2154, %v2158, %v2160
  %v2162 = vrot.slane %v2153, 2
  %v2163 = vsel %vm2154, %v2160, %v2162
  %vm2164 = vcmask 523264
  %v2167 = vsel %vm2164, %v1713, %v1784
  %v2171 = vsel %vm2164, %v1714, %v1786
  %v2175 = vsel %vm2164, %v1715, %v1788
  %v2179 = vsel %vm2164, %v1716, %v1790
  %v2183 = vsel %vm2164, %v1717, %v1792
  %v2187 = vsel %vm2164, %v1821, %v1893
  %v2191 = vsel %vm2164, %v1823, %v1895
  %v2195 = vsel %vm2164, %v1825, %v1897
  %v2199 = vsel %vm2164, %v1827, %v1899
  %v2203 = vsel %vm2164, %v1826, %v1901
  %v2207 = vsel %vm2164, %v1929, %v2007
  %v2211 = vsel %vm2164, %v1931, %v2009
  %v2215 = vsel %vm2164, %v1933, %v2011
  %v2219 = vsel %vm2164, %v1935, %v2013
  %v2223 = vsel %vm2164, %v1934, %v2015
  %v2227 = vsel %vm2164, %v2043, %v2120
  %v2231 = vsel %vm2164, %v2045, %v2122
  %v2235 = vsel %vm2164, %v2047, %v2124
  %v2239 = vsel %vm2164, %v2049, %v2126
  %v2243 = vsel %vm2164, %v2048, %v2128
  %v2245 = vld [vmem:[%s2] sm:$0xf]
  %v2246 = vld [vmem:[%s2 + $0x4] sm:$0xf]
  %v2247 = vld [vmem:[%s2 + $0x8] sm:$0xf]
  %v2248 = vld [vmem:[%s2 + $0xc] sm:$0xf]
  %v2249 = vld [vmem:[%s2 + $0x10] sm:$0xf]
  %v2250 = vld [vmem:[%s2 + $0x14] sm:$0xf]
  %v2251 = vld [vmem:[%s2 + $0x18] sm:$0xf]
  %v2252 = vld [vmem:[%s2 + $0x1c] sm:$0xf]
  %v2253 = vld [vmem:[%s2 + $0x20] sm:$0xf]
  %v2254 = vld [vmem:[%s2 + $0x24] sm:$0xf]
  %v2255 = vld [vmem:[%s2 + $0x28] sm:$0xf]
  %v2256 = vld [vmem:[%s2 + $0x2c] sm:$0xf]
  %v2257 = vld [vmem:[%s2 + $0x30] sm:$0xf]
  %v2258 = vld [vmem:[%s2 + $0x34] sm:$0xf]
  %v2259 = vld [vmem:[%s2 + $0x38] sm:$0xf]
  %v2260 = vld [vmem:[%s2 + $0x3c] sm:$0xf]
  %v2261 = vld [vmem:[%s2 + $0x40] sm:$0xf]
  %v2262 = vld [vmem:[%s2 + $0x44] sm:$0xf]
  %v2263 = vld [vmem:[%s2 + $0x48] sm:$0xf]
  %v2264 = vld [vmem:[%s2 + $0x4c] sm:$0xf]
  %v2265 = vld [vmem:[%s2 + $0x50] sm:$0xf]
  %v2266 = vld [vmem:[%s2 + $0x54] sm:$0xf]
  %v2267 = vld [vmem:[%s2 + $0x58] sm:$0xf]
  %v2268 = vld [vmem:[%s2 + $0x5c] sm:$0xf]
  %v2269 = vld [vmem:[%s2 + $0x60] sm:$0xf]
  %v2270 = vld [vmem:[%s2 + $0x64] sm:$0xf]
  %v2271 = vld [vmem:[%s2 + $0x68] sm:$0xf]
  %v2272 = vld [vmem:[%s2 + $0x6c] sm:$0xf]
  %v2273 = vld [vmem:[%s2 + $0x70] sm:$0xf]
  %v2274 = vld [vmem:[%s2 + $0x74] sm:$0xf]
  %v2275 = vld [vmem:[%s2 + $0x78] sm:$0xf]
  %v2276 = vld [vmem:[%s2 + $0x7c] sm:$0xf]
  %v2277 = vld [vmem:[%s2 + $0x80] sm:$0xf]
  %v2278 = vld [vmem:[%s2 + $0x84] sm:$0xf]
  %v2279 = vld [vmem:[%s2 + $0x88] sm:$0xf]
  %v2280 = vld [vmem:[%s2 + $0x8c] sm:$0xf]
  %v2281 = vld [vmem:[%s2 + $0x90] sm:$0xf]
  %v2282 = vld [vmem:[%s2 + $0x94] sm:$0xf]
  %v2283 = vld [vmem:[%s2 + $0x98] sm:$0xf]
  %v2284 = vld [vmem:[%s2 + $0x9c] sm:$0xf]
  %v2285 = vld [vmem:[%s2 + $0xa0] sm:$0xf]
  %v2286 = vld [vmem:[%s2 + $0xa4] sm:$0xf]
  %v2287 = vld [vmem:[%s2 + $0xa8] sm:$0xf]
  %v2288 = vld [vmem:[%s2 + $0xac] sm:$0xf]
  %v2289 = vld [vmem:[%s2 + $0xb0] sm:$0xf]
  %v2290 = vld [vmem:[%s2 + $0xb4] sm:$0xf]
  %v2291 = vld [vmem:[%s2 + $0xb8] sm:$0xf]
  %v2292 = vld [vmem:[%s2 + $0xbc] sm:$0xf]
  %v2293 = vld [vmem:[%s2 + $0xc0] sm:$0xf]
  %v2294 = vld [vmem:[%s2 + $0xc4] sm:$0xf]
  %v2295 = vld [vmem:[%s2 + $0xc8] sm:$0xf]
  %v2296 = vld [vmem:[%s2 + $0xcc] sm:$0xf]
  %v2297 = vld [vmem:[%s2 + $0xd0] sm:$0xf]
  %v2298 = vld [vmem:[%s2 + $0xd4] sm:$0xf]
  %v2299 = vld [vmem:[%s2 + $0xd8] sm:$0xf]
  %v2300 = vld [vmem:[%s2 + $0xdc] sm:$0xf]
  %v2301 = vld [vmem:[%s2 + $0xe0] sm:$0xf]
  %v2302 = vld [vmem:[%s2 + $0xe4] sm:$0xf]
  %v2303 = vld [vmem:[%s2 + $0xe8] sm:$0xf]
  %v2304 = vld [vmem:[%s2 + $0xec] sm:$0xf]
  %v2305 = vld [vmem:[%s2 + $0xf0] sm:$0xf]
  %v2306 = vld [vmem:[%s2 + $0xf4] sm:$0xf]
  %v2307 = vld [vmem:[%s2 + $0xf8] sm:$0xf]
  %v2308 = vld [vmem:[%s2 + $0xfc] sm:$0xf]
  %v2309 = vld [vmem:[%s2 + $0x100] sm:$0xf]
  %v2310 = vld [vmem:[%s2 + $0x104] sm:$0xf]
  %v2311 = vld [vmem:[%s2 + $0x108] sm:$0xf]
  %v2312 = vld [vmem:[%s2 + $0x10c] sm:$0xf]
  %v2313 = vld [vmem:[%s2 + $0x110] sm:$0xf]
  %v2314 = vld [vmem:[%s2 + $0x114] sm:$0xf]
  %v2315 = vld [vmem:[%s2 + $0x118] sm:$0xf]
  %v2316 = vld [vmem:[%s2 + $0x11c] sm:$0xf]
  %v2317 = vld [vmem:[%s3] sm:$0x1]
  %v2319 = vlaneseq
  %v2320 = vshrl.u32 %v2319, 7
  %v2321 = vsub.s32 0, %v2320
  %v2322 = vrot.slane %v2317, %v2321
  %v2396 = vunpack.c.l.b16 %v2245
  %v2397 = vunpack.c.l.b16 %v2246
  %v2398 = vunpack.c.l.b16 %v2247
  %v2399 = vunpack.c.l.b16 %v2248
  %v2400 = vunpack.c.l.b16 %v2249
  %v2401 = vunpack.c.l.b16 %v2250
  %v2402 = vunpack.c.l.b16 %v2251
  %v2403 = vunpack.c.l.b16 %v2252
  %v2404 = vunpack.c.l.b16 %v2253
  %v2405 = vunpack.c.l.b16 %v2254
  %v2406 = vunpack.c.l.b16 %v2255
  %v2407 = vunpack.c.l.b16 %v2256
  %v2408 = vunpack.c.l.b16 %v2257
  %v2409 = vunpack.c.l.b16 %v2258
  %v2410 = vunpack.c.l.b16 %v2259
  %v2411 = vunpack.c.l.b16 %v2260
  %v2412 = vunpack.c.l.b16 %v2261
  %v2413 = vunpack.c.l.b16 %v2262
  %v2414 = vunpack.c.l.b16 %v2263
  %v2415 = vunpack.c.l.b16 %v2264
  %v2416 = vunpack.c.l.b16 %v2265
  %v2417 = vunpack.c.l.b16 %v2266
  %v2418 = vunpack.c.l.b16 %v2267
  %v2419 = vunpack.c.l.b16 %v2268
  %v2420 = vunpack.c.l.b16 %v2269
  %v2421 = vunpack.c.l.b16 %v2270
  %v2422 = vunpack.c.l.b16 %v2271
  %v2423 = vunpack.c.l.b16 %v2272
  %v2424 = vunpack.c.l.b16 %v2273
  %v2425 = vunpack.c.l.b16 %v2274
  %v2426 = vunpack.c.l.b16 %v2275
  %v2427 = vunpack.c.l.b16 %v2276
  %v2428 = vunpack.c.l.b16 %v2277
  %v2429 = vunpack.c.l.b16 %v2278
  %v2430 = vunpack.c.l.b16 %v2279
  %v2431 = vunpack.c.l.b16 %v2280
  %v2432 = vunpack.c.l.b16 %v2281
  %v2433 = vunpack.c.l.b16 %v2282
  %v2434 = vunpack.c.l.b16 %v2283
  %v2435 = vunpack.c.l.b16 %v2284
  %v2436 = vunpack.c.l.b16 %v2285
  %v2437 = vunpack.c.l.b16 %v2286
  %v2438 = vunpack.c.l.b16 %v2287
  %v2439 = vunpack.c.l.b16 %v2288
  %v2440 = vunpack.c.l.b16 %v2289
  %v2441 = vunpack.c.l.b16 %v2290
  %v2442 = vunpack.c.l.b16 %v2291
  %v2443 = vunpack.c.l.b16 %v2292
  %v2444 = vunpack.c.l.b16 %v2293
  %v2445 = vunpack.c.l.b16 %v2294
  %v2446 = vunpack.c.l.b16 %v2295
  %v2447 = vunpack.c.l.b16 %v2296
  %v2448 = vunpack.c.l.b16 %v2297
  %v2449 = vunpack.c.l.b16 %v2298
  %v2450 = vunpack.c.l.b16 %v2299
  %v2451 = vunpack.c.l.b16 %v2300
  %v2452 = vunpack.c.l.b16 %v2301
  %v2453 = vunpack.c.l.b16 %v2302
  %v2454 = vunpack.c.l.b16 %v2303
  %v2455 = vunpack.c.l.b16 %v2304
  %v2456 = vunpack.c.l.b16 %v2305
  %v2457 = vunpack.c.l.b16 %v2306
  %v2458 = vunpack.c.l.b16 %v2307
  %v2459 = vunpack.c.l.b16 %v2308
  %v2460 = vunpack.c.l.b16 %v2309
  %v2461 = vunpack.c.l.b16 %v2310
  %v2462 = vunpack.c.l.b16 %v2311
  %v2463 = vunpack.c.l.b16 %v2312
  %v2464 = vunpack.c.l.b16 %v2313
  %v2465 = vunpack.c.l.b16 %v2314
  %v2466 = vunpack.c.l.b16 %v2315
  %v2467 = vunpack.c.l.b16 %v2316
  %v2468 = vpack.c.b16 %v2397, %v2396
  %v2469 = vpack.c.b16 %v2399, %v2398
  %v2470 = vpack.c.b16 %v2401, %v2400
  %v2471 = vpack.c.b16 %v2403, %v2402
  %v2472 = vpack.c.b16 %v2405, %v2404
  %v2473 = vpack.c.b16 %v2407, %v2406
  %v2474 = vpack.c.b16 %v2409, %v2408
  %v2475 = vpack.c.b16 %v2411, %v2410
  %v2476 = vpack.c.b16 %v2413, %v2412
  %v2477 = vpack.c.b16 %v2415, %v2414
  %v2478 = vpack.c.b16 %v2417, %v2416
  %v2479 = vpack.c.b16 %v2419, %v2418
  %v2480 = vpack.c.b16 %v2421, %v2420
  %v2481 = vpack.c.b16 %v2423, %v2422
  %v2482 = vpack.c.b16 %v2425, %v2424
  %v2483 = vpack.c.b16 %v2427, %v2426
  %v2484 = vpack.c.b16 %v2429, %v2428
  %v2485 = vpack.c.b16 %v2431, %v2430
  %v2486 = vpack.c.b16 %v2433, %v2432
  %v2487 = vpack.c.b16 %v2435, %v2434
  %v2488 = vpack.c.b16 %v2437, %v2436
  %v2489 = vpack.c.b16 %v2439, %v2438
  %v2490 = vpack.c.b16 %v2441, %v2440
  %v2491 = vpack.c.b16 %v2443, %v2442
  %v2492 = vpack.c.b16 %v2445, %v2444
  %v2493 = vpack.c.b16 %v2447, %v2446
  %v2494 = vpack.c.b16 %v2449, %v2448
  %v2495 = vpack.c.b16 %v2451, %v2450
  %v2496 = vpack.c.b16 %v2453, %v2452
  %v2497 = vpack.c.b16 %v2455, %v2454
  %v2498 = vpack.c.b16 %v2457, %v2456
  %v2499 = vpack.c.b16 %v2459, %v2458
  %v2500 = vpack.c.b16 %v2461, %v2460
  %v2501 = vpack.c.b16 %v2463, %v2462
  %v2502 = vpack.c.b16 %v2465, %v2464
  %v2503 = vpack.c.b16 %v2467, %v2466
  %v2541 = vsel %vm2164, %v2157, 0
  %v2544 = vsel %vm2164, %v2159, 0
  %v2547 = vsel %vm2164, %v2161, 0
  %v2550 = vsel %vm2164, %v2163, 0
  %v2553 = vsel %vm2164, %v2162, 0
  %2555 = vmatprep.subr.bf16.mxu0 0
  %2556 = vmatpush1.bf16.msra.mxu0 %v2475
  %2557 = vmatprep.subr.bf16.mxu0 0
  %2558 = vmatpush1.bf16.msra.mxu0 %v2474
  %2559 = vmatprep.subr.bf16.mxu0 0
  %2560 = vmatpush1.bf16.msra.mxu0 %v2473
  %2561 = vmatprep.subr.bf16.mxu0 0
  %2562 = vmatpush1.bf16.msra.mxu0 %v2472
  %2563 = vmatprep.subr.bf16.mxu0 0
  %2564 = vmatpush1.bf16.msra.mxu0 %v2471
  %2565 = vmatprep.subr.bf16.mxu0 0
  %2566 = vmatpush1.bf16.msra.mxu0 %v2470
  %2567 = vmatprep.subr.bf16.mxu0 0
  %2568 = vmatpush1.bf16.msra.mxu0 %v2469
  %2569 = vmatprep.subr.bf16.mxu0 0
  %2570 = vmatpush1.bf16.msra.mxu0 %v2468
  %2571 = vmatprep.subr.bf16.mxu0 0
  %2572 = vmatpush2.bf16.msra.mxu0 %v2483
  %2573 = vmatprep.subr.bf16.mxu0 0
  %2574 = vmatpush2.bf16.msra.mxu0 %v2482
  %2575 = vmatprep.subr.bf16.mxu0 0
  %2576 = vmatpush2.bf16.msra.mxu0 %v2481
  %2577 = vmatprep.subr.bf16.mxu0 0
  %2578 = vmatpush2.bf16.msra.mxu0 %v2480
  %2579 = vmatprep.subr.bf16.mxu0 0
  %2580 = vmatpush2.bf16.msra.mxu0 %v2479
  %2581 = vmatprep.subr.bf16.mxu0 0
  %2582 = vmatpush2.bf16.msra.mxu0 %v2478
  %2583 = vmatprep.subr.bf16.mxu0 0
  %2584 = vmatpush2.bf16.msra.mxu0 %v2477
  %2585 = vmatprep.subr.bf16.mxu0 0
  %2586 = vmatpush2.bf16.msra.mxu0 %v2476
  %2587 = vmatprep.mubr.bf16.mxu0 %v2187
  %2588 = vmatmul.mubr.bf16.gmra.mxu0 %v2167
  %v2589 = vpop.f32.mrf.mxu0
  %v2590 = vadd.f32 %v2322, %v2589
  %v2591 = vpop.f32.mrf.mxu0
  %v2592 = vpop.f32.mrf.mxu0
  %v2593 = vadd.f32 %v2322, %v2592
  %v2594 = vpop.f32.mrf.mxu0
  %2595 = vmatprep.mubr.bf16.mxu0 %v2191
  %2596 = vmatmul.mubr.bf16.gmra.mxu0 %v2171
  %v2597 = vpop.f32.mrf.mxu0
  %v2598 = vadd.f32 %v2322, %v2597
  %v2599 = vpop.f32.mrf.mxu0
  %v2600 = vpop.f32.mrf.mxu0
  %v2601 = vadd.f32 %v2322, %v2600
  %v2602 = vpop.f32.mrf.mxu0
  %2603 = vmatprep.mubr.bf16.mxu0 %v2195
  %2604 = vmatmul.mubr.bf16.gmra.mxu0 %v2175
  %v2605 = vpop.f32.mrf.mxu0
  %v2606 = vadd.f32 %v2322, %v2605
  %v2607 = vpop.f32.mrf.mxu0
  %v2608 = vpop.f32.mrf.mxu0
  %v2609 = vadd.f32 %v2322, %v2608
  %v2610 = vpop.f32.mrf.mxu0
  %2611 = vmatprep.mubr.bf16.mxu0 %v2199
  %2612 = vmatmul.mubr.bf16.gmra.mxu0 %v2179
  %v2613 = vpop.f32.mrf.mxu0
  %v2614 = vadd.f32 %v2322, %v2613
  %v2615 = vpop.f32.mrf.mxu0
  %v2616 = vpop.f32.mrf.mxu0
  %v2617 = vadd.f32 %v2322, %v2616
  %v2618 = vpop.f32.mrf.mxu0
  %2619 = vmatprep.mubr.bf16.mxu0 %v2203
  %2620 = vmatmul.mubr.bf16.gmra.mxu0 %v2183
  %v2621 = vpop.f32.mrf.mxu0
  %v2622 = vadd.f32 %v2322, %v2621
  %v2623 = vpop.f32.mrf.mxu0
  %v2624 = vpop.f32.mrf.mxu0
  %v2625 = vpop.f32.mrf.mxu0
  %2626 = vdwg.mxu0
  %2627 = vmatprep.subr.bf16.mxu0 0
  %2628 = vmatpush1.bf16.msra.mxu0 %v2491
  %2629 = vmatprep.subr.bf16.mxu0 0
  %2630 = vmatpush1.bf16.msra.mxu0 %v2490
  %2631 = vmatprep.subr.bf16.mxu0 0
  %2632 = vmatpush1.bf16.msra.mxu0 %v2489
  %2633 = vmatprep.subr.bf16.mxu0 0
  %2634 = vmatpush1.bf16.msra.mxu0 %v2488
  %2635 = vmatprep.subr.bf16.mxu0 0
  %2636 = vmatpush1.bf16.msra.mxu0 %v2487
  %2637 = vmatprep.subr.bf16.mxu0 0
  %2638 = vmatpush1.bf16.msra.mxu0 %v2486
  %2639 = vmatprep.subr.bf16.mxu0 0
  %2640 = vmatpush1.bf16.msra.mxu0 %v2485
  %2641 = vmatprep.subr.bf16.mxu0 0
  %2642 = vmatpush1.bf16.msra.mxu0 %v2484
  %2643 = vmatprep.subr.bf16.mxu0 0
  %2644 = vmatpush2.bf16.msra.mxu0 %v2499
  %2645 = vmatprep.subr.bf16.mxu0 0
  %2646 = vmatpush2.bf16.msra.mxu0 %v2498
  %2647 = vmatprep.subr.bf16.mxu0 0
  %2648 = vmatpush2.bf16.msra.mxu0 %v2497
  %2649 = vmatprep.subr.bf16.mxu0 0
  %2650 = vmatpush2.bf16.msra.mxu0 %v2496
  %2651 = vmatprep.subr.bf16.mxu0 0
  %2652 = vmatpush2.bf16.msra.mxu0 %v2495
  %2653 = vmatprep.subr.bf16.mxu0 0
  %2654 = vmatpush2.bf16.msra.mxu0 %v2494
  %2655 = vmatprep.subr.bf16.mxu0 0
  %2656 = vmatpush2.bf16.msra.mxu0 %v2493
  %2657 = vmatprep.subr.bf16.mxu0 0
  %2658 = vmatpush2.bf16.msra.mxu0 %v2492
  %2659 = vmatprep.mubr.bf16.mxu0 %v2227
  %2660 = vmatmul.mubr.bf16.gmra.mxu0 %v2207
  %v2661 = vpop.f32.mrf.mxu0
  %v2662 = vadd.f32 %v2590, %v2661
  %v2663 = vpop.f32.mrf.mxu0
  %v2664 = vpop.f32.mrf.mxu0
  %v2665 = vadd.f32 %v2593, %v2664
  %v2666 = vpop.f32.mrf.mxu0
  %2667 = vmatprep.mubr.bf16.mxu0 %v2231
  %2668 = vmatmul.mubr.bf16.gmra.mxu0 %v2211
  %v2669 = vpop.f32.mrf.mxu0
  %v2670 = vadd.f32 %v2598, %v2669
  %v2671 = vpop.f32.mrf.mxu0
  %v2672 = vpop.f32.mrf.mxu0
  %v2673 = vadd.f32 %v2601, %v2672
  %v2674 = vpop.f32.mrf.mxu0
  %2675 = vmatprep.mubr.bf16.mxu0 %v2235
  %2676 = vmatmul.mubr.bf16.gmra.mxu0 %v2215
  %v2677 = vpop.f32.mrf.mxu0
  %v2678 = vadd.f32 %v2606, %v2677
  %v2679 = vpop.f32.mrf.mxu0
  %v2680 = vpop.f32.mrf.mxu0
  %v2681 = vadd.f32 %v2609, %v2680
  %v2682 = vpop.f32.mrf.mxu0
  %2683 = vmatprep.mubr.bf16.mxu0 %v2239
  %2684 = vmatmul.mubr.bf16.gmra.mxu0 %v2219
  %v2685 = vpop.f32.mrf.mxu0
  %v2686 = vadd.f32 %v2614, %v2685
  %v2687 = vpop.f32.mrf.mxu0
  %v2688 = vpop.f32.mrf.mxu0
  %v2689 = vadd.f32 %v2617, %v2688
  %v2690 = vpop.f32.mrf.mxu0
  %2691 = vmatprep.mubr.bf16.mxu0 %v2243
  %2692 = vmatmul.mubr.bf16.gmra.mxu0 %v2223
  %v2693 = vpop.f32.mrf.mxu0
  %v2694 = vadd.f32 %v2622, %v2693
  %v2695 = vpop.f32.mrf.mxu0
  %v2696 = vpop.f32.mrf.mxu0
  %v2697 = vpop.f32.mrf.mxu0
  %2698 = vdwg.mxu0
  %2699 = vmatprep.subr.bf16.mxu0 0
  %2700 = vmatpush1.bf16.msra.mxu0 0
  %2701 = vmatprep.subr.bf16.mxu0 0
  %2702 = vmatpush1.bf16.msra.mxu0 0
  %2703 = vmatprep.subr.bf16.mxu0 0
  %2704 = vmatpush1.bf16.msra.mxu0 0
  %2705 = vmatprep.subr.bf16.mxu0 0
  %2706 = vmatpush1.bf16.msra.mxu0 0
  %2707 = vmatprep.subr.bf16.mxu0 0
  %2708 = vmatpush1.bf16.msra.mxu0 %v2503
  %2709 = vmatprep.subr.bf16.mxu0 0
  %2710 = vmatpush1.bf16.msra.mxu0 %v2502
  %2711 = vmatprep.subr.bf16.mxu0 0
  %2712 = vmatpush1.bf16.msra.mxu0 %v2501
  %2713 = vmatprep.subr.bf16.mxu0 0
  %2714 = vmatpush1.bf16.msra.mxu0 %v2500
  %2715 = vmatprep.subr.bf16.mxu0 0
  %2716 = vmatpush2.bf16.msra.mxu0 0
  %2717 = vmatprep.subr.bf16.mxu0 0
  %2718 = vmatpush2.bf16.msra.mxu0 0
  %2719 = vmatprep.subr.bf16.mxu0 0
  %2720 = vmatpush2.bf16.msra.mxu0 0
  %2721 = vmatprep.subr.bf16.mxu0 0
  %2722 = vmatpush2.bf16.msra.mxu0 0
  %2723 = vmatprep.subr.bf16.mxu0 0
  %2724 = vmatpush2.bf16.msra.mxu0 0
  %2725 = vmatprep.subr.bf16.mxu0 0
  %2726 = vmatpush2.bf16.msra.mxu0 0
  %2727 = vmatprep.subr.bf16.mxu0 0
  %2728 = vmatpush2.bf16.msra.mxu0 0
  %2729 = vmatprep.subr.bf16.mxu0 0
  %2730 = vmatpush2.bf16.msra.mxu0 0
  %2731 = vmatprep.mubr.bf16.mxu0 0
  %2732 = vmatmul.mubr.bf16.gmra.mxu0 %v2541
  %v2733 = vpop.f32.mrf.mxu0
  %v2734 = vadd.f32 %v2662, %v2733
  %v2735 = vpop.f32.mrf.mxu0
  %v2736 = vpop.f32.mrf.mxu0
  %v2737 = vadd.f32 %v2665, %v2736
  %v2738 = vpop.f32.mrf.mxu0
  %2739 = vmatprep.mubr.bf16.mxu0 0
  %2740 = vmatmul.mubr.bf16.gmra.mxu0 %v2544
  %v2741 = vpop.f32.mrf.mxu0
  %v2742 = vadd.f32 %v2670, %v2741
  %v2743 = vpop.f32.mrf.mxu0
  %v2744 = vpop.f32.mrf.mxu0
  %v2745 = vadd.f32 %v2673, %v2744
  %v2746 = vpop.f32.mrf.mxu0
  %2747 = vmatprep.mubr.bf16.mxu0 0
  %2748 = vmatmul.mubr.bf16.gmra.mxu0 %v2547
  %v2749 = vpop.f32.mrf.mxu0
  %v2750 = vadd.f32 %v2678, %v2749
  %v2751 = vpop.f32.mrf.mxu0
  %v2752 = vpop.f32.mrf.mxu0
  %v2753 = vadd.f32 %v2681, %v2752
  %v2754 = vpop.f32.mrf.mxu0
  %2755 = vmatprep.mubr.bf16.mxu0 0
  %2756 = vmatmul.mubr.bf16.gmra.mxu0 %v2550
  %v2757 = vpop.f32.mrf.mxu0
  %v2758 = vadd.f32 %v2686, %v2757
  %v2759 = vpop.f32.mrf.mxu0
  %v2760 = vpop.f32.mrf.mxu0
  %v2761 = vadd.f32 %v2689, %v2760
  %v2762 = vpop.f32.mrf.mxu0
  %2763 = vmatprep.mubr.bf16.mxu0 0
  %2764 = vmatmul.mubr.bf16.gmra.mxu0 %v2553
  %v2765 = vpop.f32.mrf.mxu0
  %v2766 = vadd.f32 %v2694, %v2765
  %v2767 = vpop.f32.mrf.mxu0
  %v2768 = vpop.f32.mrf.mxu0
  %v2769 = vpop.f32.mrf.mxu0
  %2770 = vdwg.mxu0
  %v2771 = vmax.f32 %v2734, 0.0
  %v2772 = vmax.f32 %v2737, 0.0
  %v2773 = vmax.f32 %v2742, 0.0
  %v2774 = vmax.f32 %v2745, 0.0
  %v2775 = vmax.f32 %v2750, 0.0
  %v2776 = vmax.f32 %v2753, 0.0
  %v2777 = vmax.f32 %v2758, 0.0
  %v2778 = vmax.f32 %v2761, 0.0
  %v2779 = vmax.f32 %v2766, 0.0
  %v2780 = vpack.c.bf16 %v2772, %v2771
  %v2781 = vpack.c.bf16 %v2774, %v2773
  %v2782 = vpack.c.bf16 %v2776, %v2775
  %v2783 = vpack.c.bf16 %v2778, %v2777
  %v2784 = vpack.c.bf16 %v2779, %v2779
  %v2790 = vunpack.c.l.b16 %v2780
  %v2791 = vunpack.c.h.b16 %v2780
  %v2792 = vunpack.c.l.b16 %v2781
  %v2793 = vunpack.c.h.b16 %v2781
  %v2794 = vunpack.c.l.b16 %v2782
  %v2795 = vunpack.c.h.b16 %v2782
  %v2796 = vunpack.c.l.b16 %v2783
  %v2797 = vunpack.c.h.b16 %v2783
  %v2798 = vunpack.c.l.b16 %v2784
  %v2799 = vpack.c.b16 %v2790, %v2790
  %v2800 = vpack.c.b16 %v2791, %v2791
  %v2801 = vpack.c.b16 %v2792, %v2792
  %v2802 = vpack.c.b16 %v2793, %v2793
  %v2803 = vpack.c.b16 %v2794, %v2794
  %v2804 = vpack.c.b16 %v2795, %v2795
  %v2805 = vpack.c.b16 %v2796, %v2796
  %v2806 = vpack.c.b16 %v2797, %v2797
  %v2807 = vpack.c.b16 %v2798, %v2798
  %v2808 = vrot.slane %v2799, 7
  %v2809 = vrot.slane %v2808, 4
  %v2810 = vrot.slane %v2800, 7
  %v2811 = vsel %vm58, %v2809, %v2810
  %v2812 = vrot.slane %v2810, 4
  %v2813 = vrot.slane %v2801, 7
  %v2814 = vsel %vm58, %v2812, %v2813
  %v2815 = vrot.slane %v2813, 4
  %v2816 = vrot.slane %v2802, 7
  %v2817 = vsel %vm58, %v2815, %v2816
  %v2818 = vrot.slane %v2816, 4
  %v2819 = vrot.slane %v2803, 7
  %v2820 = vsel %vm58, %v2818, %v2819
  %v2821 = vrot.slane %v2819, 4
  %v2822 = vrot.slane %v2804, 7
  %v2823 = vsel %vm58, %v2821, %v2822
  %v2824 = vrot.slane %v2822, 4
  %v2825 = vrot.slane %v2805, 7
  %v2826 = vsel %vm58, %v2824, %v2825
  %v2827 = vrot.slane %v2825, 4
  %v2828 = vrot.slane %v2806, 7
  %v2829 = vsel %vm58, %v2827, %v2828
  %v2830 = vrot.slane %v2828, 4
  %v2831 = vrot.slane %v2807, 7
  %v2832 = vsel %vm58, %v2830, %v2831
  %v2833 = vrot.slane %v2831, 4
  %2844 = vst.msk [vmem:[#allocation2 + $0x4] sm:$0xe] %vm95, %v2808
  %2845 = vst.msk [vmem:[#allocation2 + $0x8] sm:$0xf] %vm24, %v2811
  %2846 = vst.msk [vmem:[#allocation2 + $0xc] sm:$0xf] %vm24, %v2814
  %2847 = vst.msk [vmem:[#allocation2 + $0x10] sm:$0xf] %vm24, %v2817
  %2848 = vst.msk [vmem:[#allocation2 + $0x14] sm:$0xf] %vm24, %v2820
  %2849 = vst.msk [vmem:[#allocation2 + $0x18] sm:$0xf] %vm24, %v2823
  %2850 = vst.msk [vmem:[#allocation2 + $0x1c] sm:$0xf] %vm24, %v2826
  %2851 = vst.msk [vmem:[#allocation2 + $0x20] sm:$0xf] %vm24, %v2829
  %2852 = vst.msk [vmem:[#allocation2 + $0x24] sm:$0xf] %vm24, %v2832
  %2853 = vst.msk [vmem:[#allocation2 + $0x28] sm:$0x1] %vm105, %v2833
  %v2854 = vld [vmem:[#allocation2] sm:$0xf]
  %v2855 = vld [vmem:[#allocation2 + $0x4] sm:$0xf]
  %v2856 = vld [vmem:[#allocation2 + $0x8] sm:$0xf]
  %v2857 = vld [vmem:[#allocation2 + $0xc] sm:$0xf]
  %v2858 = vld [vmem:[#allocation2 + $0x10] sm:$0xf]
  %v2859 = vld [vmem:[#allocation2 + $0x14] sm:$0xf]
  %v2860 = vld [vmem:[#allocation2 + $0x18] sm:$0xf]
  %v2861 = vld [vmem:[#allocation2 + $0x1c] sm:$0xf]
  %v2862 = vld [vmem:[#allocation2 + $0x20] sm:$0xf]
  %v2863 = vld [vmem:[%s1] sm:$0xf]
  %v2864 = vld [vmem:[%s1 + $0x4] sm:$0xf]
  %v2865 = vld [vmem:[%s1 + $0x8] sm:$0xf]
  %v2866 = vld [vmem:[%s1 + $0xc] sm:$0xf]
  %v2867 = vld [vmem:[%s1 + $0x10] sm:$0xf]
  %v2868 = vld [vmem:[%s1 + $0x14] sm:$0xf]
  %v2869 = vld [vmem:[%s1 + $0x18] sm:$0xf]
  %v2870 = vld [vmem:[%s1 + $0x1c] sm:$0xf]
  %v2871 = vld [vmem:[%s1 + $0x20] sm:$0xf]
  %2873 = vset.pattern.permute.xlu0 0
  %2874 = vperm.xlu0 %2873, %v2863
  %v2875 = vpop.permute.xlu0 %2874
  %v2878 = vunpack.c.l.s4 839922192
  %v2879 = vunpack.c.0.s8 %v2878
  %v2880 = vlaneseq
  %v2881 = vshrl.u32 %v2880, 7
  %v2882 = vsub.s32 %v2879, %v2881
  %v2883 = vrot.slane %v2875, %v2882
  %2885 = vset.pattern.permute.xlu0 0
  %2886 = vperm.xlu0 %2885, %v2864
  %v2887 = vpop.permute.xlu0 %2886
  %v2890 = vunpack.c.l.s4 839922192
  %v2891 = vunpack.c.0.s8 %v2890
  %v2892 = vlaneseq
  %v2893 = vshrl.u32 %v2892, 7
  %v2894 = vsub.s32 %v2891, %v2893
  %v2895 = vrot.slane %v2887, %v2894
  %2897 = vset.pattern.permute.xlu0 0
  %2898 = vperm.xlu0 %2897, %v2865
  %v2899 = vpop.permute.xlu0 %2898
  %v2902 = vunpack.c.l.s4 839922192
  %v2903 = vunpack.c.0.s8 %v2902
  %v2904 = vlaneseq
  %v2905 = vshrl.u32 %v2904, 7
  %v2906 = vsub.s32 %v2903, %v2905
  %v2907 = vrot.slane %v2899, %v2906
  %2909 = vset.pattern.permute.xlu0 0
  %2910 = vperm.xlu0 %2909, %v2866
  %v2911 = vpop.permute.xlu0 %2910
  %v2914 = vunpack.c.l.s4 839922192
  %v2915 = vunpack.c.0.s8 %v2914
  %v2916 = vlaneseq
  %v2917 = vshrl.u32 %v2916, 7
  %v2918 = vsub.s32 %v2915, %v2917
  %v2919 = vrot.slane %v2911, %v2918
  %2921 = vset.pattern.permute.xlu0 0
  %2922 = vperm.xlu0 %2921, %v2867
  %v2923 = vpop.permute.xlu0 %2922
  %v2926 = vunpack.c.l.s4 839922192
  %v2927 = vunpack.c.0.s8 %v2926
  %v2928 = vlaneseq
  %v2929 = vshrl.u32 %v2928, 7
  %v2930 = vsub.s32 %v2927, %v2929
  %v2931 = vrot.slane %v2923, %v2930
  %2933 = vset.pattern.permute.xlu0 0
  %2934 = vperm.xlu0 %2933, %v2868
  %v2935 = vpop.permute.xlu0 %2934
  %v2938 = vunpack.c.l.s4 839922192
  %v2939 = vunpack.c.0.s8 %v2938
  %v2940 = vlaneseq
  %v2941 = vshrl.u32 %v2940, 7
  %v2942 = vsub.s32 %v2939, %v2941
  %v2943 = vrot.slane %v2935, %v2942
  %2945 = vset.pattern.permute.xlu0 0
  %2946 = vperm.xlu0 %2945, %v2869
  %v2947 = vpop.permute.xlu0 %2946
  %v2950 = vunpack.c.l.s4 839922192
  %v2951 = vunpack.c.0.s8 %v2950
  %v2952 = vlaneseq
  %v2953 = vshrl.u32 %v2952, 7
  %v2954 = vsub.s32 %v2951, %v2953
  %v2955 = vrot.slane %v2947, %v2954
  %2957 = vset.pattern.permute.xlu0 0
  %2958 = vperm.xlu0 %2957, %v2870
  %v2959 = vpop.permute.xlu0 %2958
  %v2962 = vunpack.c.l.s4 839922192
  %v2963 = vunpack.c.0.s8 %v2962
  %v2964 = vlaneseq
  %v2965 = vshrl.u32 %v2964, 7
  %v2966 = vsub.s32 %v2963, %v2965
  %v2967 = vrot.slane %v2959, %v2966
  %2969 = vset.pattern.permute.xlu0 0
  %2970 = vperm.xlu0 %2969, %v2871
  %v2971 = vpop.permute.xlu0 %2970
  %v2974 = vunpack.c.l.s4 839922192
  %v2975 = vunpack.c.0.s8 %v2974
  %v2976 = vlaneseq
  %v2977 = vshrl.u32 %v2976, 7
  %v2978 = vsub.s32 %v2975, %v2977
  %v2979 = vrot.slane %v2971, %v2978
  %v2980 = vmul.bf16 %v2854, %v2883
  %v2981 = vmul.bf16 %v2855, %v2895
  %v2982 = vmul.bf16 %v2856, %v2907
  %v2983 = vmul.bf16 %v2857, %v2919
  %v2984 = vmul.bf16 %v2858, %v2931
  %v2985 = vmul.bf16 %v2859, %v2943
  %v2986 = vmul.bf16 %v2860, %v2955
  %v2987 = vmul.bf16 %v2861, %v2967
  %v2988 = vmul.bf16 %v2862, %v2979
  %v2989 = vld [vmem:[#allocation2] sm:$0xf]
  %v2990 = vld [vmem:[#allocation2 + $0x4] sm:$0xf]
  %v2991 = vld [vmem:[#allocation2 + $0x8] sm:$0xf]
  %v2992 = vld [vmem:[#allocation2 + $0xc] sm:$0xf]
  %v2993 = vld [vmem:[#allocation2 + $0x10] sm:$0xf]
  %v2994 = vld [vmem:[#allocation2 + $0x14] sm:$0xf]
  %v2995 = vld [vmem:[#allocation2 + $0x18] sm:$0xf]
  %v2996 = vld [vmem:[#allocation2 + $0x1c] sm:$0xf]
  %v2997 = vld [vmem:[#allocation2 + $0x20] sm:$0xf]
  %v2998 = vld [vmem:[#allocation2 + $0x24] sm:$0x1]
  %v2999 = vld [vmem:[%s252] sm:$0xf]
  %v3000 = vld [vmem:[%s252 + $0x4] sm:$0xf]
  %v3001 = vld [vmem:[%s252 + $0x8] sm:$0xf]
  %v3002 = vld [vmem:[%s252 + $0xc] sm:$0xf]
  %v3003 = vld [vmem:[%s252 + $0x10] sm:$0xf]
  %v3004 = vld [vmem:[%s252 + $0x14] sm:$0xf]
  %v3005 = vld [vmem:[%s252 + $0x18] sm:$0xf]
  %v3006 = vld [vmem:[%s252 + $0x1c] sm:$0xf]
  %v3007 = vld [vmem:[%s252 + $0x20] sm:$0xf]
  %3009 = vset.pattern.permute.xlu0 0
  %3010 = vperm.xlu0 %3009, %v2999
  %v3011 = vpop.permute.xlu0 %3010
  %v3014 = vunpack.c.l.s4 839922192
  %v3015 = vunpack.c.0.s8 %v3014
  %v3016 = vlaneseq
  %v3017 = vshrl.u32 %v3016, 7
  %v3018 = vsub.s32 %v3015, %v3017
  %v3019 = vrot.slane %v3011, %v3018
  %3021 = vset.pattern.permute.xlu0 0
  %3022 = vperm.xlu0 %3021, %v3000
  %v3023 = vpop.permute.xlu0 %3022
  %v3026 = vunpack.c.l.s4 839922192
  %v3027 = vunpack.c.0.s8 %v3026
  %v3028 = vlaneseq
  %v3029 = vshrl.u32 %v3028, 7
  %v3030 = vsub.s32 %v3027, %v3029
  %v3031 = vrot.slane %v3023, %v3030
  %3033 = vset.pattern.permute.xlu0 0
  %3034 = vperm.xlu0 %3033, %v3001
  %v3035 = vpop.permute.xlu0 %3034
  %v3038 = vunpack.c.l.s4 839922192
  %v3039 = vunpack.c.0.s8 %v3038
  %v3040 = vlaneseq
  %v3041 = vshrl.u32 %v3040, 7
  %v3042 = vsub.s32 %v3039, %v3041
  %v3043 = vrot.slane %v3035, %v3042
  %3045 = vset.pattern.permute.xlu0 0
  %3046 = vperm.xlu0 %3045, %v3002
  %v3047 = vpop.permute.xlu0 %3046
  %v3050 = vunpack.c.l.s4 839922192
  %v3051 = vunpack.c.0.s8 %v3050
  %v3052 = vlaneseq
  %v3053 = vshrl.u32 %v3052, 7
  %v3054 = vsub.s32 %v3051, %v3053
  %v3055 = vrot.slane %v3047, %v3054
  %3057 = vset.pattern.permute.xlu0 0
  %3058 = vperm.xlu0 %3057, %v3003
  %v3059 = vpop.permute.xlu0 %3058
  %v3062 = vunpack.c.l.s4 839922192
  %v3063 = vunpack.c.0.s8 %v3062
  %v3064 = vlaneseq
  %v3065 = vshrl.u32 %v3064, 7
  %v3066 = vsub.s32 %v3063, %v3065
  %v3067 = vrot.slane %v3059, %v3066
  %3069 = vset.pattern.permute.xlu0 0
  %3070 = vperm.xlu0 %3069, %v3004
  %v3071 = vpop.permute.xlu0 %3070
  %v3074 = vunpack.c.l.s4 839922192
  %v3075 = vunpack.c.0.s8 %v3074
  %v3076 = vlaneseq
  %v3077 = vshrl.u32 %v3076, 7
  %v3078 = vsub.s32 %v3075, %v3077
  %v3079 = vrot.slane %v3071, %v3078
  %3081 = vset.pattern.permute.xlu0 0
  %3082 = vperm.xlu0 %3081, %v3005
  %v3083 = vpop.permute.xlu0 %3082
  %v3086 = vunpack.c.l.s4 839922192
  %v3087 = vunpack.c.0.s8 %v3086
  %v3088 = vlaneseq
  %v3089 = vshrl.u32 %v3088, 7
  %v3090 = vsub.s32 %v3087, %v3089
  %v3091 = vrot.slane %v3083, %v3090
  %3093 = vset.pattern.permute.xlu0 0
  %3094 = vperm.xlu0 %3093, %v3006
  %v3095 = vpop.permute.xlu0 %3094
  %v3098 = vunpack.c.l.s4 839922192
  %v3099 = vunpack.c.0.s8 %v3098
  %v3100 = vlaneseq
  %v3101 = vshrl.u32 %v3100, 7
  %v3102 = vsub.s32 %v3099, %v3101
  %v3103 = vrot.slane %v3095, %v3102
  %3105 = vset.pattern.permute.xlu0 0
  %3106 = vperm.xlu0 %3105, %v3007
  %v3107 = vpop.permute.xlu0 %3106
  %v3110 = vunpack.c.l.s4 839922192
  %v3111 = vunpack.c.0.s8 %v3110
  %v3112 = vlaneseq
  %v3113 = vshrl.u32 %v3112, 7
  %v3114 = vsub.s32 %v3111, %v3113
  %v3115 = vrot.slane %v3107, %v3114
  %v3117 = vshrl.u32 %v3019, 16
  %v3119 = vrot.slane %v3117, 7
  %v3120 = vshll.u32 %v3019, 16
  %v3122 = vor.u32 %v3119, %v3120
  %v3123 = vrot.slane %v3119, 4
  %v3125 = vshrl.u32 %v3031, 16
  %v3127 = vrot.slane %v3125, 7
  %v3128 = vshll.u32 %v3031, 16
  %v3130 = vor.u32 %v3127, %v3128
  %v3131 = vsel %vm372, %v3123, %v3130
  %v3132 = vrot.slane %v3127, 4
  %v3134 = vshrl.u32 %v3043, 16
  %v3136 = vrot.slane %v3134, 7
  %v3137 = vshll.u32 %v3043, 16
  %v3139 = vor.u32 %v3136, %v3137
  %v3140 = vsel %vm372, %v3132, %v3139
  %v3141 = vrot.slane %v3136, 4
  %v3143 = vshrl.u32 %v3055, 16
  %v3145 = vrot.slane %v3143, 7
  %v3146 = vshll.u32 %v3055, 16
  %v3148 = vor.u32 %v3145, %v3146
  %v3149 = vsel %vm372, %v3141, %v3148
  %v3150 = vrot.slane %v3145, 4
  %v3152 = vshrl.u32 %v3067, 16
  %v3154 = vrot.slane %v3152, 7
  %v3155 = vshll.u32 %v3067, 16
  %v3157 = vor.u32 %v3154, %v3155
  %v3158 = vsel %vm372, %v3150, %v3157
  %v3159 = vrot.slane %v3154, 4
  %v3161 = vshrl.u32 %v3079, 16
  %v3163 = vrot.slane %v3161, 7
  %v3164 = vshll.u32 %v3079, 16
  %v3166 = vor.u32 %v3163, %v3164
  %v3167 = vsel %vm372, %v3159, %v3166
  %v3168 = vrot.slane %v3163, 4
  %v3170 = vshrl.u32 %v3091, 16
  %v3172 = vrot.slane %v3170, 7
  %v3173 = vshll.u32 %v3091, 16
  %v3175 = vor.u32 %v3172, %v3173
  %v3176 = vsel %vm372, %v3168, %v3175
  %v3177 = vrot.slane %v3172, 4
  %v3179 = vshrl.u32 %v3103, 16
  %v3181 = vrot.slane %v3179, 7
  %v3182 = vshll.u32 %v3103, 16
  %v3184 = vor.u32 %v3181, %v3182
  %v3185 = vsel %vm372, %v3177, %v3184
  %v3186 = vrot.slane %v3181, 4
  %v3188 = vshrl.u32 %v3115, 16
  %v3190 = vrot.slane %v3188, 7
  %v3191 = vshll.u32 %v3115, 16
  %v3193 = vor.u32 %v3190, %v3191
  %v3194 = vsel %vm372, %v3186, %v3193
  %v3195 = vrot.slane %v3190, 4
  %v3206 = vmul.bf16 %v2989, %v3122
  %v3207 = vmul.bf16 %v2990, %v3131
  %v3208 = vmul.bf16 %v2991, %v3140
  %v3209 = vmul.bf16 %v2992, %v3149
  %v3210 = vmul.bf16 %v2993, %v3158
  %v3211 = vmul.bf16 %v2994, %v3167
  %v3212 = vmul.bf16 %v2995, %v3176
  %v3213 = vmul.bf16 %v2996, %v3185
  %v3214 = vmul.bf16 %v2997, %v3194
  %v3215 = vmul.bf16 %v2998, %v3195
  %v3216 = vld [vmem:[#allocation2] sm:$0xe]
  %v3217 = vld [vmem:[%s474] sm:$0xf]
  %v3218 = vld [vmem:[%s474 + $0x4] sm:$0xf]
  %v3219 = vld [vmem:[%s474 + $0x8] sm:$0xf]
  %v3220 = vld [vmem:[%s474 + $0xc] sm:$0xf]
  %v3221 = vld [vmem:[%s474 + $0x10] sm:$0xf]
  %v3222 = vld [vmem:[%s474 + $0x14] sm:$0xf]
  %v3223 = vld [vmem:[%s474 + $0x18] sm:$0xf]
  %v3224 = vld [vmem:[%s474 + $0x1c] sm:$0xf]
  %v3225 = vld [vmem:[%s474 + $0x20] sm:$0xf]
  %3227 = vset.pattern.permute.xlu0 0
  %3228 = vperm.xlu0 %3227, %v3217
  %v3229 = vpop.permute.xlu0 %3228
  %v3232 = vunpack.c.l.s4 839922192
  %v3233 = vunpack.c.0.s8 %v3232
  %v3234 = vlaneseq
  %v3235 = vshrl.u32 %v3234, 7
  %v3236 = vsub.s32 %v3233, %v3235
  %v3237 = vrot.slane %v3229, %v3236
  %3239 = vset.pattern.permute.xlu0 0
  %3240 = vperm.xlu0 %3239, %v3218
  %v3241 = vpop.permute.xlu0 %3240
  %v3244 = vunpack.c.l.s4 839922192
  %v3245 = vunpack.c.0.s8 %v3244
  %v3246 = vlaneseq
  %v3247 = vshrl.u32 %v3246, 7
  %v3248 = vsub.s32 %v3245, %v3247
  %v3249 = vrot.slane %v3241, %v3248
  %3251 = vset.pattern.permute.xlu0 0
  %3252 = vperm.xlu0 %3251, %v3219
  %v3253 = vpop.permute.xlu0 %3252
  %v3256 = vunpack.c.l.s4 839922192
  %v3257 = vunpack.c.0.s8 %v3256
  %v3258 = vlaneseq
  %v3259 = vshrl.u32 %v3258, 7
  %v3260 = vsub.s32 %v3257, %v3259
  %v3261 = vrot.slane %v3253, %v3260
  %3263 = vset.pattern.permute.xlu0 0
  %3264 = vperm.xlu0 %3263, %v3220
  %v3265 = vpop.permute.xlu0 %3264
  %v3268 = vunpack.c.l.s4 839922192
  %v3269 = vunpack.c.0.s8 %v3268
  %v3270 = vlaneseq
  %v3271 = vshrl.u32 %v3270, 7
  %v3272 = vsub.s32 %v3269, %v3271
  %v3273 = vrot.slane %v3265, %v3272
  %3275 = vset.pattern.permute.xlu0 0
  %3276 = vperm.xlu0 %3275, %v3221
  %v3277 = vpop.permute.xlu0 %3276
  %v3280 = vunpack.c.l.s4 839922192
  %v3281 = vunpack.c.0.s8 %v3280
  %v3282 = vlaneseq
  %v3283 = vshrl.u32 %v3282, 7
  %v3284 = vsub.s32 %v3281, %v3283
  %v3285 = vrot.slane %v3277, %v3284
  %3287 = vset.pattern.permute.xlu0 0
  %3288 = vperm.xlu0 %3287, %v3222
  %v3289 = vpop.permute.xlu0 %3288
  %v3292 = vunpack.c.l.s4 839922192
  %v3293 = vunpack.c.0.s8 %v3292
  %v3294 = vlaneseq
  %v3295 = vshrl.u32 %v3294, 7
  %v3296 = vsub.s32 %v3293, %v3295
  %v3297 = vrot.slane %v3289, %v3296
  %3299 = vset.pattern.permute.xlu0 0
  %3300 = vperm.xlu0 %3299, %v3223
  %v3301 = vpop.permute.xlu0 %3300
  %v3304 = vunpack.c.l.s4 839922192
  %v3305 = vunpack.c.0.s8 %v3304
  %v3306 = vlaneseq
  %v3307 = vshrl.u32 %v3306, 7
  %v3308 = vsub.s32 %v3305, %v3307
  %v3309 = vrot.slane %v3301, %v3308
  %3311 = vset.pattern.permute.xlu0 0
  %3312 = vperm.xlu0 %3311, %v3224
  %v3313 = vpop.permute.xlu0 %3312
  %v3316 = vunpack.c.l.s4 839922192
  %v3317 = vunpack.c.0.s8 %v3316
  %v3318 = vlaneseq
  %v3319 = vshrl.u32 %v3318, 7
  %v3320 = vsub.s32 %v3317, %v3319
  %v3321 = vrot.slane %v3313, %v3320
  %3323 = vset.pattern.permute.xlu0 0
  %3324 = vperm.xlu0 %3323, %v3225
  %v3325 = vpop.permute.xlu0 %3324
  %v3328 = vunpack.c.l.s4 839922192
  %v3329 = vunpack.c.0.s8 %v3328
  %v3330 = vlaneseq
  %v3331 = vshrl.u32 %v3330, 7
  %v3332 = vsub.s32 %v3329, %v3331
  %v3333 = vrot.slane %v3325, %v3332
  %v3343 = vrot.slane %v3237, 7
  %v3344 = vrot.slane %v3343, 4
  %v3345 = vrot.slane %v3249, 7
  %v3346 = vsel %vm58, %v3344, %v3345
  %v3347 = vrot.slane %v3345, 4
  %v3348 = vrot.slane %v3261, 7
  %v3349 = vsel %vm58, %v3347, %v3348
  %v3350 = vrot.slane %v3348, 4
  %v3351 = vrot.slane %v3273, 7
  %v3352 = vsel %vm58, %v3350, %v3351
  %v3353 = vrot.slane %v3351, 4
  %v3354 = vrot.slane %v3285, 7
  %v3355 = vsel %vm58, %v3353, %v3354
  %v3356 = vrot.slane %v3354, 4
  %v3357 = vrot.slane %v3297, 7
  %v3358 = vsel %vm58, %v3356, %v3357
  %v3359 = vrot.slane %v3357, 4
  %v3360 = vrot.slane %v3309, 7
  %v3361 = vsel %vm58, %v3359, %v3360
  %v3362 = vrot.slane %v3360, 4
  %v3363 = vrot.slane %v3321, 7
  %v3364 = vsel %vm58, %v3362, %v3363
  %v3365 = vrot.slane %v3363, 4
  %v3366 = vrot.slane %v3333, 7
  %v3367 = vsel %vm58, %v3365, %v3366
  %v3368 = vrot.slane %v3366, 4
  %v3379 = vmul.bf16 %v3216, %v3343
  %v3380 = vmul.bf16 %v2990, %v3346
  %v3381 = vmul.bf16 %v2991, %v3349
  %v3382 = vmul.bf16 %v2992, %v3352
  %v3383 = vmul.bf16 %v2993, %v3355
  %v3384 = vmul.bf16 %v2994, %v3358
  %v3385 = vmul.bf16 %v2995, %v3361
  %v3386 = vmul.bf16 %v2996, %v3364
  %v3387 = vmul.bf16 %v2997, %v3367
  %v3388 = vmul.bf16 %v2998, %v3368
  %v3389 = vld [vmem:[#allocation2 + $0x4] sm:$0xf]
  %v3390 = vld [vmem:[#allocation2 + $0x8] sm:$0xf]
  %v3391 = vld [vmem:[#allocation2 + $0xc] sm:$0xf]
  %v3392 = vld [vmem:[#allocation2 + $0x10] sm:$0xf]
  %v3393 = vld [vmem:[#allocation2 + $0x14] sm:$0xf]
  %v3394 = vld [vmem:[#allocation2 + $0x18] sm:$0xf]
  %v3395 = vld [vmem:[#allocation2 + $0x1c] sm:$0xf]
  %v3396 = vld [vmem:[#allocation2 + $0x20] sm:$0xf]
  %v3397 = vld [vmem:[#allocation2 + $0x24] sm:$0xf]
  %v3398 = vld [vmem:[#allocation2 + $0x28] sm:$0x1]
  %v3399 = vld [vmem:[%s657] sm:$0xf]
  %v3400 = vld [vmem:[%s657 + $0x4] sm:$0xf]
  %v3401 = vld [vmem:[%s657 + $0x8] sm:$0xf]
  %v3402 = vld [vmem:[%s657 + $0xc] sm:$0xf]
  %v3403 = vld [vmem:[%s657 + $0x10] sm:$0xf]
  %v3404 = vld [vmem:[%s657 + $0x14] sm:$0xf]
  %v3405 = vld [vmem:[%s657 + $0x18] sm:$0xf]
  %v3406 = vld [vmem:[%s657 + $0x1c] sm:$0xf]
  %v3407 = vld [vmem:[%s657 + $0x20] sm:$0xf]
  %3409 = vset.pattern.permute.xlu0 0
  %3410 = vperm.xlu0 %3409, %v3399
  %v3411 = vpop.permute.xlu0 %3410
  %v3414 = vunpack.c.l.s4 839922192
  %v3415 = vunpack.c.0.s8 %v3414
  %v3416 = vlaneseq
  %v3417 = vshrl.u32 %v3416, 7
  %v3418 = vsub.s32 %v3415, %v3417
  %v3419 = vrot.slane %v3411, %v3418
  %3421 = vset.pattern.permute.xlu0 0
  %3422 = vperm.xlu0 %3421, %v3400
  %v3423 = vpop.permute.xlu0 %3422
  %v3426 = vunpack.c.l.s4 839922192
  %v3427 = vunpack.c.0.s8 %v3426
  %v3428 = vlaneseq
  %v3429 = vshrl.u32 %v3428, 7
  %v3430 = vsub.s32 %v3427, %v3429
  %v3431 = vrot.slane %v3423, %v3430
  %3433 = vset.pattern.permute.xlu0 0
  %3434 = vperm.xlu0 %3433, %v3401
  %v3435 = vpop.permute.xlu0 %3434
  %v3438 = vunpack.c.l.s4 839922192
  %v3439 = vunpack.c.0.s8 %v3438
  %v3440 = vlaneseq
  %v3441 = vshrl.u32 %v3440, 7
  %v3442 = vsub.s32 %v3439, %v3441
  %v3443 = vrot.slane %v3435, %v3442
  %3445 = vset.pattern.permute.xlu0 0
  %3446 = vperm.xlu0 %3445, %v3402
  %v3447 = vpop.permute.xlu0 %3446
  %v3450 = vunpack.c.l.s4 839922192
  %v3451 = vunpack.c.0.s8 %v3450
  %v3452 = vlaneseq
  %v3453 = vshrl.u32 %v3452, 7
  %v3454 = vsub.s32 %v3451, %v3453
  %v3455 = vrot.slane %v3447, %v3454
  %3457 = vset.pattern.permute.xlu0 0
  %3458 = vperm.xlu0 %3457, %v3403
  %v3459 = vpop.permute.xlu0 %3458
  %v3462 = vunpack.c.l.s4 839922192
  %v3463 = vunpack.c.0.s8 %v3462
  %v3464 = vlaneseq
  %v3465 = vshrl.u32 %v3464, 7
  %v3466 = vsub.s32 %v3463, %v3465
  %v3467 = vrot.slane %v3459, %v3466
  %3469 = vset.pattern.permute.xlu0 0
  %3470 = vperm.xlu0 %3469, %v3404
  %v3471 = vpop.permute.xlu0 %3470
  %v3474 = vunpack.c.l.s4 839922192
  %v3475 = vunpack.c.0.s8 %v3474
  %v3476 = vlaneseq
  %v3477 = vshrl.u32 %v3476, 7
  %v3478 = vsub.s32 %v3475, %v3477
  %v3479 = vrot.slane %v3471, %v3478
  %3481 = vset.pattern.permute.xlu0 0
  %3482 = vperm.xlu0 %3481, %v3405
  %v3483 = vpop.permute.xlu0 %3482
  %v3486 = vunpack.c.l.s4 839922192
  %v3487 = vunpack.c.0.s8 %v3486
  %v3488 = vlaneseq
  %v3489 = vshrl.u32 %v3488, 7
  %v3490 = vsub.s32 %v3487, %v3489
  %v3491 = vrot.slane %v3483, %v3490
  %3493 = vset.pattern.permute.xlu0 0
  %3494 = vperm.xlu0 %3493, %v3406
  %v3495 = vpop.permute.xlu0 %3494
  %v3498 = vunpack.c.l.s4 839922192
  %v3499 = vunpack.c.0.s8 %v3498
  %v3500 = vlaneseq
  %v3501 = vshrl.u32 %v3500, 7
  %v3502 = vsub.s32 %v3499, %v3501
  %v3503 = vrot.slane %v3495, %v3502
  %3505 = vset.pattern.permute.xlu0 0
  %3506 = vperm.xlu0 %3505, %v3407
  %v3507 = vpop.permute.xlu0 %3506
  %v3510 = vunpack.c.l.s4 839922192
  %v3511 = vunpack.c.0.s8 %v3510
  %v3512 = vlaneseq
  %v3513 = vshrl.u32 %v3512, 7
  %v3514 = vsub.s32 %v3511, %v3513
  %v3515 = vrot.slane %v3507, %v3514
  %v3517 = vshrl.u32 %v3419, 16
  %v3519 = vrot.slane %v3517, 7
  %v3520 = vshll.u32 %v3419, 16
  %v3522 = vor.u32 %v3519, %v3520
  %v3523 = vrot.slane %v3519, 4
  %v3525 = vshrl.u32 %v3431, 16
  %v3527 = vrot.slane %v3525, 7
  %v3528 = vshll.u32 %v3431, 16
  %v3530 = vor.u32 %v3527, %v3528
  %v3531 = vsel %vm372, %v3523, %v3530
  %v3532 = vrot.slane %v3527, 4
  %v3534 = vshrl.u32 %v3443, 16
  %v3536 = vrot.slane %v3534, 7
  %v3537 = vshll.u32 %v3443, 16
  %v3539 = vor.u32 %v3536, %v3537
  %v3540 = vsel %vm372, %v3532, %v3539
  %v3541 = vrot.slane %v3536, 4
  %v3543 = vshrl.u32 %v3455, 16
  %v3545 = vrot.slane %v3543, 7
  %v3546 = vshll.u32 %v3455, 16
  %v3548 = vor.u32 %v3545, %v3546
  %v3549 = vsel %vm372, %v3541, %v3548
  %v3550 = vrot.slane %v3545, 4
  %v3552 = vshrl.u32 %v3467, 16
  %v3554 = vrot.slane %v3552, 7
  %v3555 = vshll.u32 %v3467, 16
  %v3557 = vor.u32 %v3554, %v3555
  %v3558 = vsel %vm372, %v3550, %v3557
  %v3559 = vrot.slane %v3554, 4
  %v3561 = vshrl.u32 %v3479, 16
  %v3563 = vrot.slane %v3561, 7
  %v3564 = vshll.u32 %v3479, 16
  %v3566 = vor.u32 %v3563, %v3564
  %v3567 = vsel %vm372, %v3559, %v3566
  %v3568 = vrot.slane %v3563, 4
  %v3570 = vshrl.u32 %v3491, 16
  %v3572 = vrot.slane %v3570, 7
  %v3573 = vshll.u32 %v3491, 16
  %v3575 = vor.u32 %v3572, %v3573
  %v3576 = vsel %vm372, %v3568, %v3575
  %v3577 = vrot.slane %v3572, 4
  %v3579 = vshrl.u32 %v3503, 16
  %v3581 = vrot.slane %v3579, 7
  %v3582 = vshll.u32 %v3503, 16
  %v3584 = vor.u32 %v3581, %v3582
  %v3585 = vsel %vm372, %v3577, %v3584
  %v3586 = vrot.slane %v3581, 4
  %v3588 = vshrl.u32 %v3515, 16
  %v3590 = vrot.slane %v3588, 7
  %v3591 = vshll.u32 %v3515, 16
  %v3593 = vor.u32 %v3590, %v3591
  %v3594 = vsel %vm372, %v3586, %v3593
  %v3595 = vrot.slane %v3590, 4
  %v3606 = vmul.bf16 %v3389, %v3522
  %v3607 = vmul.bf16 %v3390, %v3531
  %v3608 = vmul.bf16 %v3391, %v3540
  %v3609 = vmul.bf16 %v3392, %v3549
  %v3610 = vmul.bf16 %v3393, %v3558
  %v3611 = vmul.bf16 %v3394, %v3567
  %v3612 = vmul.bf16 %v3395, %v3576
  %v3613 = vmul.bf16 %v3396, %v3585
  %v3614 = vmul.bf16 %v3397, %v3594
  %v3615 = vmul.bf16 %v3398, %v3595
  %v3616 = vld [vmem:[#allocation2 + $0x4] sm:$0xe]
  %v3617 = vld [vmem:[#allocation2 + $0x28] sm:$0x3]
  %v3618 = vld [vmem:[%s877] sm:$0xf]
  %v3619 = vld [vmem:[%s877 + $0x4] sm:$0xf]
  %v3620 = vld [vmem:[%s877 + $0x8] sm:$0xf]
  %v3621 = vld [vmem:[%s877 + $0xc] sm:$0xf]
  %v3622 = vld [vmem:[%s877 + $0x10] sm:$0xf]
  %v3623 = vld [vmem:[%s877 + $0x14] sm:$0xf]
  %v3624 = vld [vmem:[%s877 + $0x18] sm:$0xf]
  %v3625 = vld [vmem:[%s877 + $0x1c] sm:$0xf]
  %v3626 = vld [vmem:[%s877 + $0x20] sm:$0xf]
  %3628 = vset.pattern.permute.xlu0 0
  %3629 = vperm.xlu0 %3628, %v3618
  %v3630 = vpop.permute.xlu0 %3629
  %v3633 = vunpack.c.l.s4 839922192
  %v3634 = vunpack.c.0.s8 %v3633
  %v3635 = vlaneseq
  %v3636 = vshrl.u32 %v3635, 7
  %v3637 = vsub.s32 %v3634, %v3636
  %v3638 = vrot.slane %v3630, %v3637
  %3640 = vset.pattern.permute.xlu0 0
  %3641 = vperm.xlu0 %3640, %v3619
  %v3642 = vpop.permute.xlu0 %3641
  %v3645 = vunpack.c.l.s4 839922192
  %v3646 = vunpack.c.0.s8 %v3645
  %v3647 = vlaneseq
  %v3648 = vshrl.u32 %v3647, 7
  %v3649 = vsub.s32 %v3646, %v3648
  %v3650 = vrot.slane %v3642, %v3649
  %3652 = vset.pattern.permute.xlu0 0
  %3653 = vperm.xlu0 %3652, %v3620
  %v3654 = vpop.permute.xlu0 %3653
  %v3657 = vunpack.c.l.s4 839922192
  %v3658 = vunpack.c.0.s8 %v3657
  %v3659 = vlaneseq
  %v3660 = vshrl.u32 %v3659, 7
  %v3661 = vsub.s32 %v3658, %v3660
  %v3662 = vrot.slane %v3654, %v3661
  %3664 = vset.pattern.permute.xlu0 0
  %3665 = vperm.xlu0 %3664, %v3621
  %v3666 = vpop.permute.xlu0 %3665
  %v3669 = vunpack.c.l.s4 839922192
  %v3670 = vunpack.c.0.s8 %v3669
  %v3671 = vlaneseq
  %v3672 = vshrl.u32 %v3671, 7
  %v3673 = vsub.s32 %v3670, %v3672
  %v3674 = vrot.slane %v3666, %v3673
  %3676 = vset.pattern.permute.xlu0 0
  %3677 = vperm.xlu0 %3676, %v3622
  %v3678 = vpop.permute.xlu0 %3677
  %v3681 = vunpack.c.l.s4 839922192
  %v3682 = vunpack.c.0.s8 %v3681
  %v3683 = vlaneseq
  %v3684 = vshrl.u32 %v3683, 7
  %v3685 = vsub.s32 %v3682, %v3684
  %v3686 = vrot.slane %v3678, %v3685
  %3688 = vset.pattern.permute.xlu0 0
  %3689 = vperm.xlu0 %3688, %v3623
  %v3690 = vpop.permute.xlu0 %3689
  %v3693 = vunpack.c.l.s4 839922192
  %v3694 = vunpack.c.0.s8 %v3693
  %v3695 = vlaneseq
  %v3696 = vshrl.u32 %v3695, 7
  %v3697 = vsub.s32 %v3694, %v3696
  %v3698 = vrot.slane %v3690, %v3697
  %3700 = vset.pattern.permute.xlu0 0
  %3701 = vperm.xlu0 %3700, %v3624
  %v3702 = vpop.permute.xlu0 %3701
  %v3705 = vunpack.c.l.s4 839922192
  %v3706 = vunpack.c.0.s8 %v3705
  %v3707 = vlaneseq
  %v3708 = vshrl.u32 %v3707, 7
  %v3709 = vsub.s32 %v3706, %v3708
  %v3710 = vrot.slane %v3702, %v3709
  %3712 = vset.pattern.permute.xlu0 0
  %3713 = vperm.xlu0 %3712, %v3625
  %v3714 = vpop.permute.xlu0 %3713
  %v3717 = vunpack.c.l.s4 839922192
  %v3718 = vunpack.c.0.s8 %v3717
  %v3719 = vlaneseq
  %v3720 = vshrl.u32 %v3719, 7
  %v3721 = vsub.s32 %v3718, %v3720
  %v3722 = vrot.slane %v3714, %v3721
  %3724 = vset.pattern.permute.xlu0 0
  %3725 = vperm.xlu0 %3724, %v3626
  %v3726 = vpop.permute.xlu0 %3725
  %v3729 = vunpack.c.l.s4 839922192
  %v3730 = vunpack.c.0.s8 %v3729
  %v3731 = vlaneseq
  %v3732 = vshrl.u32 %v3731, 7
  %v3733 = vsub.s32 %v3730, %v3732
  %v3734 = vrot.slane %v3726, %v3733
  %v3736 = vshrl.u32 %v3638, 16
  %v3738 = vrot.slane %v3736, 6
  %v3739 = vshll.u32 %v3638, 16
  %v3741 = vrot.slane %v3739, 7
  %v3742 = vor.u32 %v3738, %v3741
  %v3743 = vrot.slane %v3742, 4
  %v3745 = vshrl.u32 %v3650, 16
  %v3747 = vrot.slane %v3745, 6
  %v3748 = vshll.u32 %v3650, 16
  %v3750 = vrot.slane %v3748, 7
  %v3751 = vor.u32 %v3747, %v3750
  %v3752 = vsel %vm997, %v3743, %v3751
  %v3753 = vrot.slane %v3751, 4
  %v3755 = vshrl.u32 %v3662, 16
  %v3757 = vrot.slane %v3755, 6
  %v3758 = vshll.u32 %v3662, 16
  %v3760 = vrot.slane %v3758, 7
  %v3761 = vor.u32 %v3757, %v3760
  %v3762 = vsel %vm997, %v3753, %v3761
  %v3763 = vrot.slane %v3761, 4
  %v3765 = vshrl.u32 %v3674, 16
  %v3767 = vrot.slane %v3765, 6
  %v3768 = vshll.u32 %v3674, 16
  %v3770 = vrot.slane %v3768, 7
  %v3771 = vor.u32 %v3767, %v3770
  %v3772 = vsel %vm997, %v3763, %v3771
  %v3773 = vrot.slane %v3771, 4
  %v3775 = vshrl.u32 %v3686, 16
  %v3777 = vrot.slane %v3775, 6
  %v3778 = vshll.u32 %v3686, 16
  %v3780 = vrot.slane %v3778, 7
  %v3781 = vor.u32 %v3777, %v3780
  %v3782 = vsel %vm997, %v3773, %v3781
  %v3783 = vrot.slane %v3781, 4
  %v3785 = vshrl.u32 %v3698, 16
  %v3787 = vrot.slane %v3785, 6
  %v3788 = vshll.u32 %v3698, 16
  %v3790 = vrot.slane %v3788, 7
  %v3791 = vor.u32 %v3787, %v3790
  %v3792 = vsel %vm997, %v3783, %v3791
  %v3793 = vrot.slane %v3791, 4
  %v3795 = vshrl.u32 %v3710, 16
  %v3797 = vrot.slane %v3795, 6
  %v3798 = vshll.u32 %v3710, 16
  %v3800 = vrot.slane %v3798, 7
  %v3801 = vor.u32 %v3797, %v3800
  %v3802 = vsel %vm997, %v3793, %v3801
  %v3803 = vrot.slane %v3801, 4
  %v3805 = vshrl.u32 %v3722, 16
  %v3807 = vrot.slane %v3805, 6
  %v3808 = vshll.u32 %v3722, 16
  %v3810 = vrot.slane %v3808, 7
  %v3811 = vor.u32 %v3807, %v3810
  %v3812 = vsel %vm997, %v3803, %v3811
  %v3813 = vrot.slane %v3811, 4
  %v3815 = vshrl.u32 %v3734, 16
  %v3817 = vrot.slane %v3815, 6
  %v3818 = vshll.u32 %v3734, 16
  %v3820 = vrot.slane %v3818, 7
  %v3821 = vor.u32 %v3817, %v3820
  %v3822 = vsel %vm997, %v3813, %v3821
  %v3823 = vrot.slane %v3821, 4
  %v3834 = vmul.bf16 %v3616, %v3742
  %v3835 = vmul.bf16 %v3390, %v3752
  %v3836 = vmul.bf16 %v3391, %v3762
  %v3837 = vmul.bf16 %v3392, %v3772
  %v3838 = vmul.bf16 %v3393, %v3782
  %v3839 = vmul.bf16 %v3394, %v3792
  %v3840 = vmul.bf16 %v3395, %v3802
  %v3841 = vmul.bf16 %v3396, %v3812
  %v3842 = vmul.bf16 %v3397, %v3822
  %v3843 = vmul.bf16 %v3617, %v3823
  %v3844 = vld [vmem:[#allocation2 + $0x8] sm:$0xe]
  %v3845 = vld [vmem:[#allocation2 + $0xc] sm:$0xf]
  %v3846 = vld [vmem:[#allocation2 + $0x10] sm:$0xf]
  %v3847 = vld [vmem:[#allocation2 + $0x14] sm:$0xf]
  %v3848 = vld [vmem:[#allocation2 + $0x18] sm:$0xf]
  %v3849 = vld [vmem:[#allocation2 + $0x1c] sm:$0xf]
  %v3850 = vld [vmem:[#allocation2 + $0x20] sm:$0xf]
  %v3851 = vld [vmem:[#allocation2 + $0x24] sm:$0xf]
  %v3852 = vld [vmem:[#allocation2 + $0x28] sm:$0xf]
  %v3853 = vld [vmem:[#allocation2 + $0x2c] sm:$0x1]
  %v3854 = vld [vmem:[%s1117] sm:$0xf]
  %v3855 = vld [vmem:[%s1117 + $0x4] sm:$0xf]
  %v3856 = vld [vmem:[%s1117 + $0x8] sm:$0xf]
  %v3857 = vld [vmem:[%s1117 + $0xc] sm:$0xf]
  %v3858 = vld [vmem:[%s1117 + $0x10] sm:$0xf]
  %v3859 = vld [vmem:[%s1117 + $0x14] sm:$0xf]
  %v3860 = vld [vmem:[%s1117 + $0x18] sm:$0xf]
  %v3861 = vld [vmem:[%s1117 + $0x1c] sm:$0xf]
  %v3862 = vld [vmem:[%s1117 + $0x20] sm:$0xf]
  %3864 = vset.pattern.permute.xlu0 0
  %3865 = vperm.xlu0 %3864, %v3854
  %v3866 = vpop.permute.xlu0 %3865
  %v3869 = vunpack.c.l.s4 839922192
  %v3870 = vunpack.c.0.s8 %v3869
  %v3871 = vlaneseq
  %v3872 = vshrl.u32 %v3871, 7
  %v3873 = vsub.s32 %v3870, %v3872
  %v3874 = vrot.slane %v3866, %v3873
  %3876 = vset.pattern.permute.xlu0 0
  %3877 = vperm.xlu0 %3876, %v3855
  %v3878 = vpop.permute.xlu0 %3877
  %v3881 = vunpack.c.l.s4 839922192
  %v3882 = vunpack.c.0.s8 %v3881
  %v3883 = vlaneseq
  %v3884 = vshrl.u32 %v3883, 7
  %v3885 = vsub.s32 %v3882, %v3884
  %v3886 = vrot.slane %v3878, %v3885
  %3888 = vset.pattern.permute.xlu0 0
  %3889 = vperm.xlu0 %3888, %v3856
  %v3890 = vpop.permute.xlu0 %3889
  %v3893 = vunpack.c.l.s4 839922192
  %v3894 = vunpack.c.0.s8 %v3893
  %v3895 = vlaneseq
  %v3896 = vshrl.u32 %v3895, 7
  %v3897 = vsub.s32 %v3894, %v3896
  %v3898 = vrot.slane %v3890, %v3897
  %3900 = vset.pattern.permute.xlu0 0
  %3901 = vperm.xlu0 %3900, %v3857
  %v3902 = vpop.permute.xlu0 %3901
  %v3905 = vunpack.c.l.s4 839922192
  %v3906 = vunpack.c.0.s8 %v3905
  %v3907 = vlaneseq
  %v3908 = vshrl.u32 %v3907, 7
  %v3909 = vsub.s32 %v3906, %v3908
  %v3910 = vrot.slane %v3902, %v3909
  %3912 = vset.pattern.permute.xlu0 0
  %3913 = vperm.xlu0 %3912, %v3858
  %v3914 = vpop.permute.xlu0 %3913
  %v3917 = vunpack.c.l.s4 839922192
  %v3918 = vunpack.c.0.s8 %v3917
  %v3919 = vlaneseq
  %v3920 = vshrl.u32 %v3919, 7
  %v3921 = vsub.s32 %v3918, %v3920
  %v3922 = vrot.slane %v3914, %v3921
  %3924 = vset.pattern.permute.xlu0 0
  %3925 = vperm.xlu0 %3924, %v3859
  %v3926 = vpop.permute.xlu0 %3925
  %v3929 = vunpack.c.l.s4 839922192
  %v3930 = vunpack.c.0.s8 %v3929
  %v3931 = vlaneseq
  %v3932 = vshrl.u32 %v3931, 7
  %v3933 = vsub.s32 %v3930, %v3932
  %v3934 = vrot.slane %v3926, %v3933
  %3936 = vset.pattern.permute.xlu0 0
  %3937 = vperm.xlu0 %3936, %v3860
  %v3938 = vpop.permute.xlu0 %3937
  %v3941 = vunpack.c.l.s4 839922192
  %v3942 = vunpack.c.0.s8 %v3941
  %v3943 = vlaneseq
  %v3944 = vshrl.u32 %v3943, 7
  %v3945 = vsub.s32 %v3942, %v3944
  %v3946 = vrot.slane %v3938, %v3945
  %3948 = vset.pattern.permute.xlu0 0
  %3949 = vperm.xlu0 %3948, %v3861
  %v3950 = vpop.permute.xlu0 %3949
  %v3953 = vunpack.c.l.s4 839922192
  %v3954 = vunpack.c.0.s8 %v3953
  %v3955 = vlaneseq
  %v3956 = vshrl.u32 %v3955, 7
  %v3957 = vsub.s32 %v3954, %v3956
  %v3958 = vrot.slane %v3950, %v3957
  %3960 = vset.pattern.permute.xlu0 0
  %3961 = vperm.xlu0 %3960, %v3862
  %v3962 = vpop.permute.xlu0 %3961
  %v3965 = vunpack.c.l.s4 839922192
  %v3966 = vunpack.c.0.s8 %v3965
  %v3967 = vlaneseq
  %v3968 = vshrl.u32 %v3967, 7
  %v3969 = vsub.s32 %v3966, %v3968
  %v3970 = vrot.slane %v3962, %v3969
  %v3980 = vrot.slane %v3874, 7
  %v3981 = vrot.slane %v3980, 4
  %v3982 = vrot.slane %v3886, 7
  %v3983 = vsel %vm58, %v3981, %v3982
  %v3984 = vrot.slane %v3982, 4
  %v3985 = vrot.slane %v3898, 7
  %v3986 = vsel %vm58, %v3984, %v3985
  %v3987 = vrot.slane %v3985, 4
  %v3988 = vrot.slane %v3910, 7
  %v3989 = vsel %vm58, %v3987, %v3988
  %v3990 = vrot.slane %v3988, 4
  %v3991 = vrot.slane %v3922, 7
  %v3992 = vsel %vm58, %v3990, %v3991
  %v3993 = vrot.slane %v3991, 4
  %v3994 = vrot.slane %v3934, 7
  %v3995 = vsel %vm58, %v3993, %v3994
  %v3996 = vrot.slane %v3994, 4
  %v3997 = vrot.slane %v3946, 7
  %v3998 = vsel %vm58, %v3996, %v3997
  %v3999 = vrot.slane %v3997, 4
  %v4000 = vrot.slane %v3958, 7
  %v4001 = vsel %vm58, %v3999, %v4000
  %v4002 = vrot.slane %v4000, 4
  %v4003 = vrot.slane %v3970, 7
  %v4004 = vsel %vm58, %v4002, %v4003
  %v4005 = vrot.slane %v4003, 4
  %v4016 = vmul.bf16 %v3844, %v3980
  %v4017 = vmul.bf16 %v3845, %v3983
  %v4018 = vmul.bf16 %v3846, %v3986
  %v4019 = vmul.bf16 %v3847, %v3989
  %v4020 = vmul.bf16 %v3848, %v3992
  %v4021 = vmul.bf16 %v3849, %v3995
  %v4022 = vmul.bf16 %v3850, %v3998
  %v4023 = vmul.bf16 %v3851, %v4001
  %v4024 = vmul.bf16 %v3852, %v4004
  %v4025 = vmul.bf16 %v3853, %v4005
  %v4026 = vld [vmem:[#allocation2 + $0x2c] sm:$0x3]
  %v4027 = vld [vmem:[%s1291] sm:$0xf]
  %v4028 = vld [vmem:[%s1291 + $0x4] sm:$0xf]
  %v4029 = vld [vmem:[%s1291 + $0x8] sm:$0xf]
  %v4030 = vld [vmem:[%s1291 + $0xc] sm:$0xf]
  %v4031 = vld [vmem:[%s1291 + $0x10] sm:$0xf]
  %v4032 = vld [vmem:[%s1291 + $0x14] sm:$0xf]
  %v4033 = vld [vmem:[%s1291 + $0x18] sm:$0xf]
  %v4034 = vld [vmem:[%s1291 + $0x1c] sm:$0xf]
  %v4035 = vld [vmem:[%s1291 + $0x20] sm:$0xf]
  %4037 = vset.pattern.permute.xlu0 0
  %4038 = vperm.xlu0 %4037, %v4027
  %v4039 = vpop.permute.xlu0 %4038
  %v4042 = vunpack.c.l.s4 839922192
  %v4043 = vunpack.c.0.s8 %v4042
  %v4044 = vlaneseq
  %v4045 = vshrl.u32 %v4044, 7
  %v4046 = vsub.s32 %v4043, %v4045
  %v4047 = vrot.slane %v4039, %v4046
  %4049 = vset.pattern.permute.xlu0 0
  %4050 = vperm.xlu0 %4049, %v4028
  %v4051 = vpop.permute.xlu0 %4050
  %v4054 = vunpack.c.l.s4 839922192
  %v4055 = vunpack.c.0.s8 %v4054
  %v4056 = vlaneseq
  %v4057 = vshrl.u32 %v4056, 7
  %v4058 = vsub.s32 %v4055, %v4057
  %v4059 = vrot.slane %v4051, %v4058
  %4061 = vset.pattern.permute.xlu0 0
  %4062 = vperm.xlu0 %4061, %v4029
  %v4063 = vpop.permute.xlu0 %4062
  %v4066 = vunpack.c.l.s4 839922192
  %v4067 = vunpack.c.0.s8 %v4066
  %v4068 = vlaneseq
  %v4069 = vshrl.u32 %v4068, 7
  %v4070 = vsub.s32 %v4067, %v4069
  %v4071 = vrot.slane %v4063, %v4070
  %4073 = vset.pattern.permute.xlu0 0
  %4074 = vperm.xlu0 %4073, %v4030
  %v4075 = vpop.permute.xlu0 %4074
  %v4078 = vunpack.c.l.s4 839922192
  %v4079 = vunpack.c.0.s8 %v4078
  %v4080 = vlaneseq
  %v4081 = vshrl.u32 %v4080, 7
  %v4082 = vsub.s32 %v4079, %v4081
  %v4083 = vrot.slane %v4075, %v4082
  %4085 = vset.pattern.permute.xlu0 0
  %4086 = vperm.xlu0 %4085, %v4031
  %v4087 = vpop.permute.xlu0 %4086
  %v4090 = vunpack.c.l.s4 839922192
  %v4091 = vunpack.c.0.s8 %v4090
  %v4092 = vlaneseq
  %v4093 = vshrl.u32 %v4092, 7
  %v4094 = vsub.s32 %v4091, %v4093
  %v4095 = vrot.slane %v4087, %v4094
  %4097 = vset.pattern.permute.xlu0 0
  %4098 = vperm.xlu0 %4097, %v4032
  %v4099 = vpop.permute.xlu0 %4098
  %v4102 = vunpack.c.l.s4 839922192
  %v4103 = vunpack.c.0.s8 %v4102
  %v4104 = vlaneseq
  %v4105 = vshrl.u32 %v4104, 7
  %v4106 = vsub.s32 %v4103, %v4105
  %v4107 = vrot.slane %v4099, %v4106
  %4109 = vset.pattern.permute.xlu0 0
  %4110 = vperm.xlu0 %4109, %v4033
  %v4111 = vpop.permute.xlu0 %4110
  %v4114 = vunpack.c.l.s4 839922192
  %v4115 = vunpack.c.0.s8 %v4114
  %v4116 = vlaneseq
  %v4117 = vshrl.u32 %v4116, 7
  %v4118 = vsub.s32 %v4115, %v4117
  %v4119 = vrot.slane %v4111, %v4118
  %4121 = vset.pattern.permute.xlu0 0
  %4122 = vperm.xlu0 %4121, %v4034
  %v4123 = vpop.permute.xlu0 %4122
  %v4126 = vunpack.c.l.s4 839922192
  %v4127 = vunpack.c.0.s8 %v4126
  %v4128 = vlaneseq
  %v4129 = vshrl.u32 %v4128, 7
  %v4130 = vsub.s32 %v4127, %v4129
  %v4131 = vrot.slane %v4123, %v4130
  %4133 = vset.pattern.permute.xlu0 0
  %4134 = vperm.xlu0 %4133, %v4035
  %v4135 = vpop.permute.xlu0 %4134
  %v4138 = vunpack.c.l.s4 839922192
  %v4139 = vunpack.c.0.s8 %v4138
  %v4140 = vlaneseq
  %v4141 = vshrl.u32 %v4140, 7
  %v4142 = vsub.s32 %v4139, %v4141
  %v4143 = vrot.slane %v4135, %v4142
  %v4145 = vshrl.u32 %v4047, 16
  %v4147 = vrot.slane %v4145, 6
  %v4148 = vshll.u32 %v4047, 16
  %v4150 = vrot.slane %v4148, 7
  %v4151 = vor.u32 %v4147, %v4150
  %v4152 = vrot.slane %v4151, 4
  %v4154 = vshrl.u32 %v4059, 16
  %v4156 = vrot.slane %v4154, 6
  %v4157 = vshll.u32 %v4059, 16
  %v4159 = vrot.slane %v4157, 7
  %v4160 = vor.u32 %v4156, %v4159
  %v4161 = vsel %vm997, %v4152, %v4160
  %v4162 = vrot.slane %v4160, 4
  %v4164 = vshrl.u32 %v4071, 16
  %v4166 = vrot.slane %v4164, 6
  %v4167 = vshll.u32 %v4071, 16
  %v4169 = vrot.slane %v4167, 7
  %v4170 = vor.u32 %v4166, %v4169
  %v4171 = vsel %vm997, %v4162, %v4170
  %v4172 = vrot.slane %v4170, 4
  %v4174 = vshrl.u32 %v4083, 16
  %v4176 = vrot.slane %v4174, 6
  %v4177 = vshll.u32 %v4083, 16
  %v4179 = vrot.slane %v4177, 7
  %v4180 = vor.u32 %v4176, %v4179
  %v4181 = vsel %vm997, %v4172, %v4180
  %v4182 = vrot.slane %v4180, 4
  %v4184 = vshrl.u32 %v4095, 16
  %v4186 = vrot.slane %v4184, 6
  %v4187 = vshll.u32 %v4095, 16
  %v4189 = vrot.slane %v4187, 7
  %v4190 = vor.u32 %v4186, %v4189
  %v4191 = vsel %vm997, %v4182, %v4190
  %v4192 = vrot.slane %v4190, 4
  %v4194 = vshrl.u32 %v4107, 16
  %v4196 = vrot.slane %v4194, 6
  %v4197 = vshll.u32 %v4107, 16
  %v4199 = vrot.slane %v4197, 7
  %v4200 = vor.u32 %v4196, %v4199
  %v4201 = vsel %vm997, %v4192, %v4200
  %v4202 = vrot.slane %v4200, 4
  %v4204 = vshrl.u32 %v4119, 16
  %v4206 = vrot.slane %v4204, 6
  %v4207 = vshll.u32 %v4119, 16
  %v4209 = vrot.slane %v4207, 7
  %v4210 = vor.u32 %v4206, %v4209
  %v4211 = vsel %vm997, %v4202, %v4210
  %v4212 = vrot.slane %v4210, 4
  %v4214 = vshrl.u32 %v4131, 16
  %v4216 = vrot.slane %v4214, 6
  %v4217 = vshll.u32 %v4131, 16
  %v4219 = vrot.slane %v4217, 7
  %v4220 = vor.u32 %v4216, %v4219
  %v4221 = vsel %vm997, %v4212, %v4220
  %v4222 = vrot.slane %v4220, 4
  %v4224 = vshrl.u32 %v4143, 16
  %v4226 = vrot.slane %v4224, 6
  %v4227 = vshll.u32 %v4143, 16
  %v4229 = vrot.slane %v4227, 7
  %v4230 = vor.u32 %v4226, %v4229
  %v4231 = vsel %vm997, %v4222, %v4230
  %v4232 = vrot.slane %v4230, 4
  %v4243 = vmul.bf16 %v3844, %v4151
  %v4244 = vmul.bf16 %v3845, %v4161
  %v4245 = vmul.bf16 %v3846, %v4171
  %v4246 = vmul.bf16 %v3847, %v4181
  %v4247 = vmul.bf16 %v3848, %v4191
  %v4248 = vmul.bf16 %v3849, %v4201
  %v4249 = vmul.bf16 %v3850, %v4211
  %v4250 = vmul.bf16 %v3851, %v4221
  %v4251 = vmul.bf16 %v3852, %v4231
  %v4252 = vmul.bf16 %v4026, %v4232
  %v4253 = vld [vmem:[#allocation2 + $0x8] sm:$0xc]
  %v4254 = vld [vmem:[%s1519] sm:$0xf]
  %v4255 = vld [vmem:[%s1519 + $0x4] sm:$0xf]
  %v4256 = vld [vmem:[%s1519 + $0x8] sm:$0xf]
  %v4257 = vld [vmem:[%s1519 + $0xc] sm:$0xf]
  %v4258 = vld [vmem:[%s1519 + $0x10] sm:$0xf]
  %v4259 = vld [vmem:[%s1519 + $0x14] sm:$0xf]
  %v4260 = vld [vmem:[%s1519 + $0x18] sm:$0xf]
  %v4261 = vld [vmem:[%s1519 + $0x1c] sm:$0xf]
  %v4262 = vld [vmem:[%s1519 + $0x20] sm:$0xf]
  %4264 = vset.pattern.permute.xlu0 0
  %4265 = vperm.xlu0 %4264, %v4254
  %v4266 = vpop.permute.xlu0 %4265
  %v4269 = vunpack.c.l.s4 839922192
  %v4270 = vunpack.c.0.s8 %v4269
  %v4271 = vlaneseq
  %v4272 = vshrl.u32 %v4271, 7
  %v4273 = vsub.s32 %v4270, %v4272
  %v4274 = vrot.slane %v4266, %v4273
  %4276 = vset.pattern.permute.xlu0 0
  %4277 = vperm.xlu0 %4276, %v4255
  %v4278 = vpop.permute.xlu0 %4277
  %v4281 = vunpack.c.l.s4 839922192
  %v4282 = vunpack.c.0.s8 %v4281
  %v4283 = vlaneseq
  %v4284 = vshrl.u32 %v4283, 7
  %v4285 = vsub.s32 %v4282, %v4284
  %v4286 = vrot.slane %v4278, %v4285
  %4288 = vset.pattern.permute.xlu0 0
  %4289 = vperm.xlu0 %4288, %v4256
  %v4290 = vpop.permute.xlu0 %4289
  %v4293 = vunpack.c.l.s4 839922192
  %v4294 = vunpack.c.0.s8 %v4293
  %v4295 = vlaneseq
  %v4296 = vshrl.u32 %v4295, 7
  %v4297 = vsub.s32 %v4294, %v4296
  %v4298 = vrot.slane %v4290, %v4297
  %4300 = vset.pattern.permute.xlu0 0
  %4301 = vperm.xlu0 %4300, %v4257
  %v4302 = vpop.permute.xlu0 %4301
  %v4305 = vunpack.c.l.s4 839922192
  %v4306 = vunpack.c.0.s8 %v4305
  %v4307 = vlaneseq
  %v4308 = vshrl.u32 %v4307, 7
  %v4309 = vsub.s32 %v4306, %v4308
  %v4310 = vrot.slane %v4302, %v4309
  %4312 = vset.pattern.permute.xlu0 0
  %4313 = vperm.xlu0 %4312, %v4258
  %v4314 = vpop.permute.xlu0 %4313
  %v4317 = vunpack.c.l.s4 839922192
  %v4318 = vunpack.c.0.s8 %v4317
  %v4319 = vlaneseq
  %v4320 = vshrl.u32 %v4319, 7
  %v4321 = vsub.s32 %v4318, %v4320
  %v4322 = vrot.slane %v4314, %v4321
  %4324 = vset.pattern.permute.xlu0 0
  %4325 = vperm.xlu0 %4324, %v4259
  %v4326 = vpop.permute.xlu0 %4325
  %v4329 = vunpack.c.l.s4 839922192
  %v4330 = vunpack.c.0.s8 %v4329
  %v4331 = vlaneseq
  %v4332 = vshrl.u32 %v4331, 7
  %v4333 = vsub.s32 %v4330, %v4332
  %v4334 = vrot.slane %v4326, %v4333
  %4336 = vset.pattern.permute.xlu0 0
  %4337 = vperm.xlu0 %4336, %v4260
  %v4338 = vpop.permute.xlu0 %4337
  %v4341 = vunpack.c.l.s4 839922192
  %v4342 = vunpack.c.0.s8 %v4341
  %v4343 = vlaneseq
  %v4344 = vshrl.u32 %v4343, 7
  %v4345 = vsub.s32 %v4342, %v4344
  %v4346 = vrot.slane %v4338, %v4345
  %4348 = vset.pattern.permute.xlu0 0
  %4349 = vperm.xlu0 %4348, %v4261
  %v4350 = vpop.permute.xlu0 %4349
  %v4353 = vunpack.c.l.s4 839922192
  %v4354 = vunpack.c.0.s8 %v4353
  %v4355 = vlaneseq
  %v4356 = vshrl.u32 %v4355, 7
  %v4357 = vsub.s32 %v4354, %v4356
  %v4358 = vrot.slane %v4350, %v4357
  %4360 = vset.pattern.permute.xlu0 0
  %4361 = vperm.xlu0 %4360, %v4262
  %v4362 = vpop.permute.xlu0 %4361
  %v4365 = vunpack.c.l.s4 839922192
  %v4366 = vunpack.c.0.s8 %v4365
  %v4367 = vlaneseq
  %v4368 = vshrl.u32 %v4367, 7
  %v4369 = vsub.s32 %v4366, %v4368
  %v4370 = vrot.slane %v4362, %v4369
  %v4380 = vrot.slane %v4274, 6
  %v4381 = vrot.slane %v4380, 4
  %v4382 = vrot.slane %v4286, 6
  %v4383 = vsel %vm1648, %v4381, %v4382
  %v4384 = vrot.slane %v4382, 4
  %v4385 = vrot.slane %v4298, 6
  %v4386 = vsel %vm1648, %v4384, %v4385
  %v4387 = vrot.slane %v4385, 4
  %v4388 = vrot.slane %v4310, 6
  %v4389 = vsel %vm1648, %v4387, %v4388
  %v4390 = vrot.slane %v4388, 4
  %v4391 = vrot.slane %v4322, 6
  %v4392 = vsel %vm1648, %v4390, %v4391
  %v4393 = vrot.slane %v4391, 4
  %v4394 = vrot.slane %v4334, 6
  %v4395 = vsel %vm1648, %v4393, %v4394
  %v4396 = vrot.slane %v4394, 4
  %v4397 = vrot.slane %v4346, 6
  %v4398 = vsel %vm1648, %v4396, %v4397
  %v4399 = vrot.slane %v4397, 4
  %v4400 = vrot.slane %v4358, 6
  %v4401 = vsel %vm1648, %v4399, %v4400
  %v4402 = vrot.slane %v4400, 4
  %v4403 = vrot.slane %v4370, 6
  %v4404 = vsel %vm1648, %v4402, %v4403
  %v4405 = vrot.slane %v4403, 4
  %v4416 = vmul.bf16 %v4253, %v4380
  %v4417 = vmul.bf16 %v3845, %v4383
  %v4418 = vmul.bf16 %v3846, %v4386
  %v4419 = vmul.bf16 %v3847, %v4389
  %v4420 = vmul.bf16 %v3848, %v4392
  %v4421 = vmul.bf16 %v3849, %v4395
  %v4422 = vmul.bf16 %v3850, %v4398
  %v4423 = vmul.bf16 %v3851, %v4401
  %v4424 = vmul.bf16 %v3852, %v4404
  %v4425 = vmul.bf16 %v4026, %v4405
  %v4435 = vunpack.c.l.b16 %v2980
  %v4436 = vunpack.c.l.b16 %v2981
  %v4437 = vunpack.c.l.b16 %v2982
  %v4438 = vunpack.c.l.b16 %v2983
  %v4439 = vunpack.c.l.b16 %v2984
  %v4440 = vunpack.c.l.b16 %v2985
  %v4441 = vunpack.c.l.b16 %v2986
  %v4442 = vunpack.c.l.b16 %v2987
  %v4443 = vunpack.c.l.b16 %v2988
  %v4444 = vpack.c.b16 %v4436, %v4435
  %v4445 = vpack.c.b16 %v4438, %v4437
  %v4446 = vpack.c.b16 %v4440, %v4439
  %v4447 = vpack.c.b16 %v4442, %v4441
  %v4448 = vpack.c.b16 %v4443, %v4443
  %v4459 = vunpack.c.l.b16 %v3206
  %v4460 = vunpack.c.l.b16 %v3207
  %v4461 = vunpack.c.l.b16 %v3208
  %v4462 = vunpack.c.l.b16 %v3209
  %v4463 = vunpack.c.l.b16 %v3210
  %v4464 = vunpack.c.l.b16 %v3211
  %v4465 = vunpack.c.l.b16 %v3212
  %v4466 = vunpack.c.l.b16 %v3213
  %v4467 = vunpack.c.l.b16 %v3214
  %v4468 = vunpack.c.l.b16 %v3215
  %v4469 = vpack.c.b16 %v4460, %v4459
  %v4470 = vpack.c.b16 %v4462, %v4461
  %v4471 = vpack.c.b16 %v4464, %v4463
  %v4472 = vpack.c.b16 %v4466, %v4465
  %v4473 = vpack.c.b16 %v4468, %v4467
  %v4475 = vshrl.u32 %v4469, 16
  %v4477 = vshll.u32 %v4469, 16
  %v4479 = vrot.slane %v4477, 1
  %v4480 = vor.u32 %v4475, %v4479
  %v4482 = vshll.u32 %v4470, 16
  %v4484 = vrot.slane %v4482, 1
  %v4485 = vsel %vm1743, %v4480, %v4484
  %v4486 = vshrl.u32 %v4470, 16
  %v4488 = vor.u32 %v4486, %v4484
  %v4490 = vshll.u32 %v4471, 16
  %v4492 = vrot.slane %v4490, 1
  %v4493 = vsel %vm1743, %v4488, %v4492
  %v4494 = vshrl.u32 %v4471, 16
  %v4496 = vor.u32 %v4494, %v4492
  %v4498 = vshll.u32 %v4472, 16
  %v4500 = vrot.slane %v4498, 1
  %v4501 = vsel %vm1743, %v4496, %v4500
  %v4502 = vshrl.u32 %v4472, 16
  %v4504 = vor.u32 %v4502, %v4500
  %v4506 = vshll.u32 %v4473, 16
  %v4508 = vrot.slane %v4506, 1
  %v4509 = vsel %vm1743, %v4504, %v4508
  %v4510 = vshrl.u32 %v4473, 16
  %v4512 = vor.u32 %v4510, %v4508
  %4513 = vrot.lane.b32.xlu0 %v4485, 64
  %v4514 = vpop.permute.xlu0 %4513
  %4515 = vrot.lane.b32.xlu0 %v4493, 64
  %v4516 = vpop.permute.xlu0 %4515
  %4517 = vrot.lane.b32.xlu0 %v4501, 64
  %v4518 = vpop.permute.xlu0 %4517
  %4519 = vrot.lane.b32.xlu0 %v4509, 64
  %v4520 = vpop.permute.xlu0 %4519
  %4521 = vrot.lane.b32.xlu0 %v4512, 64
  %v4522 = vpop.permute.xlu0 %4521
  %v4533 = vunpack.c.l.b16 %v3379
  %v4534 = vunpack.c.l.b16 %v3380
  %v4535 = vunpack.c.l.b16 %v3381
  %v4536 = vunpack.c.l.b16 %v3382
  %v4537 = vunpack.c.l.b16 %v3383
  %v4538 = vunpack.c.l.b16 %v3384
  %v4539 = vunpack.c.l.b16 %v3385
  %v4540 = vunpack.c.l.b16 %v3386
  %v4541 = vunpack.c.l.b16 %v3387
  %v4542 = vunpack.c.l.b16 %v3388
  %v4543 = vpack.c.b16 %v4534, %v4533
  %v4544 = vpack.c.b16 %v4536, %v4535
  %v4545 = vpack.c.b16 %v4538, %v4537
  %v4546 = vpack.c.b16 %v4540, %v4539
  %v4547 = vpack.c.b16 %v4542, %v4541
  %v4548 = vrot.slane %v4543, 1
  %v4549 = vrot.slane %v4544, 1
  %v4550 = vsel %vm1818, %v4548, %v4549
  %v4551 = vrot.slane %v4545, 1
  %v4552 = vsel %vm1818, %v4549, %v4551
  %v4553 = vrot.slane %v4546, 1
  %v4554 = vsel %vm1818, %v4551, %v4553
  %v4555 = vrot.slane %v4547, 1
  %v4556 = vsel %vm1818, %v4553, %v4555
  %v4567 = vunpack.c.l.b16 %v3606
  %v4568 = vunpack.c.l.b16 %v3607
  %v4569 = vunpack.c.l.b16 %v3608
  %v4570 = vunpack.c.l.b16 %v3609
  %v4571 = vunpack.c.l.b16 %v3610
  %v4572 = vunpack.c.l.b16 %v3611
  %v4573 = vunpack.c.l.b16 %v3612
  %v4574 = vunpack.c.l.b16 %v3613
  %v4575 = vunpack.c.l.b16 %v3614
  %v4576 = vunpack.c.l.b16 %v3615
  %v4577 = vpack.c.b16 %v4568, %v4567
  %v4578 = vpack.c.b16 %v4570, %v4569
  %v4579 = vpack.c.b16 %v4572, %v4571
  %v4580 = vpack.c.b16 %v4574, %v4573
  %v4581 = vpack.c.b16 %v4576, %v4575
  %v4583 = vshrl.u32 %v4577, 16
  %v4585 = vshll.u32 %v4577, 16
  %v4587 = vrot.slane %v4585, 1
  %v4588 = vor.u32 %v4583, %v4587
  %v4590 = vshll.u32 %v4578, 16
  %v4592 = vrot.slane %v4590, 1
  %v4593 = vsel %vm1743, %v4588, %v4592
  %v4594 = vshrl.u32 %v4578, 16
  %v4596 = vor.u32 %v4594, %v4592
  %v4598 = vshll.u32 %v4579, 16
  %v4600 = vrot.slane %v4598, 1
  %v4601 = vsel %vm1743, %v4596, %v4600
  %v4602 = vshrl.u32 %v4579, 16
  %v4604 = vor.u32 %v4602, %v4600
  %v4606 = vshll.u32 %v4580, 16
  %v4608 = vrot.slane %v4606, 1
  %v4609 = vsel %vm1743, %v4604, %v4608
  %v4610 = vshrl.u32 %v4580, 16
  %v4612 = vor.u32 %v4610, %v4608
  %v4614 = vshll.u32 %v4581, 16
  %v4616 = vrot.slane %v4614, 1
  %v4617 = vsel %vm1743, %v4612, %v4616
  %v4618 = vshrl.u32 %v4581, 16
  %v4620 = vor.u32 %v4618, %v4616
  %4621 = vrot.lane.b32.xlu0 %v4593, 64
  %v4622 = vpop.permute.xlu0 %4621
  %4623 = vrot.lane.b32.xlu0 %v4601, 64
  %v4624 = vpop.permute.xlu0 %4623
  %4625 = vrot.lane.b32.xlu0 %v4609, 64
  %v4626 = vpop.permute.xlu0 %4625
  %4627 = vrot.lane.b32.xlu0 %v4617, 64
  %v4628 = vpop.permute.xlu0 %4627
  %4629 = vrot.lane.b32.xlu0 %v4620, 64
  %v4630 = vpop.permute.xlu0 %4629
  %v4641 = vunpack.c.l.b16 %v3616
  %v4642 = vunpack.c.l.b16 %v3390
  %v4643 = vunpack.c.l.b16 %v3391
  %v4644 = vunpack.c.l.b16 %v3392
  %v4645 = vunpack.c.l.b16 %v3393
  %v4646 = vunpack.c.l.b16 %v3394
  %v4647 = vunpack.c.l.b16 %v3395
  %v4648 = vunpack.c.l.b16 %v3396
  %v4649 = vunpack.c.l.b16 %v3397
  %v4650 = vunpack.c.l.b16 %v3398
  %v4651 = vpack.c.b16 %v4642, %v4641
  %v4652 = vpack.c.b16 %v4644, %v4643
  %v4653 = vpack.c.b16 %v4646, %v4645
  %v4654 = vpack.c.b16 %v4648, %v4647
  %v4655 = vpack.c.b16 %v4650, %v4649
  %v4656 = vrot.slane %v4651, 1
  %v4657 = vrot.slane %v4652, 1
  %v4658 = vsel %vm1818, %v4656, %v4657
  %v4659 = vrot.slane %v4653, 1
  %v4660 = vsel %vm1818, %v4657, %v4659
  %v4661 = vrot.slane %v4654, 1
  %v4662 = vsel %vm1818, %v4659, %v4661
  %v4663 = vrot.slane %v4655, 1
  %v4664 = vsel %vm1818, %v4661, %v4663
  %v4675 = vunpack.c.l.b16 %v3834
  %v4676 = vunpack.c.l.b16 %v3835
  %v4677 = vunpack.c.l.b16 %v3836
  %v4678 = vunpack.c.l.b16 %v3837
  %v4679 = vunpack.c.l.b16 %v3838
  %v4680 = vunpack.c.l.b16 %v3839
  %v4681 = vunpack.c.l.b16 %v3840
  %v4682 = vunpack.c.l.b16 %v3841
  %v4683 = vunpack.c.l.b16 %v3842
  %v4684 = vunpack.c.l.b16 %v3843
  %v4685 = vpack.c.b16 %v4676, %v4675
  %v4686 = vpack.c.b16 %v4678, %v4677
  %v4687 = vpack.c.b16 %v4680, %v4679
  %v4688 = vpack.c.b16 %v4682, %v4681
  %v4689 = vpack.c.b16 %v4684, %v4683
  %v4691 = vshrl.u32 %v4685, 16
  %v4693 = vrot.slane %v4691, 1
  %v4694 = vshll.u32 %v4685, 16
  %v4696 = vrot.slane %v4694, 2
  %v4697 = vor.u32 %v4693, %v4696
  %v4699 = vshrl.u32 %v4686, 16
  %v4701 = vrot.slane %v4699, 1
  %v4702 = vshll.u32 %v4686, 16
  %v4704 = vrot.slane %v4702, 2
  %v4705 = vor.u32 %v4701, %v4704
  %v4706 = vsel %vm1961, %v4697, %v4705
  %v4708 = vshrl.u32 %v4687, 16
  %v4710 = vrot.slane %v4708, 1
  %v4711 = vshll.u32 %v4687, 16
  %v4713 = vrot.slane %v4711, 2
  %v4714 = vor.u32 %v4710, %v4713
  %v4715 = vsel %vm1961, %v4705, %v4714
  %v4717 = vshrl.u32 %v4688, 16
  %v4719 = vrot.slane %v4717, 1
  %v4720 = vshll.u32 %v4688, 16
  %v4722 = vrot.slane %v4720, 2
  %v4723 = vor.u32 %v4719, %v4722
  %v4724 = vsel %vm1961, %v4714, %v4723
  %v4726 = vshrl.u32 %v4689, 16
  %v4728 = vrot.slane %v4726, 1
  %v4729 = vshll.u32 %v4689, 16
  %v4731 = vrot.slane %v4729, 2
  %v4732 = vor.u32 %v4728, %v4731
  %v4733 = vsel %vm1961, %v4723, %v4732
  %4734 = vrot.lane.b32.xlu0 %v4706, 64
  %v4735 = vpop.permute.xlu0 %4734
  %4736 = vrot.lane.b32.xlu0 %v4715, 64
  %v4737 = vpop.permute.xlu0 %4736
  %4738 = vrot.lane.b32.xlu0 %v4724, 64
  %v4739 = vpop.permute.xlu0 %4738
  %4740 = vrot.lane.b32.xlu0 %v4733, 64
  %v4741 = vpop.permute.xlu0 %4740
  %4742 = vrot.lane.b32.xlu0 %v4732, 64
  %v4743 = vpop.permute.xlu0 %4742
  %v4754 = vunpack.c.l.b16 %v4016
  %v4755 = vunpack.c.l.b16 %v4017
  %v4756 = vunpack.c.l.b16 %v4018
  %v4757 = vunpack.c.l.b16 %v4019
  %v4758 = vunpack.c.l.b16 %v4020
  %v4759 = vunpack.c.l.b16 %v4021
  %v4760 = vunpack.c.l.b16 %v4022
  %v4761 = vunpack.c.l.b16 %v4023
  %v4762 = vunpack.c.l.b16 %v4024
  %v4763 = vunpack.c.l.b16 %v4025
  %v4764 = vpack.c.b16 %v4755, %v4754
  %v4765 = vpack.c.b16 %v4757, %v4756
  %v4766 = vpack.c.b16 %v4759, %v4758
  %v4767 = vpack.c.b16 %v4761, %v4760
  %v4768 = vpack.c.b16 %v4763, %v4762
  %v4769 = vrot.slane %v4764, 1
  %v4770 = vrot.slane %v4765, 1
  %v4771 = vsel %vm1818, %v4769, %v4770
  %v4772 = vrot.slane %v4766, 1
  %v4773 = vsel %vm1818, %v4770, %v4772
  %v4774 = vrot.slane %v4767, 1
  %v4775 = vsel %vm1818, %v4772, %v4774
  %v4776 = vrot.slane %v4768, 1
  %v4777 = vsel %vm1818, %v4774, %v4776
  %v4788 = vunpack.c.l.b16 %v4243
  %v4789 = vunpack.c.l.b16 %v4244
  %v4790 = vunpack.c.l.b16 %v4245
  %v4791 = vunpack.c.l.b16 %v4246
  %v4792 = vunpack.c.l.b16 %v4247
  %v4793 = vunpack.c.l.b16 %v4248
  %v4794 = vunpack.c.l.b16 %v4249
  %v4795 = vunpack.c.l.b16 %v4250
  %v4796 = vunpack.c.l.b16 %v4251
  %v4797 = vunpack.c.l.b16 %v4252
  %v4798 = vpack.c.b16 %v4789, %v4788
  %v4799 = vpack.c.b16 %v4791, %v4790
  %v4800 = vpack.c.b16 %v4793, %v4792
  %v4801 = vpack.c.b16 %v4795, %v4794
  %v4802 = vpack.c.b16 %v4797, %v4796
  %v4804 = vshrl.u32 %v4798, 16
  %v4806 = vrot.slane %v4804, 1
  %v4807 = vshll.u32 %v4798, 16
  %v4809 = vrot.slane %v4807, 2
  %v4810 = vor.u32 %v4806, %v4809
  %v4812 = vshrl.u32 %v4799, 16
  %v4814 = vrot.slane %v4812, 1
  %v4815 = vshll.u32 %v4799, 16
  %v4817 = vrot.slane %v4815, 2
  %v4818 = vor.u32 %v4814, %v4817
  %v4819 = vsel %vm1961, %v4810, %v4818
  %v4821 = vshrl.u32 %v4800, 16
  %v4823 = vrot.slane %v4821, 1
  %v4824 = vshll.u32 %v4800, 16
  %v4826 = vrot.slane %v4824, 2
  %v4827 = vor.u32 %v4823, %v4826
  %v4828 = vsel %vm1961, %v4818, %v4827
  %v4830 = vshrl.u32 %v4801, 16
  %v4832 = vrot.slane %v4830, 1
  %v4833 = vshll.u32 %v4801, 16
  %v4835 = vrot.slane %v4833, 2
  %v4836 = vor.u32 %v4832, %v4835
  %v4837 = vsel %vm1961, %v4827, %v4836
  %v4839 = vshrl.u32 %v4802, 16
  %v4841 = vrot.slane %v4839, 1
  %v4842 = vshll.u32 %v4802, 16
  %v4844 = vrot.slane %v4842, 2
  %v4845 = vor.u32 %v4841, %v4844
  %v4846 = vsel %vm1961, %v4836, %v4845
  %4847 = vrot.lane.b32.xlu0 %v4819, 64
  %v4848 = vpop.permute.xlu0 %4847
  %4849 = vrot.lane.b32.xlu0 %v4828, 64
  %v4850 = vpop.permute.xlu0 %4849
  %4851 = vrot.lane.b32.xlu0 %v4837, 64
  %v4852 = vpop.permute.xlu0 %4851
  %4853 = vrot.lane.b32.xlu0 %v4846, 64
  %v4854 = vpop.permute.xlu0 %4853
  %4855 = vrot.lane.b32.xlu0 %v4845, 64
  %v4856 = vpop.permute.xlu0 %4855
  %v4867 = vunpack.c.l.b16 %v4416
  %v4868 = vunpack.c.l.b16 %v4417
  %v4869 = vunpack.c.l.b16 %v4418
  %v4870 = vunpack.c.l.b16 %v4419
  %v4871 = vunpack.c.l.b16 %v4420
  %v4872 = vunpack.c.l.b16 %v4421
  %v4873 = vunpack.c.l.b16 %v4422
  %v4874 = vunpack.c.l.b16 %v4423
  %v4875 = vunpack.c.l.b16 %v4424
  %v4876 = vunpack.c.l.b16 %v4425
  %v4877 = vpack.c.b16 %v4868, %v4867
  %v4878 = vpack.c.b16 %v4870, %v4869
  %v4879 = vpack.c.b16 %v4872, %v4871
  %v4880 = vpack.c.b16 %v4874, %v4873
  %v4881 = vpack.c.b16 %v4876, %v4875
  %v4882 = vrot.slane %v4877, 2
  %v4883 = vrot.slane %v4878, 2
  %v4884 = vsel %vm2154, %v4882, %v4883
  %v4885 = vrot.slane %v4879, 2
  %v4886 = vsel %vm2154, %v4883, %v4885
  %v4887 = vrot.slane %v4880, 2
  %v4888 = vsel %vm2154, %v4885, %v4887
  %v4889 = vrot.slane %v4881, 2
  %v4890 = vsel %vm2154, %v4887, %v4889
  %v4893 = vsel %vm2164, %v4444, %v4514
  %v4897 = vsel %vm2164, %v4445, %v4516
  %v4901 = vsel %vm2164, %v4446, %v4518
  %v4905 = vsel %vm2164, %v4447, %v4520
  %v4909 = vsel %vm2164, %v4448, %v4522
  %v4913 = vsel %vm2164, %v4550, %v4622
  %v4917 = vsel %vm2164, %v4552, %v4624
  %v4921 = vsel %vm2164, %v4554, %v4626
  %v4925 = vsel %vm2164, %v4556, %v4628
  %v4929 = vsel %vm2164, %v4555, %v4630
  %v4933 = vsel %vm2164, %v4658, %v4735
  %v4937 = vsel %vm2164, %v4660, %v4737
  %v4941 = vsel %vm2164, %v4662, %v4739
  %v4945 = vsel %vm2164, %v4664, %v4741
  %v4949 = vsel %vm2164, %v4663, %v4743
  %v4953 = vsel %vm2164, %v4771, %v4848
  %v4957 = vsel %vm2164, %v4773, %v4850
  %v4961 = vsel %vm2164, %v4775, %v4852
  %v4965 = vsel %vm2164, %v4777, %v4854
  %v4969 = vsel %vm2164, %v4776, %v4856
  %v4971 = vld [vmem:[%s4] sm:$0xf]
  %v4972 = vld [vmem:[%s4 + $0x4] sm:$0xf]
  %v4973 = vld [vmem:[%s4 + $0x8] sm:$0xf]
  %v4974 = vld [vmem:[%s4 + $0xc] sm:$0xf]
  %v4975 = vld [vmem:[%s4 + $0x10] sm:$0xf]
  %v4976 = vld [vmem:[%s4 + $0x14] sm:$0xf]
  %v4977 = vld [vmem:[%s4 + $0x18] sm:$0xf]
  %v4978 = vld [vmem:[%s4 + $0x1c] sm:$0xf]
  %v4979 = vld [vmem:[%s4 + $0x20] sm:$0xf]
  %v4980 = vld [vmem:[%s4 + $0x24] sm:$0xf]
  %v4981 = vld [vmem:[%s4 + $0x28] sm:$0xf]
  %v4982 = vld [vmem:[%s4 + $0x2c] sm:$0xf]
  %v4983 = vld [vmem:[%s4 + $0x30] sm:$0xf]
  %v4984 = vld [vmem:[%s4 + $0x34] sm:$0xf]
  %v4985 = vld [vmem:[%s4 + $0x38] sm:$0xf]
  %v4986 = vld [vmem:[%s4 + $0x3c] sm:$0xf]
  %v4987 = vld [vmem:[%s4 + $0x40] sm:$0xf]
  %v4988 = vld [vmem:[%s4 + $0x44] sm:$0xf]
  %v4989 = vld [vmem:[%s4 + $0x48] sm:$0xf]
  %v4990 = vld [vmem:[%s4 + $0x4c] sm:$0xf]
  %v4991 = vld [vmem:[%s4 + $0x50] sm:$0xf]
  %v4992 = vld [vmem:[%s4 + $0x54] sm:$0xf]
  %v4993 = vld [vmem:[%s4 + $0x58] sm:$0xf]
  %v4994 = vld [vmem:[%s4 + $0x5c] sm:$0xf]
  %v4995 = vld [vmem:[%s4 + $0x60] sm:$0xf]
  %v4996 = vld [vmem:[%s4 + $0x64] sm:$0xf]
  %v4997 = vld [vmem:[%s4 + $0x68] sm:$0xf]
  %v4998 = vld [vmem:[%s4 + $0x6c] sm:$0xf]
  %v4999 = vld [vmem:[%s4 + $0x70] sm:$0xf]
  %v5000 = vld [vmem:[%s4 + $0x74] sm:$0xf]
  %v5001 = vld [vmem:[%s4 + $0x78] sm:$0xf]
  %v5002 = vld [vmem:[%s4 + $0x7c] sm:$0xf]
  %v5003 = vld [vmem:[%s4 + $0x80] sm:$0xf]
  %v5004 = vld [vmem:[%s4 + $0x84] sm:$0xf]
  %v5005 = vld [vmem:[%s4 + $0x88] sm:$0xf]
  %v5006 = vld [vmem:[%s4 + $0x8c] sm:$0xf]
  %v5007 = vld [vmem:[%s4 + $0x90] sm:$0xf]
  %v5008 = vld [vmem:[%s4 + $0x94] sm:$0xf]
  %v5009 = vld [vmem:[%s4 + $0x98] sm:$0xf]
  %v5010 = vld [vmem:[%s4 + $0x9c] sm:$0xf]
  %v5011 = vld [vmem:[%s4 + $0xa0] sm:$0xf]
  %v5012 = vld [vmem:[%s4 + $0xa4] sm:$0xf]
  %v5013 = vld [vmem:[%s4 + $0xa8] sm:$0xf]
  %v5014 = vld [vmem:[%s4 + $0xac] sm:$0xf]
  %v5015 = vld [vmem:[%s4 + $0xb0] sm:$0xf]
  %v5016 = vld [vmem:[%s4 + $0xb4] sm:$0xf]
  %v5017 = vld [vmem:[%s4 + $0xb8] sm:$0xf]
  %v5018 = vld [vmem:[%s4 + $0xbc] sm:$0xf]
  %v5019 = vld [vmem:[%s4 + $0xc0] sm:$0xf]
  %v5020 = vld [vmem:[%s4 + $0xc4] sm:$0xf]
  %v5021 = vld [vmem:[%s4 + $0xc8] sm:$0xf]
  %v5022 = vld [vmem:[%s4 + $0xcc] sm:$0xf]
  %v5023 = vld [vmem:[%s4 + $0xd0] sm:$0xf]
  %v5024 = vld [vmem:[%s4 + $0xd4] sm:$0xf]
  %v5025 = vld [vmem:[%s4 + $0xd8] sm:$0xf]
  %v5026 = vld [vmem:[%s4 + $0xdc] sm:$0xf]
  %v5027 = vld [vmem:[%s4 + $0xe0] sm:$0xf]
  %v5028 = vld [vmem:[%s4 + $0xe4] sm:$0xf]
  %v5029 = vld [vmem:[%s4 + $0xe8] sm:$0xf]
  %v5030 = vld [vmem:[%s4 + $0xec] sm:$0xf]
  %v5031 = vld [vmem:[%s4 + $0xf0] sm:$0xf]
  %v5032 = vld [vmem:[%s4 + $0xf4] sm:$0xf]
  %v5033 = vld [vmem:[%s4 + $0xf8] sm:$0xf]
  %v5034 = vld [vmem:[%s4 + $0xfc] sm:$0xf]
  %v5035 = vld [vmem:[%s4 + $0x100] sm:$0xf]
  %v5036 = vld [vmem:[%s4 + $0x104] sm:$0xf]
  %v5037 = vld [vmem:[%s4 + $0x108] sm:$0xf]
  %v5038 = vld [vmem:[%s4 + $0x10c] sm:$0xf]
  %v5039 = vld [vmem:[%s4 + $0x110] sm:$0xf]
  %v5040 = vld [vmem:[%s4 + $0x114] sm:$0xf]
  %v5041 = vld [vmem:[%s4 + $0x118] sm:$0xf]
  %v5042 = vld [vmem:[%s4 + $0x11c] sm:$0xf]
  %v5043 = vld [vmem:[%s5] sm:$0x1]
  %v5045 = vlaneseq
  %v5046 = vshrl.u32 %v5045, 7
  %v5047 = vsub.s32 0, %v5046
  %v5048 = vrot.slane %v5043, %v5047
  %v5122 = vunpack.c.l.b16 %v4971
  %v5123 = vunpack.c.l.b16 %v4972
  %v5124 = vunpack.c.l.b16 %v4973
  %v5125 = vunpack.c.l.b16 %v4974
  %v5126 = vunpack.c.l.b16 %v4975
  %v5127 = vunpack.c.l.b16 %v4976
  %v5128 = vunpack.c.l.b16 %v4977
  %v5129 = vunpack.c.l.b16 %v4978
  %v5130 = vunpack.c.l.b16 %v4979
  %v5131 = vunpack.c.l.b16 %v4980
  %v5132 = vunpack.c.l.b16 %v4981
  %v5133 = vunpack.c.l.b16 %v4982
  %v5134 = vunpack.c.l.b16 %v4983
  %v5135 = vunpack.c.l.b16 %v4984
  %v5136 = vunpack.c.l.b16 %v4985
  %v5137 = vunpack.c.l.b16 %v4986
  %v5138 = vunpack.c.l.b16 %v4987
  %v5139 = vunpack.c.l.b16 %v4988
  %v5140 = vunpack.c.l.b16 %v4989
  %v5141 = vunpack.c.l.b16 %v4990
  %v5142 = vunpack.c.l.b16 %v4991
  %v5143 = vunpack.c.l.b16 %v4992
  %v5144 = vunpack.c.l.b16 %v4993
  %v5145 = vunpack.c.l.b16 %v4994
  %v5146 = vunpack.c.l.b16 %v4995
  %v5147 = vunpack.c.l.b16 %v4996
  %v5148 = vunpack.c.l.b16 %v4997
  %v5149 = vunpack.c.l.b16 %v4998
  %v5150 = vunpack.c.l.b16 %v4999
  %v5151 = vunpack.c.l.b16 %v5000
  %v5152 = vunpack.c.l.b16 %v5001
  %v5153 = vunpack.c.l.b16 %v5002
  %v5154 = vunpack.c.l.b16 %v5003
  %v5155 = vunpack.c.l.b16 %v5004
  %v5156 = vunpack.c.l.b16 %v5005
  %v5157 = vunpack.c.l.b16 %v5006
  %v5158 = vunpack.c.l.b16 %v5007
  %v5159 = vunpack.c.l.b16 %v5008
  %v5160 = vunpack.c.l.b16 %v5009
  %v5161 = vunpack.c.l.b16 %v5010
  %v5162 = vunpack.c.l.b16 %v5011
  %v5163 = vunpack.c.l.b16 %v5012
  %v5164 = vunpack.c.l.b16 %v5013
  %v5165 = vunpack.c.l.b16 %v5014
  %v5166 = vunpack.c.l.b16 %v5015
  %v5167 = vunpack.c.l.b16 %v5016
  %v5168 = vunpack.c.l.b16 %v5017
  %v5169 = vunpack.c.l.b16 %v5018
  %v5170 = vunpack.c.l.b16 %v5019
  %v5171 = vunpack.c.l.b16 %v5020
  %v5172 = vunpack.c.l.b16 %v5021
  %v5173 = vunpack.c.l.b16 %v5022
  %v5174 = vunpack.c.l.b16 %v5023
  %v5175 = vunpack.c.l.b16 %v5024
  %v5176 = vunpack.c.l.b16 %v5025
  %v5177 = vunpack.c.l.b16 %v5026
  %v5178 = vunpack.c.l.b16 %v5027
  %v5179 = vunpack.c.l.b16 %v5028
  %v5180 = vunpack.c.l.b16 %v5029
  %v5181 = vunpack.c.l.b16 %v5030
  %v5182 = vunpack.c.l.b16 %v5031
  %v5183 = vunpack.c.l.b16 %v5032
  %v5184 = vunpack.c.l.b16 %v5033
  %v5185 = vunpack.c.l.b16 %v5034
  %v5186 = vunpack.c.l.b16 %v5035
  %v5187 = vunpack.c.l.b16 %v5036
  %v5188 = vunpack.c.l.b16 %v5037
  %v5189 = vunpack.c.l.b16 %v5038
  %v5190 = vunpack.c.l.b16 %v5039
  %v5191 = vunpack.c.l.b16 %v5040
  %v5192 = vunpack.c.l.b16 %v5041
  %v5193 = vunpack.c.l.b16 %v5042
  %v5194 = vpack.c.b16 %v5123, %v5122
  %v5195 = vpack.c.b16 %v5125, %v5124
  %v5196 = vpack.c.b16 %v5127, %v5126
  %v5197 = vpack.c.b16 %v5129, %v5128
  %v5198 = vpack.c.b16 %v5131, %v5130
  %v5199 = vpack.c.b16 %v5133, %v5132
  %v5200 = vpack.c.b16 %v5135, %v5134
  %v5201 = vpack.c.b16 %v5137, %v5136
  %v5202 = vpack.c.b16 %v5139, %v5138
  %v5203 = vpack.c.b16 %v5141, %v5140
  %v5204 = vpack.c.b16 %v5143, %v5142
  %v5205 = vpack.c.b16 %v5145, %v5144
  %v5206 = vpack.c.b16 %v5147, %v5146
  %v5207 = vpack.c.b16 %v5149, %v5148
  %v5208 = vpack.c.b16 %v5151, %v5150
  %v5209 = vpack.c.b16 %v5153, %v5152
  %v5210 = vpack.c.b16 %v5155, %v5154
  %v5211 = vpack.c.b16 %v5157, %v5156
  %v5212 = vpack.c.b16 %v5159, %v5158
  %v5213 = vpack.c.b16 %v5161, %v5160
  %v5214 = vpack.c.b16 %v5163, %v5162
  %v5215 = vpack.c.b16 %v5165, %v5164
  %v5216 = vpack.c.b16 %v5167, %v5166
  %v5217 = vpack.c.b16 %v5169, %v5168
  %v5218 = vpack.c.b16 %v5171, %v5170
  %v5219 = vpack.c.b16 %v5173, %v5172
  %v5220 = vpack.c.b16 %v5175, %v5174
  %v5221 = vpack.c.b16 %v5177, %v5176
  %v5222 = vpack.c.b16 %v5179, %v5178
  %v5223 = vpack.c.b16 %v5181, %v5180
  %v5224 = vpack.c.b16 %v5183, %v5182
  %v5225 = vpack.c.b16 %v5185, %v5184
  %v5226 = vpack.c.b16 %v5187, %v5186
  %v5227 = vpack.c.b16 %v5189, %v5188
  %v5228 = vpack.c.b16 %v5191, %v5190
  %v5229 = vpack.c.b16 %v5193, %v5192
  %v5267 = vsel %vm2164, %v4884, 0
  %v5270 = vsel %vm2164, %v4886, 0
  %v5273 = vsel %vm2164, %v4888, 0
  %v5276 = vsel %vm2164, %v4890, 0
  %v5279 = vsel %vm2164, %v4889, 0
  %5281 = vmatprep.subr.bf16.mxu0 0
  %5282 = vmatpush1.bf16.msra.mxu0 %v5201
  %5283 = vmatprep.subr.bf16.mxu0 0
  %5284 = vmatpush1.bf16.msra.mxu0 %v5200
  %5285 = vmatprep.subr.bf16.mxu0 0
  %5286 = vmatpush1.bf16.msra.mxu0 %v5199
  %5287 = vmatprep.subr.bf16.mxu0 0
  %5288 = vmatpush1.bf16.msra.mxu0 %v5198
  %5289 = vmatprep.subr.bf16.mxu0 0
  %5290 = vmatpush1.bf16.msra.mxu0 %v5197
  %5291 = vmatprep.subr.bf16.mxu0 0
  %5292 = vmatpush1.bf16.msra.mxu0 %v5196
  %5293 = vmatprep.subr.bf16.mxu0 0
  %5294 = vmatpush1.bf16.msra.mxu0 %v5195
  %5295 = vmatprep.subr.bf16.mxu0 0
  %5296 = vmatpush1.bf16.msra.mxu0 %v5194
  %5297 = vmatprep.subr.bf16.mxu0 0
  %5298 = vmatpush2.bf16.msra.mxu0 %v5209
  %5299 = vmatprep.subr.bf16.mxu0 0
  %5300 = vmatpush2.bf16.msra.mxu0 %v5208
  %5301 = vmatprep.subr.bf16.mxu0 0
  %5302 = vmatpush2.bf16.msra.mxu0 %v5207
  %5303 = vmatprep.subr.bf16.mxu0 0
  %5304 = vmatpush2.bf16.msra.mxu0 %v5206
  %5305 = vmatprep.subr.bf16.mxu0 0
  %5306 = vmatpush2.bf16.msra.mxu0 %v5205
  %5307 = vmatprep.subr.bf16.mxu0 0
  %5308 = vmatpush2.bf16.msra.mxu0 %v5204
  %5309 = vmatprep.subr.bf16.mxu0 0
  %5310 = vmatpush2.bf16.msra.mxu0 %v5203
  %5311 = vmatprep.subr.bf16.mxu0 0
  %5312 = vmatpush2.bf16.msra.mxu0 %v5202
  %5313 = vmatprep.mubr.bf16.mxu0 %v4913
  %5314 = vmatmul.mubr.bf16.gmra.mxu0 %v4893
  %v5315 = vpop.f32.mrf.mxu0
  %v5316 = vadd.f32 %v5048, %v5315
  %v5317 = vpop.f32.mrf.mxu0
  %v5318 = vpop.f32.mrf.mxu0
  %v5319 = vadd.f32 %v5048, %v5318
  %v5320 = vpop.f32.mrf.mxu0
  %5321 = vmatprep.mubr.bf16.mxu0 %v4917
  %5322 = vmatmul.mubr.bf16.gmra.mxu0 %v4897
  %v5323 = vpop.f32.mrf.mxu0
  %v5324 = vadd.f32 %v5048, %v5323
  %v5325 = vpop.f32.mrf.mxu0
  %v5326 = vpop.f32.mrf.mxu0
  %v5327 = vadd.f32 %v5048, %v5326
  %v5328 = vpop.f32.mrf.mxu0
  %5329 = vmatprep.mubr.bf16.mxu0 %v4921
  %5330 = vmatmul.mubr.bf16.gmra.mxu0 %v4901
  %v5331 = vpop.f32.mrf.mxu0
  %v5332 = vadd.f32 %v5048, %v5331
  %v5333 = vpop.f32.mrf.mxu0
  %v5334 = vpop.f32.mrf.mxu0
  %v5335 = vadd.f32 %v5048, %v5334
  %v5336 = vpop.f32.mrf.mxu0
  %5337 = vmatprep.mubr.bf16.mxu0 %v4925
  %5338 = vmatmul.mubr.bf16.gmra.mxu0 %v4905
  %v5339 = vpop.f32.mrf.mxu0
  %v5340 = vadd.f32 %v5048, %v5339
  %v5341 = vpop.f32.mrf.mxu0
  %v5342 = vpop.f32.mrf.mxu0
  %v5343 = vadd.f32 %v5048, %v5342
  %v5344 = vpop.f32.mrf.mxu0
  %5345 = vmatprep.mubr.bf16.mxu0 %v4929
  %5346 = vmatmul.mubr.bf16.gmra.mxu0 %v4909
  %v5347 = vpop.f32.mrf.mxu0
  %v5348 = vadd.f32 %v5048, %v5347
  %v5349 = vpop.f32.mrf.mxu0
  %v5350 = vpop.f32.mrf.mxu0
  %v5351 = vpop.f32.mrf.mxu0
  %5352 = vdwg.mxu0
  %5353 = vmatprep.subr.bf16.mxu0 0
  %5354 = vmatpush1.bf16.msra.mxu0 %v5217
  %5355 = vmatprep.subr.bf16.mxu0 0
  %5356 = vmatpush1.bf16.msra.mxu0 %v5216
  %5357 = vmatprep.subr.bf16.mxu0 0
  %5358 = vmatpush1.bf16.msra.mxu0 %v5215
  %5359 = vmatprep.subr.bf16.mxu0 0
  %5360 = vmatpush1.bf16.msra.mxu0 %v5214
  %5361 = vmatprep.subr.bf16.mxu0 0
  %5362 = vmatpush1.bf16.msra.mxu0 %v5213
  %5363 = vmatprep.subr.bf16.mxu0 0
  %5364 = vmatpush1.bf16.msra.mxu0 %v5212
  %5365 = vmatprep.subr.bf16.mxu0 0
  %5366 = vmatpush1.bf16.msra.mxu0 %v5211
  %5367 = vmatprep.subr.bf16.mxu0 0
  %5368 = vmatpush1.bf16.msra.mxu0 %v5210
  %5369 = vmatprep.subr.bf16.mxu0 0
  %5370 = vmatpush2.bf16.msra.mxu0 %v5225
  %5371 = vmatprep.subr.bf16.mxu0 0
  %5372 = vmatpush2.bf16.msra.mxu0 %v5224
  %5373 = vmatprep.subr.bf16.mxu0 0
  %5374 = vmatpush2.bf16.msra.mxu0 %v5223
  %5375 = vmatprep.subr.bf16.mxu0 0
  %5376 = vmatpush2.bf16.msra.mxu0 %v5222
  %5377 = vmatprep.subr.bf16.mxu0 0
  %5378 = vmatpush2.bf16.msra.mxu0 %v5221
  %5379 = vmatprep.subr.bf16.mxu0 0
  %5380 = vmatpush2.bf16.msra.mxu0 %v5220
  %5381 = vmatprep.subr.bf16.mxu0 0
  %5382 = vmatpush2.bf16.msra.mxu0 %v5219
  %5383 = vmatprep.subr.bf16.mxu0 0
  %5384 = vmatpush2.bf16.msra.mxu0 %v5218
  %5385 = vmatprep.mubr.bf16.mxu0 %v4953
  %5386 = vmatmul.mubr.bf16.gmra.mxu0 %v4933
  %v5387 = vpop.f32.mrf.mxu0
  %v5388 = vadd.f32 %v5316, %v5387
  %v5389 = vpop.f32.mrf.mxu0
  %v5390 = vpop.f32.mrf.mxu0
  %v5391 = vadd.f32 %v5319, %v5390
  %v5392 = vpop.f32.mrf.mxu0
  %5393 = vmatprep.mubr.bf16.mxu0 %v4957
  %5394 = vmatmul.mubr.bf16.gmra.mxu0 %v4937
  %v5395 = vpop.f32.mrf.mxu0
  %v5396 = vadd.f32 %v5324, %v5395
  %v5397 = vpop.f32.mrf.mxu0
  %v5398 = vpop.f32.mrf.mxu0
  %v5399 = vadd.f32 %v5327, %v5398
  %v5400 = vpop.f32.mrf.mxu0
  %5401 = vmatprep.mubr.bf16.mxu0 %v4961
  %5402 = vmatmul.mubr.bf16.gmra.mxu0 %v4941
  %v5403 = vpop.f32.mrf.mxu0
  %v5404 = vadd.f32 %v5332, %v5403
  %v5405 = vpop.f32.mrf.mxu0
  %v5406 = vpop.f32.mrf.mxu0
  %v5407 = vadd.f32 %v5335, %v5406
  %v5408 = vpop.f32.mrf.mxu0
  %5409 = vmatprep.mubr.bf16.mxu0 %v4965
  %5410 = vmatmul.mubr.bf16.gmra.mxu0 %v4945
  %v5411 = vpop.f32.mrf.mxu0
  %v5412 = vadd.f32 %v5340, %v5411
  %v5413 = vpop.f32.mrf.mxu0
  %v5414 = vpop.f32.mrf.mxu0
  %v5415 = vadd.f32 %v5343, %v5414
  %v5416 = vpop.f32.mrf.mxu0
  %5417 = vmatprep.mubr.bf16.mxu0 %v4969
  %5418 = vmatmul.mubr.bf16.gmra.mxu0 %v4949
  %v5419 = vpop.f32.mrf.mxu0
  %v5420 = vadd.f32 %v5348, %v5419
  %v5421 = vpop.f32.mrf.mxu0
  %v5422 = vpop.f32.mrf.mxu0
  %v5423 = vpop.f32.mrf.mxu0
  %5424 = vdwg.mxu0
  %5425 = vmatprep.subr.bf16.mxu0 0
  %5426 = vmatpush1.bf16.msra.mxu0 0
  %5427 = vmatprep.subr.bf16.mxu0 0
  %5428 = vmatpush1.bf16.msra.mxu0 0
  %5429 = vmatprep.subr.bf16.mxu0 0
  %5430 = vmatpush1.bf16.msra.mxu0 0
  %5431 = vmatprep.subr.bf16.mxu0 0
  %5432 = vmatpush1.bf16.msra.mxu0 0
  %5433 = vmatprep.subr.bf16.mxu0 0
  %5434 = vmatpush1.bf16.msra.mxu0 %v5229
  %5435 = vmatprep.subr.bf16.mxu0 0
  %5436 = vmatpush1.bf16.msra.mxu0 %v5228
  %5437 = vmatprep.subr.bf16.mxu0 0
  %5438 = vmatpush1.bf16.msra.mxu0 %v5227
  %5439 = vmatprep.subr.bf16.mxu0 0
  %5440 = vmatpush1.bf16.msra.mxu0 %v5226
  %5441 = vmatprep.subr.bf16.mxu0 0
  %5442 = vmatpush2.bf16.msra.mxu0 0
  %5443 = vmatprep.subr.bf16.mxu0 0
  %5444 = vmatpush2.bf16.msra.mxu0 0
  %5445 = vmatprep.subr.bf16.mxu0 0
  %5446 = vmatpush2.bf16.msra.mxu0 0
  %5447 = vmatprep.subr.bf16.mxu0 0
  %5448 = vmatpush2.bf16.msra.mxu0 0
  %5449 = vmatprep.subr.bf16.mxu0 0
  %5450 = vmatpush2.bf16.msra.mxu0 0
  %5451 = vmatprep.subr.bf16.mxu0 0
  %5452 = vmatpush2.bf16.msra.mxu0 0
  %5453 = vmatprep.subr.bf16.mxu0 0
  %5454 = vmatpush2.bf16.msra.mxu0 0
  %5455 = vmatprep.subr.bf16.mxu0 0
  %5456 = vmatpush2.bf16.msra.mxu0 0
  %5457 = vmatprep.mubr.bf16.mxu0 0
  %5458 = vmatmul.mubr.bf16.gmra.mxu0 %v5267
  %v5459 = vpop.f32.mrf.mxu0
  %v5460 = vadd.f32 %v5388, %v5459
  %v5461 = vpop.f32.mrf.mxu0
  %v5462 = vpop.f32.mrf.mxu0
  %v5463 = vadd.f32 %v5391, %v5462
  %v5464 = vpop.f32.mrf.mxu0
  %5465 = vmatprep.mubr.bf16.mxu0 0
  %5466 = vmatmul.mubr.bf16.gmra.mxu0 %v5270
  %v5467 = vpop.f32.mrf.mxu0
  %v5468 = vadd.f32 %v5396, %v5467
  %v5469 = vpop.f32.mrf.mxu0
  %v5470 = vpop.f32.mrf.mxu0
  %v5471 = vadd.f32 %v5399, %v5470
  %v5472 = vpop.f32.mrf.mxu0
  %5473 = vmatprep.mubr.bf16.mxu0 0
  %5474 = vmatmul.mubr.bf16.gmra.mxu0 %v5273
  %v5475 = vpop.f32.mrf.mxu0
  %v5476 = vadd.f32 %v5404, %v5475
  %v5477 = vpop.f32.mrf.mxu0
  %v5478 = vpop.f32.mrf.mxu0
  %v5479 = vadd.f32 %v5407, %v5478
  %v5480 = vpop.f32.mrf.mxu0
  %5481 = vmatprep.mubr.bf16.mxu0 0
  %5482 = vmatmul.mubr.bf16.gmra.mxu0 %v5276
  %v5483 = vpop.f32.mrf.mxu0
  %v5484 = vadd.f32 %v5412, %v5483
  %v5485 = vpop.f32.mrf.mxu0
  %v5486 = vpop.f32.mrf.mxu0
  %v5487 = vadd.f32 %v5415, %v5486
  %v5488 = vpop.f32.mrf.mxu0
  %5489 = vmatprep.mubr.bf16.mxu0 0
  %5490 = vmatmul.mubr.bf16.gmra.mxu0 %v5279
  %v5491 = vpop.f32.mrf.mxu0
  %v5492 = vadd.f32 %v5420, %v5491
  %v5493 = vpop.f32.mrf.mxu0
  %v5494 = vpop.f32.mrf.mxu0
  %v5495 = vpop.f32.mrf.mxu0
  %5496 = vdwg.mxu0
  %v5497 = vmax.f32 %v5460, 0.0
  %v5498 = vmax.f32 %v5463, 0.0
  %v5499 = vmax.f32 %v5468, 0.0
  %v5500 = vmax.f32 %v5471, 0.0
  %v5501 = vmax.f32 %v5476, 0.0
  %v5502 = vmax.f32 %v5479, 0.0
  %v5503 = vmax.f32 %v5484, 0.0
  %v5504 = vmax.f32 %v5487, 0.0
  %v5505 = vmax.f32 %v5492, 0.0
  %v5506 = vpack.c.bf16 %v5498, %v5497
  %v5507 = vpack.c.bf16 %v5500, %v5499
  %v5508 = vpack.c.bf16 %v5502, %v5501
  %v5509 = vpack.c.bf16 %v5504, %v5503
  %v5510 = vpack.c.bf16 %v5505, %v5505
  %v5516 = vunpack.c.l.b16 %v5506
  %v5517 = vunpack.c.h.b16 %v5506
  %v5518 = vunpack.c.l.b16 %v5507
  %v5519 = vunpack.c.h.b16 %v5507
  %v5520 = vunpack.c.l.b16 %v5508
  %v5521 = vunpack.c.h.b16 %v5508
  %v5522 = vunpack.c.l.b16 %v5509
  %v5523 = vunpack.c.h.b16 %v5509
  %v5524 = vunpack.c.l.b16 %v5510
  %v5525 = vpack.c.b16 %v5516, %v5516
  %v5526 = vpack.c.b16 %v5517, %v5517
  %v5527 = vpack.c.b16 %v5518, %v5518
  %v5528 = vpack.c.b16 %v5519, %v5519
  %v5529 = vpack.c.b16 %v5520, %v5520
  %v5530 = vpack.c.b16 %v5521, %v5521
  %v5531 = vpack.c.b16 %v5522, %v5522
  %v5532 = vpack.c.b16 %v5523, %v5523
  %v5533 = vpack.c.b16 %v5524, %v5524
  %5543 = vst.msk [vmem:[%s6] sm:$0xf] %vm24, %v5525
  %5544 = vst.msk [vmem:[%s6 + $0x4] sm:$0xf] %vm24, %v5526
  %5545 = vst.msk [vmem:[%s6 + $0x8] sm:$0xf] %vm24, %v5527
  %5546 = vst.msk [vmem:[%s6 + $0xc] sm:$0xf] %vm24, %v5528
  %5547 = vst.msk [vmem:[%s6 + $0x10] sm:$0xf] %vm24, %v5529
  %5548 = vst.msk [vmem:[%s6 + $0x14] sm:$0xf] %vm24, %v5530
  %5549 = vst.msk [vmem:[%s6 + $0x18] sm:$0xf] %vm24, %v5531
  %5550 = vst.msk [vmem:[%s6 + $0x1c] sm:$0xf] %vm24, %v5532
  %5551 = vst.msk [vmem:[%s6 + $0x20] sm:$0xf] %vm24, %v5533
  // Predicated region
  $region26: #{dnn_module_forward.4} parent=0 // pred_check
    _
  $region27: #{dnn_module_forward.4} parent=0 // pred_check_branch
    %5553 = sbr.rel (0) target = $region29
  $region28: #{dnn_module_forward.4} parent=0 // pred_region
    _
  $region29: #{dnn_module_forward.4} parent=0 // pred_fallthru
    _
  // Predicated region
  $region30: #{dnn_module_forward.4} parent=0 // pred_check
    _
  $region31: #{dnn_module_forward.4} parent=0 // pred_check_branch
    %5555 = sbr.rel (0) target = $region33
  $region32: #{dnn_module_forward.4} parent=0 // pred_region
    _
  $region33: #{dnn_module_forward.4} parent=0 // pred_fallthru
    _

// kernel: dnn_module_forward.5
$region0: #{dnn_module_forward.5}
  #allocation0 [shape = 'u32[]', space=smem, size = 0x4, offset = 0x4, fixed_abs, tag = 'smem constant byte address 0x4 - core index']
  #allocation1 [shape = 'u32[144,128]{1,0:T(1,128)}', space=vmem, size = 0x12000, scoped, tag = 'internal scratch']
  %s0 = inlined_call_operand.vmem [shape: bf16[2,2304], index: 0, kind: input, shape index: {}]
  %s1 = inlined_call_operand.vmem [shape: bf16[2304,32], index: 1, kind: input, shape index: {}]
  %s2 = inlined_call_operand.vmem [shape: f32[1,32], index: 2, kind: input, shape index: {}]
  %s3 = inlined_call_operand.vmem [shape: bf16[32,16], index: 3, kind: input, shape index: {}]
  %s4 = inlined_call_operand.vmem [shape: f32[1,16], index: 4, kind: input, shape index: {}]
  %s5 = inlined_call_operand.vmem [shape: f32[2,24,16], index: 5, kind: input, shape index: {}]
  %s6 = inlined_call_operand.vmem [shape: f32[24,24], index: 6, kind: input, shape index: {}]
  %s7 = inlined_call_operand.vmem [shape: bf16[24,100], index: 7, kind: input, shape index: {}]
  %s8 = inlined_call_operand.vmem [shape: f32[1,100], index: 8, kind: input, shape index: {}]
  %s9 = inlined_call_operand.vmem [shape: bf16[100,100], index: 9, kind: input, shape index: {}]
  %s10 = inlined_call_operand.vmem [shape: f32[1,100], index: 10, kind: input, shape index: {}]
  %s11 = inlined_call_operand.vmem [shape: bf16[100,24], index: 11, kind: input, shape index: {}]
  %s12 = inlined_call_operand.vmem [shape: f32[1,24], index: 12, kind: input, shape index: {}]
  %s13 = inlined_call_operand.vmem [shape: f32[2,128], index: 13, kind: output, shape index: {}]
  %s14 = sld [smem:[#allocation0]]
  $region62: #{dnn_module_forward.5} parent=0
    _
  %s16 = ssub.s32 1, %s14
  %s17 = scalar_select 0, %s16, %s14
  // Predicated region
  $region2: #{dnn_module_forward.5} parent=0 // pred_check
    _
  $region3: #{dnn_module_forward.5} parent=0 // pred_check_branch
    %19 = sbr.rel (0) target = $region5
  $region4: #{dnn_module_forward.5} parent=0 // pred_region
    _
  $region5: #{dnn_module_forward.5} parent=0 // pred_fallthru
    _
  // Predicated region
  $region6: #{dnn_module_forward.5} parent=0 // pred_check
    _
  $region7: #{dnn_module_forward.5} parent=0 // pred_check_branch
    %21 = sbr.rel (0) target = $region9
  $region8: #{dnn_module_forward.5} parent=0 // pred_region
    _
  $region9: #{dnn_module_forward.5} parent=0 // pred_fallthru
    _
  // Predicated region
  $region10: #{dnn_module_forward.5} parent=0 // pred_check
    _
  $region11: #{dnn_module_forward.5} parent=0 // pred_check_branch
    %23 = sbr.rel (0) target = $region13
  $region12: #{dnn_module_forward.5} parent=0 // pred_region
    _
  $region13: #{dnn_module_forward.5} parent=0 // pred_fallthru
    _
  // Predicated region
  $region14: #{dnn_module_forward.5} parent=0 // pred_check
    _
  $region15: #{dnn_module_forward.5} parent=0 // pred_check_branch
    %25 = sbr.rel (0) target = $region17
  $region16: #{dnn_module_forward.5} parent=0 // pred_region
    _
  $region17: #{dnn_module_forward.5} parent=0 // pred_fallthru
    _
  // Predicated region
  $region18: #{dnn_module_forward.5} parent=0 // pred_check
    _
  $region19: #{dnn_module_forward.5} parent=0 // pred_check_branch
    %27 = sbr.rel (0) target = $region21
  $region20: #{dnn_module_forward.5} parent=0 // pred_region
    _
  $region21: #{dnn_module_forward.5} parent=0 // pred_fallthru
    _
  // Predicated region
  $region22: #{dnn_module_forward.5} parent=0 // pred_check
    _
  $region23: #{dnn_module_forward.5} parent=0 // pred_check_branch
    %29 = sbr.rel (0) target = $region25
  $region24: #{dnn_module_forward.5} parent=0 // pred_region
    _
  $region25: #{dnn_module_forward.5} parent=0 // pred_fallthru
    _
  // Predicated region
  $region26: #{dnn_module_forward.5} parent=0 // pred_check
    _
  $region27: #{dnn_module_forward.5} parent=0 // pred_check_branch
    %31 = sbr.rel (0) target = $region29
  $region28: #{dnn_module_forward.5} parent=0 // pred_region
    _
  $region29: #{dnn_module_forward.5} parent=0 // pred_fallthru
    _
  // Predicated region
  $region30: #{dnn_module_forward.5} parent=0 // pred_check
    _
  $region31: #{dnn_module_forward.5} parent=0 // pred_check_branch
    %33 = sbr.rel (0) target = $region33
  $region32: #{dnn_module_forward.5} parent=0 // pred_region
    _
  $region33: #{dnn_module_forward.5} parent=0 // pred_fallthru
    _
  // Predicated region
  $region34: #{dnn_module_forward.5} parent=0 // pred_check
    _
  $region35: #{dnn_module_forward.5} parent=0 // pred_check_branch
    %35 = sbr.rel (0) target = $region37
  $region36: #{dnn_module_forward.5} parent=0 // pred_region
    _
  $region37: #{dnn_module_forward.5} parent=0 // pred_fallthru
    _
  // Predicated region
  $region38: #{dnn_module_forward.5} parent=0 // pred_check
    _
  $region39: #{dnn_module_forward.5} parent=0 // pred_check_branch
    %37 = sbr.rel (0) target = $region41
  $region40: #{dnn_module_forward.5} parent=0 // pred_region
    _
  $region41: #{dnn_module_forward.5} parent=0 // pred_fallthru
    _
  // Predicated region
  $region42: #{dnn_module_forward.5} parent=0 // pred_check
    _
  $region43: #{dnn_module_forward.5} parent=0 // pred_check_branch
    %39 = sbr.rel (0) target = $region45
  $region44: #{dnn_module_forward.5} parent=0 // pred_region
    _
  $region45: #{dnn_module_forward.5} parent=0 // pred_fallthru
    _
  // Predicated region
  $region46: #{dnn_module_forward.5} parent=0 // pred_check
    _
  $region47: #{dnn_module_forward.5} parent=0 // pred_check_branch
    %41 = sbr.rel (0) target = $region49
  $region48: #{dnn_module_forward.5} parent=0 // pred_region
    _
  $region49: #{dnn_module_forward.5} parent=0 // pred_fallthru
    _
  // Predicated region
  $region50: #{dnn_module_forward.5} parent=0 // pred_check
    _
  $region51: #{dnn_module_forward.5} parent=0 // pred_check_branch
    %43 = sbr.rel (0) target = $region53
  $region52: #{dnn_module_forward.5} parent=0 // pred_region
    _
  $region53: #{dnn_module_forward.5} parent=0 // pred_fallthru
    _
  %v45 = vld [vmem:[%s0] sm:$0xff]
  %v46 = vld [vmem:[%s0 + $0x8] sm:$0xff]
  %v47 = vld [vmem:[%s0 + $0x10] sm:$0x3]
  %v48 = vld [vmem:[%s1] sm:$0xf]
  %v49 = vld [vmem:[%s1 + $0x4] sm:$0xf]
  %v50 = vld [vmem:[%s1 + $0x8] sm:$0xf]
  %v51 = vld [vmem:[%s1 + $0xc] sm:$0xf]
  %v52 = vld [vmem:[%s1 + $0x10] sm:$0xf]
  %v53 = vld [vmem:[%s1 + $0x14] sm:$0xf]
  %v54 = vld [vmem:[%s1 + $0x18] sm:$0xf]
  %v55 = vld [vmem:[%s1 + $0x1c] sm:$0xf]
  %v56 = vld [vmem:[%s1 + $0x20] sm:$0xf]
  %v57 = vld [vmem:[%s1 + $0x24] sm:$0xf]
  %v58 = vld [vmem:[%s1 + $0x28] sm:$0xf]
  %v59 = vld [vmem:[%s1 + $0x2c] sm:$0xf]
  %v60 = vld [vmem:[%s1 + $0x30] sm:$0xf]
  %v61 = vld [vmem:[%s1 + $0x34] sm:$0xf]
  %v62 = vld [vmem:[%s1 + $0x38] sm:$0xf]
  %v63 = vld [vmem:[%s1 + $0x3c] sm:$0xf]
  %v64 = vld [vmem:[%s1 + $0x40] sm:$0xf]
  %v65 = vld [vmem:[%s1 + $0x44] sm:$0xf]
  %v66 = vld [vmem:[%s1 + $0x48] sm:$0xf]
  %v67 = vld [vmem:[%s1 + $0x4c] sm:$0xf]
  %v68 = vld [vmem:[%s1 + $0x50] sm:$0xf]
  %v69 = vld [vmem:[%s1 + $0x54] sm:$0xf]
  %v70 = vld [vmem:[%s1 + $0x58] sm:$0xf]
  %v71 = vld [vmem:[%s1 + $0x5c] sm:$0xf]
  %v72 = vld [vmem:[%s1 + $0x60] sm:$0xf]
  %v73 = vld [vmem:[%s1 + $0x64] sm:$0xf]
  %v74 = vld [vmem:[%s1 + $0x68] sm:$0xf]
  %v75 = vld [vmem:[%s1 + $0x6c] sm:$0xf]
  %v76 = vld [vmem:[%s1 + $0x70] sm:$0xf]
  %v77 = vld [vmem:[%s1 + $0x74] sm:$0xf]
  %v78 = vld [vmem:[%s1 + $0x78] sm:$0xf]
  %v79 = vld [vmem:[%s1 + $0x7c] sm:$0xf]
  %v80 = vld [vmem:[%s1 + $0x80] sm:$0xf]
  %v81 = vld [vmem:[%s1 + $0x84] sm:$0xf]
  %v82 = vld [vmem:[%s1 + $0x88] sm:$0xf]
  %v83 = vld [vmem:[%s1 + $0x8c] sm:$0xf]
  %v84 = vld [vmem:[%s1 + $0x90] sm:$0xf]
  %v85 = vld [vmem:[%s1 + $0x94] sm:$0xf]
  %v86 = vld [vmem:[%s1 + $0x98] sm:$0xf]
  %v87 = vld [vmem:[%s1 + $0x9c] sm:$0xf]
  %v88 = vld [vmem:[%s1 + $0xa0] sm:$0xf]
  %v89 = vld [vmem:[%s1 + $0xa4] sm:$0xf]
  %v90 = vld [vmem:[%s1 + $0xa8] sm:$0xf]
  %v91 = vld [vmem:[%s1 + $0xac] sm:$0xf]
  %v92 = vld [vmem:[%s1 + $0xb0] sm:$0xf]
  %v93 = vld [vmem:[%s1 + $0xb4] sm:$0xf]
  %v94 = vld [vmem:[%s1 + $0xb8] sm:$0xf]
  %v95 = vld [vmem:[%s1 + $0xbc] sm:$0xf]
  %v96 = vld [vmem:[%s1 + $0xc0] sm:$0xf]
  %v97 = vld [vmem:[%s1 + $0xc4] sm:$0xf]
  %v98 = vld [vmem:[%s1 + $0xc8] sm:$0xf]
  %v99 = vld [vmem:[%s1 + $0xcc] sm:$0xf]
  %v100 = vld [vmem:[%s1 + $0xd0] sm:$0xf]
  %v101 = vld [vmem:[%s1 + $0xd4] sm:$0xf]
  %v102 = vld [vmem:[%s1 + $0xd8] sm:$0xf]
  %v103 = vld [vmem:[%s1 + $0xdc] sm:$0xf]
  %v104 = vld [vmem:[%s1 + $0xe0] sm:$0xf]
  %v105 = vld [vmem:[%s1 + $0xe4] sm:$0xf]
  %v106 = vld [vmem:[%s1 + $0xe8] sm:$0xf]
  %v107 = vld [vmem:[%s1 + $0xec] sm:$0xf]
  %v108 = vld [vmem:[%s1 + $0xf0] sm:$0xf]
  %v109 = vld [vmem:[%s1 + $0xf4] sm:$0xf]
  %v110 = vld [vmem:[%s1 + $0xf8] sm:$0xf]
  %v111 = vld [vmem:[%s1 + $0xfc] sm:$0xf]
  %v112 = vld [vmem:[%s1 + $0x100] sm:$0xf]
  %v113 = vld [vmem:[%s1 + $0x104] sm:$0xf]
  %v114 = vld [vmem:[%s1 + $0x108] sm:$0xf]
  %v115 = vld [vmem:[%s1 + $0x10c] sm:$0xf]
  %v116 = vld [vmem:[%s1 + $0x110] sm:$0xf]
  %v117 = vld [vmem:[%s1 + $0x114] sm:$0xf]
  %v118 = vld [vmem:[%s1 + $0x118] sm:$0xf]
  %v119 = vld [vmem:[%s1 + $0x11c] sm:$0xf]
  %v120 = vld [vmem:[%s1 + $0x120] sm:$0xf]
  %v121 = vld [vmem:[%s1 + $0x124] sm:$0xf]
  %v122 = vld [vmem:[%s1 + $0x128] sm:$0xf]
  %v123 = vld [vmem:[%s1 + $0x12c] sm:$0xf]
  %v124 = vld [vmem:[%s1 + $0x130] sm:$0xf]
  %v125 = vld [vmem:[%s1 + $0x134] sm:$0xf]
  %v126 = vld [vmem:[%s1 + $0x138] sm:$0xf]
  %v127 = vld [vmem:[%s1 + $0x13c] sm:$0xf]
  %v128 = vld [vmem:[%s1 + $0x140] sm:$0xf]
  %v129 = vld [vmem:[%s1 + $0x144] sm:$0xf]
  %v130 = vld [vmem:[%s1 + $0x148] sm:$0xf]
  %v131 = vld [vmem:[%s1 + $0x14c] sm:$0xf]
  %v132 = vld [vmem:[%s1 + $0x150] sm:$0xf]
  %v133 = vld [vmem:[%s1 + $0x154] sm:$0xf]
  %v134 = vld [vmem:[%s1 + $0x158] sm:$0xf]
  %v135 = vld [vmem:[%s1 + $0x15c] sm:$0xf]
  %v136 = vld [vmem:[%s1 + $0x160] sm:$0xf]
  %v137 = vld [vmem:[%s1 + $0x164] sm:$0xf]
  %v138 = vld [vmem:[%s1 + $0x168] sm:$0xf]
  %v139 = vld [vmem:[%s1 + $0x16c] sm:$0xf]
  %v140 = vld [vmem:[%s1 + $0x170] sm:$0xf]
  %v141 = vld [vmem:[%s1 + $0x174] sm:$0xf]
  %v142 = vld [vmem:[%s1 + $0x178] sm:$0xf]
  %v143 = vld [vmem:[%s1 + $0x17c] sm:$0xf]
  %v144 = vld [vmem:[%s1 + $0x180] sm:$0xf]
  %v145 = vld [vmem:[%s1 + $0x184] sm:$0xf]
  %v146 = vld [vmem:[%s1 + $0x188] sm:$0xf]
  %v147 = vld [vmem:[%s1 + $0x18c] sm:$0xf]
  %v148 = vld [vmem:[%s1 + $0x190] sm:$0xf]
  %v149 = vld [vmem:[%s1 + $0x194] sm:$0xf]
  %v150 = vld [vmem:[%s1 + $0x198] sm:$0xf]
  %v151 = vld [vmem:[%s1 + $0x19c] sm:$0xf]
  %v152 = vld [vmem:[%s1 + $0x1a0] sm:$0xf]
  %v153 = vld [vmem:[%s1 + $0x1a4] sm:$0xf]
  %v154 = vld [vmem:[%s1 + $0x1a8] sm:$0xf]
  %v155 = vld [vmem:[%s1 + $0x1ac] sm:$0xf]
  %v156 = vld [vmem:[%s1 + $0x1b0] sm:$0xf]
  %v157 = vld [vmem:[%s1 + $0x1b4] sm:$0xf]
  %v158 = vld [vmem:[%s1 + $0x1b8] sm:$0xf]
  %v159 = vld [vmem:[%s1 + $0x1bc] sm:$0xf]
  %v160 = vld [vmem:[%s1 + $0x1c0] sm:$0xf]
  %v161 = vld [vmem:[%s1 + $0x1c4] sm:$0xf]
  %v162 = vld [vmem:[%s1 + $0x1c8] sm:$0xf]
  %v163 = vld [vmem:[%s1 + $0x1cc] sm:$0xf]
  %v164 = vld [vmem:[%s1 + $0x1d0] sm:$0xf]
  %v165 = vld [vmem:[%s1 + $0x1d4] sm:$0xf]
  %v166 = vld [vmem:[%s1 + $0x1d8] sm:$0xf]
  %v167 = vld [vmem:[%s1 + $0x1dc] sm:$0xf]
  %v168 = vld [vmem:[%s1 + $0x1e0] sm:$0xf]
  %v169 = vld [vmem:[%s1 + $0x1e4] sm:$0xf]
  %v170 = vld [vmem:[%s1 + $0x1e8] sm:$0xf]
  %v171 = vld [vmem:[%s1 + $0x1ec] sm:$0xf]
  %v172 = vld [vmem:[%s1 + $0x1f0] sm:$0xf]
  %v173 = vld [vmem:[%s1 + $0x1f4] sm:$0xf]
  %v174 = vld [vmem:[%s1 + $0x1f8] sm:$0xf]
  %v175 = vld [vmem:[%s1 + $0x1fc] sm:$0xf]
  %v176 = vld [vmem:[%s1 + $0x200] sm:$0xf]
  %v177 = vld [vmem:[%s1 + $0x204] sm:$0xf]
  %v178 = vld [vmem:[%s1 + $0x208] sm:$0xf]
  %v179 = vld [vmem:[%s1 + $0x20c] sm:$0xf]
  %v180 = vld [vmem:[%s1 + $0x210] sm:$0xf]
  %v181 = vld [vmem:[%s1 + $0x214] sm:$0xf]
  %v182 = vld [vmem:[%s1 + $0x218] sm:$0xf]
  %v183 = vld [vmem:[%s1 + $0x21c] sm:$0xf]
  %v184 = vld [vmem:[%s1 + $0x220] sm:$0xf]
  %v185 = vld [vmem:[%s1 + $0x224] sm:$0xf]
  %v186 = vld [vmem:[%s1 + $0x228] sm:$0xf]
  %v187 = vld [vmem:[%s1 + $0x22c] sm:$0xf]
  %v188 = vld [vmem:[%s1 + $0x230] sm:$0xf]
  %v189 = vld [vmem:[%s1 + $0x234] sm:$0xf]
  %v190 = vld [vmem:[%s1 + $0x238] sm:$0xf]
  %v191 = vld [vmem:[%s1 + $0x23c] sm:$0xf]
  %v192 = vld [vmem:[%s1 + $0x240] sm:$0xf]
  %v193 = vld [vmem:[%s1 + $0x244] sm:$0xf]
  %v194 = vld [vmem:[%s1 + $0x248] sm:$0xf]
  %v195 = vld [vmem:[%s1 + $0x24c] sm:$0xf]
  %v196 = vld [vmem:[%s1 + $0x250] sm:$0xf]
  %v197 = vld [vmem:[%s1 + $0x254] sm:$0xf]
  %v198 = vld [vmem:[%s1 + $0x258] sm:$0xf]
  %v199 = vld [vmem:[%s1 + $0x25c] sm:$0xf]
  %v200 = vld [vmem:[%s1 + $0x260] sm:$0xf]
  %v201 = vld [vmem:[%s1 + $0x264] sm:$0xf]
  %v202 = vld [vmem:[%s1 + $0x268] sm:$0xf]
  %v203 = vld [vmem:[%s1 + $0x26c] sm:$0xf]
  %v204 = vld [vmem:[%s1 + $0x270] sm:$0xf]
  %v205 = vld [vmem:[%s1 + $0x274] sm:$0xf]
  %v206 = vld [vmem:[%s1 + $0x278] sm:$0xf]
  %v207 = vld [vmem:[%s1 + $0x27c] sm:$0xf]
  %v208 = vld [vmem:[%s1 + $0x280] sm:$0xf]
  %v209 = vld [vmem:[%s1 + $0x284] sm:$0xf]
  %v210 = vld [vmem:[%s1 + $0x288] sm:$0xf]
  %v211 = vld [vmem:[%s1 + $0x28c] sm:$0xf]
  %v212 = vld [vmem:[%s1 + $0x290] sm:$0xf]
  %v213 = vld [vmem:[%s1 + $0x294] sm:$0xf]
  %v214 = vld [vmem:[%s1 + $0x298] sm:$0xf]
  %v215 = vld [vmem:[%s1 + $0x29c] sm:$0xf]
  %v216 = vld [vmem:[%s1 + $0x2a0] sm:$0xf]
  %v217 = vld [vmem:[%s1 + $0x2a4] sm:$0xf]
  %v218 = vld [vmem:[%s1 + $0x2a8] sm:$0xf]
  %v219 = vld [vmem:[%s1 + $0x2ac] sm:$0xf]
  %v220 = vld [vmem:[%s1 + $0x2b0] sm:$0xf]
  %v221 = vld [vmem:[%s1 + $0x2b4] sm:$0xf]
  %v222 = vld [vmem:[%s1 + $0x2b8] sm:$0xf]
  %v223 = vld [vmem:[%s1 + $0x2bc] sm:$0xf]
  %v224 = vld [vmem:[%s1 + $0x2c0] sm:$0xf]
  %v225 = vld [vmem:[%s1 + $0x2c4] sm:$0xf]
  %v226 = vld [vmem:[%s1 + $0x2c8] sm:$0xf]
  %v227 = vld [vmem:[%s1 + $0x2cc] sm:$0xf]
  %v228 = vld [vmem:[%s1 + $0x2d0] sm:$0xf]
  %v229 = vld [vmem:[%s1 + $0x2d4] sm:$0xf]
  %v230 = vld [vmem:[%s1 + $0x2d8] sm:$0xf]
  %v231 = vld [vmem:[%s1 + $0x2dc] sm:$0xf]
  %v232 = vld [vmem:[%s1 + $0x2e0] sm:$0xf]
  %v233 = vld [vmem:[%s1 + $0x2e4] sm:$0xf]
  %v234 = vld [vmem:[%s1 + $0x2e8] sm:$0xf]
  %v235 = vld [vmem:[%s1 + $0x2ec] sm:$0xf]
  %v236 = vld [vmem:[%s1 + $0x2f0] sm:$0xf]
  %v237 = vld [vmem:[%s1 + $0x2f4] sm:$0xf]
  %v238 = vld [vmem:[%s1 + $0x2f8] sm:$0xf]
  %v239 = vld [vmem:[%s1 + $0x2fc] sm:$0xf]
  %v240 = vld [vmem:[%s1 + $0x300] sm:$0xf]
  %v241 = vld [vmem:[%s1 + $0x304] sm:$0xf]
  %v242 = vld [vmem:[%s1 + $0x308] sm:$0xf]
  %v243 = vld [vmem:[%s1 + $0x30c] sm:$0xf]
  %v244 = vld [vmem:[%s1 + $0x310] sm:$0xf]
  %v245 = vld [vmem:[%s1 + $0x314] sm:$0xf]
  %v246 = vld [vmem:[%s1 + $0x318] sm:$0xf]
  %v247 = vld [vmem:[%s1 + $0x31c] sm:$0xf]
  %v248 = vld [vmem:[%s1 + $0x320] sm:$0xf]
  %v249 = vld [vmem:[%s1 + $0x324] sm:$0xf]
  %v250 = vld [vmem:[%s1 + $0x328] sm:$0xf]
  %v251 = vld [vmem:[%s1 + $0x32c] sm:$0xf]
  %v252 = vld [vmem:[%s1 + $0x330] sm:$0xf]
  %v253 = vld [vmem:[%s1 + $0x334] sm:$0xf]
  %v254 = vld [vmem:[%s1 + $0x338] sm:$0xf]
  %v255 = vld [vmem:[%s1 + $0x33c] sm:$0xf]
  %v256 = vld [vmem:[%s1 + $0x340] sm:$0xf]
  %v257 = vld [vmem:[%s1 + $0x344] sm:$0xf]
  %v258 = vld [vmem:[%s1 + $0x348] sm:$0xf]
  %v259 = vld [vmem:[%s1 + $0x34c] sm:$0xf]
  %v260 = vld [vmem:[%s1 + $0x350] sm:$0xf]
  %v261 = vld [vmem:[%s1 + $0x354] sm:$0xf]
  %v262 = vld [vmem:[%s1 + $0x358] sm:$0xf]
  %v263 = vld [vmem:[%s1 + $0x35c] sm:$0xf]
  %v264 = vld [vmem:[%s1 + $0x360] sm:$0xf]
  %v265 = vld [vmem:[%s1 + $0x364] sm:$0xf]
  %v266 = vld [vmem:[%s1 + $0x368] sm:$0xf]
  %v267 = vld [vmem:[%s1 + $0x36c] sm:$0xf]
  %v268 = vld [vmem:[%s1 + $0x370] sm:$0xf]
  %v269 = vld [vmem:[%s1 + $0x374] sm:$0xf]
  %v270 = vld [vmem:[%s1 + $0x378] sm:$0xf]
  %v271 = vld [vmem:[%s1 + $0x37c] sm:$0xf]
  %v272 = vld [vmem:[%s1 + $0x380] sm:$0xf]
  %v273 = vld [vmem:[%s1 + $0x384] sm:$0xf]
  %v274 = vld [vmem:[%s1 + $0x388] sm:$0xf]
  %v275 = vld [vmem:[%s1 + $0x38c] sm:$0xf]
  %v276 = vld [vmem:[%s1 + $0x390] sm:$0xf]
  %v277 = vld [vmem:[%s1 + $0x394] sm:$0xf]
  %v278 = vld [vmem:[%s1 + $0x398] sm:$0xf]
  %v279 = vld [vmem:[%s1 + $0x39c] sm:$0xf]
  %v280 = vld [vmem:[%s1 + $0x3a0] sm:$0xf]
  %v281 = vld [vmem:[%s1 + $0x3a4] sm:$0xf]
  %v282 = vld [vmem:[%s1 + $0x3a8] sm:$0xf]
  %v283 = vld [vmem:[%s1 + $0x3ac] sm:$0xf]
  %v284 = vld [vmem:[%s1 + $0x3b0] sm:$0xf]
  %v285 = vld [vmem:[%s1 + $0x3b4] sm:$0xf]
  %v286 = vld [vmem:[%s1 + $0x3b8] sm:$0xf]
  %v287 = vld [vmem:[%s1 + $0x3bc] sm:$0xf]
  %v288 = vld [vmem:[%s1 + $0x3c0] sm:$0xf]
  %v289 = vld [vmem:[%s1 + $0x3c4] sm:$0xf]
  %v290 = vld [vmem:[%s1 + $0x3c8] sm:$0xf]
  %v291 = vld [vmem:[%s1 + $0x3cc] sm:$0xf]
  %v292 = vld [vmem:[%s1 + $0x3d0] sm:$0xf]
  %v293 = vld [vmem:[%s1 + $0x3d4] sm:$0xf]
  %v294 = vld [vmem:[%s1 + $0x3d8] sm:$0xf]
  %v295 = vld [vmem:[%s1 + $0x3dc] sm:$0xf]
  %v296 = vld [vmem:[%s1 + $0x3e0] sm:$0xf]
  %v297 = vld [vmem:[%s1 + $0x3e4] sm:$0xf]
  %v298 = vld [vmem:[%s1 + $0x3e8] sm:$0xf]
  %v299 = vld [vmem:[%s1 + $0x3ec] sm:$0xf]
  %v300 = vld [vmem:[%s1 + $0x3f0] sm:$0xf]
  %v301 = vld [vmem:[%s1 + $0x3f4] sm:$0xf]
  %v302 = vld [vmem:[%s1 + $0x3f8] sm:$0xf]
  %v303 = vld [vmem:[%s1 + $0x3fc] sm:$0xf]
  %v304 = vld [vmem:[%s1 + $0x400] sm:$0xf]
  %v305 = vld [vmem:[%s1 + $0x404] sm:$0xf]
  %v306 = vld [vmem:[%s1 + $0x408] sm:$0xf]
  %v307 = vld [vmem:[%s1 + $0x40c] sm:$0xf]
  %v308 = vld [vmem:[%s1 + $0x410] sm:$0xf]
  %v309 = vld [vmem:[%s1 + $0x414] sm:$0xf]
  %v310 = vld [vmem:[%s1 + $0x418] sm:$0xf]
  %v311 = vld [vmem:[%s1 + $0x41c] sm:$0xf]
  %v312 = vld [vmem:[%s1 + $0x420] sm:$0xf]
  %v313 = vld [vmem:[%s1 + $0x424] sm:$0xf]
  %v314 = vld [vmem:[%s1 + $0x428] sm:$0xf]
  %v315 = vld [vmem:[%s1 + $0x42c] sm:$0xf]
  %v316 = vld [vmem:[%s1 + $0x430] sm:$0xf]
  %v317 = vld [vmem:[%s1 + $0x434] sm:$0xf]
  %v318 = vld [vmem:[%s1 + $0x438] sm:$0xf]
  %v319 = vld [vmem:[%s1 + $0x43c] sm:$0xf]
  %v320 = vld [vmem:[%s1 + $0x440] sm:$0xf]
  %v321 = vld [vmem:[%s1 + $0x444] sm:$0xf]
  %v322 = vld [vmem:[%s1 + $0x448] sm:$0xf]
  %v323 = vld [vmem:[%s1 + $0x44c] sm:$0xf]
  %v324 = vld [vmem:[%s1 + $0x450] sm:$0xf]
  %v325 = vld [vmem:[%s1 + $0x454] sm:$0xf]
  %v326 = vld [vmem:[%s1 + $0x458] sm:$0xf]
  %v327 = vld [vmem:[%s1 + $0x45c] sm:$0xf]
  %v328 = vld [vmem:[%s1 + $0x460] sm:$0xf]
  %v329 = vld [vmem:[%s1 + $0x464] sm:$0xf]
  %v330 = vld [vmem:[%s1 + $0x468] sm:$0xf]
  %v331 = vld [vmem:[%s1 + $0x46c] sm:$0xf]
  %v332 = vld [vmem:[%s1 + $0x470] sm:$0xf]
  %v333 = vld [vmem:[%s1 + $0x474] sm:$0xf]
  %v334 = vld [vmem:[%s1 + $0x478] sm:$0xf]
  %v335 = vld [vmem:[%s1 + $0x47c] sm:$0xf]
  %v336 = vld [vmem:[%s2] sm:$0x1]
  %v338 = vlaneseq
  %v339 = vshrl.u32 %v338, 7
  %v340 = vsub.s32 0, %v339
  %v341 = vrot.slane %v336, %v340
  %v346 = vcombine.high %v45, %v45
  %v348 = vunpack.c.l.s4 1966171168
  %v349 = vunpack.c.0.s8 %v348
  %v350 = vlaneseq
  %v351 = vshrl.u32 %v350, 7
  %v352 = vsub.s32 %v349, %v351
  %v353 = vrot.slane %v45, %v352
  %v355 = vunpack.c.l.s4 1966171168
  %v356 = vunpack.c.0.s8 %v355
  %v357 = vlaneseq
  %v358 = vshrl.u32 %v357, 7
  %v359 = vsub.s32 %v356, %v358
  %v360 = vrot.slane %v346, %v359
  %v361 = vcombine.high %v353, %v353
  %v362 = vcombine.high %v360, %v360
  %v364 = vunpack.c.l.s4 1966171168
  %v365 = vunpack.c.0.s8 %v364
  %v366 = vlaneseq
  %v367 = vshrl.u32 %v366, 7
  %v368 = vsub.s32 %v365, %v367
  %v369 = vrot.slane %v353, %v368
  %v371 = vunpack.c.l.s4 1966171168
  %v372 = vunpack.c.0.s8 %v371
  %v373 = vlaneseq
  %v374 = vshrl.u32 %v373, 7
  %v375 = vsub.s32 %v372, %v374
  %v376 = vrot.slane %v360, %v375
  %v378 = vunpack.c.l.s4 1966171168
  %v379 = vunpack.c.0.s8 %v378
  %v380 = vlaneseq
  %v381 = vshrl.u32 %v380, 7
  %v382 = vsub.s32 %v379, %v381
  %v383 = vrot.slane %v361, %v382
  %v385 = vunpack.c.l.s4 1966171168
  %v386 = vunpack.c.0.s8 %v385
  %v387 = vlaneseq
  %v388 = vshrl.u32 %v387, 7
  %v389 = vsub.s32 %v386, %v388
  %v390 = vrot.slane %v362, %v389
  %v391 = vcombine.high %v369, %v369
  %v392 = vcombine.high %v376, %v376
  %v393 = vcombine.high %v383, %v383
  %v394 = vcombine.high %v390, %v390
  %v395 = vcombine.high %v46, %v46
  %v397 = vunpack.c.l.s4 1966171168
  %v398 = vunpack.c.0.s8 %v397
  %v399 = vlaneseq
  %v400 = vshrl.u32 %v399, 7
  %v401 = vsub.s32 %v398, %v400
  %v402 = vrot.slane %v46, %v401
  %v404 = vunpack.c.l.s4 1966171168
  %v405 = vunpack.c.0.s8 %v404
  %v406 = vlaneseq
  %v407 = vshrl.u32 %v406, 7
  %v408 = vsub.s32 %v405, %v407
  %v409 = vrot.slane %v395, %v408
  %v410 = vcombine.high %v402, %v402
  %v411 = vcombine.high %v409, %v409
  %v413 = vunpack.c.l.s4 1966171168
  %v414 = vunpack.c.0.s8 %v413
  %v415 = vlaneseq
  %v416 = vshrl.u32 %v415, 7
  %v417 = vsub.s32 %v414, %v416
  %v418 = vrot.slane %v402, %v417
  %v420 = vunpack.c.l.s4 1966171168
  %v421 = vunpack.c.0.s8 %v420
  %v422 = vlaneseq
  %v423 = vshrl.u32 %v422, 7
  %v424 = vsub.s32 %v421, %v423
  %v425 = vrot.slane %v409, %v424
  %v427 = vunpack.c.l.s4 1966171168
  %v428 = vunpack.c.0.s8 %v427
  %v429 = vlaneseq
  %v430 = vshrl.u32 %v429, 7
  %v431 = vsub.s32 %v428, %v430
  %v432 = vrot.slane %v410, %v431
  %v434 = vunpack.c.l.s4 1966171168
  %v435 = vunpack.c.0.s8 %v434
  %v436 = vlaneseq
  %v437 = vshrl.u32 %v436, 7
  %v438 = vsub.s32 %v435, %v437
  %v439 = vrot.slane %v411, %v438
  %v440 = vcombine.high %v418, %v418
  %v441 = vcombine.high %v425, %v425
  %v442 = vcombine.high %v432, %v432
  %v443 = vcombine.high %v439, %v439
  %v445 = vunpack.c.l.s4 1966171168
  %v446 = vunpack.c.0.s8 %v445
  %v447 = vlaneseq
  %v448 = vshrl.u32 %v447, 7
  %v449 = vsub.s32 %v446, %v448
  %v450 = vrot.slane %v47, %v449
  %v451 = vcombine.high %v450, %v450
  %v453 = vunpack.c.l.s4 1966171168
  %v454 = vunpack.c.0.s8 %v453
  %v455 = vlaneseq
  %v456 = vshrl.u32 %v455, 7
  %v457 = vsub.s32 %v454, %v456
  %v458 = vrot.slane %v450, %v457
  %v460 = vunpack.c.l.s4 1966171168
  %v461 = vunpack.c.0.s8 %v460
  %v462 = vlaneseq
  %v463 = vshrl.u32 %v462, 7
  %v464 = vsub.s32 %v461, %v463
  %v465 = vrot.slane %v451, %v464
  %v772 = vunpack.c.l.b16 %v48
  %v773 = vunpack.c.l.b16 %v49
  %v774 = vunpack.c.l.b16 %v50
  %v775 = vunpack.c.l.b16 %v51
  %v776 = vunpack.c.l.b16 %v52
  %v777 = vunpack.c.l.b16 %v53
  %v778 = vunpack.c.l.b16 %v54
  %v779 = vunpack.c.l.b16 %v55
  %v780 = vunpack.c.l.b16 %v56
  %v781 = vunpack.c.l.b16 %v57
  %v782 = vunpack.c.l.b16 %v58
  %v783 = vunpack.c.l.b16 %v59
  %v784 = vunpack.c.l.b16 %v60
  %v785 = vunpack.c.l.b16 %v61
  %v786 = vunpack.c.l.b16 %v62
  %v787 = vunpack.c.l.b16 %v63
  %v788 = vunpack.c.l.b16 %v64
  %v789 = vunpack.c.l.b16 %v65
  %v790 = vunpack.c.l.b16 %v66
  %v791 = vunpack.c.l.b16 %v67
  %v792 = vunpack.c.l.b16 %v68
  %v793 = vunpack.c.l.b16 %v69
  %v794 = vunpack.c.l.b16 %v70
  %v795 = vunpack.c.l.b16 %v71
  %v796 = vunpack.c.l.b16 %v72
  %v797 = vunpack.c.l.b16 %v73
  %v798 = vunpack.c.l.b16 %v74
  %v799 = vunpack.c.l.b16 %v75
  %v800 = vunpack.c.l.b16 %v76
  %v801 = vunpack.c.l.b16 %v77
  %v802 = vunpack.c.l.b16 %v78
  %v803 = vunpack.c.l.b16 %v79
  %v804 = vunpack.c.l.b16 %v80
  %v805 = vunpack.c.l.b16 %v81
  %v806 = vunpack.c.l.b16 %v82
  %v807 = vunpack.c.l.b16 %v83
  %v808 = vunpack.c.l.b16 %v84
  %v809 = vunpack.c.l.b16 %v85
  %v810 = vunpack.c.l.b16 %v86
  %v811 = vunpack.c.l.b16 %v87
  %v812 = vunpack.c.l.b16 %v88
  %v813 = vunpack.c.l.b16 %v89
  %v814 = vunpack.c.l.b16 %v90
  %v815 = vunpack.c.l.b16 %v91
  %v816 = vunpack.c.l.b16 %v92
  %v817 = vunpack.c.l.b16 %v93
  %v818 = vunpack.c.l.b16 %v94
  %v819 = vunpack.c.l.b16 %v95
  %v820 = vunpack.c.l.b16 %v96
  %v821 = vunpack.c.l.b16 %v97
  %v822 = vunpack.c.l.b16 %v98
  %v823 = vunpack.c.l.b16 %v99
  %v824 = vunpack.c.l.b16 %v100
  %v825 = vunpack.c.l.b16 %v101
  %v826 = vunpack.c.l.b16 %v102
  %v827 = vunpack.c.l.b16 %v103
  %v828 = vunpack.c.l.b16 %v104
  %v829 = vunpack.c.l.b16 %v105
  %v830 = vunpack.c.l.b16 %v106
  %v831 = vunpack.c.l.b16 %v107
  %v832 = vunpack.c.l.b16 %v108
  %v833 = vunpack.c.l.b16 %v109
  %v834 = vunpack.c.l.b16 %v110
  %v835 = vunpack.c.l.b16 %v111
  %v836 = vunpack.c.l.b16 %v112
  %v837 = vunpack.c.l.b16 %v113
  %v838 = vunpack.c.l.b16 %v114
  %v839 = vunpack.c.l.b16 %v115
  %v840 = vunpack.c.l.b16 %v116
  %v841 = vunpack.c.l.b16 %v117
  %v842 = vunpack.c.l.b16 %v118
  %v843 = vunpack.c.l.b16 %v119
  %v844 = vunpack.c.l.b16 %v120
  %v845 = vunpack.c.l.b16 %v121
  %v846 = vunpack.c.l.b16 %v122
  %v847 = vunpack.c.l.b16 %v123
  %v848 = vunpack.c.l.b16 %v124
  %v849 = vunpack.c.l.b16 %v125
  %v850 = vunpack.c.l.b16 %v126
  %v851 = vunpack.c.l.b16 %v127
  %v852 = vunpack.c.l.b16 %v128
  %v853 = vunpack.c.l.b16 %v129
  %v854 = vunpack.c.l.b16 %v130
  %v855 = vunpack.c.l.b16 %v131
  %v856 = vunpack.c.l.b16 %v132
  %v857 = vunpack.c.l.b16 %v133
  %v858 = vunpack.c.l.b16 %v134
  %v859 = vunpack.c.l.b16 %v135
  %v860 = vunpack.c.l.b16 %v136
  %v861 = vunpack.c.l.b16 %v137
  %v862 = vunpack.c.l.b16 %v138
  %v863 = vunpack.c.l.b16 %v139
  %v864 = vunpack.c.l.b16 %v140
  %v865 = vunpack.c.l.b16 %v141
  %v866 = vunpack.c.l.b16 %v142
  %v867 = vunpack.c.l.b16 %v143
  %v868 = vunpack.c.l.b16 %v144
  %v869 = vunpack.c.l.b16 %v145
  %v870 = vunpack.c.l.b16 %v146
  %v871 = vunpack.c.l.b16 %v147
  %v872 = vunpack.c.l.b16 %v148
  %v873 = vunpack.c.l.b16 %v149
  %v874 = vunpack.c.l.b16 %v150
  %v875 = vunpack.c.l.b16 %v151
  %v876 = vunpack.c.l.b16 %v152
  %v877 = vunpack.c.l.b16 %v153
  %v878 = vunpack.c.l.b16 %v154
  %v879 = vunpack.c.l.b16 %v155
  %v880 = vunpack.c.l.b16 %v156
  %v881 = vunpack.c.l.b16 %v157
  %v882 = vunpack.c.l.b16 %v158
  %v883 = vunpack.c.l.b16 %v159
  %v884 = vunpack.c.l.b16 %v160
  %v885 = vunpack.c.l.b16 %v161
  %v886 = vunpack.c.l.b16 %v162
  %v887 = vunpack.c.l.b16 %v163
  %v888 = vunpack.c.l.b16 %v164
  %v889 = vunpack.c.l.b16 %v165
  %v890 = vunpack.c.l.b16 %v166
  %v891 = vunpack.c.l.b16 %v167
  %v892 = vunpack.c.l.b16 %v168
  %v893 = vunpack.c.l.b16 %v169
  %v894 = vunpack.c.l.b16 %v170
  %v895 = vunpack.c.l.b16 %v171
  %v896 = vunpack.c.l.b16 %v172
  %v897 = vunpack.c.l.b16 %v173
  %v898 = vunpack.c.l.b16 %v174
  %v899 = vunpack.c.l.b16 %v175
  %v900 = vunpack.c.l.b16 %v176
  %v901 = vunpack.c.l.b16 %v177
  %v902 = vunpack.c.l.b16 %v178
  %v903 = vunpack.c.l.b16 %v179
  %v904 = vunpack.c.l.b16 %v180
  %v905 = vunpack.c.l.b16 %v181
  %v906 = vunpack.c.l.b16 %v182
  %v907 = vunpack.c.l.b16 %v183
  %v908 = vunpack.c.l.b16 %v184
  %v909 = vunpack.c.l.b16 %v185
  %v910 = vunpack.c.l.b16 %v186
  %v911 = vunpack.c.l.b16 %v187
  %v912 = vunpack.c.l.b16 %v188
  %v913 = vunpack.c.l.b16 %v189
  %v914 = vunpack.c.l.b16 %v190
  %v915 = vunpack.c.l.b16 %v191
  %v916 = vunpack.c.l.b16 %v192
  %v917 = vunpack.c.l.b16 %v193
  %v918 = vunpack.c.l.b16 %v194
  %v919 = vunpack.c.l.b16 %v195
  %v920 = vunpack.c.l.b16 %v196
  %v921 = vunpack.c.l.b16 %v197
  %v922 = vunpack.c.l.b16 %v198
  %v923 = vunpack.c.l.b16 %v199
  %v924 = vunpack.c.l.b16 %v200
  %v925 = vunpack.c.l.b16 %v201
  %v926 = vunpack.c.l.b16 %v202
  %v927 = vunpack.c.l.b16 %v203
  %v928 = vunpack.c.l.b16 %v204
  %v929 = vunpack.c.l.b16 %v205
  %v930 = vunpack.c.l.b16 %v206
  %v931 = vunpack.c.l.b16 %v207
  %v932 = vunpack.c.l.b16 %v208
  %v933 = vunpack.c.l.b16 %v209
  %v934 = vunpack.c.l.b16 %v210
  %v935 = vunpack.c.l.b16 %v211
  %v936 = vunpack.c.l.b16 %v212
  %v937 = vunpack.c.l.b16 %v213
  %v938 = vunpack.c.l.b16 %v214
  %v939 = vunpack.c.l.b16 %v215
  %v940 = vunpack.c.l.b16 %v216
  %v941 = vunpack.c.l.b16 %v217
  %v942 = vunpack.c.l.b16 %v218
  %v943 = vunpack.c.l.b16 %v219
  %v944 = vunpack.c.l.b16 %v220
  %v945 = vunpack.c.l.b16 %v221
  %v946 = vunpack.c.l.b16 %v222
  %v947 = vunpack.c.l.b16 %v223
  %v948 = vunpack.c.l.b16 %v224
  %v949 = vunpack.c.l.b16 %v225
  %v950 = vunpack.c.l.b16 %v226
  %v951 = vunpack.c.l.b16 %v227
  %v952 = vunpack.c.l.b16 %v228
  %v953 = vunpack.c.l.b16 %v229
  %v954 = vunpack.c.l.b16 %v230
  %v955 = vunpack.c.l.b16 %v231
  %v956 = vunpack.c.l.b16 %v232
  %v957 = vunpack.c.l.b16 %v233
  %v958 = vunpack.c.l.b16 %v234
  %v959 = vunpack.c.l.b16 %v235
  %v960 = vunpack.c.l.b16 %v236
  %v961 = vunpack.c.l.b16 %v237
  %v962 = vunpack.c.l.b16 %v238
  %v963 = vunpack.c.l.b16 %v239
  %v964 = vunpack.c.l.b16 %v240
  %v965 = vunpack.c.l.b16 %v241
  %v966 = vunpack.c.l.b16 %v242
  %v967 = vunpack.c.l.b16 %v243
  %v968 = vunpack.c.l.b16 %v244
  %v969 = vunpack.c.l.b16 %v245
  %v970 = vunpack.c.l.b16 %v246
  %v971 = vunpack.c.l.b16 %v247
  %v972 = vunpack.c.l.b16 %v248
  %v973 = vunpack.c.l.b16 %v249
  %v974 = vunpack.c.l.b16 %v250
  %v975 = vunpack.c.l.b16 %v251
  %v976 = vunpack.c.l.b16 %v252
  %v977 = vunpack.c.l.b16 %v253
  %v978 = vunpack.c.l.b16 %v254
  %v979 = vunpack.c.l.b16 %v255
  %v980 = vunpack.c.l.b16 %v256
  %v981 = vunpack.c.l.b16 %v257
  %v982 = vunpack.c.l.b16 %v258
  %v983 = vunpack.c.l.b16 %v259
  %v984 = vunpack.c.l.b16 %v260
  %v985 = vunpack.c.l.b16 %v261
  %v986 = vunpack.c.l.b16 %v262
  %v987 = vunpack.c.l.b16 %v263
  %v988 = vunpack.c.l.b16 %v264
  %v989 = vunpack.c.l.b16 %v265
  %v990 = vunpack.c.l.b16 %v266
  %v991 = vunpack.c.l.b16 %v267
  %v992 = vunpack.c.l.b16 %v268
  %v993 = vunpack.c.l.b16 %v269
  %v994 = vunpack.c.l.b16 %v270
  %v995 = vunpack.c.l.b16 %v271
  %v996 = vunpack.c.l.b16 %v272
  %v997 = vunpack.c.l.b16 %v273
  %v998 = vunpack.c.l.b16 %v274
  %v999 = vunpack.c.l.b16 %v275
  %v1000 = vunpack.c.l.b16 %v276
  %v1001 = vunpack.c.l.b16 %v277
  %v1002 = vunpack.c.l.b16 %v278
  %v1003 = vunpack.c.l.b16 %v279
  %v1004 = vunpack.c.l.b16 %v280
  %v1005 = vunpack.c.l.b16 %v281
  %v1006 = vunpack.c.l.b16 %v282
  %v1007 = vunpack.c.l.b16 %v283
  %v1008 = vunpack.c.l.b16 %v284
  %v1009 = vunpack.c.l.b16 %v285
  %v1010 = vunpack.c.l.b16 %v286
  %v1011 = vunpack.c.l.b16 %v287
  %v1012 = vunpack.c.l.b16 %v288
  %v1013 = vunpack.c.l.b16 %v289
  %v1014 = vunpack.c.l.b16 %v290
  %v1015 = vunpack.c.l.b16 %v291
  %v1016 = vunpack.c.l.b16 %v292
  %v1017 = vunpack.c.l.b16 %v293
  %v1018 = vunpack.c.l.b16 %v294
  %v1019 = vunpack.c.l.b16 %v295
  %v1020 = vunpack.c.l.b16 %v296
  %v1021 = vunpack.c.l.b16 %v297
  %v1022 = vunpack.c.l.b16 %v298
  %v1023 = vunpack.c.l.b16 %v299
  %v1024 = vunpack.c.l.b16 %v300
  %v1025 = vunpack.c.l.b16 %v301
  %v1026 = vunpack.c.l.b16 %v302
  %v1027 = vunpack.c.l.b16 %v303
  %v1028 = vunpack.c.l.b16 %v304
  %v1029 = vunpack.c.l.b16 %v305
  %v1030 = vunpack.c.l.b16 %v306
  %v1031 = vunpack.c.l.b16 %v307
  %v1032 = vunpack.c.l.b16 %v308
  %v1033 = vunpack.c.l.b16 %v309
  %v1034 = vunpack.c.l.b16 %v310
  %v1035 = vunpack.c.l.b16 %v311
  %v1036 = vunpack.c.l.b16 %v312
  %v1037 = vunpack.c.l.b16 %v313
  %v1038 = vunpack.c.l.b16 %v314
  %v1039 = vunpack.c.l.b16 %v315
  %v1040 = vunpack.c.l.b16 %v316
  %v1041 = vunpack.c.l.b16 %v317
  %v1042 = vunpack.c.l.b16 %v318
  %v1043 = vunpack.c.l.b16 %v319
  %v1044 = vunpack.c.l.b16 %v320
  %v1045 = vunpack.c.l.b16 %v321
  %v1046 = vunpack.c.l.b16 %v322
  %v1047 = vunpack.c.l.b16 %v323
  %v1048 = vunpack.c.l.b16 %v324
  %v1049 = vunpack.c.l.b16 %v325
  %v1050 = vunpack.c.l.b16 %v326
  %v1051 = vunpack.c.l.b16 %v327
  %v1052 = vunpack.c.l.b16 %v328
  %v1053 = vunpack.c.l.b16 %v329
  %v1054 = vunpack.c.l.b16 %v330
  %v1055 = vunpack.c.l.b16 %v331
  %v1056 = vunpack.c.l.b16 %v332
  %v1057 = vunpack.c.l.b16 %v333
  %v1058 = vunpack.c.l.b16 %v334
  %v1059 = vunpack.c.l.b16 %v335
  %v1060 = vpack.c.b16 %v773, %v772
  %v1061 = vpack.c.b16 %v775, %v774
  %v1062 = vpack.c.b16 %v777, %v776
  %v1063 = vpack.c.b16 %v779, %v778
  %v1064 = vpack.c.b16 %v781, %v780
  %v1065 = vpack.c.b16 %v783, %v782
  %v1066 = vpack.c.b16 %v785, %v784
  %v1067 = vpack.c.b16 %v787, %v786
  %v1068 = vpack.c.b16 %v789, %v788
  %v1069 = vpack.c.b16 %v791, %v790
  %v1070 = vpack.c.b16 %v793, %v792
  %v1071 = vpack.c.b16 %v795, %v794
  %v1072 = vpack.c.b16 %v797, %v796
  %v1073 = vpack.c.b16 %v799, %v798
  %v1074 = vpack.c.b16 %v801, %v800
  %v1075 = vpack.c.b16 %v803, %v802
  %v1076 = vpack.c.b16 %v805, %v804
  %v1077 = vpack.c.b16 %v807, %v806
  %v1078 = vpack.c.b16 %v809, %v808
  %v1079 = vpack.c.b16 %v811, %v810
  %v1080 = vpack.c.b16 %v813, %v812
  %v1081 = vpack.c.b16 %v815, %v814
  %v1082 = vpack.c.b16 %v817, %v816
  %v1083 = vpack.c.b16 %v819, %v818
  %v1084 = vpack.c.b16 %v821, %v820
  %v1085 = vpack.c.b16 %v823, %v822
  %v1086 = vpack.c.b16 %v825, %v824
  %v1087 = vpack.c.b16 %v827, %v826
  %v1088 = vpack.c.b16 %v829, %v828
  %v1089 = vpack.c.b16 %v831, %v830
  %v1090 = vpack.c.b16 %v833, %v832
  %v1091 = vpack.c.b16 %v835, %v834
  %v1092 = vpack.c.b16 %v837, %v836
  %v1093 = vpack.c.b16 %v839, %v838
  %v1094 = vpack.c.b16 %v841, %v840
  %v1095 = vpack.c.b16 %v843, %v842
  %v1096 = vpack.c.b16 %v845, %v844
  %v1097 = vpack.c.b16 %v847, %v846
  %v1098 = vpack.c.b16 %v849, %v848
  %v1099 = vpack.c.b16 %v851, %v850
  %v1100 = vpack.c.b16 %v853, %v852
  %v1101 = vpack.c.b16 %v855, %v854
  %v1102 = vpack.c.b16 %v857, %v856
  %v1103 = vpack.c.b16 %v859, %v858
  %v1104 = vpack.c.b16 %v861, %v860
  %v1105 = vpack.c.b16 %v863, %v862
  %v1106 = vpack.c.b16 %v865, %v864
  %v1107 = vpack.c.b16 %v867, %v866
  %v1108 = vpack.c.b16 %v869, %v868
  %v1109 = vpack.c.b16 %v871, %v870
  %v1110 = vpack.c.b16 %v873, %v872
  %v1111 = vpack.c.b16 %v875, %v874
  %v1112 = vpack.c.b16 %v877, %v876
  %v1113 = vpack.c.b16 %v879, %v878
  %v1114 = vpack.c.b16 %v881, %v880
  %v1115 = vpack.c.b16 %v883, %v882
  %v1116 = vpack.c.b16 %v885, %v884
  %v1117 = vpack.c.b16 %v887, %v886
  %v1118 = vpack.c.b16 %v889, %v888
  %v1119 = vpack.c.b16 %v891, %v890
  %v1120 = vpack.c.b16 %v893, %v892
  %v1121 = vpack.c.b16 %v895, %v894
  %v1122 = vpack.c.b16 %v897, %v896
  %v1123 = vpack.c.b16 %v899, %v898
  %v1124 = vpack.c.b16 %v901, %v900
  %v1125 = vpack.c.b16 %v903, %v902
  %v1126 = vpack.c.b16 %v905, %v904
  %v1127 = vpack.c.b16 %v907, %v906
  %v1128 = vpack.c.b16 %v909, %v908
  %v1129 = vpack.c.b16 %v911, %v910
  %v1130 = vpack.c.b16 %v913, %v912
  %v1131 = vpack.c.b16 %v915, %v914
  %v1132 = vpack.c.b16 %v917, %v916
  %v1133 = vpack.c.b16 %v919, %v918
  %v1134 = vpack.c.b16 %v921, %v920
  %v1135 = vpack.c.b16 %v923, %v922
  %v1136 = vpack.c.b16 %v925, %v924
  %v1137 = vpack.c.b16 %v927, %v926
  %v1138 = vpack.c.b16 %v929, %v928
  %v1139 = vpack.c.b16 %v931, %v930
  %v1140 = vpack.c.b16 %v933, %v932
  %v1141 = vpack.c.b16 %v935, %v934
  %v1142 = vpack.c.b16 %v937, %v936
  %v1143 = vpack.c.b16 %v939, %v938
  %v1144 = vpack.c.b16 %v941, %v940
  %v1145 = vpack.c.b16 %v943, %v942
  %v1146 = vpack.c.b16 %v945, %v944
  %v1147 = vpack.c.b16 %v947, %v946
  %v1148 = vpack.c.b16 %v949, %v948
  %v1149 = vpack.c.b16 %v951, %v950
  %v1150 = vpack.c.b16 %v953, %v952
  %v1151 = vpack.c.b16 %v955, %v954
  %v1152 = vpack.c.b16 %v957, %v956
  %v1153 = vpack.c.b16 %v959, %v958
  %v1154 = vpack.c.b16 %v961, %v960
  %v1155 = vpack.c.b16 %v963, %v962
  %v1156 = vpack.c.b16 %v965, %v964
  %v1157 = vpack.c.b16 %v967, %v966
  %v1158 = vpack.c.b16 %v969, %v968
  %v1159 = vpack.c.b16 %v971, %v970
  %v1160 = vpack.c.b16 %v973, %v972
  %v1161 = vpack.c.b16 %v975, %v974
  %v1162 = vpack.c.b16 %v977, %v976
  %v1163 = vpack.c.b16 %v979, %v978
  %v1164 = vpack.c.b16 %v981, %v980
  %v1165 = vpack.c.b16 %v983, %v982
  %v1166 = vpack.c.b16 %v985, %v984
  %v1167 = vpack.c.b16 %v987, %v986
  %v1168 = vpack.c.b16 %v989, %v988
  %v1169 = vpack.c.b16 %v991, %v990
  %v1170 = vpack.c.b16 %v993, %v992
  %v1171 = vpack.c.b16 %v995, %v994
  %v1172 = vpack.c.b16 %v997, %v996
  %v1173 = vpack.c.b16 %v999, %v998
  %v1174 = vpack.c.b16 %v1001, %v1000
  %v1175 = vpack.c.b16 %v1003, %v1002
  %v1176 = vpack.c.b16 %v1005, %v1004
  %v1177 = vpack.c.b16 %v1007, %v1006
  %v1178 = vpack.c.b16 %v1009, %v1008
  %v1179 = vpack.c.b16 %v1011, %v1010
  %v1180 = vpack.c.b16 %v1013, %v1012
  %v1181 = vpack.c.b16 %v1015, %v1014
  %v1182 = vpack.c.b16 %v1017, %v1016
  %v1183 = vpack.c.b16 %v1019, %v1018
  %v1184 = vpack.c.b16 %v1021, %v1020
  %v1185 = vpack.c.b16 %v1023, %v1022
  %v1186 = vpack.c.b16 %v1025, %v1024
  %v1187 = vpack.c.b16 %v1027, %v1026
  %v1188 = vpack.c.b16 %v1029, %v1028
  %v1189 = vpack.c.b16 %v1031, %v1030
  %v1190 = vpack.c.b16 %v1033, %v1032
  %v1191 = vpack.c.b16 %v1035, %v1034
  %v1192 = vpack.c.b16 %v1037, %v1036
  %v1193 = vpack.c.b16 %v1039, %v1038
  %v1194 = vpack.c.b16 %v1041, %v1040
  %v1195 = vpack.c.b16 %v1043, %v1042
  %v1196 = vpack.c.b16 %v1045, %v1044
  %v1197 = vpack.c.b16 %v1047, %v1046
  %v1198 = vpack.c.b16 %v1049, %v1048
  %v1199 = vpack.c.b16 %v1051, %v1050
  %v1200 = vpack.c.b16 %v1053, %v1052
  %v1201 = vpack.c.b16 %v1055, %v1054
  %v1202 = vpack.c.b16 %v1057, %v1056
  %v1203 = vpack.c.b16 %v1059, %v1058
  %1348 = vmatprep.subr.bf16.mxu0 0
  %1349 = vmatpush1.bf16.msra.mxu0 %v1067
  %1350 = vmatprep.subr.bf16.mxu0 0
  %1351 = vmatpush1.bf16.msra.mxu0 %v1066
  %1352 = vmatprep.subr.bf16.mxu0 0
  %1353 = vmatpush1.bf16.msra.mxu0 %v1065
  %1354 = vmatprep.subr.bf16.mxu0 0
  %1355 = vmatpush1.bf16.msra.mxu0 %v1064
  %1356 = vmatprep.subr.bf16.mxu0 0
  %1357 = vmatpush1.bf16.msra.mxu0 %v1063
  %1358 = vmatprep.subr.bf16.mxu0 0
  %1359 = vmatpush1.bf16.msra.mxu0 %v1062
  %1360 = vmatprep.subr.bf16.mxu0 0
  %1361 = vmatpush1.bf16.msra.mxu0 %v1061
  %1362 = vmatprep.subr.bf16.mxu0 0
  %1363 = vmatpush1.bf16.msra.mxu0 %v1060
  %1364 = vmatprep.subr.bf16.mxu0 0
  %1365 = vmatpush2.bf16.msra.mxu0 %v1075
  %1366 = vmatprep.subr.bf16.mxu0 0
  %1367 = vmatpush2.bf16.msra.mxu0 %v1074
  %1368 = vmatprep.subr.bf16.mxu0 0
  %1369 = vmatpush2.bf16.msra.mxu0 %v1073
  %1370 = vmatprep.subr.bf16.mxu0 0
  %1371 = vmatpush2.bf16.msra.mxu0 %v1072
  %1372 = vmatprep.subr.bf16.mxu0 0
  %1373 = vmatpush2.bf16.msra.mxu0 %v1071
  %1374 = vmatprep.subr.bf16.mxu0 0
  %1375 = vmatpush2.bf16.msra.mxu0 %v1070
  %1376 = vmatprep.subr.bf16.mxu0 0
  %1377 = vmatpush2.bf16.msra.mxu0 %v1069
  %1378 = vmatprep.subr.bf16.mxu0 0
  %1379 = vmatpush2.bf16.msra.mxu0 %v1068
  %1380 = vmatprep.mubr.bf16.mxu0 %v383
  %1381 = vmatmul.mubr.bf16.gmra.mxu0 %v369
  %v1382 = vpop.f32.mrf.mxu0
  %v1383 = vadd.f32 %v341, %v1382
  %v1384 = vpop.f32.mrf.mxu0
  %v1385 = vpop.f32.mrf.mxu0
  %v1386 = vpop.f32.mrf.mxu0
  %1387 = vdwg.mxu0
  %1388 = vmatprep.subr.bf16.mxu0 0
  %1389 = vmatpush1.bf16.msra.mxu0 %v1083
  %1390 = vmatprep.subr.bf16.mxu0 0
  %1391 = vmatpush1.bf16.msra.mxu0 %v1082
  %1392 = vmatprep.subr.bf16.mxu0 0
  %1393 = vmatpush1.bf16.msra.mxu0 %v1081
  %1394 = vmatprep.subr.bf16.mxu0 0
  %1395 = vmatpush1.bf16.msra.mxu0 %v1080
  %1396 = vmatprep.subr.bf16.mxu0 0
  %1397 = vmatpush1.bf16.msra.mxu0 %v1079
  %1398 = vmatprep.subr.bf16.mxu0 0
  %1399 = vmatpush1.bf16.msra.mxu0 %v1078
  %1400 = vmatprep.subr.bf16.mxu0 0
  %1401 = vmatpush1.bf16.msra.mxu0 %v1077
  %1402 = vmatprep.subr.bf16.mxu0 0
  %1403 = vmatpush1.bf16.msra.mxu0 %v1076
  %1404 = vmatprep.subr.bf16.mxu0 0
  %1405 = vmatpush2.bf16.msra.mxu0 %v1091
  %1406 = vmatprep.subr.bf16.mxu0 0
  %1407 = vmatpush2.bf16.msra.mxu0 %v1090
  %1408 = vmatprep.subr.bf16.mxu0 0
  %1409 = vmatpush2.bf16.msra.mxu0 %v1089
  %1410 = vmatprep.subr.bf16.mxu0 0
  %1411 = vmatpush2.bf16.msra.mxu0 %v1088
  %1412 = vmatprep.subr.bf16.mxu0 0
  %1413 = vmatpush2.bf16.msra.mxu0 %v1087
  %1414 = vmatprep.subr.bf16.mxu0 0
  %1415 = vmatpush2.bf16.msra.mxu0 %v1086
  %1416 = vmatprep.subr.bf16.mxu0 0
  %1417 = vmatpush2.bf16.msra.mxu0 %v1085
  %1418 = vmatprep.subr.bf16.mxu0 0
  %1419 = vmatpush2.bf16.msra.mxu0 %v1084
  %1420 = vmatprep.mubr.bf16.mxu0 %v393
  %1421 = vmatmul.mubr.bf16.gmra.mxu0 %v391
  %v1422 = vpop.f32.mrf.mxu0
  %v1423 = vadd.f32 %v1383, %v1422
  %v1424 = vpop.f32.mrf.mxu0
  %v1425 = vpop.f32.mrf.mxu0
  %v1426 = vpop.f32.mrf.mxu0
  %1427 = vdwg.mxu0
  %1428 = vmatprep.subr.bf16.mxu0 0
  %1429 = vmatpush1.bf16.msra.mxu0 %v1099
  %1430 = vmatprep.subr.bf16.mxu0 0
  %1431 = vmatpush1.bf16.msra.mxu0 %v1098
  %1432 = vmatprep.subr.bf16.mxu0 0
  %1433 = vmatpush1.bf16.msra.mxu0 %v1097
  %1434 = vmatprep.subr.bf16.mxu0 0
  %1435 = vmatpush1.bf16.msra.mxu0 %v1096
  %1436 = vmatprep.subr.bf16.mxu0 0
  %1437 = vmatpush1.bf16.msra.mxu0 %v1095
  %1438 = vmatprep.subr.bf16.mxu0 0
  %1439 = vmatpush1.bf16.msra.mxu0 %v1094
  %1440 = vmatprep.subr.bf16.mxu0 0
  %1441 = vmatpush1.bf16.msra.mxu0 %v1093
  %1442 = vmatprep.subr.bf16.mxu0 0
  %1443 = vmatpush1.bf16.msra.mxu0 %v1092
  %1444 = vmatprep.subr.bf16.mxu0 0
  %1445 = vmatpush2.bf16.msra.mxu0 %v1107
  %1446 = vmatprep.subr.bf16.mxu0 0
  %1447 = vmatpush2.bf16.msra.mxu0 %v1106
  %1448 = vmatprep.subr.bf16.mxu0 0
  %1449 = vmatpush2.bf16.msra.mxu0 %v1105
  %1450 = vmatprep.subr.bf16.mxu0 0
  %1451 = vmatpush2.bf16.msra.mxu0 %v1104
  %1452 = vmatprep.subr.bf16.mxu0 0
  %1453 = vmatpush2.bf16.msra.mxu0 %v1103
  %1454 = vmatprep.subr.bf16.mxu0 0
  %1455 = vmatpush2.bf16.msra.mxu0 %v1102
  %1456 = vmatprep.subr.bf16.mxu0 0
  %1457 = vmatpush2.bf16.msra.mxu0 %v1101
  %1458 = vmatprep.subr.bf16.mxu0 0
  %1459 = vmatpush2.bf16.msra.mxu0 %v1100
  %1460 = vmatprep.mubr.bf16.mxu0 %v390
  %1461 = vmatmul.mubr.bf16.gmra.mxu0 %v376
  %v1462 = vpop.f32.mrf.mxu0
  %v1463 = vadd.f32 %v1423, %v1462
  %v1464 = vpop.f32.mrf.mxu0
  %v1465 = vpop.f32.mrf.mxu0
  %v1466 = vpop.f32.mrf.mxu0
  %1467 = vdwg.mxu0
  %1468 = vmatprep.subr.bf16.mxu0 0
  %1469 = vmatpush1.bf16.msra.mxu0 %v1115
  %1470 = vmatprep.subr.bf16.mxu0 0
  %1471 = vmatpush1.bf16.msra.mxu0 %v1114
  %1472 = vmatprep.subr.bf16.mxu0 0
  %1473 = vmatpush1.bf16.msra.mxu0 %v1113
  %1474 = vmatprep.subr.bf16.mxu0 0
  %1475 = vmatpush1.bf16.msra.mxu0 %v1112
  %1476 = vmatprep.subr.bf16.mxu0 0
  %1477 = vmatpush1.bf16.msra.mxu0 %v1111
  %1478 = vmatprep.subr.bf16.mxu0 0
  %1479 = vmatpush1.bf16.msra.mxu0 %v1110
  %1480 = vmatprep.subr.bf16.mxu0 0
  %1481 = vmatpush1.bf16.msra.mxu0 %v1109
  %1482 = vmatprep.subr.bf16.mxu0 0
  %1483 = vmatpush1.bf16.msra.mxu0 %v1108
  %1484 = vmatprep.subr.bf16.mxu0 0
  %1485 = vmatpush2.bf16.msra.mxu0 %v1123
  %1486 = vmatprep.subr.bf16.mxu0 0
  %1487 = vmatpush2.bf16.msra.mxu0 %v1122
  %1488 = vmatprep.subr.bf16.mxu0 0
  %1489 = vmatpush2.bf16.msra.mxu0 %v1121
  %1490 = vmatprep.subr.bf16.mxu0 0
  %1491 = vmatpush2.bf16.msra.mxu0 %v1120
  %1492 = vmatprep.subr.bf16.mxu0 0
  %1493 = vmatpush2.bf16.msra.mxu0 %v1119
  %1494 = vmatprep.subr.bf16.mxu0 0
  %1495 = vmatpush2.bf16.msra.mxu0 %v1118
  %1496 = vmatprep.subr.bf16.mxu0 0
  %1497 = vmatpush2.bf16.msra.mxu0 %v1117
  %1498 = vmatprep.subr.bf16.mxu0 0
  %1499 = vmatpush2.bf16.msra.mxu0 %v1116
  %1500 = vmatprep.mubr.bf16.mxu0 %v394
  %1501 = vmatmul.mubr.bf16.gmra.mxu0 %v392
  %v1502 = vpop.f32.mrf.mxu0
  %v1503 = vadd.f32 %v1463, %v1502
  %v1504 = vpop.f32.mrf.mxu0
  %v1505 = vpop.f32.mrf.mxu0
  %v1506 = vpop.f32.mrf.mxu0
  %1507 = vdwg.mxu0
  %1508 = vmatprep.subr.bf16.mxu0 0
  %1509 = vmatpush1.bf16.msra.mxu0 %v1131
  %1510 = vmatprep.subr.bf16.mxu0 0
  %1511 = vmatpush1.bf16.msra.mxu0 %v1130
  %1512 = vmatprep.subr.bf16.mxu0 0
  %1513 = vmatpush1.bf16.msra.mxu0 %v1129
  %1514 = vmatprep.subr.bf16.mxu0 0
  %1515 = vmatpush1.bf16.msra.mxu0 %v1128
  %1516 = vmatprep.subr.bf16.mxu0 0
  %1517 = vmatpush1.bf16.msra.mxu0 %v1127
  %1518 = vmatprep.subr.bf16.mxu0 0
  %1519 = vmatpush1.bf16.msra.mxu0 %v1126
  %1520 = vmatprep.subr.bf16.mxu0 0
  %1521 = vmatpush1.bf16.msra.mxu0 %v1125
  %1522 = vmatprep.subr.bf16.mxu0 0
  %1523 = vmatpush1.bf16.msra.mxu0 %v1124
  %1524 = vmatprep.subr.bf16.mxu0 0
  %1525 = vmatpush2.bf16.msra.mxu0 %v1139
  %1526 = vmatprep.subr.bf16.mxu0 0
  %1527 = vmatpush2.bf16.msra.mxu0 %v1138
  %1528 = vmatprep.subr.bf16.mxu0 0
  %1529 = vmatpush2.bf16.msra.mxu0 %v1137
  %1530 = vmatprep.subr.bf16.mxu0 0
  %1531 = vmatpush2.bf16.msra.mxu0 %v1136
  %1532 = vmatprep.subr.bf16.mxu0 0
  %1533 = vmatpush2.bf16.msra.mxu0 %v1135
  %1534 = vmatprep.subr.bf16.mxu0 0
  %1535 = vmatpush2.bf16.msra.mxu0 %v1134
  %1536 = vmatprep.subr.bf16.mxu0 0
  %1537 = vmatpush2.bf16.msra.mxu0 %v1133
  %1538 = vmatprep.subr.bf16.mxu0 0
  %1539 = vmatpush2.bf16.msra.mxu0 %v1132
  %1540 = vmatprep.mubr.bf16.mxu0 %v432
  %1541 = vmatmul.mubr.bf16.gmra.mxu0 %v418
  %v1542 = vpop.f32.mrf.mxu0
  %v1543 = vadd.f32 %v1503, %v1542
  %v1544 = vpop.f32.mrf.mxu0
  %v1545 = vpop.f32.mrf.mxu0
  %v1546 = vpop.f32.mrf.mxu0
  %1547 = vdwg.mxu0
  %1548 = vmatprep.subr.bf16.mxu0 0
  %1549 = vmatpush1.bf16.msra.mxu0 %v1147
  %1550 = vmatprep.subr.bf16.mxu0 0
  %1551 = vmatpush1.bf16.msra.mxu0 %v1146
  %1552 = vmatprep.subr.bf16.mxu0 0
  %1553 = vmatpush1.bf16.msra.mxu0 %v1145
  %1554 = vmatprep.subr.bf16.mxu0 0
  %1555 = vmatpush1.bf16.msra.mxu0 %v1144
  %1556 = vmatprep.subr.bf16.mxu0 0
  %1557 = vmatpush1.bf16.msra.mxu0 %v1143
  %1558 = vmatprep.subr.bf16.mxu0 0
  %1559 = vmatpush1.bf16.msra.mxu0 %v1142
  %1560 = vmatprep.subr.bf16.mxu0 0
  %1561 = vmatpush1.bf16.msra.mxu0 %v1141
  %1562 = vmatprep.subr.bf16.mxu0 0
  %1563 = vmatpush1.bf16.msra.mxu0 %v1140
  %1564 = vmatprep.subr.bf16.mxu0 0
  %1565 = vmatpush2.bf16.msra.mxu0 %v1155
  %1566 = vmatprep.subr.bf16.mxu0 0
  %1567 = vmatpush2.bf16.msra.mxu0 %v1154
  %1568 = vmatprep.subr.bf16.mxu0 0
  %1569 = vmatpush2.bf16.msra.mxu0 %v1153
  %1570 = vmatprep.subr.bf16.mxu0 0
  %1571 = vmatpush2.bf16.msra.mxu0 %v1152
  %1572 = vmatprep.subr.bf16.mxu0 0
  %1573 = vmatpush2.bf16.msra.mxu0 %v1151
  %1574 = vmatprep.subr.bf16.mxu0 0
  %1575 = vmatpush2.bf16.msra.mxu0 %v1150
  %1576 = vmatprep.subr.bf16.mxu0 0
  %1577 = vmatpush2.bf16.msra.mxu0 %v1149
  %1578 = vmatprep.subr.bf16.mxu0 0
  %1579 = vmatpush2.bf16.msra.mxu0 %v1148
  %1580 = vmatprep.mubr.bf16.mxu0 %v442
  %1581 = vmatmul.mubr.bf16.gmra.mxu0 %v440
  %v1582 = vpop.f32.mrf.mxu0
  %v1583 = vadd.f32 %v1543, %v1582
  %v1584 = vpop.f32.mrf.mxu0
  %v1585 = vpop.f32.mrf.mxu0
  %v1586 = vpop.f32.mrf.mxu0
  %1587 = vdwg.mxu0
  %1588 = vmatprep.subr.bf16.mxu0 0
  %1589 = vmatpush1.bf16.msra.mxu0 %v1163
  %1590 = vmatprep.subr.bf16.mxu0 0
  %1591 = vmatpush1.bf16.msra.mxu0 %v1162
  %1592 = vmatprep.subr.bf16.mxu0 0
  %1593 = vmatpush1.bf16.msra.mxu0 %v1161
  %1594 = vmatprep.subr.bf16.mxu0 0
  %1595 = vmatpush1.bf16.msra.mxu0 %v1160
  %1596 = vmatprep.subr.bf16.mxu0 0
  %1597 = vmatpush1.bf16.msra.mxu0 %v1159
  %1598 = vmatprep.subr.bf16.mxu0 0
  %1599 = vmatpush1.bf16.msra.mxu0 %v1158
  %1600 = vmatprep.subr.bf16.mxu0 0
  %1601 = vmatpush1.bf16.msra.mxu0 %v1157
  %1602 = vmatprep.subr.bf16.mxu0 0
  %1603 = vmatpush1.bf16.msra.mxu0 %v1156
  %1604 = vmatprep.subr.bf16.mxu0 0
  %1605 = vmatpush2.bf16.msra.mxu0 %v1171
  %1606 = vmatprep.subr.bf16.mxu0 0
  %1607 = vmatpush2.bf16.msra.mxu0 %v1170
  %1608 = vmatprep.subr.bf16.mxu0 0
  %1609 = vmatpush2.bf16.msra.mxu0 %v1169
  %1610 = vmatprep.subr.bf16.mxu0 0
  %1611 = vmatpush2.bf16.msra.mxu0 %v1168
  %1612 = vmatprep.subr.bf16.mxu0 0
  %1613 = vmatpush2.bf16.msra.mxu0 %v1167
  %1614 = vmatprep.subr.bf16.mxu0 0
  %1615 = vmatpush2.bf16.msra.mxu0 %v1166
  %1616 = vmatprep.subr.bf16.mxu0 0
  %1617 = vmatpush2.bf16.msra.mxu0 %v1165
  %1618 = vmatprep.subr.bf16.mxu0 0
  %1619 = vmatpush2.bf16.msra.mxu0 %v1164
  %1620 = vmatprep.mubr.bf16.mxu0 %v439
  %1621 = vmatmul.mubr.bf16.gmra.mxu0 %v425
  %v1622 = vpop.f32.mrf.mxu0
  %v1623 = vadd.f32 %v1583, %v1622
  %v1624 = vpop.f32.mrf.mxu0
  %v1625 = vpop.f32.mrf.mxu0
  %v1626 = vpop.f32.mrf.mxu0
  %1627 = vdwg.mxu0
  %1628 = vmatprep.subr.bf16.mxu0 0
  %1629 = vmatpush1.bf16.msra.mxu0 %v1179
  %1630 = vmatprep.subr.bf16.mxu0 0
  %1631 = vmatpush1.bf16.msra.mxu0 %v1178
  %1632 = vmatprep.subr.bf16.mxu0 0
  %1633 = vmatpush1.bf16.msra.mxu0 %v1177
  %1634 = vmatprep.subr.bf16.mxu0 0
  %1635 = vmatpush1.bf16.msra.mxu0 %v1176
  %1636 = vmatprep.subr.bf16.mxu0 0
  %1637 = vmatpush1.bf16.msra.mxu0 %v1175
  %1638 = vmatprep.subr.bf16.mxu0 0
  %1639 = vmatpush1.bf16.msra.mxu0 %v1174
  %1640 = vmatprep.subr.bf16.mxu0 0
  %1641 = vmatpush1.bf16.msra.mxu0 %v1173
  %1642 = vmatprep.subr.bf16.mxu0 0
  %1643 = vmatpush1.bf16.msra.mxu0 %v1172
  %1644 = vmatprep.subr.bf16.mxu0 0
  %1645 = vmatpush2.bf16.msra.mxu0 %v1187
  %1646 = vmatprep.subr.bf16.mxu0 0
  %1647 = vmatpush2.bf16.msra.mxu0 %v1186
  %1648 = vmatprep.subr.bf16.mxu0 0
  %1649 = vmatpush2.bf16.msra.mxu0 %v1185
  %1650 = vmatprep.subr.bf16.mxu0 0
  %1651 = vmatpush2.bf16.msra.mxu0 %v1184
  %1652 = vmatprep.subr.bf16.mxu0 0
  %1653 = vmatpush2.bf16.msra.mxu0 %v1183
  %1654 = vmatprep.subr.bf16.mxu0 0
  %1655 = vmatpush2.bf16.msra.mxu0 %v1182
  %1656 = vmatprep.subr.bf16.mxu0 0
  %1657 = vmatpush2.bf16.msra.mxu0 %v1181
  %1658 = vmatprep.subr.bf16.mxu0 0
  %1659 = vmatpush2.bf16.msra.mxu0 %v1180
  %1660 = vmatprep.mubr.bf16.mxu0 %v443
  %1661 = vmatmul.mubr.bf16.gmra.mxu0 %v441
  %v1662 = vpop.f32.mrf.mxu0
  %v1663 = vadd.f32 %v1623, %v1662
  %v1664 = vpop.f32.mrf.mxu0
  %v1665 = vpop.f32.mrf.mxu0
  %v1666 = vpop.f32.mrf.mxu0
  %1667 = vdwg.mxu0
  %1668 = vmatprep.subr.bf16.mxu0 0
  %1669 = vmatpush1.bf16.msra.mxu0 %v1195
  %1670 = vmatprep.subr.bf16.mxu0 0
  %1671 = vmatpush1.bf16.msra.mxu0 %v1194
  %1672 = vmatprep.subr.bf16.mxu0 0
  %1673 = vmatpush1.bf16.msra.mxu0 %v1193
  %1674 = vmatprep.subr.bf16.mxu0 0
  %1675 = vmatpush1.bf16.msra.mxu0 %v1192
  %1676 = vmatprep.subr.bf16.mxu0 0
  %1677 = vmatpush1.bf16.msra.mxu0 %v1191
  %1678 = vmatprep.subr.bf16.mxu0 0
  %1679 = vmatpush1.bf16.msra.mxu0 %v1190
  %1680 = vmatprep.subr.bf16.mxu0 0
  %1681 = vmatpush1.bf16.msra.mxu0 %v1189
  %1682 = vmatprep.subr.bf16.mxu0 0
  %1683 = vmatpush1.bf16.msra.mxu0 %v1188
  %1684 = vmatprep.subr.bf16.mxu0 0
  %1685 = vmatpush2.bf16.msra.mxu0 %v1203
  %1686 = vmatprep.subr.bf16.mxu0 0
  %1687 = vmatpush2.bf16.msra.mxu0 %v1202
  %1688 = vmatprep.subr.bf16.mxu0 0
  %1689 = vmatpush2.bf16.msra.mxu0 %v1201
  %1690 = vmatprep.subr.bf16.mxu0 0
  %1691 = vmatpush2.bf16.msra.mxu0 %v1200
  %1692 = vmatprep.subr.bf16.mxu0 0
  %1693 = vmatpush2.bf16.msra.mxu0 %v1199
  %1694 = vmatprep.subr.bf16.mxu0 0
  %1695 = vmatpush2.bf16.msra.mxu0 %v1198
  %1696 = vmatprep.subr.bf16.mxu0 0
  %1697 = vmatpush2.bf16.msra.mxu0 %v1197
  %1698 = vmatprep.subr.bf16.mxu0 0
  %1699 = vmatpush2.bf16.msra.mxu0 %v1196
  %1700 = vmatprep.mubr.bf16.mxu0 %v465
  %1701 = vmatmul.mubr.bf16.gmra.mxu0 %v458
  %v1702 = vpop.f32.mrf.mxu0
  %v1703 = vadd.f32 %v1663, %v1702
  %v1704 = vpop.f32.mrf.mxu0
  %v1705 = vpop.f32.mrf.mxu0
  %v1706 = vpop.f32.mrf.mxu0
  %1707 = vdwg.mxu0
  %v1708 = vmax.f32 %v1703, 0.0
  %v1709 = vpack.c.bf16 %v1708, %v1708
  %v1710 = vld [vmem:[%s3] sm:$0xf]
  %v1711 = vld [vmem:[%s3 + $0x4] sm:$0xf]
  %v1712 = vld [vmem:[%s3 + $0x8] sm:$0xf]
  %v1713 = vld [vmem:[%s3 + $0xc] sm:$0xf]
  %v1714 = vld [vmem:[%s4] sm:$0x1]
  %v1716 = vlaneseq
  %v1717 = vshrl.u32 %v1716, 7
  %v1718 = vsub.s32 0, %v1717
  %v1719 = vrot.slane %v1714, %v1718
  %v1725 = vunpack.c.l.b16 %v1710
  %v1726 = vunpack.c.l.b16 %v1711
  %v1727 = vunpack.c.l.b16 %v1712
  %v1728 = vunpack.c.l.b16 %v1713
  %v1729 = vpack.c.b16 %v1726, %v1725
  %v1730 = vpack.c.b16 %v1728, %v1727
  %vm1733 = vcmask 261120
  %v1735 = vsel %vm1733, %v1709, 0
  %1737 = vmatprep.subr.bf16.mxu0 0
  %1738 = vmatpush1.bf16.msra.mxu0 0
  %1739 = vmatprep.subr.bf16.mxu0 0
  %1740 = vmatpush1.bf16.msra.mxu0 0
  %1741 = vmatprep.subr.bf16.mxu0 0
  %1742 = vmatpush1.bf16.msra.mxu0 0
  %1743 = vmatprep.subr.bf16.mxu0 0
  %1744 = vmatpush1.bf16.msra.mxu0 0
  %1745 = vmatprep.subr.bf16.mxu0 0
  %1746 = vmatpush1.bf16.msra.mxu0 0
  %1747 = vmatprep.subr.bf16.mxu0 0
  %1748 = vmatpush1.bf16.msra.mxu0 0
  %1749 = vmatprep.subr.bf16.mxu0 0
  %1750 = vmatpush1.bf16.msra.mxu0 %v1730
  %1751 = vmatprep.subr.bf16.mxu0 0
  %1752 = vmatpush1.bf16.msra.mxu0 %v1729
  %1753 = vmatprep.subr.bf16.mxu0 0
  %1754 = vmatpush2.bf16.msra.mxu0 0
  %1755 = vmatprep.subr.bf16.mxu0 0
  %1756 = vmatpush2.bf16.msra.mxu0 0
  %1757 = vmatprep.subr.bf16.mxu0 0
  %1758 = vmatpush2.bf16.msra.mxu0 0
  %1759 = vmatprep.subr.bf16.mxu0 0
  %1760 = vmatpush2.bf16.msra.mxu0 0
  %1761 = vmatprep.subr.bf16.mxu0 0
  %1762 = vmatpush2.bf16.msra.mxu0 0
  %1763 = vmatprep.subr.bf16.mxu0 0
  %1764 = vmatpush2.bf16.msra.mxu0 0
  %1765 = vmatprep.subr.bf16.mxu0 0
  %1766 = vmatpush2.bf16.msra.mxu0 0
  %1767 = vmatprep.subr.bf16.mxu0 0
  %1768 = vmatpush2.bf16.msra.mxu0 0
  %1769 = vmatprep.mubr.bf16.mxu0 0
  %1770 = vmatmul.mubr.bf16.gmra.mxu0 %v1735
  %v1771 = vpop.f32.mrf.mxu0
  %v1772 = vadd.f32 %v1719, %v1771
  %v1773 = vpop.f32.mrf.mxu0
  %v1774 = vpop.f32.mrf.mxu0
  %v1775 = vpop.f32.mrf.mxu0
  %1776 = vdwg.mxu0
  %v1777 = vmul.f32 %v1772, %v1772
  %1779 = vrot.lane.b32.xlu0 %v1777, 120
  %v1780 = vpop.permute.xlu0 %1779
  %v1782 = vadd.f32 %v1777, %v1780
  %v1783 = vrsqrt.pop %v1782
  %v1784 = vmul.f32 %v1782, %v1783
  %vm1785 = vcmp.eq.f32.partialorder %v1782, inf
  %v1786 = vsel %vm1785, %v1782, %v1784
  %vm1787 = vcmp.eq.f32.partialorder %v1782, 0.0
  %v1788 = vand.u32 %v1782, 2147483648
  %v1789 = vsel %vm1787, %v1788, %v1786
  %v1790 = vmax.f32 %v1789, 1e-12
  %v1791 = vrcp.pop %v1790
  %v1792 = vmul.f32 %v1772, %v1791
  %1794 = vrot.lane.b32.xlu0 %v1790, 8
  %v1795 = vpop.permute.xlu0 %1794
  %v1797 = vrcp.pop %v1795
  %v1798 = vmul.f32 %v1772, %v1797
  %vm1799 = vcmask 64512
  %v1800 = vsel %vm1799, %v1792, %v1798
  %v1801 = vld [vmem:[%s5] sm:$0xff]
  %v1802 = vld [vmem:[%s5 + $0x8] sm:$0xff]
  %v1803 = vld [vmem:[%s5 + $0x10] sm:$0xff]
  %v1804 = vld [vmem:[%s5 + $0x18] sm:$0xff]
  %v1805 = vld [vmem:[%s5 + $0x20] sm:$0xff]
  %v1806 = vld [vmem:[%s5 + $0x28] sm:$0xff]
  %v1809 = vunpack.c.l.s4 1966171168
  %v1810 = vunpack.c.0.s8 %v1809
  %v1811 = vlaneseq
  %v1812 = vshrl.u32 %v1811, 7
  %v1813 = vsub.s32 %v1810, %v1812
  %v1814 = vrot.slane %v1800, %v1813
  %v1815 = vcombine.high %v1814, %v1814
  %v1817 = vunpack.c.l.s4 1966171168
  %v1818 = vunpack.c.0.s8 %v1817
  %v1819 = vlaneseq
  %v1820 = vshrl.u32 %v1819, 7
  %v1821 = vsub.s32 %v1818, %v1820
  %v1822 = vrot.slane %v1814, %v1821
  %v1824 = vunpack.c.l.s4 1966171168
  %v1825 = vunpack.c.0.s8 %v1824
  %v1826 = vlaneseq
  %v1827 = vshrl.u32 %v1826, 7
  %v1828 = vsub.s32 %v1825, %v1827
  %v1829 = vrot.slane %v1815, %v1828
  %v1830 = vlaneseq
  %v1831 = vshrl.u32 %v1830, 7
  %v1832 = vsub.s32 0, %v1831
  %v1833 = vrot.slane %v1822, %v1832
  %v1834 = vlaneseq
  %v1835 = vshrl.u32 %v1834, 7
  %v1836 = vsub.s32 0, %v1835
  %v1837 = vrot.slane %v1829, %v1836
  %v1840 = vmul.f32 %v1801, %v1833
  %v1841 = vmul.f32 %v1802, %v1833
  %v1842 = vmul.f32 %v1803, %v1833
  %v1843 = vmul.f32 %v1804, %v1837
  %v1844 = vmul.f32 %v1805, %v1837
  %v1845 = vmul.f32 %v1806, %v1837
  %vm1846 = vcmask 130048
  %v1847 = vsel %vm1846, %v1840, 0.0
  %1848 = vadd.xlane.f32.xlu0 %v1847
  %v1849 = vpop.xlane.xlu0 %1848
  %v1850 = vsel %vm1846, %v1841, 0.0
  %1851 = vadd.xlane.f32.xlu0 %v1850
  %v1852 = vpop.xlane.xlu0 %1851
  %v1853 = vsel %vm1846, %v1842, 0.0
  %1854 = vadd.xlane.f32.xlu0 %v1853
  %v1855 = vpop.xlane.xlu0 %1854
  %v1856 = vsel %vm1846, %v1843, 0.0
  %1857 = vadd.xlane.f32.xlu0 %v1856
  %v1858 = vpop.xlane.xlu0 %1857
  %v1859 = vsel %vm1846, %v1844, 0.0
  %1860 = vadd.xlane.f32.xlu0 %v1859
  %v1861 = vpop.xlane.xlu0 %1860
  %v1862 = vsel %vm1846, %v1845, 0.0
  %1863 = vadd.xlane.f32.xlu0 %v1862
  %v1864 = vpop.xlane.xlu0 %1863
  %v1865 = vpack.c.bf16 %v1852, %v1849
  %v1866 = vpack.c.bf16 %v1855, %v1855
  %v1867 = vpack.c.bf16 %v1861, %v1858
  %v1868 = vpack.c.bf16 %v1864, %v1864
  %v1869 = vld [vmem:[%s7] sm:$0xf]
  %v1870 = vld [vmem:[%s7 + $0x4] sm:$0xf]
  %v1871 = vld [vmem:[%s7 + $0x8] sm:$0xf]
  %v1872 = vld [vmem:[%s8] sm:$0x1]
  %v1874 = vlaneseq
  %v1875 = vshrl.u32 %v1874, 7
  %v1876 = vsub.s32 0, %v1875
  %v1877 = vrot.slane %v1872, %v1876
  %v1883 = vunpack.c.l.b16 %v1865
  %v1884 = vunpack.c.h.b16 %v1865
  %v1885 = vunpack.c.l.b16 %v1866
  %v1886 = vunpack.c.l.b16 %v1867
  %v1887 = vunpack.c.h.b16 %v1867
  %v1888 = vunpack.c.l.b16 %v1868
  %v1889 = vlaneseq
  %v1890 = vand.u32 %v1889, 127
  %v1891 = vlaneseq
  %v1892 = vshrl.u32 %v1891, 7
  %v1893 = vsub.s32 %v1890, %v1892
  %v1894 = vrot.slane %v1883, %v1893
  %v1895 = vadd.s32 %v1890, 4294967288
  %v1896 = vlaneseq
  %v1897 = vshrl.u32 %v1896, 7
  %v1898 = vsub.s32 %v1895, %v1897
  %v1899 = vrot.slane %v1884, %v1898
  %vm1900 = vcmask 130112
  %v1901 = vsel %vm1900, %v1899, %v1894
  %v1902 = vadd.s32 %v1890, 4294967280
  %v1903 = vlaneseq
  %v1904 = vshrl.u32 %v1903, 7
  %v1905 = vsub.s32 %v1902, %v1904
  %v1906 = vrot.slane %v1885, %v1905
  %vm1907 = vcmask 195712
  %v1908 = vsel %vm1907, %v1906, %v1901
  %v1909 = vlaneseq
  %v1910 = vshrl.u32 %v1909, 7
  %v1911 = vsub.s32 %v1890, %v1910
  %v1912 = vrot.slane %v1886, %v1911
  %v1913 = vlaneseq
  %v1914 = vshrl.u32 %v1913, 7
  %v1915 = vsub.s32 %v1895, %v1914
  %v1916 = vrot.slane %v1887, %v1915
  %v1917 = vsel %vm1900, %v1916, %v1912
  %v1918 = vlaneseq
  %v1919 = vshrl.u32 %v1918, 7
  %v1920 = vsub.s32 %v1902, %v1919
  %v1921 = vrot.slane %v1888, %v1920
  %v1922 = vsel %vm1907, %v1921, %v1917
  %vm1923 = vcmask 1041409
  %v1924 = vsel %vm1923, %v1922, %v1908
  %v1925 = vpack.c.b16 %v1924, %v1924
  %v1929 = vunpack.c.l.b16 %v1869
  %v1930 = vunpack.c.l.b16 %v1870
  %v1931 = vunpack.c.l.b16 %v1871
  %v1932 = vpack.c.b16 %v1930, %v1929
  %v1933 = vpack.c.b16 %v1931, %v1931
  %vm1935 = vcmask 195584
  %v1937 = vsel %vm1935, %v1925, 0
  %vm1939 = vcmask 1043456
  %v1941 = vsel %vm1939, %v1933, 0
  %1943 = vmatprep.subr.bf16.mxu0 0
  %1944 = vmatpush1.bf16.msra.mxu0 0
  %1945 = vmatprep.subr.bf16.mxu0 0
  %1946 = vmatpush1.bf16.msra.mxu0 0
  %1947 = vmatprep.subr.bf16.mxu0 0
  %1948 = vmatpush1.bf16.msra.mxu0 0
  %1949 = vmatprep.subr.bf16.mxu0 0
  %1950 = vmatpush1.bf16.msra.mxu0 0
  %1951 = vmatprep.subr.bf16.mxu0 0
  %1952 = vmatpush1.bf16.msra.mxu0 0
  %1953 = vmatprep.subr.bf16.mxu0 0
  %1954 = vmatpush1.bf16.msra.mxu0 0
  %1955 = vmatprep.subr.bf16.mxu0 0
  %1956 = vmatpush1.bf16.msra.mxu0 %v1941
  %1957 = vmatprep.subr.bf16.mxu0 0
  %1958 = vmatpush1.bf16.msra.mxu0 %v1932
  %1959 = vmatprep.subr.bf16.mxu0 0
  %1960 = vmatpush2.bf16.msra.mxu0 0
  %1961 = vmatprep.subr.bf16.mxu0 0
  %1962 = vmatpush2.bf16.msra.mxu0 0
  %1963 = vmatprep.subr.bf16.mxu0 0
  %1964 = vmatpush2.bf16.msra.mxu0 0
  %1965 = vmatprep.subr.bf16.mxu0 0
  %1966 = vmatpush2.bf16.msra.mxu0 0
  %1967 = vmatprep.subr.bf16.mxu0 0
  %1968 = vmatpush2.bf16.msra.mxu0 0
  %1969 = vmatprep.subr.bf16.mxu0 0
  %1970 = vmatpush2.bf16.msra.mxu0 0
  %1971 = vmatprep.subr.bf16.mxu0 0
  %1972 = vmatpush2.bf16.msra.mxu0 0
  %1973 = vmatprep.subr.bf16.mxu0 0
  %1974 = vmatpush2.bf16.msra.mxu0 0
  %1975 = vmatprep.mubr.bf16.mxu0 0
  %1976 = vmatmul.mubr.bf16.gmra.mxu0 %v1937
  %v1977 = vpop.f32.mrf.mxu0
  %v1978 = vadd.f32 %v1877, %v1977
  %v1979 = vpop.f32.mrf.mxu0
  %v1980 = vpop.f32.mrf.mxu0
  %v1981 = vpop.f32.mrf.mxu0
  %1982 = vdwg.mxu0
  %v1983 = vmax.f32 %v1978, 0.0
  %v1984 = vpack.c.bf16 %v1983, %v1983
  %v1985 = vld [vmem:[%s9] sm:$0xf]
  %v1986 = vld [vmem:[%s9 + $0x4] sm:$0xf]
  %v1987 = vld [vmem:[%s9 + $0x8] sm:$0xf]
  %v1988 = vld [vmem:[%s9 + $0xc] sm:$0xf]
  %v1989 = vld [vmem:[%s9 + $0x10] sm:$0xf]
  %v1990 = vld [vmem:[%s9 + $0x14] sm:$0xf]
  %v1991 = vld [vmem:[%s9 + $0x18] sm:$0xf]
  %v1992 = vld [vmem:[%s9 + $0x1c] sm:$0xf]
  %v1993 = vld [vmem:[%s9 + $0x20] sm:$0xf]
  %v1994 = vld [vmem:[%s9 + $0x24] sm:$0xf]
  %v1995 = vld [vmem:[%s9 + $0x28] sm:$0xf]
  %v1996 = vld [vmem:[%s9 + $0x2c] sm:$0xf]
  %v1997 = vld [vmem:[%s9 + $0x30] sm:$0x3]
  %v1998 = vld [vmem:[%s10] sm:$0x1]
  %v2000 = vlaneseq
  %v2001 = vshrl.u32 %v2000, 7
  %v2002 = vsub.s32 0, %v2001
  %v2003 = vrot.slane %v1998, %v2002
  %v2018 = vunpack.c.l.b16 %v1985
  %v2019 = vunpack.c.l.b16 %v1986
  %v2020 = vunpack.c.l.b16 %v1987
  %v2021 = vunpack.c.l.b16 %v1988
  %v2022 = vunpack.c.l.b16 %v1989
  %v2023 = vunpack.c.l.b16 %v1990
  %v2024 = vunpack.c.l.b16 %v1991
  %v2025 = vunpack.c.l.b16 %v1992
  %v2026 = vunpack.c.l.b16 %v1993
  %v2027 = vunpack.c.l.b16 %v1994
  %v2028 = vunpack.c.l.b16 %v1995
  %v2029 = vunpack.c.l.b16 %v1996
  %v2030 = vunpack.c.l.b16 %v1997
  %v2031 = vpack.c.b16 %v2019, %v2018
  %v2032 = vpack.c.b16 %v2021, %v2020
  %v2033 = vpack.c.b16 %v2023, %v2022
  %v2034 = vpack.c.b16 %v2025, %v2024
  %v2035 = vpack.c.b16 %v2027, %v2026
  %v2036 = vpack.c.b16 %v2029, %v2028
  %v2037 = vpack.c.b16 %v2030, %v2030
  %vm2044 = vcmask 818176
  %v2046 = vsel %vm2044, %v1984, 0
  %vm2048 = vcmask 1041408
  %v2050 = vsel %vm2048, %v2037, 0
  %2052 = vmatprep.subr.bf16.mxu0 0
  %2053 = vmatpush1.bf16.msra.mxu0 0
  %2054 = vmatprep.subr.bf16.mxu0 0
  %2055 = vmatpush1.bf16.msra.mxu0 %v2050
  %2056 = vmatprep.subr.bf16.mxu0 0
  %2057 = vmatpush1.bf16.msra.mxu0 %v2036
  %2058 = vmatprep.subr.bf16.mxu0 0
  %2059 = vmatpush1.bf16.msra.mxu0 %v2035
  %2060 = vmatprep.subr.bf16.mxu0 0
  %2061 = vmatpush1.bf16.msra.mxu0 %v2034
  %2062 = vmatprep.subr.bf16.mxu0 0
  %2063 = vmatpush1.bf16.msra.mxu0 %v2033
  %2064 = vmatprep.subr.bf16.mxu0 0
  %2065 = vmatpush1.bf16.msra.mxu0 %v2032
  %2066 = vmatprep.subr.bf16.mxu0 0
  %2067 = vmatpush1.bf16.msra.mxu0 %v2031
  %2068 = vmatprep.subr.bf16.mxu0 0
  %2069 = vmatpush2.bf16.msra.mxu0 0
  %2070 = vmatprep.subr.bf16.mxu0 0
  %2071 = vmatpush2.bf16.msra.mxu0 0
  %2072 = vmatprep.subr.bf16.mxu0 0
  %2073 = vmatpush2.bf16.msra.mxu0 0
  %2074 = vmatprep.subr.bf16.mxu0 0
  %2075 = vmatpush2.bf16.msra.mxu0 0
  %2076 = vmatprep.subr.bf16.mxu0 0
  %2077 = vmatpush2.bf16.msra.mxu0 0
  %2078 = vmatprep.subr.bf16.mxu0 0
  %2079 = vmatpush2.bf16.msra.mxu0 0
  %2080 = vmatprep.subr.bf16.mxu0 0
  %2081 = vmatpush2.bf16.msra.mxu0 0
  %2082 = vmatprep.subr.bf16.mxu0 0
  %2083 = vmatpush2.bf16.msra.mxu0 0
  %2084 = vmatprep.mubr.bf16.mxu0 0
  %2085 = vmatmul.mubr.bf16.gmra.mxu0 %v2046
  %v2086 = vpop.f32.mrf.mxu0
  %v2087 = vadd.f32 %v2003, %v2086
  %v2088 = vpop.f32.mrf.mxu0
  %v2089 = vpop.f32.mrf.mxu0
  %v2090 = vpop.f32.mrf.mxu0
  %2091 = vdwg.mxu0
  %v2092 = vmax.f32 %v2087, 0.0
  %v2093 = vpack.c.bf16 %v2092, %v2092
  %v2094 = vld [vmem:[%s11] sm:$0xf]
  %v2095 = vld [vmem:[%s11 + $0x4] sm:$0xf]
  %v2096 = vld [vmem:[%s11 + $0x8] sm:$0xf]
  %v2097 = vld [vmem:[%s11 + $0xc] sm:$0xf]
  %v2098 = vld [vmem:[%s11 + $0x10] sm:$0xf]
  %v2099 = vld [vmem:[%s11 + $0x14] sm:$0xf]
  %v2100 = vld [vmem:[%s11 + $0x18] sm:$0xf]
  %v2101 = vld [vmem:[%s11 + $0x1c] sm:$0xf]
  %v2102 = vld [vmem:[%s11 + $0x20] sm:$0xf]
  %v2103 = vld [vmem:[%s11 + $0x24] sm:$0xf]
  %v2104 = vld [vmem:[%s11 + $0x28] sm:$0xf]
  %v2105 = vld [vmem:[%s11 + $0x2c] sm:$0xf]
  %v2106 = vld [vmem:[%s11 + $0x30] sm:$0x3]
  %v2107 = vld [vmem:[%s12] sm:$0x1]
  %v2109 = vlaneseq
  %v2110 = vshrl.u32 %v2109, 7
  %v2111 = vsub.s32 0, %v2110
  %v2112 = vrot.slane %v2107, %v2111
  %v2127 = vunpack.c.l.b16 %v2094
  %v2128 = vunpack.c.l.b16 %v2095
  %v2129 = vunpack.c.l.b16 %v2096
  %v2130 = vunpack.c.l.b16 %v2097
  %v2131 = vunpack.c.l.b16 %v2098
  %v2132 = vunpack.c.l.b16 %v2099
  %v2133 = vunpack.c.l.b16 %v2100
  %v2134 = vunpack.c.l.b16 %v2101
  %v2135 = vunpack.c.l.b16 %v2102
  %v2136 = vunpack.c.l.b16 %v2103
  %v2137 = vunpack.c.l.b16 %v2104
  %v2138 = vunpack.c.l.b16 %v2105
  %v2139 = vunpack.c.l.b16 %v2106
  %v2140 = vpack.c.b16 %v2128, %v2127
  %v2141 = vpack.c.b16 %v2130, %v2129
  %v2142 = vpack.c.b16 %v2132, %v2131
  %v2143 = vpack.c.b16 %v2134, %v2133
  %v2144 = vpack.c.b16 %v2136, %v2135
  %v2145 = vpack.c.b16 %v2138, %v2137
  %v2146 = vpack.c.b16 %v2139, %v2139
  %v2154 = vsel %vm2044, %v2093, 0
  %v2157 = vsel %vm2048, %v2146, 0
  %2159 = vmatprep.subr.bf16.mxu0 0
  %2160 = vmatpush1.bf16.msra.mxu0 0
  %2161 = vmatprep.subr.bf16.mxu0 0
  %2162 = vmatpush1.bf16.msra.mxu0 %v2157
  %2163 = vmatprep.subr.bf16.mxu0 0
  %2164 = vmatpush1.bf16.msra.mxu0 %v2145
  %2165 = vmatprep.subr.bf16.mxu0 0
  %2166 = vmatpush1.bf16.msra.mxu0 %v2144
  %2167 = vmatprep.subr.bf16.mxu0 0
  %2168 = vmatpush1.bf16.msra.mxu0 %v2143
  %2169 = vmatprep.subr.bf16.mxu0 0
  %2170 = vmatpush1.bf16.msra.mxu0 %v2142
  %2171 = vmatprep.subr.bf16.mxu0 0
  %2172 = vmatpush1.bf16.msra.mxu0 %v2141
  %2173 = vmatprep.subr.bf16.mxu0 0
  %2174 = vmatpush1.bf16.msra.mxu0 %v2140
  %2175 = vmatprep.subr.bf16.mxu0 0
  %2176 = vmatpush2.bf16.msra.mxu0 0
  %2177 = vmatprep.subr.bf16.mxu0 0
  %2178 = vmatpush2.bf16.msra.mxu0 0
  %2179 = vmatprep.subr.bf16.mxu0 0
  %2180 = vmatpush2.bf16.msra.mxu0 0
  %2181 = vmatprep.subr.bf16.mxu0 0
  %2182 = vmatpush2.bf16.msra.mxu0 0
  %2183 = vmatprep.subr.bf16.mxu0 0
  %2184 = vmatpush2.bf16.msra.mxu0 0
  %2185 = vmatprep.subr.bf16.mxu0 0
  %2186 = vmatpush2.bf16.msra.mxu0 0
  %2187 = vmatprep.subr.bf16.mxu0 0
  %2188 = vmatpush2.bf16.msra.mxu0 0
  %2189 = vmatprep.subr.bf16.mxu0 0
  %2190 = vmatpush2.bf16.msra.mxu0 0
  %2191 = vmatprep.mubr.bf16.mxu0 0
  %2192 = vmatmul.mubr.bf16.gmra.mxu0 %v2154
  %v2193 = vpop.f32.mrf.mxu0
  %v2194 = vadd.f32 %v2112, %v2193
  %v2195 = vpop.f32.mrf.mxu0
  %v2196 = vpop.f32.mrf.mxu0
  %v2197 = vpop.f32.mrf.mxu0
  %2198 = vdwg.mxu0
  %v2199 = vmul.f32 %v2194, %v2194
  %v2200 = vld [vmem:[%s6] sm:$0xff]
  %v2201 = vld [vmem:[%s6 + $0x8] sm:$0xff]
  %v2202 = vld [vmem:[%s6 + $0x10] sm:$0xff]
  %v2204 = vsel %vm1935, %v2199, 0
  %2206 = vmatprep.subr.mxu0 0.0
  %2207 = vmatpush1.msra.mxu0 0.0
  %2208 = vmatprep.subr.mxu0 0.0
  %2209 = vmatpush1.msra.mxu0 0.0
  %2210 = vmatprep.subr.mxu0 0.0
  %2211 = vmatpush1.msra.mxu0 0.0
  %2212 = vmatprep.subr.mxu0 0.0
  %2213 = vmatpush1.msra.mxu0 0.0
  %2214 = vmatprep.subr.mxu0 0.0
  %2215 = vmatpush1.msra.mxu0 0.0
  %2216 = vmatprep.subr.mxu0 0.0
  %2217 = vmatpush1.msra.mxu0 0.0
  %2218 = vmatprep.subr.mxu0 0.0
  %2219 = vmatpush1.msra.mxu0 0.0
  %2220 = vmatprep.subr.mxu0 0.0
  %2221 = vmatpush1.msra.mxu0 0.0
  %2222 = vmatprep.subr.mxu0 0.0
  %2223 = vmatpush1.msra.mxu0 0.0
  %2224 = vmatprep.subr.mxu0 0.0
  %2225 = vmatpush1.msra.mxu0 0.0
  %2226 = vmatprep.subr.mxu0 0.0
  %2227 = vmatpush1.msra.mxu0 0.0
  %2228 = vmatprep.subr.mxu0 0.0
  %2229 = vmatpush1.msra.mxu0 0.0
  %2230 = vmatprep.subr.mxu0 0.0
  %2231 = vmatpush1.msra.mxu0 0.0
  %2232 = vmatprep.subr.mxu0 0.0
  %2233 = vmatpush1.msra.mxu0 %v2202
  %2234 = vmatprep.subr.mxu0 0.0
  %2235 = vmatpush1.msra.mxu0 %v2201
  %2236 = vmatprep.subr.mxu0 0.0
  %2237 = vmatpush1.msra.mxu0 %v2200
  %2238 = vmatprep.subr.mxu0 0.0
  %2239 = vmatpush2.msra.mxu0 0.0
  %2240 = vmatprep.subr.mxu0 0.0
  %2241 = vmatpush2.msra.mxu0 0.0
  %2242 = vmatprep.subr.mxu0 0.0
  %2243 = vmatpush2.msra.mxu0 0.0
  %2244 = vmatprep.subr.mxu0 0.0
  %2245 = vmatpush2.msra.mxu0 0.0
  %2246 = vmatprep.subr.mxu0 0.0
  %2247 = vmatpush2.msra.mxu0 0.0
  %2248 = vmatprep.subr.mxu0 0.0
  %2249 = vmatpush2.msra.mxu0 0.0
  %2250 = vmatprep.subr.mxu0 0.0
  %2251 = vmatpush2.msra.mxu0 0.0
  %2252 = vmatprep.subr.mxu0 0.0
  %2253 = vmatpush2.msra.mxu0 0.0
  %2254 = vmatprep.subr.mxu0 0.0
  %2255 = vmatpush2.msra.mxu0 0.0
  %2256 = vmatprep.subr.mxu0 0.0
  %2257 = vmatpush2.msra.mxu0 0.0
  %2258 = vmatprep.subr.mxu0 0.0
  %2259 = vmatpush2.msra.mxu0 0.0
  %2260 = vmatprep.subr.mxu0 0.0
  %2261 = vmatpush2.msra.mxu0 0.0
  %2262 = vmatprep.subr.mxu0 0.0
  %2263 = vmatpush2.msra.mxu0 0.0
  %2264 = vmatprep.subr.mxu0 0.0
  %2265 = vmatpush2.msra.mxu0 0.0
  %2266 = vmatprep.subr.mxu0 0.0
  %2267 = vmatpush2.msra.mxu0 0.0
  %2268 = vmatprep.subr.mxu0 0.0
  %2269 = vmatpush2.msra.mxu0 0.0
  %2270 = vmatprep.mubr.f32.mxu0 0.0
  %2271 = vmatmul.mubr.f32.gmra.mxu0 %v2204
  %v2272 = vpop.f32.mrf.mxu0
  %v2273 = vadd.f32 0.0, %v2272
  %v2274 = vpop.f32.mrf.mxu0
  %2275 = vdwg.mxu0
  %v2276 = vrsqrt.pop %v2273
  %v2277 = vmul.f32 %v2273, %v2276
  %vm2278 = vcmp.eq.f32.partialorder %v2273, inf
  %v2279 = vsel %vm2278, %v2273, %v2277
  %vm2280 = vcmp.eq.f32.partialorder %v2273, 0.0
  %v2281 = vand.u32 %v2273, 2147483648
  %v2282 = vsel %vm2280, %v2281, %v2279
  %v2283 = vmax.f32 %v2282, 1e-12
  %v2284 = vrcp.pop %v2283
  %v2285 = vmul.f32 %v2194, %v2284
  %v2286 = vmul.f32 %v2285, 1.0540925
  %2288 = vrot.lane.b32.xlu0 %v2286, 16
  %v2289 = vpop.permute.xlu0 %2288
  %v2291 = vsel %vm1846, %v1800, %v2289
  %vm2292 = vcmask 326656
  %v2293 = vsel %vm2292, %v2291, 0.0
  %2294 = vst [vmem:[%s13] sm:$0x3] %v2293
  // Predicated region
  $region54: #{dnn_module_forward.5} parent=0 // pred_check
    _
  $region55: #{dnn_module_forward.5} parent=0 // pred_check_branch
    %2296 = sbr.rel (0) target = $region57
  $region56: #{dnn_module_forward.5} parent=0 // pred_region
    _
  $region57: #{dnn_module_forward.5} parent=0 // pred_fallthru
    _
  // Predicated region
  $region58: #{dnn_module_forward.5} parent=0 // pred_check
    _
  $region59: #{dnn_module_forward.5} parent=0 // pred_check_branch
    %2298 = sbr.rel (0) target = $region61
  $region60: #{dnn_module_forward.5} parent=0 // pred_region
    _
  $region61: #{dnn_module_forward.5} parent=0 // pred_fallthru
    _

</llo_original>
